<compile_context>
chip_gen: v5e
topology: v5e:2x2
jax: 0.10.0
libtpu: 0.0.40
codegen_flags: <defaults>
</compile_context>

<pallas_src>
import functools
import math

import jax
import jax.numpy as jnp
from jax.experimental import pallas as pl
from jax.experimental.pallas import tpu as pltpu

_HIGHEST = jax.lax.Precision.HIGHEST


# ------------------------------ kernel helpers ------------------------------
def _elu(x):
    # F.elu with alpha=1.  exp(min(x,0))-1 instead of expm1 to stay on ops with
    # guaranteed Mosaic lowering; the cancellation near 0 is ~1 ulp absolute.
    return jnp.where(x > 0, x, jnp.exp(jnp.minimum(x, 0.0)) - 1.0)


def _mm(a, b):
    # f32 MXU matmul; HIGHEST precision made explicit so correctness does not
    # depend on the global matmul-precision config.
    return jnp.dot(a, b, preferred_element_type=jnp.float32, precision=_HIGHEST)


# --------------------------------- the kernel --------------------------------
def _pixelsnail_kernel(layout, img_w, img_s, fold, c, ck,
                       x_ref, img_ref, slab_ref, o_ref):
    x = x_ref[0]       # (SF, C), SF = fold * H*W
    img = img_ref[0]   # (SF, 1)
    sf = x.shape[0]

    def seg(name):
        off, r, cols = layout[name]
        return slab_ref[off:off + r, :cols]

    # -- per-row tap-validity masks for the causal 2x2 conv, hoisted once and
    #    reused by all four causal_conv calls (JAX does not CSE iota/broadcast).
    r_idx = jax.lax.broadcasted_iota(jnp.int32, (sf, 1), 0)
    has_left = (r_idx % img_w) != 0           # not in the first image column
    has_above = (r_idx % img_s) >= img_w      # not in the first image row
    has_al = jnp.logical_and(has_left, has_above)

    def causal_conv(inp, w_flat, b, cout):
        # == PyTorch Conv2d(kernel=2, padding=1)(x)[:, :, :H, :W] in (S, Cin)
        # layout.  w_flat: (Cin, 4*cout), column blocks [center|left|above|al].
        # ONE matmul; per-tap contributions are rolled along S and masked.
        p = _mm(inp, w_flat)
        center = p[:, :cout]
        left = jnp.where(has_left,
                         pltpu.roll(p[:, cout:2 * cout], shift=1, axis=0), 0.0)
        above = jnp.where(has_above,
                          pltpu.roll(p[:, 2 * cout:3 * cout], shift=img_w, axis=0), 0.0)
        above_left = jnp.where(has_al,
                               pltpu.roll(p[:, 3 * cout:4 * cout], shift=img_w + 1, axis=0), 0.0)
        return center + left + above + above_left + b

    def residual_block(hid, wi, bi, wo, bo):
        t = _elu(causal_conv(_elu(hid), wi, bi, c))
        r = causal_conv(t, wo, bo, 2 * c)               # fused [a | gate] conv
        return hid + r[:, :c] * jax.nn.sigmoid(r[:, c:])

    res = residual_block(x, seg("rb0_wi"), seg("rb0_bi"), seg("rb0_wo"), seg("rb0_bo"))
    res = residual_block(res, seg("rb1_wi"), seg("rb1_bi"), seg("rb1_wo"), seg("rb1_bo"))

    # ---- causally masked single-head attention over the flattened image ----
    # q/k/v in one matmul: pos contribution + biases prefolded into a constant
    # additive term, 1/sqrt(ck) prefolded into the q columns, img enters the
    # k/v columns as a rank-1 broadcast (its q columns are zero).
    qkv = _mm(res, seg("w_qkv")) + seg("pos_b_qkv") + img * seg("w_img")
    q = qkv[:, :ck]
    k = qkv[:, ck:2 * ck]
    v = qkv[:, 2 * ck:]

    logits = jax.lax.dot_general(q, k, (((1,), (1,)), ((), ())),
                                 preferred_element_type=jnp.float32,
                                 precision=_HIGHEST)
    # Causal mask generated in-kernel (one iota+compare; no O(S^2) slab DMA).
    # Block-diagonal across folded batch images so attention never leaks.
    ri = jax.lax.broadcasted_iota(jnp.int32, (sf, sf), 0)
    ci = jax.lax.broadcasted_iota(jnp.int32, (sf, sf), 1)
    allowed = ri >= ci
    if fold > 1:
        allowed = jnp.logical_and(allowed, (ri // img_s) == (ci // img_s))
    logits = jnp.where(allowed, logits, -1e30)
    logits = logits - jnp.max(logits, axis=-1, keepdims=True)
    p = jnp.exp(logits)
    # Exact normalization (the approx EUP reciprocal caused the ~6e-3 mismatch).
    p = p / jnp.sum(p, axis=-1, keepdims=True)
    attn = _mm(p, v)
    attn = _mm(attn, seg("w_proj")) + seg("b_proj")

    # ---- output head: elu -> 1x1 conv -> elu per branch, merge, repeat -----
    r_out = _elu(_mm(_elu(res), seg("w_res_out")) + seg("b_res_out"))
    a_out = _elu(_mm(_elu(attn), seg("w_attn_out")) + seg("b_attn_out"))
    out = _elu(_mm(_elu(r_out + a_out), seg("w_out")) + seg("b_out"))
    # NOTE: C=16 (<128 lanes) is fixed by the model, so the store is a masked
    # vst; harmless here since the (S,S) attention dominates the step.
    o_ref[0] = out.astype(o_ref.dtype)


# --------------------------- params + packing glue ---------------------------
def _conv_init(key, cout, cin, k):
    wkey, bkey = jax.random.split(key)
    scale = 1.0 / math.sqrt(cin * k * k)
    w = scale * jax.random.normal(wkey, (cout, cin, k, k), jnp.float32)
    b = scale * jax.random.normal(bkey, (cout,), jnp.float32)
    return w, b


def init_params(key, c, ck, cv, img_c=1, n_res=2):
    assert img_c == 1, "positional encoding always has 2 channels (img_c must be 1)"
    keys = jax.random.split(key, 2 * n_res + 6)
    ki = 0
    params = {"res_blocks": []}
    for _ in range(n_res):
        in_w, in_b = _conv_init(keys[ki], c, c, 2); ki += 1
        out_w, out_b = _conv_init(keys[ki], 2 * c, c, 2); ki += 1
        params["res_blocks"].append(
            {"in_w": in_w, "in_b": in_b, "out_w": out_w, "out_b": out_b})
    q_w, q_b = _conv_init(keys[ki], ck, c + 2 * img_c, 1); ki += 1
    kv_w, kv_b = _conv_init(keys[ki], ck + cv, c + 2 * img_c + img_c, 1); ki += 1
    proj_w, proj_b = _conv_init(keys[ki], cv, cv, 1); ki += 1
    params["attn"] = {"q_w": q_w, "q_b": q_b, "kv_w": kv_w, "kv_b": kv_b,
                      "proj_w": proj_w, "proj_b": proj_b}
    params["res_out_w"], params["res_out_b"] = _conv_init(keys[ki], c, c, 1); ki += 1
    params["attn_out_w"], params["attn_out_b"] = _conv_init(keys[ki], c, cv, 1); ki += 1
    params["out_w"], params["out_b"] = _conv_init(keys[ki], c, c, 1); ki += 1
    return params


def _pack_slab(params, c, ck, cv, h, w, fold):
    """Pack every weight/bias plus the pos-folded qkv term into ONE 128-lane f32
    slab.  Returns (slab, {name: (row_off, rows, cols)}).  Called once per
    parameter set (hoisted out of the per-call path)."""
    s = h * w
    segs = {}

    def conv2x2_flat(wt):
        # (Cout, Cin, 2, 2) -> (Cin, 4*Cout), tap order [center|left|above|above-left]
        taps = (wt[:, :, 1, 1], wt[:, :, 1, 0], wt[:, :, 0, 1], wt[:, :, 0, 0])
        return jnp.concatenate([jnp.transpose(t) for t in taps], axis=1)

    for i, rb in enumerate(params["res_blocks"]):
        segs[f"rb{i}_wi"] = conv2x2_flat(rb["in_w"])
        segs[f"rb{i}_bi"] = rb["in_b"][None, :]
        segs[f"rb{i}_wo"] = conv2x2_flat(rb["out_w"])   # fused [a | gate] halves
        segs[f"rb{i}_bo"] = rb["out_b"][None, :]

    at = params["attn"]
    scale = 1.0 / math.sqrt(ck)
    wq = jnp.transpose(at["q_w"][:, :, 0, 0])     # (c+2, ck); rows = [pos(2), res(c)]
    wkv = jnp.transpose(at["kv_w"][:, :, 0, 0])   # (c+3, ck+cv); rows = [pos, res, img]
    # res -> [q | k | v], q columns pre-scaled by 1/sqrt(ck)
    segs["w_qkv"] = jnp.concatenate([wq[2:] * scale, wkv[2:2 + c]], axis=1)

    # positional encoding, folded with the q/kv biases into a constant additive term
    rows = jnp.broadcast_to((jnp.arange(h, dtype=jnp.float32) / h - 0.5)[:, None], (h, w))
    cols = jnp.broadcast_to((jnp.arange(w, dtype=jnp.float32) / w - 0.5)[None, :], (h, w))
    pos = jnp.stack([rows.reshape(s), cols.reshape(s)], axis=1)           # (s, 2)
    pos_q = (pos @ wq[:2] + at["q_b"][None, :]) * scale                   # (s, ck)
    pos_kv = pos @ wkv[:2] + at["kv_b"][None, :]                          # (s, ck+cv)
    pos_b = jnp.concatenate([pos_q, pos_kv], axis=1)                      # (s, 2ck+cv)
    segs["pos_b_qkv"] = jnp.tile(pos_b, (fold, 1))                        # (fold*s, 2ck+cv)
    segs["w_img"] = jnp.concatenate(
        [jnp.zeros((1, ck), jnp.float32), wkv[2 + c:]], axis=1)           # (1, 2ck+cv)

    segs["w_proj"] = jnp.transpose(at["proj_w"][:, :, 0, 0])
    segs["b_proj"] = at["proj_b"][None, :]
    for name in ("res_out", "attn_out", "out"):
        segs["w_" + name] = jnp.transpose(params[name + "_w"][:, :, 0, 0])
        segs["b_" + name] = params[name + "_b"][None, :]

    layout = {}
    off = 0
    max_cols = 0
    for name, arr in segs.items():
        r, ncols = int(arr.shape[0]), int(arr.shape[1])
        layout[name] = (off, r, ncols)
        off += -(-r // 8) * 8                 # keep every segment 8-row aligned
        max_cols = max(max_cols, ncols)
    total_rows = -(-off // 8) * 8
    width = -(-max_cols // 128) * 128         # 128-lane padded slab
    slab = jnp.zeros((total_rows, width), jnp.float32)
    for name, arr in segs.items():
        o, r, ncols = layout[name]
        slab = slab.at[o:o + r, :ncols].set(arr)
    return slab, layout


def _pick_fold(n):
    """Batch-fold factor.  Single-TensorCore chips (v5e/v6e): fold the whole
    batch into one grid step (fills the MXU M dim, one per-step overhead).
    2-TC chips (v7x / megacore) or unknown: keep >=2 grid points so the
    "parallel" grid axis can shard across cores."""
    if n <= 1:
        return 1
    try:
        kind = jax.devices()[0].device_kind.lower()
    except Exception:
        kind = ""
    single_tc = any(t in kind for t in ("v5 lite", "v5e", "v6 lite", "v6e", "v6"))
    if single_tc:
        return n
    for f in range(n // 2, 0, -1):
        if n % f == 0:
            return f
    return 1


def make_pixelsnail_forward(params, c, ck, cv, h, w, n, fold=None):
    """Pack the weight slab ONCE and return a jitted forward(x, img) -> NCHW."""
    s = h * w
    if fold is None:
        fold = _pick_fold(n)
    assert n % fold == 0
    nb, sf = n // fold, fold * s
    slab, layout = _pack_slab(params, c, ck, cv, h, w, fold)
    kernel = functools.partial(_pixelsnail_kernel, layout, w, s, fold, c, ck)

    pallas_fn = pl.pallas_call(
        kernel,
        grid=(nb,),
        in_specs=[
            pl.BlockSpec((1, sf, c), lambda b: (b, 0, 0)),
            pl.BlockSpec((1, sf, 1), lambda b: (b, 0, 0)),
            # grid-invariant weight slab: constant index_map, never re-fetched
            pl.BlockSpec(slab.shape, lambda b: (0, 0)),
        ],
        out_specs=pl.BlockSpec((1, sf, c), lambda b: (b, 0, 0)),
        out_shape=jax.ShapeDtypeStruct((nb, sf, c), jnp.float32),
        compiler_params=pltpu.CompilerParams(
            dimension_semantics=("parallel",)),   # batch blocks independent
    )

    @jax.jit
    def forward(x_nchw, img_nchw):
        x_sc = jnp.transpose(x_nchw, (0, 2, 3, 1)).reshape(nb, sf, c)
        img_sc = jnp.transpose(img_nchw, (0, 2, 3, 1)).reshape(nb, sf, 1)
        out_sc = pallas_fn(x_sc, img_sc, slab)
        return jnp.transpose(out_sc.reshape(n, h, w, c), (0, 3, 1, 2))

    return forward


# ----------------------------- pure-JAX reference ----------------------------
def _ref_conv(x, w, b, pad):
    out = jax.lax.conv_general_dilated(
        x, w, window_strides=(1, 1),
        padding=[(pad, pad), (pad, pad)],
        dimension_numbers=("NCHW", "OIHW", "NCHW"))
    return out + b[None, :, None, None]


def _ref_residual_block(x, p):
    _, c, h, w = x.shape
    out = jax.nn.elu(_ref_conv(jax.nn.elu(x), p["in_w"], p["in_b"], 1))[:, :, :h, :w]
    g = _ref_conv(out, p["out_w"], p["out_b"], 1)[:, :, :h, :w]
    a, gate = g[:, :c], g[:, c:]
    return x + a * jax.nn.sigmoid(gate)


def _ref_attention(x, extra, p, ck, cv):
    n, _, h, w = x.shape
    s = h * w
    q = _ref_conv(x, p["q_w"], p["q_b"], 0)
    kv = _ref_conv(jnp.concatenate([x, extra], axis=1), p["kv_w"], p["kv_b"], 0)
    k, v = kv[:, :ck], kv[:, ck:]

    def to_seq(t):
        return jnp.transpose(t.reshape(n, t.shape[1], s), (0, 2, 1))

    q, k, v = to_seq(q), to_seq(k), to_seq(v)
    logits = jnp.einsum("nsc,ntc->nst", q, k) / math.sqrt(ck)
    mask = jnp.tril(jnp.ones((s, s)))
    logits = jnp.where(mask == 0, -jnp.inf, logits)
    attn = jax.nn.softmax(logits, axis=-1)
    out = jnp.einsum("nst,ntc->nsc", attn, v)
    out = jnp.transpose(out, (0, 2, 1)).reshape(n, cv, h, w)
    return _ref_conv(out, p["proj_w"], p["proj_b"], 0)


def _ref_pos_encoding(shape):
    n, _, h, w = shape
    rows = (jnp.arange(h, dtype=jnp.float32) / h - 0.5)[None, None, :, None]
    cols = (jnp.arange(w, dtype=jnp.float32) / w - 0.5)[None, None, None, :]
    zeros = jnp.zeros((n, 1, h, w), jnp.float32)
    return jnp.concatenate([rows + zeros, cols + zeros], axis=1)


def pixelsnail_block_reference(x, img, params, ck, cv):
    res = x
    for rb in params["res_blocks"]:
        res = _ref_residual_block(res, rb)
    pos = _ref_pos_encoding(img.shape)
    attn = _ref_attention(jnp.concatenate([pos, res], axis=1), img,
                          params["attn"], ck, cv)
    r = jax.nn.elu(_ref_conv(jax.nn.elu(res), params["res_out_w"], params["res_out_b"], 0))
    a = jax.nn.elu(_ref_conv(jax.nn.elu(attn), params["attn_out_w"], params["attn_out_b"], 0))
    return jax.nn.elu(_ref_conv(jax.nn.elu(r + a), params["out_w"], params["out_b"], 0))


# ------------------------------------ main -----------------------------------
if __name__ == "__main__":
    jax.config.update("jax_default_matmul_precision", "float32")

    N, C, H, W = 2, 16, 8, 8          # n_channels=16, 8x8 images
    CK, CV, IMG_C = 4, 32, 1          # attention key/value channels, img channels

    key = jax.random.PRNGKey(0)
    kx, kimg, kp = jax.random.split(key, 3)
    x = jax.random.normal(kx, (N, C, H, W), jnp.float32)
    input_img = jax.random.normal(kimg, (N, IMG_C, H, W), jnp.float32)
    params = init_params(kp, C, CK, CV, IMG_C, n_res=2)

    forward = make_pixelsnail_forward(params, C, CK, CV, H, W, N)
    out = jax.block_until_ready(forward(x, input_img))

    ref = pixelsnail_block_reference(x, input_img, params, CK, CV)
    assert out.shape == (N, C, H, W)
    # Exact softmax normalization + HIGHEST-precision matmuls: expected error
    # ~1e-5; 2e-3 leaves generous headroom for MXU f32 pass rounding.
    if bool(jnp.allclose(out, ref, atol=2e-3, rtol=2e-3)):
        print("KERNEL_OK")
    else:
        print("MISMATCH max_abs_err=", float(jnp.max(jnp.abs(out - ref))))
</pallas_src>

<mosaic_0001>
module attributes {stable_mosaic.version = 11 : i64} {
  func.func @_pixelsnail_kernel(%arg0: i32, %arg1: memref<1x64x16xf32, #tpu.memory_space<vmem>>, %arg2: memref<1x64x1xf32, #tpu.memory_space<vmem>>, %arg3: memref<312x128xf32, #tpu.memory_space<vmem>>, %arg4: memref<1x64x16xf32, #tpu.memory_space<vmem>>) attributes {dimension_semantics = [#tpu.dimension_semantics<parallel>], iteration_bounds = array<i64: 2>, scalar_prefetch = 0 : i64, scratch_operands = 0 : i64, tpu.core_type = #tpu.core_type<tc>, window_params = [{transform_indices = @transform_0, window_bounds = array<i64: 1, 64, 16>}, {transform_indices = @transform_1, window_bounds = array<i64: 1, 64, 1>}, {pipeline_mode = #tpu.pipeline_mode<synchronous>, transform_indices = @transform_2, window_bounds = array<i64: 312, 128>}, {transform_indices = @transform_3, window_bounds = array<i64: 1, 64, 16>}]} {
    %c0 = arith.constant 0 : index
    %c0_0 = arith.constant 0 : index
    %c0_1 = arith.constant 0 : index
    %0 = vector.load %arg1[%c0, %c0_0, %c0_1] : memref<1x64x16xf32, #tpu.memory_space<vmem>>, vector<1x64x16xf32>
    %1 = vector.shape_cast %0 : vector<1x64x16xf32> to vector<64x16xf32>
    %c0_2 = arith.constant 0 : index
    %c0_3 = arith.constant 0 : index
    %c0_4 = arith.constant 0 : index
    %2 = vector.load %arg2[%c0_2, %c0_3, %c0_4] : memref<1x64x1xf32, #tpu.memory_space<vmem>>, vector<1x64x1xf32>
    %3 = vector.shape_cast %2 : vector<1x64x1xf32> to vector<64x1xf32>
    %4 = tpu.iota {dimensions = array<i32: 0>} : vector<64x1xi32>
    %c8_i32 = arith.constant 8 : i32
    %c0_i32 = arith.constant 0 : i32
    %5 = arith.cmpi eq, %c8_i32, %c0_i32 : i32
    %c1_i32 = arith.constant 1 : i32
    %6 = arith.select %5, %c1_i32, %c8_i32 : i32
    %7 = vector.broadcast %6 : i32 to vector<64x1xi32>
    %8 = arith.remsi %4, %7 : vector<64x1xi32>
    %c0_i32_5 = arith.constant 0 : i32
    %9 = vector.broadcast %c0_i32_5 : i32 to vector<64x1xi32>
    %10 = arith.cmpi ne, %8, %9 : vector<64x1xi32>
    %c0_i32_6 = arith.constant 0 : i32
    %11 = vector.broadcast %c0_i32_6 : i32 to vector<64x1xi32>
    %12 = arith.cmpi slt, %8, %11 : vector<64x1xi32>
    %c0_i32_7 = arith.constant 0 : i32
    %13 = arith.cmpi slt, %6, %c0_i32_7 : i32
    %14 = vector.broadcast %13 : i1 to vector<64x1xi1>
    %15 = vector.broadcast %14 : vector<64x1xi1> to vector<64x1xi1>
    %16 = arith.xori %12, %15 : vector<64x1xi1>
    %17 = arith.andi %16, %10 : vector<64x1xi1>
    %18 = vector.broadcast %6 : i32 to vector<64x1xi32>
    %19 = arith.addi %8, %18 : vector<64x1xi32>
    %20 = arith.select %17, %19, %8 : vector<64x1xi1>, vector<64x1xi32>
    %c0_i32_8 = arith.constant 0 : i32
    %21 = vector.broadcast %c0_i32_8 : i32 to vector<64x1xi32>
    %22 = arith.cmpi ne, %20, %21 : vector<64x1xi32>
    %c64_i32 = arith.constant 64 : i32
    %c0_i32_9 = arith.constant 0 : i32
    %23 = arith.cmpi eq, %c64_i32, %c0_i32_9 : i32
    %c1_i32_10 = arith.constant 1 : i32
    %24 = arith.select %23, %c1_i32_10, %c64_i32 : i32
    %25 = vector.broadcast %24 : i32 to vector<64x1xi32>
    %26 = arith.remsi %4, %25 : vector<64x1xi32>
    %c0_i32_11 = arith.constant 0 : i32
    %27 = vector.broadcast %c0_i32_11 : i32 to vector<64x1xi32>
    %28 = arith.cmpi ne, %26, %27 : vector<64x1xi32>
    %c0_i32_12 = arith.constant 0 : i32
    %29 = vector.broadcast %c0_i32_12 : i32 to vector<64x1xi32>
    %30 = arith.cmpi slt, %26, %29 : vector<64x1xi32>
    %c0_i32_13 = arith.constant 0 : i32
    %31 = arith.cmpi slt, %24, %c0_i32_13 : i32
    %32 = vector.broadcast %31 : i1 to vector<64x1xi1>
    %33 = vector.broadcast %32 : vector<64x1xi1> to vector<64x1xi1>
    %34 = arith.xori %30, %33 : vector<64x1xi1>
    %35 = arith.andi %34, %28 : vector<64x1xi1>
    %36 = vector.broadcast %24 : i32 to vector<64x1xi32>
    %37 = arith.addi %26, %36 : vector<64x1xi32>
    %38 = arith.select %35, %37, %26 : vector<64x1xi1>, vector<64x1xi32>
    %c8_i32_14 = arith.constant 8 : i32
    %39 = vector.broadcast %c8_i32_14 : i32 to vector<64x1xi32>
    %40 = arith.cmpi sge, %38, %39 : vector<64x1xi32>
    %41 = arith.andi %22, %40 : vector<64x1xi1>
    %c0_15 = arith.constant 0 : index
    %c0_16 = arith.constant 0 : index
    %42 = vector.load %arg3[%c0_15, %c0_16] : memref<312x128xf32, #tpu.memory_space<vmem>>, vector<16x64xf32>
    %c16 = arith.constant 16 : index
    %c0_17 = arith.constant 0 : index
    %43 = vector.load %arg3[%c16, %c0_17] : memref<312x128xf32, #tpu.memory_space<vmem>>, vector<1x16xf32>
    %c24 = arith.constant 24 : index
    %c0_18 = arith.constant 0 : index
    %44 = vector.load %arg3[%c24, %c0_18] : memref<312x128xf32, #tpu.memory_space<vmem>>, vector<16x128xf32>
    %c40 = arith.constant 40 : index
    %c0_19 = arith.constant 0 : index
    %45 = vector.load %arg3[%c40, %c0_19] : memref<312x128xf32, #tpu.memory_space<vmem>>, vector<1x32xf32>
    %cst = arith.constant 0.000000e+00 : f32
    %46 = vector.broadcast %cst : f32 to vector<64x16xf32>
    %47 = arith.cmpf ogt, %1, %46 : vector<64x16xf32>
    %cst_20 = arith.constant 0.000000e+00 : f32
    %48 = vector.broadcast %cst_20 : f32 to vector<64x16xf32>
    %49 = arith.minimumf %1, %48 : vector<64x16xf32>
    %50 = math.exp %49 : vector<64x16xf32>
    %cst_21 = arith.constant 1.000000e+00 : f32
    %51 = vector.broadcast %cst_21 : f32 to vector<64x16xf32>
    %52 = arith.subf %50, %51 : vector<64x16xf32>
    %53 = arith.select %47, %1, %52 : vector<64x16xi1>, vector<64x16xf32>
    %cst_22 = arith.constant dense<0.000000e+00> : vector<64x64xf32>
    %54 = tpu.matmul %53, %42, %cst_22 {dimension_numbers = #tpu.dot_dimension_numbers<[1], [0], [0], [1], [0, 0, 1, 1], [], []>, precision = #tpu.contract_precision<fp32>} : vector<64x16xf32>, vector<16x64xf32>, vector<64x64xf32> -> vector<64x64xf32>
    %55 = vector.extract_strided_slice %54 {offsets = [0, 0], sizes = [64, 16], strides = [1, 1]} : vector<64x64xf32> to vector<64x16xf32>
    %56 = vector.extract_strided_slice %54 {offsets = [0, 16], sizes = [64, 16], strides = [1, 1]} : vector<64x64xf32> to vector<64x16xf32>
    %c1_i32_23 = arith.constant 1 : i32
    %57 = tpu.dynamic_rotate %56 by %c1_i32_23 dim 0 : vector<64x16xf32>, i32 -> vector<64x16xf32>
    %cst_24 = arith.constant 0.000000e+00 : f32
    %58 = vector.shape_cast %22 : vector<64x1xi1> to vector<64x1xi1>
    %59 = vector.broadcast %58 : vector<64x1xi1> to vector<64x16xi1>
    %60 = vector.broadcast %cst_24 : f32 to vector<64x16xf32>
    %61 = arith.select %59, %57, %60 : vector<64x16xi1>, vector<64x16xf32>
    %62 = vector.extract_strided_slice %54 {offsets = [0, 32], sizes = [64, 16], strides = [1, 1]} : vector<64x64xf32> to vector<64x16xf32>
    %c8_i32_25 = arith.constant 8 : i32
    %63 = tpu.dynamic_rotate %62 by %c8_i32_25 dim 0 : vector<64x16xf32>, i32 -> vector<64x16xf32>
    %cst_26 = arith.constant 0.000000e+00 : f32
    %64 = vector.shape_cast %40 : vector<64x1xi1> to vector<64x1xi1>
    %65 = vector.broadcast %64 : vector<64x1xi1> to vector<64x16xi1>
    %66 = vector.broadcast %cst_26 : f32 to vector<64x16xf32>
    %67 = arith.select %65, %63, %66 : vector<64x16xi1>, vector<64x16xf32>
    %68 = vector.extract_strided_slice %54 {offsets = [0, 48], sizes = [64, 16], strides = [1, 1]} : vector<64x64xf32> to vector<64x16xf32>
    %c9_i32 = arith.constant 9 : i32
    %69 = tpu.dynamic_rotate %68 by %c9_i32 dim 0 : vector<64x16xf32>, i32 -> vector<64x16xf32>
    %cst_27 = arith.constant 0.000000e+00 : f32
    %70 = vector.shape_cast %41 : vector<64x1xi1> to vector<64x1xi1>
    %71 = vector.broadcast %70 : vector<64x1xi1> to vector<64x16xi1>
    %72 = vector.broadcast %cst_27 : f32 to vector<64x16xf32>
    %73 = arith.select %71, %69, %72 : vector<64x16xi1>, vector<64x16xf32>
    %74 = arith.addf %55, %61 : vector<64x16xf32>
    %75 = arith.addf %74, %67 : vector<64x16xf32>
    %76 = arith.addf %75, %73 : vector<64x16xf32>
    %77 = vector.broadcast %43 : vector<1x16xf32> to vector<64x16xf32>
    %78 = arith.addf %76, %77 : vector<64x16xf32>
    %cst_28 = arith.constant 0.000000e+00 : f32
    %79 = vector.broadcast %cst_28 : f32 to vector<64x16xf32>
    %80 = arith.cmpf ogt, %78, %79 : vector<64x16xf32>
    %cst_29 = arith.constant 0.000000e+00 : f32
    %81 = vector.broadcast %cst_29 : f32 to vector<64x16xf32>
    %82 = arith.minimumf %78, %81 : vector<64x16xf32>
    %83 = math.exp %82 : vector<64x16xf32>
    %cst_30 = arith.constant 1.000000e+00 : f32
    %84 = vector.broadcast %cst_30 : f32 to vector<64x16xf32>
    %85 = arith.subf %83, %84 : vector<64x16xf32>
    %86 = arith.select %80, %78, %85 : vector<64x16xi1>, vector<64x16xf32>
    %cst_31 = arith.constant dense<0.000000e+00> : vector<64x128xf32>
    %87 = tpu.matmul %86, %44, %cst_31 {dimension_numbers = #tpu.dot_dimension_numbers<[1], [0], [0], [1], [0, 0, 1, 1], [], []>, precision = #tpu.contract_precision<fp32>} : vector<64x16xf32>, vector<16x128xf32>, vector<64x128xf32> -> vector<64x128xf32>
    %88 = vector.extract_strided_slice %87 {offsets = [0, 0], sizes = [64, 32], strides = [1, 1]} : vector<64x128xf32> to vector<64x32xf32>
    %89 = vector.extract_strided_slice %87 {offsets = [0, 32], sizes = [64, 32], strides = [1, 1]} : vector<64x128xf32> to vector<64x32xf32>
    %c1_i32_32 = arith.constant 1 : i32
    %90 = tpu.dynamic_rotate %89 by %c1_i32_32 dim 0 : vector<64x32xf32>, i32 -> vector<64x32xf32>
    %cst_33 = arith.constant 0.000000e+00 : f32
    %91 = vector.shape_cast %22 : vector<64x1xi1> to vector<64x1xi1>
    %92 = vector.broadcast %91 : vector<64x1xi1> to vector<64x32xi1>
    %93 = vector.broadcast %cst_33 : f32 to vector<64x32xf32>
    %94 = arith.select %92, %90, %93 : vector<64x32xi1>, vector<64x32xf32>
    %95 = vector.extract_strided_slice %87 {offsets = [0, 64], sizes = [64, 32], strides = [1, 1]} : vector<64x128xf32> to vector<64x32xf32>
    %c8_i32_34 = arith.constant 8 : i32
    %96 = tpu.dynamic_rotate %95 by %c8_i32_34 dim 0 : vector<64x32xf32>, i32 -> vector<64x32xf32>
    %cst_35 = arith.constant 0.000000e+00 : f32
    %97 = vector.shape_cast %40 : vector<64x1xi1> to vector<64x1xi1>
    %98 = vector.broadcast %97 : vector<64x1xi1> to vector<64x32xi1>
    %99 = vector.broadcast %cst_35 : f32 to vector<64x32xf32>
    %100 = arith.select %98, %96, %99 : vector<64x32xi1>, vector<64x32xf32>
    %101 = vector.extract_strided_slice %87 {offsets = [0, 96], sizes = [64, 32], strides = [1, 1]} : vector<64x128xf32> to vector<64x32xf32>
    %c9_i32_36 = arith.constant 9 : i32
    %102 = tpu.dynamic_rotate %101 by %c9_i32_36 dim 0 : vector<64x32xf32>, i32 -> vector<64x32xf32>
    %cst_37 = arith.constant 0.000000e+00 : f32
    %103 = vector.shape_cast %41 : vector<64x1xi1> to vector<64x1xi1>
    %104 = vector.broadcast %103 : vector<64x1xi1> to vector<64x32xi1>
    %105 = vector.broadcast %cst_37 : f32 to vector<64x32xf32>
    %106 = arith.select %104, %102, %105 : vector<64x32xi1>, vector<64x32xf32>
    %107 = arith.addf %88, %94 : vector<64x32xf32>
    %108 = arith.addf %107, %100 : vector<64x32xf32>
    %109 = arith.addf %108, %106 : vector<64x32xf32>
    %110 = vector.broadcast %45 : vector<1x32xf32> to vector<64x32xf32>
    %111 = arith.addf %109, %110 : vector<64x32xf32>
    %112 = vector.extract_strided_slice %111 {offsets = [0, 0], sizes = [64, 16], strides = [1, 1]} : vector<64x32xf32> to vector<64x16xf32>
    %113 = vector.extract_strided_slice %111 {offsets = [0, 16], sizes = [64, 16], strides = [1, 1]} : vector<64x32xf32> to vector<64x16xf32>
    %114 = arith.negf %113 : vector<64x16xf32>
    %115 = math.exp %114 : vector<64x16xf32>
    %cst_38 = arith.constant 1.000000e+00 : f32
    %116 = vector.broadcast %cst_38 : f32 to vector<64x16xf32>
    %117 = arith.addf %116, %115 : vector<64x16xf32>
    %118 = arith.divf %116, %117 : vector<64x16xf32>
    %119 = arith.mulf %112, %118 : vector<64x16xf32>
    %120 = arith.addf %1, %119 : vector<64x16xf32>
    %c48 = arith.constant 48 : index
    %c0_39 = arith.constant 0 : index
    %121 = vector.load %arg3[%c48, %c0_39] : memref<312x128xf32, #tpu.memory_space<vmem>>, vector<16x64xf32>
    %c64 = arith.constant 64 : index
    %c0_40 = arith.constant 0 : index
    %122 = vector.load %arg3[%c64, %c0_40] : memref<312x128xf32, #tpu.memory_space<vmem>>, vector<1x16xf32>
    %c72 = arith.constant 72 : index
    %c0_41 = arith.constant 0 : index
    %123 = vector.load %arg3[%c72, %c0_41] : memref<312x128xf32, #tpu.memory_space<vmem>>, vector<16x128xf32>
    %c88 = arith.constant 88 : index
    %c0_42 = arith.constant 0 : index
    %124 = vector.load %arg3[%c88, %c0_42] : memref<312x128xf32, #tpu.memory_space<vmem>>, vector<1x32xf32>
    %cst_43 = arith.constant 0.000000e+00 : f32
    %125 = vector.broadcast %cst_43 : f32 to vector<64x16xf32>
    %126 = arith.cmpf ogt, %120, %125 : vector<64x16xf32>
    %cst_44 = arith.constant 0.000000e+00 : f32
    %127 = vector.broadcast %cst_44 : f32 to vector<64x16xf32>
    %128 = arith.minimumf %120, %127 : vector<64x16xf32>
    %129 = math.exp %128 : vector<64x16xf32>
    %cst_45 = arith.constant 1.000000e+00 : f32
    %130 = vector.broadcast %cst_45 : f32 to vector<64x16xf32>
    %131 = arith.subf %129, %130 : vector<64x16xf32>
    %132 = arith.select %126, %120, %131 : vector<64x16xi1>, vector<64x16xf32>
    %cst_46 = arith.constant dense<0.000000e+00> : vector<64x64xf32>
    %133 = tpu.matmul %132, %121, %cst_46 {dimension_numbers = #tpu.dot_dimension_numbers<[1], [0], [0], [1], [0, 0, 1, 1], [], []>, precision = #tpu.contract_precision<fp32>} : vector<64x16xf32>, vector<16x64xf32>, vector<64x64xf32> -> vector<64x64xf32>
    %134 = vector.extract_strided_slice %133 {offsets = [0, 0], sizes = [64, 16], strides = [1, 1]} : vector<64x64xf32> to vector<64x16xf32>
    %135 = vector.extract_strided_slice %133 {offsets = [0, 16], sizes = [64, 16], strides = [1, 1]} : vector<64x64xf32> to vector<64x16xf32>
    %c1_i32_47 = arith.constant 1 : i32
    %136 = tpu.dynamic_rotate %135 by %c1_i32_47 dim 0 : vector<64x16xf32>, i32 -> vector<64x16xf32>
    %cst_48 = arith.constant 0.000000e+00 : f32
    %137 = vector.shape_cast %22 : vector<64x1xi1> to vector<64x1xi1>
    %138 = vector.broadcast %137 : vector<64x1xi1> to vector<64x16xi1>
    %139 = vector.broadcast %cst_48 : f32 to vector<64x16xf32>
    %140 = arith.select %138, %136, %139 : vector<64x16xi1>, vector<64x16xf32>
    %141 = vector.extract_strided_slice %133 {offsets = [0, 32], sizes = [64, 16], strides = [1, 1]} : vector<64x64xf32> to vector<64x16xf32>
    %c8_i32_49 = arith.constant 8 : i32
    %142 = tpu.dynamic_rotate %141 by %c8_i32_49 dim 0 : vector<64x16xf32>, i32 -> vector<64x16xf32>
    %cst_50 = arith.constant 0.000000e+00 : f32
    %143 = vector.shape_cast %40 : vector<64x1xi1> to vector<64x1xi1>
    %144 = vector.broadcast %143 : vector<64x1xi1> to vector<64x16xi1>
    %145 = vector.broadcast %cst_50 : f32 to vector<64x16xf32>
    %146 = arith.select %144, %142, %145 : vector<64x16xi1>, vector<64x16xf32>
    %147 = vector.extract_strided_slice %133 {offsets = [0, 48], sizes = [64, 16], strides = [1, 1]} : vector<64x64xf32> to vector<64x16xf32>
    %c9_i32_51 = arith.constant 9 : i32
    %148 = tpu.dynamic_rotate %147 by %c9_i32_51 dim 0 : vector<64x16xf32>, i32 -> vector<64x16xf32>
    %cst_52 = arith.constant 0.000000e+00 : f32
    %149 = vector.shape_cast %41 : vector<64x1xi1> to vector<64x1xi1>
    %150 = vector.broadcast %149 : vector<64x1xi1> to vector<64x16xi1>
    %151 = vector.broadcast %cst_52 : f32 to vector<64x16xf32>
    %152 = arith.select %150, %148, %151 : vector<64x16xi1>, vector<64x16xf32>
    %153 = arith.addf %134, %140 : vector<64x16xf32>
    %154 = arith.addf %153, %146 : vector<64x16xf32>
    %155 = arith.addf %154, %152 : vector<64x16xf32>
    %156 = vector.broadcast %122 : vector<1x16xf32> to vector<64x16xf32>
    %157 = arith.addf %155, %156 : vector<64x16xf32>
    %cst_53 = arith.constant 0.000000e+00 : f32
    %158 = vector.broadcast %cst_53 : f32 to vector<64x16xf32>
    %159 = arith.cmpf ogt, %157, %158 : vector<64x16xf32>
    %cst_54 = arith.constant 0.000000e+00 : f32
    %160 = vector.broadcast %cst_54 : f32 to vector<64x16xf32>
    %161 = arith.minimumf %157, %160 : vector<64x16xf32>
    %162 = math.exp %161 : vector<64x16xf32>
    %cst_55 = arith.constant 1.000000e+00 : f32
    %163 = vector.broadcast %cst_55 : f32 to vector<64x16xf32>
    %164 = arith.subf %162, %163 : vector<64x16xf32>
    %165 = arith.select %159, %157, %164 : vector<64x16xi1>, vector<64x16xf32>
    %cst_56 = arith.constant dense<0.000000e+00> : vector<64x128xf32>
    %166 = tpu.matmul %165, %123, %cst_56 {dimension_numbers = #tpu.dot_dimension_numbers<[1], [0], [0], [1], [0, 0, 1, 1], [], []>, precision = #tpu.contract_precision<fp32>} : vector<64x16xf32>, vector<16x128xf32>, vector<64x128xf32> -> vector<64x128xf32>
    %167 = vector.extract_strided_slice %166 {offsets = [0, 0], sizes = [64, 32], strides = [1, 1]} : vector<64x128xf32> to vector<64x32xf32>
    %168 = vector.extract_strided_slice %166 {offsets = [0, 32], sizes = [64, 32], strides = [1, 1]} : vector<64x128xf32> to vector<64x32xf32>
    %c1_i32_57 = arith.constant 1 : i32
    %169 = tpu.dynamic_rotate %168 by %c1_i32_57 dim 0 : vector<64x32xf32>, i32 -> vector<64x32xf32>
    %cst_58 = arith.constant 0.000000e+00 : f32
    %170 = vector.shape_cast %22 : vector<64x1xi1> to vector<64x1xi1>
    %171 = vector.broadcast %170 : vector<64x1xi1> to vector<64x32xi1>
    %172 = vector.broadcast %cst_58 : f32 to vector<64x32xf32>
    %173 = arith.select %171, %169, %172 : vector<64x32xi1>, vector<64x32xf32>
    %174 = vector.extract_strided_slice %166 {offsets = [0, 64], sizes = [64, 32], strides = [1, 1]} : vector<64x128xf32> to vector<64x32xf32>
    %c8_i32_59 = arith.constant 8 : i32
    %175 = tpu.dynamic_rotate %174 by %c8_i32_59 dim 0 : vector<64x32xf32>, i32 -> vector<64x32xf32>
    %cst_60 = arith.constant 0.000000e+00 : f32
    %176 = vector.shape_cast %40 : vector<64x1xi1> to vector<64x1xi1>
    %177 = vector.broadcast %176 : vector<64x1xi1> to vector<64x32xi1>
    %178 = vector.broadcast %cst_60 : f32 to vector<64x32xf32>
    %179 = arith.select %177, %175, %178 : vector<64x32xi1>, vector<64x32xf32>
    %180 = vector.extract_strided_slice %166 {offsets = [0, 96], sizes = [64, 32], strides = [1, 1]} : vector<64x128xf32> to vector<64x32xf32>
    %c9_i32_61 = arith.constant 9 : i32
    %181 = tpu.dynamic_rotate %180 by %c9_i32_61 dim 0 : vector<64x32xf32>, i32 -> vector<64x32xf32>
    %cst_62 = arith.constant 0.000000e+00 : f32
    %182 = vector.shape_cast %41 : vector<64x1xi1> to vector<64x1xi1>
    %183 = vector.broadcast %182 : vector<64x1xi1> to vector<64x32xi1>
    %184 = vector.broadcast %cst_62 : f32 to vector<64x32xf32>
    %185 = arith.select %183, %181, %184 : vector<64x32xi1>, vector<64x32xf32>
    %186 = arith.addf %167, %173 : vector<64x32xf32>
    %187 = arith.addf %186, %179 : vector<64x32xf32>
    %188 = arith.addf %187, %185 : vector<64x32xf32>
    %189 = vector.broadcast %124 : vector<1x32xf32> to vector<64x32xf32>
    %190 = arith.addf %188, %189 : vector<64x32xf32>
    %191 = vector.extract_strided_slice %190 {offsets = [0, 0], sizes = [64, 16], strides = [1, 1]} : vector<64x32xf32> to vector<64x16xf32>
    %192 = vector.extract_strided_slice %190 {offsets = [0, 16], sizes = [64, 16], strides = [1, 1]} : vector<64x32xf32> to vector<64x16xf32>
    %193 = arith.negf %192 : vector<64x16xf32>
    %194 = math.exp %193 : vector<64x16xf32>
    %cst_63 = arith.constant 1.000000e+00 : f32
    %195 = vector.broadcast %cst_63 : f32 to vector<64x16xf32>
    %196 = arith.addf %195, %194 : vector<64x16xf32>
    %197 = arith.divf %195, %196 : vector<64x16xf32>
    %198 = arith.mulf %191, %197 : vector<64x16xf32>
    %199 = arith.addf %120, %198 : vector<64x16xf32>
    %c96 = arith.constant 96 : index
    %c0_64 = arith.constant 0 : index
    %200 = vector.load %arg3[%c96, %c0_64] : memref<312x128xf32, #tpu.memory_space<vmem>>, vector<16x40xf32>
    %cst_65 = arith.constant dense<0.000000e+00> : vector<64x40xf32>
    %201 = tpu.matmul %199, %200, %cst_65 {dimension_numbers = #tpu.dot_dimension_numbers<[1], [0], [0], [1], [0, 0, 1, 1], [], []>, precision = #tpu.contract_precision<fp32>} : vector<64x16xf32>, vector<16x40xf32>, vector<64x40xf32> -> vector<64x40xf32>
    %c112 = arith.constant 112 : index
    %c0_66 = arith.constant 0 : index
    %202 = vector.load %arg3[%c112, %c0_66] : memref<312x128xf32, #tpu.memory_space<vmem>>, vector<64x40xf32>
    %203 = arith.addf %201, %202 : vector<64x40xf32>
    %c176 = arith.constant 176 : index
    %c0_67 = arith.constant 0 : index
    %204 = vector.load %arg3[%c176, %c0_67] : memref<312x128xf32, #tpu.memory_space<vmem>>, vector<1x40xf32>
    %205 = vector.broadcast %3 : vector<64x1xf32> to vector<64x40xf32>
    %206 = vector.broadcast %204 : vector<1x40xf32> to vector<64x40xf32>
    %207 = arith.mulf %205, %206 : vector<64x40xf32>
    %208 = arith.addf %203, %207 : vector<64x40xf32>
    %209 = vector.extract_strided_slice %208 {offsets = [0, 0], sizes = [64, 4], strides = [1, 1]} : vector<64x40xf32> to vector<64x4xf32>
    %210 = vector.extract_strided_slice %208 {offsets = [0, 4], sizes = [64, 4], strides = [1, 1]} : vector<64x40xf32> to vector<64x4xf32>
    %211 = vector.extract_strided_slice %208 {offsets = [0, 8], sizes = [64, 32], strides = [1, 1]} : vector<64x40xf32> to vector<64x32xf32>
    %cst_68 = arith.constant dense<0.000000e+00> : vector<64x64xf32>
    %212 = tpu.matmul %209, %210, %cst_68 {dimension_numbers = #tpu.dot_dimension_numbers<[1], [1], [0], [0], [0, 0, 1, 0], [], []>, precision = #tpu.contract_precision<fp32>} : vector<64x4xf32>, vector<64x4xf32>, vector<64x64xf32> -> vector<64x64xf32>
    %213 = tpu.iota {dimensions = array<i32: 0>} : vector<64x64xi32>
    %214 = tpu.iota {dimensions = array<i32: 1>} : vector<64x64xi32>
    %215 = arith.cmpi sge, %213, %214 : vector<64x64xi32>
    %cst_69 = arith.constant -1.000000e+30 : f32
    %216 = vector.broadcast %cst_69 : f32 to vector<64x64xf32>
    %217 = arith.select %215, %212, %216 : vector<64x64xi1>, vector<64x64xf32>
    %cst_70 = arith.constant dense<0xFF800000> : vector<64xf32>
    %218 = vector.multi_reduction <maximumf>, %217, %cst_70 [1] : vector<64x64xf32> to vector<64xf32>
    %219 = vector.shape_cast %218 : vector<64xf32> to vector<64x1xf32>
    %220 = vector.broadcast %219 : vector<64x1xf32> to vector<64x64xf32>
    %221 = arith.subf %217, %220 : vector<64x64xf32>
    %222 = math.exp %221 : vector<64x64xf32>
    %cst_71 = arith.constant dense<0.000000e+00> : vector<64xf32>
    %223 = vector.multi_reduction <add>, %222, %cst_71 [1] : vector<64x64xf32> to vector<64xf32>
    %224 = vector.shape_cast %223 : vector<64xf32> to vector<64x1xf32>
    %225 = vector.broadcast %224 : vector<64x1xf32> to vector<64x64xf32>
    %226 = arith.divf %222, %225 : vector<64x64xf32>
    %cst_72 = arith.constant dense<0.000000e+00> : vector<64x32xf32>
    %227 = tpu.matmul %226, %211, %cst_72 {dimension_numbers = #tpu.dot_dimension_numbers<[1], [0], [0], [1], [0, 0, 1, 1], [], []>, precision = #tpu.contract_precision<fp32>} : vector<64x64xf32>, vector<64x32xf32>, vector<64x32xf32> -> vector<64x32xf32>
    %c184 = arith.constant 184 : index
    %c0_73 = arith.constant 0 : index
    %228 = vector.load %arg3[%c184, %c0_73] : memref<312x128xf32, #tpu.memory_space<vmem>>, vector<32x32xf32>
    %cst_74 = arith.constant dense<0.000000e+00> : vector<64x32xf32>
    %229 = tpu.matmul %227, %228, %cst_74 {dimension_numbers = #tpu.dot_dimension_numbers<[1], [0], [0], [1], [0, 0, 1, 1], [], []>, precision = #tpu.contract_precision<fp32>} : vector<64x32xf32>, vector<32x32xf32>, vector<64x32xf32> -> vector<64x32xf32>
    %c216 = arith.constant 216 : index
    %c0_75 = arith.constant 0 : index
    %230 = vector.load %arg3[%c216, %c0_75] : memref<312x128xf32, #tpu.memory_space<vmem>>, vector<1x32xf32>
    %231 = vector.broadcast %230 : vector<1x32xf32> to vector<64x32xf32>
    %232 = arith.addf %229, %231 : vector<64x32xf32>
    %cst_76 = arith.constant 0.000000e+00 : f32
    %233 = vector.broadcast %cst_76 : f32 to vector<64x16xf32>
    %234 = arith.cmpf ogt, %199, %233 : vector<64x16xf32>
    %cst_77 = arith.constant 0.000000e+00 : f32
    %235 = vector.broadcast %cst_77 : f32 to vector<64x16xf32>
    %236 = arith.minimumf %199, %235 : vector<64x16xf32>
    %237 = math.exp %236 : vector<64x16xf32>
    %cst_78 = arith.constant 1.000000e+00 : f32
    %238 = vector.broadcast %cst_78 : f32 to vector<64x16xf32>
    %239 = arith.subf %237, %238 : vector<64x16xf32>
    %240 = arith.select %234, %199, %239 : vector<64x16xi1>, vector<64x16xf32>
    %c224 = arith.constant 224 : index
    %c0_79 = arith.constant 0 : index
    %241 = vector.load %arg3[%c224, %c0_79] : memref<312x128xf32, #tpu.memory_space<vmem>>, vector<16x16xf32>
    %cst_80 = arith.constant dense<0.000000e+00> : vector<64x16xf32>
    %242 = tpu.matmul %240, %241, %cst_80 {dimension_numbers = #tpu.dot_dimension_numbers<[1], [0], [0], [1], [0, 0, 1, 1], [], []>, precision = #tpu.contract_precision<fp32>} : vector<64x16xf32>, vector<16x16xf32>, vector<64x16xf32> -> vector<64x16xf32>
    %c240 = arith.constant 240 : index
    %c0_81 = arith.constant 0 : index
    %243 = vector.load %arg3[%c240, %c0_81] : memref<312x128xf32, #tpu.memory_space<vmem>>, vector<1x16xf32>
    %244 = vector.broadcast %243 : vector<1x16xf32> to vector<64x16xf32>
    %245 = arith.addf %242, %244 : vector<64x16xf32>
    %cst_82 = arith.constant 0.000000e+00 : f32
    %246 = vector.broadcast %cst_82 : f32 to vector<64x16xf32>
    %247 = arith.cmpf ogt, %245, %246 : vector<64x16xf32>
    %cst_83 = arith.constant 0.000000e+00 : f32
    %248 = vector.broadcast %cst_83 : f32 to vector<64x16xf32>
    %249 = arith.minimumf %245, %248 : vector<64x16xf32>
    %250 = math.exp %249 : vector<64x16xf32>
    %cst_84 = arith.constant 1.000000e+00 : f32
    %251 = vector.broadcast %cst_84 : f32 to vector<64x16xf32>
    %252 = arith.subf %250, %251 : vector<64x16xf32>
    %253 = arith.select %247, %245, %252 : vector<64x16xi1>, vector<64x16xf32>
    %cst_85 = arith.constant 0.000000e+00 : f32
    %254 = vector.broadcast %cst_85 : f32 to vector<64x32xf32>
    %255 = arith.cmpf ogt, %232, %254 : vector<64x32xf32>
    %cst_86 = arith.constant 0.000000e+00 : f32
    %256 = vector.broadcast %cst_86 : f32 to vector<64x32xf32>
    %257 = arith.minimumf %232, %256 : vector<64x32xf32>
    %258 = math.exp %257 : vector<64x32xf32>
    %cst_87 = arith.constant 1.000000e+00 : f32
    %259 = vector.broadcast %cst_87 : f32 to vector<64x32xf32>
    %260 = arith.subf %258, %259 : vector<64x32xf32>
    %261 = arith.select %255, %232, %260 : vector<64x32xi1>, vector<64x32xf32>
    %c248 = arith.constant 248 : index
    %c0_88 = arith.constant 0 : index
    %262 = vector.load %arg3[%c248, %c0_88] : memref<312x128xf32, #tpu.memory_space<vmem>>, vector<32x16xf32>
    %cst_89 = arith.constant dense<0.000000e+00> : vector<64x16xf32>
    %263 = tpu.matmul %261, %262, %cst_89 {dimension_numbers = #tpu.dot_dimension_numbers<[1], [0], [0], [1], [0, 0, 1, 1], [], []>, precision = #tpu.contract_precision<fp32>} : vector<64x32xf32>, vector<32x16xf32>, vector<64x16xf32> -> vector<64x16xf32>
    %c280 = arith.constant 280 : index
    %c0_90 = arith.constant 0 : index
    %264 = vector.load %arg3[%c280, %c0_90] : memref<312x128xf32, #tpu.memory_space<vmem>>, vector<1x16xf32>
    %265 = vector.broadcast %264 : vector<1x16xf32> to vector<64x16xf32>
    %266 = arith.addf %263, %265 : vector<64x16xf32>
    %cst_91 = arith.constant 0.000000e+00 : f32
    %267 = vector.broadcast %cst_91 : f32 to vector<64x16xf32>
    %268 = arith.cmpf ogt, %266, %267 : vector<64x16xf32>
    %cst_92 = arith.constant 0.000000e+00 : f32
    %269 = vector.broadcast %cst_92 : f32 to vector<64x16xf32>
    %270 = arith.minimumf %266, %269 : vector<64x16xf32>
    %271 = math.exp %270 : vector<64x16xf32>
    %cst_93 = arith.constant 1.000000e+00 : f32
    %272 = vector.broadcast %cst_93 : f32 to vector<64x16xf32>
    %273 = arith.subf %271, %272 : vector<64x16xf32>
    %274 = arith.select %268, %266, %273 : vector<64x16xi1>, vector<64x16xf32>
    %275 = arith.addf %253, %274 : vector<64x16xf32>
    %cst_94 = arith.constant 0.000000e+00 : f32
    %276 = vector.broadcast %cst_94 : f32 to vector<64x16xf32>
    %277 = arith.cmpf ogt, %275, %276 : vector<64x16xf32>
    %cst_95 = arith.constant 0.000000e+00 : f32
    %278 = vector.broadcast %cst_95 : f32 to vector<64x16xf32>
    %279 = arith.minimumf %275, %278 : vector<64x16xf32>
    %280 = math.exp %279 : vector<64x16xf32>
    %cst_96 = arith.constant 1.000000e+00 : f32
    %281 = vector.broadcast %cst_96 : f32 to vector<64x16xf32>
    %282 = arith.subf %280, %281 : vector<64x16xf32>
    %283 = arith.select %277, %275, %282 : vector<64x16xi1>, vector<64x16xf32>
    %c288 = arith.constant 288 : index
    %c0_97 = arith.constant 0 : index
    %284 = vector.load %arg3[%c288, %c0_97] : memref<312x128xf32, #tpu.memory_space<vmem>>, vector<16x16xf32>
    %cst_98 = arith.constant dense<0.000000e+00> : vector<64x16xf32>
    %285 = tpu.matmul %283, %284, %cst_98 {dimension_numbers = #tpu.dot_dimension_numbers<[1], [0], [0], [1], [0, 0, 1, 1], [], []>, precision = #tpu.contract_precision<fp32>} : vector<64x16xf32>, vector<16x16xf32>, vector<64x16xf32> -> vector<64x16xf32>
    %c304 = arith.constant 304 : index
    %c0_99 = arith.constant 0 : index
    %286 = vector.load %arg3[%c304, %c0_99] : memref<312x128xf32, #tpu.memory_space<vmem>>, vector<1x16xf32>
    %287 = vector.broadcast %286 : vector<1x16xf32> to vector<64x16xf32>
    %288 = arith.addf %285, %287 : vector<64x16xf32>
    %cst_100 = arith.constant 0.000000e+00 : f32
    %289 = vector.broadcast %cst_100 : f32 to vector<64x16xf32>
    %290 = arith.cmpf ogt, %288, %289 : vector<64x16xf32>
    %cst_101 = arith.constant 0.000000e+00 : f32
    %291 = vector.broadcast %cst_101 : f32 to vector<64x16xf32>
    %292 = arith.minimumf %288, %291 : vector<64x16xf32>
    %293 = math.exp %292 : vector<64x16xf32>
    %cst_102 = arith.constant 1.000000e+00 : f32
    %294 = vector.broadcast %cst_102 : f32 to vector<64x16xf32>
    %295 = arith.subf %293, %294 : vector<64x16xf32>
    %296 = arith.select %290, %288, %295 : vector<64x16xi1>, vector<64x16xf32>
    %c0_103 = arith.constant 0 : index
    %c0_104 = arith.constant 0 : index
    %c0_105 = arith.constant 0 : index
    %297 = vector.load %arg4[%c0_103, %c0_104, %c0_105] : memref<1x64x16xf32, #tpu.memory_space<vmem>>, vector<1x64x16xf32>
    %298 = vector.shape_cast %297 : vector<1x64x16xf32> to vector<64x16xf32>
    %299 = vector.shape_cast %296 : vector<64x16xf32> to vector<1x64x16xf32>
    tpu.vector_store %arg4[%c0_103, %c0_104, %c0_105], %299 {strides = array<i32>} : memref<1x64x16xf32, #tpu.memory_space<vmem>>, vector<1x64x16xf32>,
    return
  }
  func.func @transform_0(%arg0: i32) -> (i32, i32, i32) {
    %c0_i32 = arith.constant 0 : i32
    %c0_i32_0 = arith.constant 0 : i32
    %c0_i32_1 = arith.constant 0 : i32
    return %arg0, %c0_i32, %c0_i32_0 : i32, i32, i32
  }
  func.func @transform_1(%arg0: i32) -> (i32, i32, i32) {
    %c0_i32 = arith.constant 0 : i32
    %c0_i32_0 = arith.constant 0 : i32
    %c0_i32_1 = arith.constant 0 : i32
    return %arg0, %c0_i32, %c0_i32_0 : i32, i32, i32
  }
  func.func @transform_2(%arg0: i32) -> (i32, i32) {
    %c0_i32 = arith.constant 0 : i32
    %c0_i32_0 = arith.constant 0 : i32
    %c0_i32_1 = arith.constant 0 : i32
    return %c0_i32, %c0_i32_0 : i32, i32
  }
  func.func @transform_3(%arg0: i32) -> (i32, i32, i32) {
    %c0_i32 = arith.constant 0 : i32
    %c0_i32_0 = arith.constant 0 : i32
    %c0_i32_1 = arith.constant 0 : i32
    return %arg0, %c0_i32, %c0_i32_0 : i32, i32, i32
  }
}

</mosaic_0001>

<llo_original>
// kernel: forward.1
$region0: #{forward.1}
  #allocation0 [shape = 'u32[]', space=smem, size = 0x4, offset = 0x4, fixed_abs, tag = 'smem constant byte address 0x4 - core index']
  #allocation1 [shape = 'u32[72,128]{1,0:T(1,128)}', space=vmem, size = 0x9000, scoped, tag = 'internal scratch']
  %s0 = inlined_call_operand.vmem [shape: f32[2,64,16], index: 0, kind: input, shape index: {}]
  %s1 = inlined_call_operand.vmem [shape: f32[2,64,1], index: 1, kind: input, shape index: {}]
  %s2 = inlined_call_operand.hbm [shape: f32[312,128], index: 2, kind: input, shape index: {}]
  %s3 = inlined_call_operand.hbm [shape: f32[2,64,16], index: 3, kind: output, shape index: {}]
  %s4 = sld [smem:[#allocation0]]
  $region49: #{forward.1} parent=0
    _
  %s6 = ssub.s32 1, %s4
  %s7 = scalar_select 0, %s6, %s4
  $region1: #{forward.1} parent=0
    #allocation2 [shape = 'u8[159744]{0}', space=vmem, size = 0x27000, scoped, tag = 'input window, operand 2, single buffered']
    #allocation3 [shape = 's32[2]{0}', space=sflag, size = 0x8, scoped, tag = 'scoped memory for forward.1']
    #allocation4 [shape = 's32[2]{0}', space=sflag, size = 0x8, scoped, tag = 'scoped memory for forward.1']
    #allocation5 [shape = 'u8[65536]{0}', space=vmem, size = 0x10000, scoped, tag = 'output window, operand 0']
    %8 = vsyncpa [#allocation3], 0
    %9 = vsyncpa [#allocation4], 0
    %s10 = scalar_lea.sflag [#allocation4], 1
    %11 = vsyncpa %s10, 0
    loop: start=0, step=1, limit=4
    $region2: #{forward.1} parent=1 // loop_pre_header
      _
    $region3: #{forward.1} parent=1 // loop_header
      %s13 = sphi 0, %s17
      %p14 = scmp.ge.s32.totalorder %s13, 4
      %s23 = sphi 0, %s25
      %s26 = sphi 0, %s23
      %s27 = sphi 0, %s26
      %s43 = sphi 0, %s27
      %s49 = sphi 0, %s51
      %s52 = sphi 0, %s49
      %s53 = sphi 0, %s52
      %s69 = sphi 0, %s53
      %s73 = sphi 0, %s73
      %s75 = sphi 0, %s73
      %s76 = sphi 0, %s75
      %s90 = sphi 0, %s76
      %s96 = sphi 0, %s98
      %s99 = sphi 0, %s96
      %s100 = sphi 0, %s99
      %s116 = sphi 0, %s100
    $region4: #{forward.1} parent=1 // loop_header_branch
      %16 = sbr.rel (%p14) target = $region8
    $region5: #{forward.1} parent=1 // loop_body
      %s18 = ssub.s32 %s13, 1
      %s19 = ssub.s32 %s13, 2
      %s20 = sadd.s32 %s13, 1
      %s21 = ssub.s32 %s13, %s20
      %p22 = scmp.eq.s32.totalorder %s21, 0
      %s24 = sadd.s32 %s23, 1
      %s25 = scalar_select %p22, %s23, %s24
      %p28 = pneg %p22
      %p29 = scmp.eq.s32.totalorder %s13, 1
      %p30 = por %p28, %p29
      %p31 = scmp.ne.s32.totalorder %s23, %s26
      %p32 = scmp.eq.s32.totalorder %s13, 0
      %p33 = por %p31, %p32
      %p34 = scmp.ne.s32.totalorder %s23, %s26
      %p35 = scmp.eq.s32.totalorder %s18, 1
      %p36 = por %p34, %p35
      %p37 = scmp.ne.s32.totalorder %s26, %s27
      %p38 = scmp.eq.s32.totalorder %s18, 0
      %p39 = por %p37, %p38
      %p40 = scmp.ne.s32.totalorder %s26, %s27
      %p41 = scmp.eq.s32.totalorder %s19, 1
      %p42 = por %p40, %p41
      %p44 = scmp.ne.s32.totalorder %s27, %s43
      %p45 = scmp.eq.s32.totalorder %s19, 0
      %p46 = por %p44, %p45
      %s47 = ssub.s32 %s13, %s20
      %p48 = scmp.eq.s32.totalorder %s47, 0
      %s50 = sadd.s32 %s49, 1
      %s51 = scalar_select %p48, %s49, %s50
      %p54 = pneg %p48
      %p55 = scmp.eq.s32.totalorder %s13, 1
      %p56 = por %p54, %p55
      %p57 = scmp.ne.s32.totalorder %s49, %s52
      %p58 = scmp.eq.s32.totalorder %s13, 0
      %p59 = por %p57, %p58
      %p60 = scmp.ne.s32.totalorder %s49, %s52
      %p61 = scmp.eq.s32.totalorder %s18, 1
      %p62 = por %p60, %p61
      %p63 = scmp.ne.s32.totalorder %s52, %s53
      %p64 = scmp.eq.s32.totalorder %s18, 0
      %p65 = por %p63, %p64
      %p66 = scmp.ne.s32.totalorder %s52, %s53
      %p67 = scmp.eq.s32.totalorder %s19, 1
      %p68 = por %p66, %p67
      %p70 = scmp.ne.s32.totalorder %s53, %s69
      %p71 = scmp.eq.s32.totalorder %s19, 0
      %p72 = por %p70, %p71
      %s74 = sadd.s32 %s73, 1
      %p77 = scmp.eq.s32.totalorder %s13, 1
      %p78 = scmp.ne.s32.totalorder %s73, %s75
      %p79 = scmp.eq.s32.totalorder %s13, 0
      %p80 = por %p78, %p79
      %p81 = scmp.ne.s32.totalorder %s73, %s75
      %p82 = scmp.eq.s32.totalorder %s18, 1
      %p83 = por %p81, %p82
      %p84 = scmp.ne.s32.totalorder %s75, %s76
      %p85 = scmp.eq.s32.totalorder %s18, 0
      %p86 = por %p84, %p85
      %p87 = scmp.ne.s32.totalorder %s75, %s76
      %p88 = scmp.eq.s32.totalorder %s19, 1
      %p89 = por %p87, %p88
      %p91 = scmp.ne.s32.totalorder %s76, %s90
      %p92 = scmp.eq.s32.totalorder %s19, 0
      %p93 = por %p91, %p92
      %s94 = ssub.s32 %s13, %s20
      %p95 = scmp.eq.s32.totalorder %s94, 0
      %s97 = sadd.s32 %s96, 1
      %s98 = scalar_select %p95, %s96, %s97
      %p101 = pneg %p95
      %p102 = scmp.eq.s32.totalorder %s13, 1
      %p103 = por %p101, %p102
      %p104 = scmp.ne.s32.totalorder %s96, %s99
      %p105 = scmp.eq.s32.totalorder %s13, 0
      %p106 = por %p104, %p105
      %p107 = scmp.ne.s32.totalorder %s96, %s99
      %p108 = scmp.eq.s32.totalorder %s18, 1
      %p109 = por %p107, %p108
      %p110 = scmp.ne.s32.totalorder %s99, %s100
      %p111 = scmp.eq.s32.totalorder %s18, 0
      %p112 = por %p110, %p111
      %p113 = scmp.ne.s32.totalorder %s99, %s100
      %p114 = scmp.eq.s32.totalorder %s19, 1
      %p115 = por %p113, %p114
      %p117 = scmp.ne.s32.totalorder %s100, %s116
      %p118 = scmp.eq.s32.totalorder %s19, 0
      %p119 = por %p117, %p118
      %p120 = scmp.le.s32.totalorder 1, %s13
      %p121 = scmp.lt.s32.totalorder %s13, 3
      %p122 = pnand %p120, %p121
      %p123 = pneg %p122
      // Predicated region
      $region9: #{forward.1} parent=5 // pred_check
        _
      $region10: #{forward.1} parent=5 // pred_check_branch
        %125 = sbr.rel (%p122) target = $region12
      $region11: #{forward.1} parent=5 // pred_region
        %s126 = ssub.s32 %s13, 1
        // Predicated region
        $region13: #{forward.1} parent=11 // pred_check
          %p127 = pneg %p86
        $region14: #{forward.1} parent=11 // pred_check_branch
          %129 = sbr.rel (%p127) target = $region16
        $region15: #{forward.1} parent=11 // pred_region
          %131 = vsyncadd [#allocation3], 0
          %s132 = sshll.u32 %s2, 4
          %s133 = int_to_ptr.hbm [resolvable:$true] %s132
          %s134 = sshll.u32 [#allocation2], 4
          %s135 = int_to_ptr.vmem [resolvable:$true] %s134
          %140 = dma.hbm_to_vmem [thread:$0]  %s133, 4992, %s135, [#allocation3], 128, 128, 8
        $region16: #{forward.1} parent=11 // pred_fallthru
          _
      $region12: #{forward.1} parent=5 // pred_fallthru
        _
      %p141 = scmp.lt.s32.totalorder %s13, 2
      // Predicated region
      $region17: #{forward.1} parent=5 // pred_check
        %p142 = pneg %p141
      $region18: #{forward.1} parent=5 // pred_check_branch
        %144 = sbr.rel (%p142) target = $region20
      $region19: #{forward.1} parent=5 // pred_region
        // Predicated region
        $region21: #{forward.1} parent=19 // pred_check
          %p145 = pneg %p33
        $region22: #{forward.1} parent=19 // pred_check_branch
          %147 = sbr.rel (%p145) target = $region24
        $region23: #{forward.1} parent=19 // pred_region
          %p148 = scmp.lt.s32.totalorder %s13, 1
          %s149 = scalar_select %p148, %s13, 1
          %s150 = smul.addr %s149, 8
          %s151 = smul.addr %s150, 8
          %s152 = scalar_lea.vmem %s0, %s151
        $region24: #{forward.1} parent=19 // pred_fallthru
          _
        // Predicated region
        $region25: #{forward.1} parent=19 // pred_check
          %p153 = pneg %p59
        $region26: #{forward.1} parent=19 // pred_check_branch
          %155 = sbr.rel (%p153) target = $region28
        $region27: #{forward.1} parent=19 // pred_region
          %p156 = scmp.lt.s32.totalorder %s13, 1
          %s157 = scalar_select %p156, %s13, 1
          %s158 = smul.addr %s157, 8
          %s159 = smul.addr %s158, 8
          %s160 = scalar_lea.vmem %s1, %s159
        $region28: #{forward.1} parent=19 // pred_fallthru
          _
      $region20: #{forward.1} parent=5 // pred_fallthru
        _
      %p161 = scmp.le.s32.totalorder 1, %s13
      %p162 = scmp.lt.s32.totalorder %s13, 3
      %p163 = pnand %p161, %p162
      %p164 = pneg %p163
      // Predicated region
      $region29: #{forward.1} parent=5 // pred_check
        _
      $region30: #{forward.1} parent=5 // pred_check_branch
        %166 = sbr.rel (%p163) target = $region32
      $region31: #{forward.1} parent=5 // pred_region
        %s167 = ssub.s32 %s13, 1
        // Predicated region
        $region33: #{forward.1} parent=31 // pred_check
          %p168 = pneg %p86
        $region34: #{forward.1} parent=31 // pred_check_branch
          %170 = sbr.rel (%p168) target = $region36
        $region35: #{forward.1} parent=31 // pred_region
          %172 = dma.done [#allocation3], 4992
        $region36: #{forward.1} parent=31 // pred_fallthru
          _
        %p173 = scmp.lt.s32.totalorder %s18, 1
        %s174 = scalar_select %p173, %s18, 1
        %s175 = smul.addr %s174, 8
        %s176 = smul.addr %s175, 8
        %s177 = scalar_lea.vmem %s0, %s176
        %p178 = pneg %p39
        %p179 = pneg %p36
        %p180 = scmp.lt.s32.totalorder %s18, 1
        %s181 = scalar_select %p180, %s18, 1
        %s182 = smul.addr %s181, 8
        %s183 = smul.addr %s182, 8
        %s184 = scalar_lea.vmem %s1, %s183
        %p185 = pneg %p65
        %p186 = pneg %p62
        %p187 = pneg %p86
        %p188 = pneg %p83
        %p189 = pneg %p112
        %p190 = pneg %p109
        %s191 = sand.u32 %s99, 1
        %s192 = scalar_lea.sflag [#allocation4], %s191
        %s193 = sand.u32 %s99, 1
        %s194 = smul.addr %s193, 64
        %s195 = scalar_lea.vmem [#allocation5], %s194
        %p196 = scmp.lt.s32.totalorder %s18, 1
        %s197 = scalar_select %p196, %s18, 1
        %s198 = smul.addr %s197, 8
        %s199 = smul.addr %s198, 8
        %s200 = scalar_lea.vmem %s0, %s199
        %p201 = scmp.lt.s32.totalorder %s18, 1
        %s202 = scalar_select %p201, %s18, 1
        %s203 = smul.addr %s202, 8
        %s204 = smul.addr %s203, 8
        %s205 = scalar_lea.vmem %s1, %s204
        %v206 = vld [vmem:[%s200] sm:$0xff]
        %v207 = vld [vmem:[%s200 + $0x8] sm:$0xff]
        %v208 = vld [vmem:[%s200 + $0x10] sm:$0xff]
        %v209 = vld [vmem:[%s200 + $0x18] sm:$0xff]
        %v210 = vld [vmem:[%s200 + $0x20] sm:$0xff]
        %v211 = vld [vmem:[%s200 + $0x28] sm:$0xff]
        %v212 = vld [vmem:[%s200 + $0x30] sm:$0xff]
        %v213 = vld [vmem:[%s200 + $0x38] sm:$0xff]
        %v214 = vld [vmem:[%s205] sm:$0xff]
        %v215 = vld [vmem:[%s205 + $0x8] sm:$0xff]
        %v216 = vld [vmem:[%s205 + $0x10] sm:$0xff]
        %v217 = vld [vmem:[%s205 + $0x18] sm:$0xff]
        %v218 = vld [vmem:[%s205 + $0x20] sm:$0xff]
        %v219 = vld [vmem:[%s205 + $0x28] sm:$0xff]
        %v220 = vld [vmem:[%s205 + $0x30] sm:$0xff]
        %v221 = vld [vmem:[%s205 + $0x38] sm:$0xff]
        %v222 = vlaneseq
        %v223 = vshrl.u32 %v222, 7
        %v224 = vadd.s32 %v223, 8
        %v225 = vadd.s32 %v223, 16
        %v226 = vadd.s32 %v223, 24
        %v227 = vadd.s32 %v223, 32
        %v228 = vadd.s32 %v223, 40
        %v229 = vadd.s32 %v223, 48
        %v230 = vadd.s32 %v223, 56
        %vm231 = vcmp.lt.s32.totalorder %v223, 0
        %v232 = vsub.s32 0, %v223
        %v233 = vsel %vm231, %v232, %v223
        %v234 = vshrl.u32 %v233, 3
        %v235 = vand.u32 %v233, 7
        %v236 = vsub.s32 0, %v235
        %v237 = vsel %vm231, %v236, %v235
        %vm238 = vcmp.lt.s32.totalorder %v224, 0
        %v239 = vsub.s32 0, %v224
        %v240 = vsel %vm238, %v239, %v224
        %v241 = vshrl.u32 %v240, 3
        %v242 = vand.u32 %v240, 7
        %v243 = vsub.s32 0, %v242
        %v244 = vsel %vm238, %v243, %v242
        %vm245 = vcmp.lt.s32.totalorder %v225, 0
        %v246 = vsub.s32 0, %v225
        %v247 = vsel %vm245, %v246, %v225
        %v248 = vshrl.u32 %v247, 3
        %v249 = vand.u32 %v247, 7
        %v250 = vsub.s32 0, %v249
        %v251 = vsel %vm245, %v250, %v249
        %vm252 = vcmp.lt.s32.totalorder %v226, 0
        %v253 = vsub.s32 0, %v226
        %v254 = vsel %vm252, %v253, %v226
        %v255 = vshrl.u32 %v254, 3
        %v256 = vand.u32 %v254, 7
        %v257 = vsub.s32 0, %v256
        %v258 = vsel %vm252, %v257, %v256
        %vm259 = vcmp.lt.s32.totalorder %v227, 0
        %v260 = vsub.s32 0, %v227
        %v261 = vsel %vm259, %v260, %v227
        %v262 = vshrl.u32 %v261, 3
        %v263 = vand.u32 %v261, 7
        %v264 = vsub.s32 0, %v263
        %v265 = vsel %vm259, %v264, %v263
        %vm266 = vcmp.lt.s32.totalorder %v228, 0
        %v267 = vsub.s32 0, %v228
        %v268 = vsel %vm266, %v267, %v228
        %v269 = vshrl.u32 %v268, 3
        %v270 = vand.u32 %v268, 7
        %v271 = vsub.s32 0, %v270
        %v272 = vsel %vm266, %v271, %v270
        %vm273 = vcmp.lt.s32.totalorder %v229, 0
        %v274 = vsub.s32 0, %v229
        %v275 = vsel %vm273, %v274, %v229
        %v276 = vshrl.u32 %v275, 3
        %v277 = vand.u32 %v275, 7
        %v278 = vsub.s32 0, %v277
        %v279 = vsel %vm273, %v278, %v277
        %vm280 = vcmp.lt.s32.totalorder %v230, 0
        %v281 = vsub.s32 0, %v230
        %v282 = vsel %vm280, %v281, %v230
        %v283 = vshrl.u32 %v282, 3
        %v284 = vand.u32 %v282, 7
        %v285 = vsub.s32 0, %v284
        %v286 = vsel %vm280, %v285, %v284
        %vm287 = vcmp.ne.s32.totalorder %v237, 0
        %vm288 = vcmp.ne.s32.totalorder %v244, 0
        %vm289 = vcmp.ne.s32.totalorder %v251, 0
        %vm290 = vcmp.ne.s32.totalorder %v258, 0
        %vm291 = vcmp.ne.s32.totalorder %v265, 0
        %vm292 = vcmp.ne.s32.totalorder %v272, 0
        %vm293 = vcmp.ne.s32.totalorder %v279, 0
        %vm294 = vcmp.ne.s32.totalorder %v286, 0
        %vm295 = vcmp.lt.s32.totalorder %v237, 0
        %vm296 = vcmp.lt.s32.totalorder %v244, 0
        %vm297 = vcmp.lt.s32.totalorder %v251, 0
        %vm298 = vcmp.lt.s32.totalorder %v258, 0
        %vm299 = vcmp.lt.s32.totalorder %v265, 0
        %vm300 = vcmp.lt.s32.totalorder %v272, 0
        %vm301 = vcmp.lt.s32.totalorder %v279, 0
        %vm302 = vcmp.lt.s32.totalorder %v286, 0
        %vm303 = vmand %vm295, %vm287
        %vm304 = vmand %vm296, %vm288
        %vm305 = vmand %vm297, %vm289
        %vm306 = vmand %vm298, %vm290
        %vm307 = vmand %vm299, %vm291
        %vm308 = vmand %vm300, %vm292
        %vm309 = vmand %vm301, %vm293
        %vm310 = vmand %vm302, %vm294
        %v311 = vadd.s32 %v237, 8
        %v312 = vadd.s32 %v244, 8
        %v313 = vadd.s32 %v251, 8
        %v314 = vadd.s32 %v258, 8
        %v315 = vadd.s32 %v265, 8
        %v316 = vadd.s32 %v272, 8
        %v317 = vadd.s32 %v279, 8
        %v318 = vadd.s32 %v286, 8
        %v319 = vsel %vm303, %v311, %v237
        %v320 = vsel %vm304, %v312, %v244
        %v321 = vsel %vm305, %v313, %v251
        %v322 = vsel %vm306, %v314, %v258
        %v323 = vsel %vm307, %v315, %v265
        %v324 = vsel %vm308, %v316, %v272
        %v325 = vsel %vm309, %v317, %v279
        %v326 = vsel %vm310, %v318, %v286
        %vm327 = vcmp.ne.s32.totalorder %v319, 0
        %vm328 = vcmp.ne.s32.totalorder %v320, 0
        %vm329 = vcmp.ne.s32.totalorder %v321, 0
        %vm330 = vcmp.ne.s32.totalorder %v322, 0
        %vm331 = vcmp.ne.s32.totalorder %v323, 0
        %vm332 = vcmp.ne.s32.totalorder %v324, 0
        %vm333 = vcmp.ne.s32.totalorder %v325, 0
        %vm334 = vcmp.ne.s32.totalorder %v326, 0
        %vm335 = vcmp.lt.s32.totalorder %v223, 0
        %v336 = vsub.s32 0, %v223
        %v337 = vsel %vm335, %v336, %v223
        %v338 = vshrl.u32 %v337, 6
        %v339 = vand.u32 %v337, 63
        %v340 = vsub.s32 0, %v339
        %v341 = vsel %vm335, %v340, %v339
        %vm342 = vcmp.lt.s32.totalorder %v224, 0
        %v343 = vsub.s32 0, %v224
        %v344 = vsel %vm342, %v343, %v224
        %v345 = vshrl.u32 %v344, 6
        %v346 = vand.u32 %v344, 63
        %v347 = vsub.s32 0, %v346
        %v348 = vsel %vm342, %v347, %v346
        %vm349 = vcmp.lt.s32.totalorder %v225, 0
        %v350 = vsub.s32 0, %v225
        %v351 = vsel %vm349, %v350, %v225
        %v352 = vshrl.u32 %v351, 6
        %v353 = vand.u32 %v351, 63
        %v354 = vsub.s32 0, %v353
        %v355 = vsel %vm349, %v354, %v353
        %vm356 = vcmp.lt.s32.totalorder %v226, 0
        %v357 = vsub.s32 0, %v226
        %v358 = vsel %vm356, %v357, %v226
        %v359 = vshrl.u32 %v358, 6
        %v360 = vand.u32 %v358, 63
        %v361 = vsub.s32 0, %v360
        %v362 = vsel %vm356, %v361, %v360
        %vm363 = vcmp.lt.s32.totalorder %v227, 0
        %v364 = vsub.s32 0, %v227
        %v365 = vsel %vm363, %v364, %v227
        %v366 = vshrl.u32 %v365, 6
        %v367 = vand.u32 %v365, 63
        %v368 = vsub.s32 0, %v367
        %v369 = vsel %vm363, %v368, %v367
        %vm370 = vcmp.lt.s32.totalorder %v228, 0
        %v371 = vsub.s32 0, %v228
        %v372 = vsel %vm370, %v371, %v228
        %v373 = vshrl.u32 %v372, 6
        %v374 = vand.u32 %v372, 63
        %v375 = vsub.s32 0, %v374
        %v376 = vsel %vm370, %v375, %v374
        %vm377 = vcmp.lt.s32.totalorder %v229, 0
        %v378 = vsub.s32 0, %v229
        %v379 = vsel %vm377, %v378, %v229
        %v380 = vshrl.u32 %v379, 6
        %v381 = vand.u32 %v379, 63
        %v382 = vsub.s32 0, %v381
        %v383 = vsel %vm377, %v382, %v381
        %vm384 = vcmp.lt.s32.totalorder %v230, 0
        %v385 = vsub.s32 0, %v230
        %v386 = vsel %vm384, %v385, %v230
        %v387 = vshrl.u32 %v386, 6
        %v388 = vand.u32 %v386, 63
        %v389 = vsub.s32 0, %v388
        %v390 = vsel %vm384, %v389, %v388
        %vm391 = vcmp.ne.s32.totalorder %v341, 0
        %vm392 = vcmp.ne.s32.totalorder %v348, 0
        %vm393 = vcmp.ne.s32.totalorder %v355, 0
        %vm394 = vcmp.ne.s32.totalorder %v362, 0
        %vm395 = vcmp.ne.s32.totalorder %v369, 0
        %vm396 = vcmp.ne.s32.totalorder %v376, 0
        %vm397 = vcmp.ne.s32.totalorder %v383, 0
        %vm398 = vcmp.ne.s32.totalorder %v390, 0
        %vm399 = vcmp.lt.s32.totalorder %v341, 0
        %vm400 = vcmp.lt.s32.totalorder %v348, 0
        %vm401 = vcmp.lt.s32.totalorder %v355, 0
        %vm402 = vcmp.lt.s32.totalorder %v362, 0
        %vm403 = vcmp.lt.s32.totalorder %v369, 0
        %vm404 = vcmp.lt.s32.totalorder %v376, 0
        %vm405 = vcmp.lt.s32.totalorder %v383, 0
        %vm406 = vcmp.lt.s32.totalorder %v390, 0
        %vm407 = vmand %vm399, %vm391
        %vm408 = vmand %vm400, %vm392
        %vm409 = vmand %vm401, %vm393
        %vm410 = vmand %vm402, %vm394
        %vm411 = vmand %vm403, %vm395
        %vm412 = vmand %vm404, %vm396
        %vm413 = vmand %vm405, %vm397
        %vm414 = vmand %vm406, %vm398
        %v415 = vadd.s32 %v341, 64
        %v416 = vadd.s32 %v348, 64
        %v417 = vadd.s32 %v355, 64
        %v418 = vadd.s32 %v362, 64
        %v419 = vadd.s32 %v369, 64
        %v420 = vadd.s32 %v376, 64
        %v421 = vadd.s32 %v383, 64
        %v422 = vadd.s32 %v390, 64
        %v423 = vsel %vm407, %v415, %v341
        %v424 = vsel %vm408, %v416, %v348
        %v425 = vsel %vm409, %v417, %v355
        %v426 = vsel %vm410, %v418, %v362
        %v427 = vsel %vm411, %v419, %v369
        %v428 = vsel %vm412, %v420, %v376
        %v429 = vsel %vm413, %v421, %v383
        %v430 = vsel %vm414, %v422, %v390
        %vm431 = vcmp.ge.s32.totalorder %v423, 8
        %vm432 = vcmp.ge.s32.totalorder %v424, 8
        %vm433 = vcmp.ge.s32.totalorder %v425, 8
        %vm434 = vcmp.ge.s32.totalorder %v426, 8
        %vm435 = vcmp.ge.s32.totalorder %v427, 8
        %vm436 = vcmp.ge.s32.totalorder %v428, 8
        %vm437 = vcmp.ge.s32.totalorder %v429, 8
        %vm438 = vcmp.ge.s32.totalorder %v430, 8
        %vm439 = vmand %vm327, %vm431
        %vm440 = vmand %vm328, %vm432
        %vm441 = vmand %vm329, %vm433
        %vm442 = vmand %vm330, %vm434
        %vm443 = vmand %vm331, %vm435
        %vm444 = vmand %vm332, %vm436
        %vm445 = vmand %vm333, %vm437
        %vm446 = vmand %vm334, %vm438
        %v447 = vld [vmem:[#allocation2] sm:$0xff]
        %v448 = vld [vmem:[#allocation2 + $0x8] sm:$0xff]
        %v449 = vld [vmem:[#allocation2 + $0x10] sm:$0x1]
        %v450 = vld [vmem:[#allocation2 + $0x18] sm:$0xff]
        %v451 = vld [vmem:[#allocation2 + $0x20] sm:$0xff]
        %v452 = vld [vmem:[#allocation2 + $0x28] sm:$0x1]
        %vm453 = vcmp.gt.f32.partialorder %v206, 0.0
        %vm454 = vcmp.gt.f32.partialorder %v207, 0.0
        %vm455 = vcmp.gt.f32.partialorder %v208, 0.0
        %vm456 = vcmp.gt.f32.partialorder %v209, 0.0
        %vm457 = vcmp.gt.f32.partialorder %v210, 0.0
        %vm458 = vcmp.gt.f32.partialorder %v211, 0.0
        %vm459 = vcmp.gt.f32.partialorder %v212, 0.0
        %vm460 = vcmp.gt.f32.partialorder %v213, 0.0
        %v461 = vmin.f32 %v206, 0.0
        %v462 = vmin.f32 %v207, 0.0
        %v463 = vmin.f32 %v208, 0.0
        %v464 = vmin.f32 %v209, 0.0
        %v465 = vmin.f32 %v210, 0.0
        %v466 = vmin.f32 %v211, 0.0
        %v467 = vmin.f32 %v212, 0.0
        %v468 = vmin.f32 %v213, 0.0
        %v469 = vmul.f32 %v461, 1.442695
        %v470 = vpow.pop %v469
        %v471 = vmul.f32 %v462, 1.442695
        %v472 = vpow.pop %v471
        %v473 = vmul.f32 %v463, 1.442695
        %v474 = vpow.pop %v473
        %v475 = vmul.f32 %v464, 1.442695
        %v476 = vpow.pop %v475
        %v477 = vmul.f32 %v465, 1.442695
        %v478 = vpow.pop %v477
        %v479 = vmul.f32 %v466, 1.442695
        %v480 = vpow.pop %v479
        %v481 = vmul.f32 %v467, 1.442695
        %v482 = vpow.pop %v481
        %v483 = vmul.f32 %v468, 1.442695
        %v484 = vpow.pop %v483
        %v485 = vsub.f32 %v470, 1.0
        %v486 = vsub.f32 %v472, 1.0
        %v487 = vsub.f32 %v474, 1.0
        %v488 = vsub.f32 %v476, 1.0
        %v489 = vsub.f32 %v478, 1.0
        %v490 = vsub.f32 %v480, 1.0
        %v491 = vsub.f32 %v482, 1.0
        %v492 = vsub.f32 %v484, 1.0
        %v493 = vsel %vm453, %v206, %v485
        %v494 = vsel %vm454, %v207, %v486
        %v495 = vsel %vm455, %v208, %v487
        %v496 = vsel %vm456, %v209, %v488
        %v497 = vsel %vm457, %v210, %v489
        %v498 = vsel %vm458, %v211, %v490
        %v499 = vsel %vm459, %v212, %v491
        %v500 = vsel %vm460, %v213, %v492
        %vm501 = vcmask 130048
        %v503 = vsel %vm501, %v493, 0
        %v506 = vsel %vm501, %v494, 0
        %v509 = vsel %vm501, %v495, 0
        %v512 = vsel %vm501, %v496, 0
        %v515 = vsel %vm501, %v497, 0
        %v518 = vsel %vm501, %v498, 0
        %v521 = vsel %vm501, %v499, 0
        %v524 = vsel %vm501, %v500, 0
        %526 = vmatpush.msra.mxu0 0.0
        %527 = vmatpush.msra.mxu0 0.0
        %528 = vmatpush.msra.mxu0 0.0
        %529 = vmatpush.msra.mxu0 0.0
        %530 = vmatpush.msra.mxu0 0.0
        %531 = vmatpush.msra.mxu0 0.0
        %532 = vmatpush.msra.mxu0 0.0
        %533 = vmatpush.msra.mxu0 0.0
        %534 = vmatpush.msra.mxu0 0.0
        %535 = vmatpush.msra.mxu0 0.0
        %536 = vmatpush.msra.mxu0 0.0
        %537 = vmatpush.msra.mxu0 0.0
        %538 = vmatpush.msra.mxu0 0.0
        %539 = vmatpush.msra.mxu0 0.0
        %v540 = vand.u32 %v448, 4294901760
        %541 = vmatpush.msra.mxu0 %v540
        %v542 = vand.u32 %v447, 4294901760
        %543 = vmatpush.msra.mxu0 %v542
        %v544 = vand.u32 %v503, 4294901760
        %v545 = vsub.f32 %v503, %v544
        %v546 = vand.u32 %v545, 4294901760
        %v547 = vsub.f32 %v545, %v546
        %v548 = vand.u32 %v547, 4294901760
        %549 = vmatmul.f32.gmra.mxu0 %v548
        %v550 = vpop.f32.mrf.mxu0
        %v551 = vadd.f32 0.0, %v550
        %v552 = vand.u32 %v506, 4294901760
        %v553 = vsub.f32 %v506, %v552
        %v554 = vand.u32 %v553, 4294901760
        %v555 = vsub.f32 %v553, %v554
        %v556 = vand.u32 %v555, 4294901760
        %557 = vmatmul.f32.gmra.mxu0 %v556
        %v558 = vpop.f32.mrf.mxu0
        %v559 = vadd.f32 0.0, %v558
        %v560 = vand.u32 %v509, 4294901760
        %v561 = vsub.f32 %v509, %v560
        %v562 = vand.u32 %v561, 4294901760
        %v563 = vsub.f32 %v561, %v562
        %v564 = vand.u32 %v563, 4294901760
        %565 = vmatmul.f32.gmra.mxu0 %v564
        %v566 = vpop.f32.mrf.mxu0
        %v567 = vadd.f32 0.0, %v566
        %v568 = vand.u32 %v512, 4294901760
        %v569 = vsub.f32 %v512, %v568
        %v570 = vand.u32 %v569, 4294901760
        %v571 = vsub.f32 %v569, %v570
        %v572 = vand.u32 %v571, 4294901760
        %573 = vmatmul.f32.gmra.mxu0 %v572
        %v574 = vpop.f32.mrf.mxu0
        %v575 = vadd.f32 0.0, %v574
        %v576 = vand.u32 %v515, 4294901760
        %v577 = vsub.f32 %v515, %v576
        %v578 = vand.u32 %v577, 4294901760
        %v579 = vsub.f32 %v577, %v578
        %v580 = vand.u32 %v579, 4294901760
        %581 = vmatmul.f32.gmra.mxu0 %v580
        %v582 = vpop.f32.mrf.mxu0
        %v583 = vadd.f32 0.0, %v582
        %v584 = vand.u32 %v518, 4294901760
        %v585 = vsub.f32 %v518, %v584
        %v586 = vand.u32 %v585, 4294901760
        %v587 = vsub.f32 %v585, %v586
        %v588 = vand.u32 %v587, 4294901760
        %589 = vmatmul.f32.gmra.mxu0 %v588
        %v590 = vpop.f32.mrf.mxu0
        %v591 = vadd.f32 0.0, %v590
        %v592 = vand.u32 %v521, 4294901760
        %v593 = vsub.f32 %v521, %v592
        %v594 = vand.u32 %v593, 4294901760
        %v595 = vsub.f32 %v593, %v594
        %v596 = vand.u32 %v595, 4294901760
        %597 = vmatmul.f32.gmra.mxu0 %v596
        %v598 = vpop.f32.mrf.mxu0
        %v599 = vadd.f32 0.0, %v598
        %v600 = vand.u32 %v524, 4294901760
        %v601 = vsub.f32 %v524, %v600
        %v602 = vand.u32 %v601, 4294901760
        %v603 = vsub.f32 %v601, %v602
        %v604 = vand.u32 %v603, 4294901760
        %605 = vmatmul.f32.gmra.mxu0 %v604
        %v606 = vpop.f32.mrf.mxu0
        %v607 = vadd.f32 0.0, %v606
        %608 = vdwg.mxu0
        %609 = vmatpush.msra.mxu0 0.0
        %610 = vmatpush.msra.mxu0 0.0
        %611 = vmatpush.msra.mxu0 0.0
        %612 = vmatpush.msra.mxu0 0.0
        %613 = vmatpush.msra.mxu0 0.0
        %614 = vmatpush.msra.mxu0 0.0
        %615 = vmatpush.msra.mxu0 0.0
        %616 = vmatpush.msra.mxu0 0.0
        %617 = vmatpush.msra.mxu0 0.0
        %618 = vmatpush.msra.mxu0 0.0
        %619 = vmatpush.msra.mxu0 0.0
        %620 = vmatpush.msra.mxu0 0.0
        %621 = vmatpush.msra.mxu0 0.0
        %622 = vmatpush.msra.mxu0 0.0
        %v623 = vand.u32 %v448, 4294901760
        %v624 = vsub.f32 %v448, %v623
        %v625 = vand.u32 %v624, 4294901760
        %v626 = vsub.f32 %v624, %v625
        %v627 = vand.u32 %v626, 4294901760
        %628 = vmatpush.msra.mxu0 %v627
        %v629 = vand.u32 %v447, 4294901760
        %v630 = vsub.f32 %v447, %v629
        %v631 = vand.u32 %v630, 4294901760
        %v632 = vsub.f32 %v630, %v631
        %v633 = vand.u32 %v632, 4294901760
        %634 = vmatpush.msra.mxu0 %v633
        %v635 = vand.u32 %v503, 4294901760
        %636 = vmatmul.f32.gmra.mxu0 %v635
        %v637 = vpop.f32.mrf.mxu0
        %v638 = vadd.f32 %v551, %v637
        %v639 = vand.u32 %v506, 4294901760
        %640 = vmatmul.f32.gmra.mxu0 %v639
        %v641 = vpop.f32.mrf.mxu0
        %v642 = vadd.f32 %v559, %v641
        %v643 = vand.u32 %v509, 4294901760
        %644 = vmatmul.f32.gmra.mxu0 %v643
        %v645 = vpop.f32.mrf.mxu0
        %v646 = vadd.f32 %v567, %v645
        %v647 = vand.u32 %v512, 4294901760
        %648 = vmatmul.f32.gmra.mxu0 %v647
        %v649 = vpop.f32.mrf.mxu0
        %v650 = vadd.f32 %v575, %v649
        %v651 = vand.u32 %v515, 4294901760
        %652 = vmatmul.f32.gmra.mxu0 %v651
        %v653 = vpop.f32.mrf.mxu0
        %v654 = vadd.f32 %v583, %v653
        %v655 = vand.u32 %v518, 4294901760
        %656 = vmatmul.f32.gmra.mxu0 %v655
        %v657 = vpop.f32.mrf.mxu0
        %v658 = vadd.f32 %v591, %v657
        %v659 = vand.u32 %v521, 4294901760
        %660 = vmatmul.f32.gmra.mxu0 %v659
        %v661 = vpop.f32.mrf.mxu0
        %v662 = vadd.f32 %v599, %v661
        %v663 = vand.u32 %v524, 4294901760
        %664 = vmatmul.f32.gmra.mxu0 %v663
        %v665 = vpop.f32.mrf.mxu0
        %v666 = vadd.f32 %v607, %v665
        %667 = vdwg.mxu0
        %668 = vmatpush.msra.mxu0 0.0
        %669 = vmatpush.msra.mxu0 0.0
        %670 = vmatpush.msra.mxu0 0.0
        %671 = vmatpush.msra.mxu0 0.0
        %672 = vmatpush.msra.mxu0 0.0
        %673 = vmatpush.msra.mxu0 0.0
        %674 = vmatpush.msra.mxu0 0.0
        %675 = vmatpush.msra.mxu0 0.0
        %676 = vmatpush.msra.mxu0 0.0
        %677 = vmatpush.msra.mxu0 0.0
        %678 = vmatpush.msra.mxu0 0.0
        %679 = vmatpush.msra.mxu0 0.0
        %680 = vmatpush.msra.mxu0 0.0
        %681 = vmatpush.msra.mxu0 0.0
        %v682 = vand.u32 %v448, 4294901760
        %v683 = vsub.f32 %v448, %v682
        %684 = vmatpush.msra.mxu0 %v683
        %v685 = vand.u32 %v447, 4294901760
        %v686 = vsub.f32 %v447, %v685
        %687 = vmatpush.msra.mxu0 %v686
        %v688 = vand.u32 %v503, 4294901760
        %v689 = vsub.f32 %v503, %v688
        %690 = vmatmul.f32.gmra.mxu0 %v689
        %v691 = vpop.f32.mrf.mxu0
        %v692 = vadd.f32 %v638, %v691
        %v693 = vand.u32 %v506, 4294901760
        %v694 = vsub.f32 %v506, %v693
        %695 = vmatmul.f32.gmra.mxu0 %v694
        %v696 = vpop.f32.mrf.mxu0
        %v697 = vadd.f32 %v642, %v696
        %v698 = vand.u32 %v509, 4294901760
        %v699 = vsub.f32 %v509, %v698
        %700 = vmatmul.f32.gmra.mxu0 %v699
        %v701 = vpop.f32.mrf.mxu0
        %v702 = vadd.f32 %v646, %v701
        %v703 = vand.u32 %v512, 4294901760
        %v704 = vsub.f32 %v512, %v703
        %705 = vmatmul.f32.gmra.mxu0 %v704
        %v706 = vpop.f32.mrf.mxu0
        %v707 = vadd.f32 %v650, %v706
        %v708 = vand.u32 %v515, 4294901760
        %v709 = vsub.f32 %v515, %v708
        %710 = vmatmul.f32.gmra.mxu0 %v709
        %v711 = vpop.f32.mrf.mxu0
        %v712 = vadd.f32 %v654, %v711
        %v713 = vand.u32 %v518, 4294901760
        %v714 = vsub.f32 %v518, %v713
        %715 = vmatmul.f32.gmra.mxu0 %v714
        %v716 = vpop.f32.mrf.mxu0
        %v717 = vadd.f32 %v658, %v716
        %v718 = vand.u32 %v521, 4294901760
        %v719 = vsub.f32 %v521, %v718
        %720 = vmatmul.f32.gmra.mxu0 %v719
        %v721 = vpop.f32.mrf.mxu0
        %v722 = vadd.f32 %v662, %v721
        %v723 = vand.u32 %v524, 4294901760
        %v724 = vsub.f32 %v524, %v723
        %725 = vmatmul.f32.gmra.mxu0 %v724
        %v726 = vpop.f32.mrf.mxu0
        %v727 = vadd.f32 %v666, %v726
        %728 = vdwg.mxu0
        %729 = vmatpush.msra.mxu0 0.0
        %730 = vmatpush.msra.mxu0 0.0
        %731 = vmatpush.msra.mxu0 0.0
        %732 = vmatpush.msra.mxu0 0.0
        %733 = vmatpush.msra.mxu0 0.0
        %734 = vmatpush.msra.mxu0 0.0
        %735 = vmatpush.msra.mxu0 0.0
        %736 = vmatpush.msra.mxu0 0.0
        %737 = vmatpush.msra.mxu0 0.0
        %738 = vmatpush.msra.mxu0 0.0
        %739 = vmatpush.msra.mxu0 0.0
        %740 = vmatpush.msra.mxu0 0.0
        %741 = vmatpush.msra.mxu0 0.0
        %742 = vmatpush.msra.mxu0 0.0
        %v743 = vand.u32 %v448, 4294901760
        %744 = vmatpush.msra.mxu0 %v743
        %v745 = vand.u32 %v447, 4294901760
        %746 = vmatpush.msra.mxu0 %v745
        %v747 = vand.u32 %v503, 4294901760
        %v748 = vsub.f32 %v503, %v747
        %v749 = vand.u32 %v748, 4294901760
        %750 = vmatmul.f32.gmra.mxu0 %v749
        %v751 = vpop.f32.mrf.mxu0
        %v752 = vadd.f32 %v692, %v751
        %v753 = vand.u32 %v506, 4294901760
        %v754 = vsub.f32 %v506, %v753
        %v755 = vand.u32 %v754, 4294901760
        %756 = vmatmul.f32.gmra.mxu0 %v755
        %v757 = vpop.f32.mrf.mxu0
        %v758 = vadd.f32 %v697, %v757
        %v759 = vand.u32 %v509, 4294901760
        %v760 = vsub.f32 %v509, %v759
        %v761 = vand.u32 %v760, 4294901760
        %762 = vmatmul.f32.gmra.mxu0 %v761
        %v763 = vpop.f32.mrf.mxu0
        %v764 = vadd.f32 %v702, %v763
        %v765 = vand.u32 %v512, 4294901760
        %v766 = vsub.f32 %v512, %v765
        %v767 = vand.u32 %v766, 4294901760
        %768 = vmatmul.f32.gmra.mxu0 %v767
        %v769 = vpop.f32.mrf.mxu0
        %v770 = vadd.f32 %v707, %v769
        %v771 = vand.u32 %v515, 4294901760
        %v772 = vsub.f32 %v515, %v771
        %v773 = vand.u32 %v772, 4294901760
        %774 = vmatmul.f32.gmra.mxu0 %v773
        %v775 = vpop.f32.mrf.mxu0
        %v776 = vadd.f32 %v712, %v775
        %v777 = vand.u32 %v518, 4294901760
        %v778 = vsub.f32 %v518, %v777
        %v779 = vand.u32 %v778, 4294901760
        %780 = vmatmul.f32.gmra.mxu0 %v779
        %v781 = vpop.f32.mrf.mxu0
        %v782 = vadd.f32 %v717, %v781
        %v783 = vand.u32 %v521, 4294901760
        %v784 = vsub.f32 %v521, %v783
        %v785 = vand.u32 %v784, 4294901760
        %786 = vmatmul.f32.gmra.mxu0 %v785
        %v787 = vpop.f32.mrf.mxu0
        %v788 = vadd.f32 %v722, %v787
        %v789 = vand.u32 %v524, 4294901760
        %v790 = vsub.f32 %v524, %v789
        %v791 = vand.u32 %v790, 4294901760
        %792 = vmatmul.f32.gmra.mxu0 %v791
        %v793 = vpop.f32.mrf.mxu0
        %v794 = vadd.f32 %v727, %v793
        %795 = vdwg.mxu0
        %796 = vmatpush.msra.mxu0 0.0
        %797 = vmatpush.msra.mxu0 0.0
        %798 = vmatpush.msra.mxu0 0.0
        %799 = vmatpush.msra.mxu0 0.0
        %800 = vmatpush.msra.mxu0 0.0
        %801 = vmatpush.msra.mxu0 0.0
        %802 = vmatpush.msra.mxu0 0.0
        %803 = vmatpush.msra.mxu0 0.0
        %804 = vmatpush.msra.mxu0 0.0
        %805 = vmatpush.msra.mxu0 0.0
        %806 = vmatpush.msra.mxu0 0.0
        %807 = vmatpush.msra.mxu0 0.0
        %808 = vmatpush.msra.mxu0 0.0
        %809 = vmatpush.msra.mxu0 0.0
        %v810 = vand.u32 %v448, 4294901760
        %v811 = vsub.f32 %v448, %v810
        %v812 = vand.u32 %v811, 4294901760
        %813 = vmatpush.msra.mxu0 %v812
        %v814 = vand.u32 %v447, 4294901760
        %v815 = vsub.f32 %v447, %v814
        %v816 = vand.u32 %v815, 4294901760
        %817 = vmatpush.msra.mxu0 %v816
        %v818 = vand.u32 %v503, 4294901760
        %819 = vmatmul.f32.gmra.mxu0 %v818
        %v820 = vpop.f32.mrf.mxu0
        %v821 = vadd.f32 %v752, %v820
        %v822 = vand.u32 %v506, 4294901760
        %823 = vmatmul.f32.gmra.mxu0 %v822
        %v824 = vpop.f32.mrf.mxu0
        %v825 = vadd.f32 %v758, %v824
        %v826 = vand.u32 %v509, 4294901760
        %827 = vmatmul.f32.gmra.mxu0 %v826
        %v828 = vpop.f32.mrf.mxu0
        %v829 = vadd.f32 %v764, %v828
        %v830 = vand.u32 %v512, 4294901760
        %831 = vmatmul.f32.gmra.mxu0 %v830
        %v832 = vpop.f32.mrf.mxu0
        %v833 = vadd.f32 %v770, %v832
        %v834 = vand.u32 %v515, 4294901760
        %835 = vmatmul.f32.gmra.mxu0 %v834
        %v836 = vpop.f32.mrf.mxu0
        %v837 = vadd.f32 %v776, %v836
        %v838 = vand.u32 %v518, 4294901760
        %839 = vmatmul.f32.gmra.mxu0 %v838
        %v840 = vpop.f32.mrf.mxu0
        %v841 = vadd.f32 %v782, %v840
        %v842 = vand.u32 %v521, 4294901760
        %843 = vmatmul.f32.gmra.mxu0 %v842
        %v844 = vpop.f32.mrf.mxu0
        %v845 = vadd.f32 %v788, %v844
        %v846 = vand.u32 %v524, 4294901760
        %847 = vmatmul.f32.gmra.mxu0 %v846
        %v848 = vpop.f32.mrf.mxu0
        %v849 = vadd.f32 %v794, %v848
        %850 = vdwg.mxu0
        %851 = vmatpush.msra.mxu0 0.0
        %852 = vmatpush.msra.mxu0 0.0
        %853 = vmatpush.msra.mxu0 0.0
        %854 = vmatpush.msra.mxu0 0.0
        %855 = vmatpush.msra.mxu0 0.0
        %856 = vmatpush.msra.mxu0 0.0
        %857 = vmatpush.msra.mxu0 0.0
        %858 = vmatpush.msra.mxu0 0.0
        %859 = vmatpush.msra.mxu0 0.0
        %860 = vmatpush.msra.mxu0 0.0
        %861 = vmatpush.msra.mxu0 0.0
        %862 = vmatpush.msra.mxu0 0.0
        %863 = vmatpush.msra.mxu0 0.0
        %864 = vmatpush.msra.mxu0 0.0
        %v865 = vand.u32 %v448, 4294901760
        %866 = vmatpush.msra.mxu0 %v865
        %v867 = vand.u32 %v447, 4294901760
        %868 = vmatpush.msra.mxu0 %v867
        %v869 = vand.u32 %v503, 4294901760
        %870 = vmatmul.f32.gmra.mxu0 %v869
        %v871 = vpop.f32.mrf.mxu0
        %v872 = vadd.f32 %v821, %v871
        %v873 = vand.u32 %v506, 4294901760
        %874 = vmatmul.f32.gmra.mxu0 %v873
        %v875 = vpop.f32.mrf.mxu0
        %v876 = vadd.f32 %v825, %v875
        %v877 = vand.u32 %v509, 4294901760
        %878 = vmatmul.f32.gmra.mxu0 %v877
        %v879 = vpop.f32.mrf.mxu0
        %v880 = vadd.f32 %v829, %v879
        %v881 = vand.u32 %v512, 4294901760
        %882 = vmatmul.f32.gmra.mxu0 %v881
        %v883 = vpop.f32.mrf.mxu0
        %v884 = vadd.f32 %v833, %v883
        %v885 = vand.u32 %v515, 4294901760
        %886 = vmatmul.f32.gmra.mxu0 %v885
        %v887 = vpop.f32.mrf.mxu0
        %v888 = vadd.f32 %v837, %v887
        %v889 = vand.u32 %v518, 4294901760
        %890 = vmatmul.f32.gmra.mxu0 %v889
        %v891 = vpop.f32.mrf.mxu0
        %v892 = vadd.f32 %v841, %v891
        %v893 = vand.u32 %v521, 4294901760
        %894 = vmatmul.f32.gmra.mxu0 %v893
        %v895 = vpop.f32.mrf.mxu0
        %v896 = vadd.f32 %v845, %v895
        %v897 = vand.u32 %v524, 4294901760
        %898 = vmatmul.f32.gmra.mxu0 %v897
        %v899 = vpop.f32.mrf.mxu0
        %v900 = vadd.f32 %v849, %v899
        %901 = vdwg.mxu0
        %910 = vrot.lane.b32.xlu0 %v872, 112
        %v911 = vpop.permute.xlu0 %910
        %912 = vrot.lane.b32.xlu0 %v876, 112
        %v913 = vpop.permute.xlu0 %912
        %914 = vrot.lane.b32.xlu0 %v880, 112
        %v915 = vpop.permute.xlu0 %914
        %916 = vrot.lane.b32.xlu0 %v884, 112
        %v917 = vpop.permute.xlu0 %916
        %918 = vrot.lane.b32.xlu0 %v888, 112
        %v919 = vpop.permute.xlu0 %918
        %920 = vrot.lane.b32.xlu0 %v892, 112
        %v921 = vpop.permute.xlu0 %920
        %922 = vrot.lane.b32.xlu0 %v896, 112
        %v923 = vpop.permute.xlu0 %922
        %924 = vrot.lane.b32.xlu0 %v900, 112
        %v925 = vpop.permute.xlu0 %924
        %v934 = vrot.slane %v911, 7
        %v935 = vrot.slane %v913, 7
        %v936 = vrot.slane %v915, 7
        %v937 = vrot.slane %v917, 7
        %v938 = vrot.slane %v919, 7
        %v939 = vrot.slane %v921, 7
        %v940 = vrot.slane %v923, 7
        %v941 = vrot.slane %v925, 7
        %vm942 = vcmp.lt.s32.totalorder %v223, 1
        %v943 = vsel %vm942, %v940, %v941
        %v944 = vsel %vm942, %v939, %v940
        %v945 = vsel %vm942, %v938, %v939
        %v946 = vsel %vm942, %v937, %v938
        %v947 = vsel %vm942, %v936, %v937
        %v948 = vsel %vm942, %v935, %v936
        %v949 = vsel %vm942, %v934, %v935
        %v950 = vsel %vm942, %v941, %v934
        %v951 = vsel %vm327, 1, 0
        %v952 = vsel %vm328, 1, 0
        %v953 = vsel %vm329, 1, 0
        %v954 = vsel %vm330, 1, 0
        %v955 = vsel %vm331, 1, 0
        %v956 = vsel %vm332, 1, 0
        %v957 = vsel %vm333, 1, 0
        %v958 = vsel %vm334, 1, 0
        %vm959 = vcmp.eq.s32.totalorder %v951, 1
        %vm960 = vcmp.eq.s32.totalorder %v952, 1
        %vm961 = vcmp.eq.s32.totalorder %v953, 1
        %vm962 = vcmp.eq.s32.totalorder %v954, 1
        %vm963 = vcmp.eq.s32.totalorder %v955, 1
        %vm964 = vcmp.eq.s32.totalorder %v956, 1
        %vm965 = vcmp.eq.s32.totalorder %v957, 1
        %vm966 = vcmp.eq.s32.totalorder %v958, 1
        %v967 = vsel %vm959, %v950, 0.0
        %v968 = vsel %vm960, %v949, 0.0
        %v969 = vsel %vm961, %v948, 0.0
        %v970 = vsel %vm962, %v947, 0.0
        %v971 = vsel %vm963, %v946, 0.0
        %v972 = vsel %vm964, %v945, 0.0
        %v973 = vsel %vm965, %v944, 0.0
        %v974 = vsel %vm966, %v943, 0.0
        %975 = vrot.lane.b32.xlu0 %v872, 96
        %v976 = vpop.permute.xlu0 %975
        %977 = vrot.lane.b32.xlu0 %v876, 96
        %v978 = vpop.permute.xlu0 %977
        %979 = vrot.lane.b32.xlu0 %v880, 96
        %v980 = vpop.permute.xlu0 %979
        %981 = vrot.lane.b32.xlu0 %v884, 96
        %v982 = vpop.permute.xlu0 %981
        %983 = vrot.lane.b32.xlu0 %v888, 96
        %v984 = vpop.permute.xlu0 %983
        %985 = vrot.lane.b32.xlu0 %v892, 96
        %v986 = vpop.permute.xlu0 %985
        %987 = vrot.lane.b32.xlu0 %v896, 96
        %v988 = vpop.permute.xlu0 %987
        %989 = vrot.lane.b32.xlu0 %v900, 96
        %v990 = vpop.permute.xlu0 %989
        %v999 = vsel %vm431, 1, 0
        %v1000 = vsel %vm432, 1, 0
        %v1001 = vsel %vm433, 1, 0
        %v1002 = vsel %vm434, 1, 0
        %v1003 = vsel %vm435, 1, 0
        %v1004 = vsel %vm436, 1, 0
        %v1005 = vsel %vm437, 1, 0
        %v1006 = vsel %vm438, 1, 0
        %vm1007 = vcmp.eq.s32.totalorder %v999, 1
        %vm1008 = vcmp.eq.s32.totalorder %v1000, 1
        %vm1009 = vcmp.eq.s32.totalorder %v1001, 1
        %vm1010 = vcmp.eq.s32.totalorder %v1002, 1
        %vm1011 = vcmp.eq.s32.totalorder %v1003, 1
        %vm1012 = vcmp.eq.s32.totalorder %v1004, 1
        %vm1013 = vcmp.eq.s32.totalorder %v1005, 1
        %vm1014 = vcmp.eq.s32.totalorder %v1006, 1
        %v1015 = vsel %vm1007, %v990, 0.0
        %v1016 = vsel %vm1008, %v976, 0.0
        %v1017 = vsel %vm1009, %v978, 0.0
        %v1018 = vsel %vm1010, %v980, 0.0
        %v1019 = vsel %vm1011, %v982, 0.0
        %v1020 = vsel %vm1012, %v984, 0.0
        %v1021 = vsel %vm1013, %v986, 0.0
        %v1022 = vsel %vm1014, %v988, 0.0
        %1023 = vrot.lane.b32.xlu0 %v872, 80
        %v1024 = vpop.permute.xlu0 %1023
        %1025 = vrot.lane.b32.xlu0 %v876, 80
        %v1026 = vpop.permute.xlu0 %1025
        %1027 = vrot.lane.b32.xlu0 %v880, 80
        %v1028 = vpop.permute.xlu0 %1027
        %1029 = vrot.lane.b32.xlu0 %v884, 80
        %v1030 = vpop.permute.xlu0 %1029
        %1031 = vrot.lane.b32.xlu0 %v888, 80
        %v1032 = vpop.permute.xlu0 %1031
        %1033 = vrot.lane.b32.xlu0 %v892, 80
        %v1034 = vpop.permute.xlu0 %1033
        %1035 = vrot.lane.b32.xlu0 %v896, 80
        %v1036 = vpop.permute.xlu0 %1035
        %1037 = vrot.lane.b32.xlu0 %v900, 80
        %v1038 = vpop.permute.xlu0 %1037
        %v1047 = vrot.slane %v1024, 7
        %v1048 = vrot.slane %v1026, 7
        %v1049 = vrot.slane %v1028, 7
        %v1050 = vrot.slane %v1030, 7
        %v1051 = vrot.slane %v1032, 7
        %v1052 = vrot.slane %v1034, 7
        %v1053 = vrot.slane %v1036, 7
        %v1054 = vrot.slane %v1038, 7
        %v1055 = vsel %vm942, %v1053, %v1054
        %v1056 = vsel %vm942, %v1052, %v1053
        %v1057 = vsel %vm942, %v1051, %v1052
        %v1058 = vsel %vm942, %v1050, %v1051
        %v1059 = vsel %vm942, %v1049, %v1050
        %v1060 = vsel %vm942, %v1048, %v1049
        %v1061 = vsel %vm942, %v1047, %v1048
        %v1062 = vsel %vm942, %v1054, %v1047
        %v1063 = vsel %vm439, 1, 0
        %v1064 = vsel %vm440, 1, 0
        %v1065 = vsel %vm441, 1, 0
        %v1066 = vsel %vm442, 1, 0
        %v1067 = vsel %vm443, 1, 0
        %v1068 = vsel %vm444, 1, 0
        %v1069 = vsel %vm445, 1, 0
        %v1070 = vsel %vm446, 1, 0
        %vm1071 = vcmp.eq.s32.totalorder %v1063, 1
        %vm1072 = vcmp.eq.s32.totalorder %v1064, 1
        %vm1073 = vcmp.eq.s32.totalorder %v1065, 1
        %vm1074 = vcmp.eq.s32.totalorder %v1066, 1
        %vm1075 = vcmp.eq.s32.totalorder %v1067, 1
        %vm1076 = vcmp.eq.s32.totalorder %v1068, 1
        %vm1077 = vcmp.eq.s32.totalorder %v1069, 1
        %vm1078 = vcmp.eq.s32.totalorder %v1070, 1
        %v1079 = vsel %vm1071, %v1055, 0.0
        %v1080 = vsel %vm1072, %v1062, 0.0
        %v1081 = vsel %vm1073, %v1061, 0.0
        %v1082 = vsel %vm1074, %v1060, 0.0
        %v1083 = vsel %vm1075, %v1059, 0.0
        %v1084 = vsel %vm1076, %v1058, 0.0
        %v1085 = vsel %vm1077, %v1057, 0.0
        %v1086 = vsel %vm1078, %v1056, 0.0
        %v1087 = vadd.f32 %v872, %v967
        %v1088 = vadd.f32 %v876, %v968
        %v1089 = vadd.f32 %v880, %v969
        %v1090 = vadd.f32 %v884, %v970
        %v1091 = vadd.f32 %v888, %v971
        %v1092 = vadd.f32 %v892, %v972
        %v1093 = vadd.f32 %v896, %v973
        %v1094 = vadd.f32 %v900, %v974
        %v1095 = vadd.f32 %v1087, %v1015
        %v1096 = vadd.f32 %v1088, %v1016
        %v1097 = vadd.f32 %v1089, %v1017
        %v1098 = vadd.f32 %v1090, %v1018
        %v1099 = vadd.f32 %v1091, %v1019
        %v1100 = vadd.f32 %v1092, %v1020
        %v1101 = vadd.f32 %v1093, %v1021
        %v1102 = vadd.f32 %v1094, %v1022
        %v1103 = vadd.f32 %v1095, %v1079
        %v1104 = vadd.f32 %v1096, %v1080
        %v1105 = vadd.f32 %v1097, %v1081
        %v1106 = vadd.f32 %v1098, %v1082
        %v1107 = vadd.f32 %v1099, %v1083
        %v1108 = vadd.f32 %v1100, %v1084
        %v1109 = vadd.f32 %v1101, %v1085
        %v1110 = vadd.f32 %v1102, %v1086
        %v1111 = vperm.slane %v449, 0
        %v1112 = vadd.f32 %v1103, %v1111
        %v1113 = vadd.f32 %v1104, %v1111
        %v1114 = vadd.f32 %v1105, %v1111
        %v1115 = vadd.f32 %v1106, %v1111
        %v1116 = vadd.f32 %v1107, %v1111
        %v1117 = vadd.f32 %v1108, %v1111
        %v1118 = vadd.f32 %v1109, %v1111
        %v1119 = vadd.f32 %v1110, %v1111
        %vm1120 = vcmp.gt.f32.partialorder %v1112, 0.0
        %vm1121 = vcmp.gt.f32.partialorder %v1113, 0.0
        %vm1122 = vcmp.gt.f32.partialorder %v1114, 0.0
        %vm1123 = vcmp.gt.f32.partialorder %v1115, 0.0
        %vm1124 = vcmp.gt.f32.partialorder %v1116, 0.0
        %vm1125 = vcmp.gt.f32.partialorder %v1117, 0.0
        %vm1126 = vcmp.gt.f32.partialorder %v1118, 0.0
        %vm1127 = vcmp.gt.f32.partialorder %v1119, 0.0
        %v1128 = vmin.f32 %v1112, 0.0
        %v1129 = vmin.f32 %v1113, 0.0
        %v1130 = vmin.f32 %v1114, 0.0
        %v1131 = vmin.f32 %v1115, 0.0
        %v1132 = vmin.f32 %v1116, 0.0
        %v1133 = vmin.f32 %v1117, 0.0
        %v1134 = vmin.f32 %v1118, 0.0
        %v1135 = vmin.f32 %v1119, 0.0
        %v1136 = vmul.f32 %v1128, 1.442695
        %v1137 = vpow.pop %v1136
        %v1138 = vmul.f32 %v1129, 1.442695
        %v1139 = vpow.pop %v1138
        %v1140 = vmul.f32 %v1130, 1.442695
        %v1141 = vpow.pop %v1140
        %v1142 = vmul.f32 %v1131, 1.442695
        %v1143 = vpow.pop %v1142
        %v1144 = vmul.f32 %v1132, 1.442695
        %v1145 = vpow.pop %v1144
        %v1146 = vmul.f32 %v1133, 1.442695
        %v1147 = vpow.pop %v1146
        %v1148 = vmul.f32 %v1134, 1.442695
        %v1149 = vpow.pop %v1148
        %v1150 = vmul.f32 %v1135, 1.442695
        %v1151 = vpow.pop %v1150
        %v1152 = vsub.f32 %v1137, 1.0
        %v1153 = vsub.f32 %v1139, 1.0
        %v1154 = vsub.f32 %v1141, 1.0
        %v1155 = vsub.f32 %v1143, 1.0
        %v1156 = vsub.f32 %v1145, 1.0
        %v1157 = vsub.f32 %v1147, 1.0
        %v1158 = vsub.f32 %v1149, 1.0
        %v1159 = vsub.f32 %v1151, 1.0
        %v1160 = vsel %vm1120, %v1112, %v1152
        %v1161 = vsel %vm1121, %v1113, %v1153
        %v1162 = vsel %vm1122, %v1114, %v1154
        %v1163 = vsel %vm1123, %v1115, %v1155
        %v1164 = vsel %vm1124, %v1116, %v1156
        %v1165 = vsel %vm1125, %v1117, %v1157
        %v1166 = vsel %vm1126, %v1118, %v1158
        %v1167 = vsel %vm1127, %v1119, %v1159
        %v1169 = vsel %vm501, %v1160, 0
        %v1172 = vsel %vm501, %v1161, 0
        %v1175 = vsel %vm501, %v1162, 0
        %v1178 = vsel %vm501, %v1163, 0
        %v1181 = vsel %vm501, %v1164, 0
        %v1184 = vsel %vm501, %v1165, 0
        %v1187 = vsel %vm501, %v1166, 0
        %v1190 = vsel %vm501, %v1167, 0
        %1192 = vmatpush.msra.mxu0 0.0
        %1193 = vmatpush.msra.mxu0 0.0
        %1194 = vmatpush.msra.mxu0 0.0
        %1195 = vmatpush.msra.mxu0 0.0
        %1196 = vmatpush.msra.mxu0 0.0
        %1197 = vmatpush.msra.mxu0 0.0
        %1198 = vmatpush.msra.mxu0 0.0
        %1199 = vmatpush.msra.mxu0 0.0
        %1200 = vmatpush.msra.mxu0 0.0
        %1201 = vmatpush.msra.mxu0 0.0
        %1202 = vmatpush.msra.mxu0 0.0
        %1203 = vmatpush.msra.mxu0 0.0
        %1204 = vmatpush.msra.mxu0 0.0
        %1205 = vmatpush.msra.mxu0 0.0
        %v1206 = vand.u32 %v451, 4294901760
        %1207 = vmatpush.msra.mxu0 %v1206
        %v1208 = vand.u32 %v450, 4294901760
        %1209 = vmatpush.msra.mxu0 %v1208
        %v1210 = vand.u32 %v1169, 4294901760
        %v1211 = vsub.f32 %v1169, %v1210
        %v1212 = vand.u32 %v1211, 4294901760
        %v1213 = vsub.f32 %v1211, %v1212
        %v1214 = vand.u32 %v1213, 4294901760
        %1215 = vmatmul.f32.gmra.mxu0 %v1214
        %v1216 = vpop.f32.mrf.mxu0
        %v1217 = vadd.f32 0.0, %v1216
        %v1218 = vand.u32 %v1172, 4294901760
        %v1219 = vsub.f32 %v1172, %v1218
        %v1220 = vand.u32 %v1219, 4294901760
        %v1221 = vsub.f32 %v1219, %v1220
        %v1222 = vand.u32 %v1221, 4294901760
        %1223 = vmatmul.f32.gmra.mxu0 %v1222
        %v1224 = vpop.f32.mrf.mxu0
        %v1225 = vadd.f32 0.0, %v1224
        %v1226 = vand.u32 %v1175, 4294901760
        %v1227 = vsub.f32 %v1175, %v1226
        %v1228 = vand.u32 %v1227, 4294901760
        %v1229 = vsub.f32 %v1227, %v1228
        %v1230 = vand.u32 %v1229, 4294901760
        %1231 = vmatmul.f32.gmra.mxu0 %v1230
        %v1232 = vpop.f32.mrf.mxu0
        %v1233 = vadd.f32 0.0, %v1232
        %v1234 = vand.u32 %v1178, 4294901760
        %v1235 = vsub.f32 %v1178, %v1234
        %v1236 = vand.u32 %v1235, 4294901760
        %v1237 = vsub.f32 %v1235, %v1236
        %v1238 = vand.u32 %v1237, 4294901760
        %1239 = vmatmul.f32.gmra.mxu0 %v1238
        %v1240 = vpop.f32.mrf.mxu0
        %v1241 = vadd.f32 0.0, %v1240
        %v1242 = vand.u32 %v1181, 4294901760
        %v1243 = vsub.f32 %v1181, %v1242
        %v1244 = vand.u32 %v1243, 4294901760
        %v1245 = vsub.f32 %v1243, %v1244
        %v1246 = vand.u32 %v1245, 4294901760
        %1247 = vmatmul.f32.gmra.mxu0 %v1246
        %v1248 = vpop.f32.mrf.mxu0
        %v1249 = vadd.f32 0.0, %v1248
        %v1250 = vand.u32 %v1184, 4294901760
        %v1251 = vsub.f32 %v1184, %v1250
        %v1252 = vand.u32 %v1251, 4294901760
        %v1253 = vsub.f32 %v1251, %v1252
        %v1254 = vand.u32 %v1253, 4294901760
        %1255 = vmatmul.f32.gmra.mxu0 %v1254
        %v1256 = vpop.f32.mrf.mxu0
        %v1257 = vadd.f32 0.0, %v1256
        %v1258 = vand.u32 %v1187, 4294901760
        %v1259 = vsub.f32 %v1187, %v1258
        %v1260 = vand.u32 %v1259, 4294901760
        %v1261 = vsub.f32 %v1259, %v1260
        %v1262 = vand.u32 %v1261, 4294901760
        %1263 = vmatmul.f32.gmra.mxu0 %v1262
        %v1264 = vpop.f32.mrf.mxu0
        %v1265 = vadd.f32 0.0, %v1264
        %v1266 = vand.u32 %v1190, 4294901760
        %v1267 = vsub.f32 %v1190, %v1266
        %v1268 = vand.u32 %v1267, 4294901760
        %v1269 = vsub.f32 %v1267, %v1268
        %v1270 = vand.u32 %v1269, 4294901760
        %1271 = vmatmul.f32.gmra.mxu0 %v1270
        %v1272 = vpop.f32.mrf.mxu0
        %v1273 = vadd.f32 0.0, %v1272
        %1274 = vdwg.mxu0
        %1275 = vmatpush.msra.mxu0 0.0
        %1276 = vmatpush.msra.mxu0 0.0
        %1277 = vmatpush.msra.mxu0 0.0
        %1278 = vmatpush.msra.mxu0 0.0
        %1279 = vmatpush.msra.mxu0 0.0
        %1280 = vmatpush.msra.mxu0 0.0
        %1281 = vmatpush.msra.mxu0 0.0
        %1282 = vmatpush.msra.mxu0 0.0
        %1283 = vmatpush.msra.mxu0 0.0
        %1284 = vmatpush.msra.mxu0 0.0
        %1285 = vmatpush.msra.mxu0 0.0
        %1286 = vmatpush.msra.mxu0 0.0
        %1287 = vmatpush.msra.mxu0 0.0
        %1288 = vmatpush.msra.mxu0 0.0
        %v1289 = vand.u32 %v451, 4294901760
        %v1290 = vsub.f32 %v451, %v1289
        %v1291 = vand.u32 %v1290, 4294901760
        %v1292 = vsub.f32 %v1290, %v1291
        %v1293 = vand.u32 %v1292, 4294901760
        %1294 = vmatpush.msra.mxu0 %v1293
        %v1295 = vand.u32 %v450, 4294901760
        %v1296 = vsub.f32 %v450, %v1295
        %v1297 = vand.u32 %v1296, 4294901760
        %v1298 = vsub.f32 %v1296, %v1297
        %v1299 = vand.u32 %v1298, 4294901760
        %1300 = vmatpush.msra.mxu0 %v1299
        %v1301 = vand.u32 %v1169, 4294901760
        %1302 = vmatmul.f32.gmra.mxu0 %v1301
        %v1303 = vpop.f32.mrf.mxu0
        %v1304 = vadd.f32 %v1217, %v1303
        %v1305 = vand.u32 %v1172, 4294901760
        %1306 = vmatmul.f32.gmra.mxu0 %v1305
        %v1307 = vpop.f32.mrf.mxu0
        %v1308 = vadd.f32 %v1225, %v1307
        %v1309 = vand.u32 %v1175, 4294901760
        %1310 = vmatmul.f32.gmra.mxu0 %v1309
        %v1311 = vpop.f32.mrf.mxu0
        %v1312 = vadd.f32 %v1233, %v1311
        %v1313 = vand.u32 %v1178, 4294901760
        %1314 = vmatmul.f32.gmra.mxu0 %v1313
        %v1315 = vpop.f32.mrf.mxu0
        %v1316 = vadd.f32 %v1241, %v1315
        %v1317 = vand.u32 %v1181, 4294901760
        %1318 = vmatmul.f32.gmra.mxu0 %v1317
        %v1319 = vpop.f32.mrf.mxu0
        %v1320 = vadd.f32 %v1249, %v1319
        %v1321 = vand.u32 %v1184, 4294901760
        %1322 = vmatmul.f32.gmra.mxu0 %v1321
        %v1323 = vpop.f32.mrf.mxu0
        %v1324 = vadd.f32 %v1257, %v1323
        %v1325 = vand.u32 %v1187, 4294901760
        %1326 = vmatmul.f32.gmra.mxu0 %v1325
        %v1327 = vpop.f32.mrf.mxu0
        %v1328 = vadd.f32 %v1265, %v1327
        %v1329 = vand.u32 %v1190, 4294901760
        %1330 = vmatmul.f32.gmra.mxu0 %v1329
        %v1331 = vpop.f32.mrf.mxu0
        %v1332 = vadd.f32 %v1273, %v1331
        %1333 = vdwg.mxu0
        %1334 = vmatpush.msra.mxu0 0.0
        %1335 = vmatpush.msra.mxu0 0.0
        %1336 = vmatpush.msra.mxu0 0.0
        %1337 = vmatpush.msra.mxu0 0.0
        %1338 = vmatpush.msra.mxu0 0.0
        %1339 = vmatpush.msra.mxu0 0.0
        %1340 = vmatpush.msra.mxu0 0.0
        %1341 = vmatpush.msra.mxu0 0.0
        %1342 = vmatpush.msra.mxu0 0.0
        %1343 = vmatpush.msra.mxu0 0.0
        %1344 = vmatpush.msra.mxu0 0.0
        %1345 = vmatpush.msra.mxu0 0.0
        %1346 = vmatpush.msra.mxu0 0.0
        %1347 = vmatpush.msra.mxu0 0.0
        %v1348 = vand.u32 %v451, 4294901760
        %v1349 = vsub.f32 %v451, %v1348
        %1350 = vmatpush.msra.mxu0 %v1349
        %v1351 = vand.u32 %v450, 4294901760
        %v1352 = vsub.f32 %v450, %v1351
        %1353 = vmatpush.msra.mxu0 %v1352
        %v1354 = vand.u32 %v1169, 4294901760
        %v1355 = vsub.f32 %v1169, %v1354
        %1356 = vmatmul.f32.gmra.mxu0 %v1355
        %v1357 = vpop.f32.mrf.mxu0
        %v1358 = vadd.f32 %v1304, %v1357
        %v1359 = vand.u32 %v1172, 4294901760
        %v1360 = vsub.f32 %v1172, %v1359
        %1361 = vmatmul.f32.gmra.mxu0 %v1360
        %v1362 = vpop.f32.mrf.mxu0
        %v1363 = vadd.f32 %v1308, %v1362
        %v1364 = vand.u32 %v1175, 4294901760
        %v1365 = vsub.f32 %v1175, %v1364
        %1366 = vmatmul.f32.gmra.mxu0 %v1365
        %v1367 = vpop.f32.mrf.mxu0
        %v1368 = vadd.f32 %v1312, %v1367
        %v1369 = vand.u32 %v1178, 4294901760
        %v1370 = vsub.f32 %v1178, %v1369
        %1371 = vmatmul.f32.gmra.mxu0 %v1370
        %v1372 = vpop.f32.mrf.mxu0
        %v1373 = vadd.f32 %v1316, %v1372
        %v1374 = vand.u32 %v1181, 4294901760
        %v1375 = vsub.f32 %v1181, %v1374
        %1376 = vmatmul.f32.gmra.mxu0 %v1375
        %v1377 = vpop.f32.mrf.mxu0
        %v1378 = vadd.f32 %v1320, %v1377
        %v1379 = vand.u32 %v1184, 4294901760
        %v1380 = vsub.f32 %v1184, %v1379
        %1381 = vmatmul.f32.gmra.mxu0 %v1380
        %v1382 = vpop.f32.mrf.mxu0
        %v1383 = vadd.f32 %v1324, %v1382
        %v1384 = vand.u32 %v1187, 4294901760
        %v1385 = vsub.f32 %v1187, %v1384
        %1386 = vmatmul.f32.gmra.mxu0 %v1385
        %v1387 = vpop.f32.mrf.mxu0
        %v1388 = vadd.f32 %v1328, %v1387
        %v1389 = vand.u32 %v1190, 4294901760
        %v1390 = vsub.f32 %v1190, %v1389
        %1391 = vmatmul.f32.gmra.mxu0 %v1390
        %v1392 = vpop.f32.mrf.mxu0
        %v1393 = vadd.f32 %v1332, %v1392
        %1394 = vdwg.mxu0
        %1395 = vmatpush.msra.mxu0 0.0
        %1396 = vmatpush.msra.mxu0 0.0
        %1397 = vmatpush.msra.mxu0 0.0
        %1398 = vmatpush.msra.mxu0 0.0
        %1399 = vmatpush.msra.mxu0 0.0
        %1400 = vmatpush.msra.mxu0 0.0
        %1401 = vmatpush.msra.mxu0 0.0
        %1402 = vmatpush.msra.mxu0 0.0
        %1403 = vmatpush.msra.mxu0 0.0
        %1404 = vmatpush.msra.mxu0 0.0
        %1405 = vmatpush.msra.mxu0 0.0
        %1406 = vmatpush.msra.mxu0 0.0
        %1407 = vmatpush.msra.mxu0 0.0
        %1408 = vmatpush.msra.mxu0 0.0
        %v1409 = vand.u32 %v451, 4294901760
        %1410 = vmatpush.msra.mxu0 %v1409
        %v1411 = vand.u32 %v450, 4294901760
        %1412 = vmatpush.msra.mxu0 %v1411
        %v1413 = vand.u32 %v1169, 4294901760
        %v1414 = vsub.f32 %v1169, %v1413
        %v1415 = vand.u32 %v1414, 4294901760
        %1416 = vmatmul.f32.gmra.mxu0 %v1415
        %v1417 = vpop.f32.mrf.mxu0
        %v1418 = vadd.f32 %v1358, %v1417
        %v1419 = vand.u32 %v1172, 4294901760
        %v1420 = vsub.f32 %v1172, %v1419
        %v1421 = vand.u32 %v1420, 4294901760
        %1422 = vmatmul.f32.gmra.mxu0 %v1421
        %v1423 = vpop.f32.mrf.mxu0
        %v1424 = vadd.f32 %v1363, %v1423
        %v1425 = vand.u32 %v1175, 4294901760
        %v1426 = vsub.f32 %v1175, %v1425
        %v1427 = vand.u32 %v1426, 4294901760
        %1428 = vmatmul.f32.gmra.mxu0 %v1427
        %v1429 = vpop.f32.mrf.mxu0
        %v1430 = vadd.f32 %v1368, %v1429
        %v1431 = vand.u32 %v1178, 4294901760
        %v1432 = vsub.f32 %v1178, %v1431
        %v1433 = vand.u32 %v1432, 4294901760
        %1434 = vmatmul.f32.gmra.mxu0 %v1433
        %v1435 = vpop.f32.mrf.mxu0
        %v1436 = vadd.f32 %v1373, %v1435
        %v1437 = vand.u32 %v1181, 4294901760
        %v1438 = vsub.f32 %v1181, %v1437
        %v1439 = vand.u32 %v1438, 4294901760
        %1440 = vmatmul.f32.gmra.mxu0 %v1439
        %v1441 = vpop.f32.mrf.mxu0
        %v1442 = vadd.f32 %v1378, %v1441
        %v1443 = vand.u32 %v1184, 4294901760
        %v1444 = vsub.f32 %v1184, %v1443
        %v1445 = vand.u32 %v1444, 4294901760
        %1446 = vmatmul.f32.gmra.mxu0 %v1445
        %v1447 = vpop.f32.mrf.mxu0
        %v1448 = vadd.f32 %v1383, %v1447
        %v1449 = vand.u32 %v1187, 4294901760
        %v1450 = vsub.f32 %v1187, %v1449
        %v1451 = vand.u32 %v1450, 4294901760
        %1452 = vmatmul.f32.gmra.mxu0 %v1451
        %v1453 = vpop.f32.mrf.mxu0
        %v1454 = vadd.f32 %v1388, %v1453
        %v1455 = vand.u32 %v1190, 4294901760
        %v1456 = vsub.f32 %v1190, %v1455
        %v1457 = vand.u32 %v1456, 4294901760
        %1458 = vmatmul.f32.gmra.mxu0 %v1457
        %v1459 = vpop.f32.mrf.mxu0
        %v1460 = vadd.f32 %v1393, %v1459
        %1461 = vdwg.mxu0
        %1462 = vmatpush.msra.mxu0 0.0
        %1463 = vmatpush.msra.mxu0 0.0
        %1464 = vmatpush.msra.mxu0 0.0
        %1465 = vmatpush.msra.mxu0 0.0
        %1466 = vmatpush.msra.mxu0 0.0
        %1467 = vmatpush.msra.mxu0 0.0
        %1468 = vmatpush.msra.mxu0 0.0
        %1469 = vmatpush.msra.mxu0 0.0
        %1470 = vmatpush.msra.mxu0 0.0
        %1471 = vmatpush.msra.mxu0 0.0
        %1472 = vmatpush.msra.mxu0 0.0
        %1473 = vmatpush.msra.mxu0 0.0
        %1474 = vmatpush.msra.mxu0 0.0
        %1475 = vmatpush.msra.mxu0 0.0
        %v1476 = vand.u32 %v451, 4294901760
        %v1477 = vsub.f32 %v451, %v1476
        %v1478 = vand.u32 %v1477, 4294901760
        %1479 = vmatpush.msra.mxu0 %v1478
        %v1480 = vand.u32 %v450, 4294901760
        %v1481 = vsub.f32 %v450, %v1480
        %v1482 = vand.u32 %v1481, 4294901760
        %1483 = vmatpush.msra.mxu0 %v1482
        %v1484 = vand.u32 %v1169, 4294901760
        %1485 = vmatmul.f32.gmra.mxu0 %v1484
        %v1486 = vpop.f32.mrf.mxu0
        %v1487 = vadd.f32 %v1418, %v1486
        %v1488 = vand.u32 %v1172, 4294901760
        %1489 = vmatmul.f32.gmra.mxu0 %v1488
        %v1490 = vpop.f32.mrf.mxu0
        %v1491 = vadd.f32 %v1424, %v1490
        %v1492 = vand.u32 %v1175, 4294901760
        %1493 = vmatmul.f32.gmra.mxu0 %v1492
        %v1494 = vpop.f32.mrf.mxu0
        %v1495 = vadd.f32 %v1430, %v1494
        %v1496 = vand.u32 %v1178, 4294901760
        %1497 = vmatmul.f32.gmra.mxu0 %v1496
        %v1498 = vpop.f32.mrf.mxu0
        %v1499 = vadd.f32 %v1436, %v1498
        %v1500 = vand.u32 %v1181, 4294901760
        %1501 = vmatmul.f32.gmra.mxu0 %v1500
        %v1502 = vpop.f32.mrf.mxu0
        %v1503 = vadd.f32 %v1442, %v1502
        %v1504 = vand.u32 %v1184, 4294901760
        %1505 = vmatmul.f32.gmra.mxu0 %v1504
        %v1506 = vpop.f32.mrf.mxu0
        %v1507 = vadd.f32 %v1448, %v1506
        %v1508 = vand.u32 %v1187, 4294901760
        %1509 = vmatmul.f32.gmra.mxu0 %v1508
        %v1510 = vpop.f32.mrf.mxu0
        %v1511 = vadd.f32 %v1454, %v1510
        %v1512 = vand.u32 %v1190, 4294901760
        %1513 = vmatmul.f32.gmra.mxu0 %v1512
        %v1514 = vpop.f32.mrf.mxu0
        %v1515 = vadd.f32 %v1460, %v1514
        %1516 = vdwg.mxu0
        %1517 = vmatpush.msra.mxu0 0.0
        %1518 = vmatpush.msra.mxu0 0.0
        %1519 = vmatpush.msra.mxu0 0.0
        %1520 = vmatpush.msra.mxu0 0.0
        %1521 = vmatpush.msra.mxu0 0.0
        %1522 = vmatpush.msra.mxu0 0.0
        %1523 = vmatpush.msra.mxu0 0.0
        %1524 = vmatpush.msra.mxu0 0.0
        %1525 = vmatpush.msra.mxu0 0.0
        %1526 = vmatpush.msra.mxu0 0.0
        %1527 = vmatpush.msra.mxu0 0.0
        %1528 = vmatpush.msra.mxu0 0.0
        %1529 = vmatpush.msra.mxu0 0.0
        %1530 = vmatpush.msra.mxu0 0.0
        %v1531 = vand.u32 %v451, 4294901760
        %1532 = vmatpush.msra.mxu0 %v1531
        %v1533 = vand.u32 %v450, 4294901760
        %1534 = vmatpush.msra.mxu0 %v1533
        %v1535 = vand.u32 %v1169, 4294901760
        %1536 = vmatmul.f32.gmra.mxu0 %v1535
        %v1537 = vpop.f32.mrf.mxu0
        %v1538 = vadd.f32 %v1487, %v1537
        %v1539 = vand.u32 %v1172, 4294901760
        %1540 = vmatmul.f32.gmra.mxu0 %v1539
        %v1541 = vpop.f32.mrf.mxu0
        %v1542 = vadd.f32 %v1491, %v1541
        %v1543 = vand.u32 %v1175, 4294901760
        %1544 = vmatmul.f32.gmra.mxu0 %v1543
        %v1545 = vpop.f32.mrf.mxu0
        %v1546 = vadd.f32 %v1495, %v1545
        %v1547 = vand.u32 %v1178, 4294901760
        %1548 = vmatmul.f32.gmra.mxu0 %v1547
        %v1549 = vpop.f32.mrf.mxu0
        %v1550 = vadd.f32 %v1499, %v1549
        %v1551 = vand.u32 %v1181, 4294901760
        %1552 = vmatmul.f32.gmra.mxu0 %v1551
        %v1553 = vpop.f32.mrf.mxu0
        %v1554 = vadd.f32 %v1503, %v1553
        %v1555 = vand.u32 %v1184, 4294901760
        %1556 = vmatmul.f32.gmra.mxu0 %v1555
        %v1557 = vpop.f32.mrf.mxu0
        %v1558 = vadd.f32 %v1507, %v1557
        %v1559 = vand.u32 %v1187, 4294901760
        %1560 = vmatmul.f32.gmra.mxu0 %v1559
        %v1561 = vpop.f32.mrf.mxu0
        %v1562 = vadd.f32 %v1511, %v1561
        %v1563 = vand.u32 %v1190, 4294901760
        %1564 = vmatmul.f32.gmra.mxu0 %v1563
        %v1565 = vpop.f32.mrf.mxu0
        %v1566 = vadd.f32 %v1515, %v1565
        %1567 = vdwg.mxu0
        %1576 = vrot.lane.b32.xlu0 %v1538, 96
        %v1577 = vpop.permute.xlu0 %1576
        %1578 = vrot.lane.b32.xlu0 %v1542, 96
        %v1579 = vpop.permute.xlu0 %1578
        %1580 = vrot.lane.b32.xlu0 %v1546, 96
        %v1581 = vpop.permute.xlu0 %1580
        %1582 = vrot.lane.b32.xlu0 %v1550, 96
        %v1583 = vpop.permute.xlu0 %1582
        %1584 = vrot.lane.b32.xlu0 %v1554, 96
        %v1585 = vpop.permute.xlu0 %1584
        %1586 = vrot.lane.b32.xlu0 %v1558, 96
        %v1587 = vpop.permute.xlu0 %1586
        %1588 = vrot.lane.b32.xlu0 %v1562, 96
        %v1589 = vpop.permute.xlu0 %1588
        %1590 = vrot.lane.b32.xlu0 %v1566, 96
        %v1591 = vpop.permute.xlu0 %1590
        %v1600 = vrot.slane %v1577, 7
        %v1601 = vrot.slane %v1579, 7
        %v1602 = vrot.slane %v1581, 7
        %v1603 = vrot.slane %v1583, 7
        %v1604 = vrot.slane %v1585, 7
        %v1605 = vrot.slane %v1587, 7
        %v1606 = vrot.slane %v1589, 7
        %v1607 = vrot.slane %v1591, 7
        %v1608 = vsel %vm942, %v1606, %v1607
        %v1609 = vsel %vm942, %v1605, %v1606
        %v1610 = vsel %vm942, %v1604, %v1605
        %v1611 = vsel %vm942, %v1603, %v1604
        %v1612 = vsel %vm942, %v1602, %v1603
        %v1613 = vsel %vm942, %v1601, %v1602
        %v1614 = vsel %vm942, %v1600, %v1601
        %v1615 = vsel %vm942, %v1607, %v1600
        %v1616 = vsel %vm959, %v1615, 0.0
        %v1617 = vsel %vm960, %v1614, 0.0
        %v1618 = vsel %vm961, %v1613, 0.0
        %v1619 = vsel %vm962, %v1612, 0.0
        %v1620 = vsel %vm963, %v1611, 0.0
        %v1621 = vsel %vm964, %v1610, 0.0
        %v1622 = vsel %vm965, %v1609, 0.0
        %v1623 = vsel %vm966, %v1608, 0.0
        %1624 = vrot.lane.b32.xlu0 %v1538, 64
        %v1625 = vpop.permute.xlu0 %1624
        %1626 = vrot.lane.b32.xlu0 %v1542, 64
        %v1627 = vpop.permute.xlu0 %1626
        %1628 = vrot.lane.b32.xlu0 %v1546, 64
        %v1629 = vpop.permute.xlu0 %1628
        %1630 = vrot.lane.b32.xlu0 %v1550, 64
        %v1631 = vpop.permute.xlu0 %1630
        %1632 = vrot.lane.b32.xlu0 %v1554, 64
        %v1633 = vpop.permute.xlu0 %1632
        %1634 = vrot.lane.b32.xlu0 %v1558, 64
        %v1635 = vpop.permute.xlu0 %1634
        %1636 = vrot.lane.b32.xlu0 %v1562, 64
        %v1637 = vpop.permute.xlu0 %1636
        %1638 = vrot.lane.b32.xlu0 %v1566, 64
        %v1639 = vpop.permute.xlu0 %1638
        %v1648 = vsel %vm1007, %v1639, 0.0
        %v1649 = vsel %vm1008, %v1625, 0.0
        %v1650 = vsel %vm1009, %v1627, 0.0
        %v1651 = vsel %vm1010, %v1629, 0.0
        %v1652 = vsel %vm1011, %v1631, 0.0
        %v1653 = vsel %vm1012, %v1633, 0.0
        %v1654 = vsel %vm1013, %v1635, 0.0
        %v1655 = vsel %vm1014, %v1637, 0.0
        %1656 = vrot.lane.b32.xlu0 %v1538, 32
        %v1657 = vpop.permute.xlu0 %1656
        %1658 = vrot.lane.b32.xlu0 %v1542, 32
        %v1659 = vpop.permute.xlu0 %1658
        %1660 = vrot.lane.b32.xlu0 %v1546, 32
        %v1661 = vpop.permute.xlu0 %1660
        %1662 = vrot.lane.b32.xlu0 %v1550, 32
        %v1663 = vpop.permute.xlu0 %1662
        %1664 = vrot.lane.b32.xlu0 %v1554, 32
        %v1665 = vpop.permute.xlu0 %1664
        %1666 = vrot.lane.b32.xlu0 %v1558, 32
        %v1667 = vpop.permute.xlu0 %1666
        %1668 = vrot.lane.b32.xlu0 %v1562, 32
        %v1669 = vpop.permute.xlu0 %1668
        %1670 = vrot.lane.b32.xlu0 %v1566, 32
        %v1671 = vpop.permute.xlu0 %1670
        %v1680 = vrot.slane %v1657, 7
        %v1681 = vrot.slane %v1659, 7
        %v1682 = vrot.slane %v1661, 7
        %v1683 = vrot.slane %v1663, 7
        %v1684 = vrot.slane %v1665, 7
        %v1685 = vrot.slane %v1667, 7
        %v1686 = vrot.slane %v1669, 7
        %v1687 = vrot.slane %v1671, 7
        %v1688 = vsel %vm942, %v1686, %v1687
        %v1689 = vsel %vm942, %v1685, %v1686
        %v1690 = vsel %vm942, %v1684, %v1685
        %v1691 = vsel %vm942, %v1683, %v1684
        %v1692 = vsel %vm942, %v1682, %v1683
        %v1693 = vsel %vm942, %v1681, %v1682
        %v1694 = vsel %vm942, %v1680, %v1681
        %v1695 = vsel %vm942, %v1687, %v1680
        %v1696 = vsel %vm1071, %v1688, 0.0
        %v1697 = vsel %vm1072, %v1695, 0.0
        %v1698 = vsel %vm1073, %v1694, 0.0
        %v1699 = vsel %vm1074, %v1693, 0.0
        %v1700 = vsel %vm1075, %v1692, 0.0
        %v1701 = vsel %vm1076, %v1691, 0.0
        %v1702 = vsel %vm1077, %v1690, 0.0
        %v1703 = vsel %vm1078, %v1689, 0.0
        %v1704 = vadd.f32 %v1538, %v1616
        %v1705 = vadd.f32 %v1542, %v1617
        %v1706 = vadd.f32 %v1546, %v1618
        %v1707 = vadd.f32 %v1550, %v1619
        %v1708 = vadd.f32 %v1554, %v1620
        %v1709 = vadd.f32 %v1558, %v1621
        %v1710 = vadd.f32 %v1562, %v1622
        %v1711 = vadd.f32 %v1566, %v1623
        %v1712 = vadd.f32 %v1704, %v1648
        %v1713 = vadd.f32 %v1705, %v1649
        %v1714 = vadd.f32 %v1706, %v1650
        %v1715 = vadd.f32 %v1707, %v1651
        %v1716 = vadd.f32 %v1708, %v1652
        %v1717 = vadd.f32 %v1709, %v1653
        %v1718 = vadd.f32 %v1710, %v1654
        %v1719 = vadd.f32 %v1711, %v1655
        %v1720 = vadd.f32 %v1712, %v1696
        %v1721 = vadd.f32 %v1713, %v1697
        %v1722 = vadd.f32 %v1714, %v1698
        %v1723 = vadd.f32 %v1715, %v1699
        %v1724 = vadd.f32 %v1716, %v1700
        %v1725 = vadd.f32 %v1717, %v1701
        %v1726 = vadd.f32 %v1718, %v1702
        %v1727 = vadd.f32 %v1719, %v1703
        %v1728 = vperm.slane %v452, 0
        %v1729 = vadd.f32 %v1720, %v1728
        %v1730 = vadd.f32 %v1721, %v1728
        %v1731 = vadd.f32 %v1722, %v1728
        %v1732 = vadd.f32 %v1723, %v1728
        %v1733 = vadd.f32 %v1724, %v1728
        %v1734 = vadd.f32 %v1725, %v1728
        %v1735 = vadd.f32 %v1726, %v1728
        %v1736 = vadd.f32 %v1727, %v1728
        %v1737 = vxor.u32 %v1729, 2147483648
        %v1738 = vxor.u32 %v1730, 2147483648
        %v1739 = vxor.u32 %v1731, 2147483648
        %v1740 = vxor.u32 %v1732, 2147483648
        %v1741 = vxor.u32 %v1733, 2147483648
        %v1742 = vxor.u32 %v1734, 2147483648
        %v1743 = vxor.u32 %v1735, 2147483648
        %v1744 = vxor.u32 %v1736, 2147483648
        %v1745 = vmul.f32 %v1737, 1.442695
        %v1746 = vpow.pop %v1745
        %v1747 = vmul.f32 %v1738, 1.442695
        %v1748 = vpow.pop %v1747
        %v1749 = vmul.f32 %v1739, 1.442695
        %v1750 = vpow.pop %v1749
        %v1751 = vmul.f32 %v1740, 1.442695
        %v1752 = vpow.pop %v1751
        %v1753 = vmul.f32 %v1741, 1.442695
        %v1754 = vpow.pop %v1753
        %v1755 = vmul.f32 %v1742, 1.442695
        %v1756 = vpow.pop %v1755
        %v1757 = vmul.f32 %v1743, 1.442695
        %v1758 = vpow.pop %v1757
        %v1759 = vmul.f32 %v1744, 1.442695
        %v1760 = vpow.pop %v1759
        %v1761 = vadd.f32 %v1746, 1.0
        %v1762 = vadd.f32 %v1748, 1.0
        %v1763 = vadd.f32 %v1750, 1.0
        %v1764 = vadd.f32 %v1752, 1.0
        %v1765 = vadd.f32 %v1754, 1.0
        %v1766 = vadd.f32 %v1756, 1.0
        %v1767 = vadd.f32 %v1758, 1.0
        %v1768 = vadd.f32 %v1760, 1.0
        %v1769 = vrcp.pop %v1761
        %v1770 = vmul.f32 %v1761, %v1769
        %v1771 = vsub.f32 1.0, %v1770
        %v1772 = vmul.f32 %v1769, %v1771
        %v1773 = vadd.f32 %v1769, %v1772
        %vm1774 = vweird.f32 %v1761
        %vm1775 = vweird.f32 %v1769
        %vm1776 = vmor %vm1774, %vm1775
        %v1777 = vsel %vm1776, %v1769, %v1773
        %v1778 = vand.u32 2147483647, %v1761
        %vm1779 = vcmp.eq.f32.partialorder %v1778, 8.507059e+37
        %v1780 = vand.u32 %v1761, 2147483648
        %v1781 = vor.u32 1.1754944e-38, %v1780
        %v1782 = vsel %vm1779, %v1781, %v1777
        %v1783 = vmul.f32 1.0, %v1782
        %v1784 = vrcp.pop %v1762
        %v1785 = vmul.f32 %v1762, %v1784
        %v1786 = vsub.f32 1.0, %v1785
        %v1787 = vmul.f32 %v1784, %v1786
        %v1788 = vadd.f32 %v1784, %v1787
        %vm1789 = vweird.f32 %v1762
        %vm1790 = vweird.f32 %v1784
        %vm1791 = vmor %vm1789, %vm1790
        %v1792 = vsel %vm1791, %v1784, %v1788
        %v1793 = vand.u32 2147483647, %v1762
        %vm1794 = vcmp.eq.f32.partialorder %v1793, 8.507059e+37
        %v1795 = vand.u32 %v1762, 2147483648
        %v1796 = vor.u32 1.1754944e-38, %v1795
        %v1797 = vsel %vm1794, %v1796, %v1792
        %v1798 = vmul.f32 1.0, %v1797
        %v1799 = vrcp.pop %v1763
        %v1800 = vmul.f32 %v1763, %v1799
        %v1801 = vsub.f32 1.0, %v1800
        %v1802 = vmul.f32 %v1799, %v1801
        %v1803 = vadd.f32 %v1799, %v1802
        %vm1804 = vweird.f32 %v1763
        %vm1805 = vweird.f32 %v1799
        %vm1806 = vmor %vm1804, %vm1805
        %v1807 = vsel %vm1806, %v1799, %v1803
        %v1808 = vand.u32 2147483647, %v1763
        %vm1809 = vcmp.eq.f32.partialorder %v1808, 8.507059e+37
        %v1810 = vand.u32 %v1763, 2147483648
        %v1811 = vor.u32 1.1754944e-38, %v1810
        %v1812 = vsel %vm1809, %v1811, %v1807
        %v1813 = vmul.f32 1.0, %v1812
        %v1814 = vrcp.pop %v1764
        %v1815 = vmul.f32 %v1764, %v1814
        %v1816 = vsub.f32 1.0, %v1815
        %v1817 = vmul.f32 %v1814, %v1816
        %v1818 = vadd.f32 %v1814, %v1817
        %vm1819 = vweird.f32 %v1764
        %vm1820 = vweird.f32 %v1814
        %vm1821 = vmor %vm1819, %vm1820
        %v1822 = vsel %vm1821, %v1814, %v1818
        %v1823 = vand.u32 2147483647, %v1764
        %vm1824 = vcmp.eq.f32.partialorder %v1823, 8.507059e+37
        %v1825 = vand.u32 %v1764, 2147483648
        %v1826 = vor.u32 1.1754944e-38, %v1825
        %v1827 = vsel %vm1824, %v1826, %v1822
        %v1828 = vmul.f32 1.0, %v1827
        %v1829 = vrcp.pop %v1765
        %v1830 = vmul.f32 %v1765, %v1829
        %v1831 = vsub.f32 1.0, %v1830
        %v1832 = vmul.f32 %v1829, %v1831
        %v1833 = vadd.f32 %v1829, %v1832
        %vm1834 = vweird.f32 %v1765
        %vm1835 = vweird.f32 %v1829
        %vm1836 = vmor %vm1834, %vm1835
        %v1837 = vsel %vm1836, %v1829, %v1833
        %v1838 = vand.u32 2147483647, %v1765
        %vm1839 = vcmp.eq.f32.partialorder %v1838, 8.507059e+37
        %v1840 = vand.u32 %v1765, 2147483648
        %v1841 = vor.u32 1.1754944e-38, %v1840
        %v1842 = vsel %vm1839, %v1841, %v1837
        %v1843 = vmul.f32 1.0, %v1842
        %v1844 = vrcp.pop %v1766
        %v1845 = vmul.f32 %v1766, %v1844
        %v1846 = vsub.f32 1.0, %v1845
        %v1847 = vmul.f32 %v1844, %v1846
        %v1848 = vadd.f32 %v1844, %v1847
        %vm1849 = vweird.f32 %v1766
        %vm1850 = vweird.f32 %v1844
        %vm1851 = vmor %vm1849, %vm1850
        %v1852 = vsel %vm1851, %v1844, %v1848
        %v1853 = vand.u32 2147483647, %v1766
        %vm1854 = vcmp.eq.f32.partialorder %v1853, 8.507059e+37
        %v1855 = vand.u32 %v1766, 2147483648
        %v1856 = vor.u32 1.1754944e-38, %v1855
        %v1857 = vsel %vm1854, %v1856, %v1852
        %v1858 = vmul.f32 1.0, %v1857
        %v1859 = vrcp.pop %v1767
        %v1860 = vmul.f32 %v1767, %v1859
        %v1861 = vsub.f32 1.0, %v1860
        %v1862 = vmul.f32 %v1859, %v1861
        %v1863 = vadd.f32 %v1859, %v1862
        %vm1864 = vweird.f32 %v1767
        %vm1865 = vweird.f32 %v1859
        %vm1866 = vmor %vm1864, %vm1865
        %v1867 = vsel %vm1866, %v1859, %v1863
        %v1868 = vand.u32 2147483647, %v1767
        %vm1869 = vcmp.eq.f32.partialorder %v1868, 8.507059e+37
        %v1870 = vand.u32 %v1767, 2147483648
        %v1871 = vor.u32 1.1754944e-38, %v1870
        %v1872 = vsel %vm1869, %v1871, %v1867
        %v1873 = vmul.f32 1.0, %v1872
        %v1874 = vrcp.pop %v1768
        %v1875 = vmul.f32 %v1768, %v1874
        %v1876 = vsub.f32 1.0, %v1875
        %v1877 = vmul.f32 %v1874, %v1876
        %v1878 = vadd.f32 %v1874, %v1877
        %vm1879 = vweird.f32 %v1768
        %vm1880 = vweird.f32 %v1874
        %vm1881 = vmor %vm1879, %vm1880
        %v1882 = vsel %vm1881, %v1874, %v1878
        %v1883 = vand.u32 2147483647, %v1768
        %vm1884 = vcmp.eq.f32.partialorder %v1883, 8.507059e+37
        %v1885 = vand.u32 %v1768, 2147483648
        %v1886 = vor.u32 1.1754944e-38, %v1885
        %v1887 = vsel %vm1884, %v1886, %v1882
        %v1888 = vmul.f32 1.0, %v1887
        %1897 = vrot.lane.b32.xlu0 %v1783, 112
        %v1898 = vpop.permute.xlu0 %1897
        %1899 = vrot.lane.b32.xlu0 %v1798, 112
        %v1900 = vpop.permute.xlu0 %1899
        %1901 = vrot.lane.b32.xlu0 %v1813, 112
        %v1902 = vpop.permute.xlu0 %1901
        %1903 = vrot.lane.b32.xlu0 %v1828, 112
        %v1904 = vpop.permute.xlu0 %1903
        %1905 = vrot.lane.b32.xlu0 %v1843, 112
        %v1906 = vpop.permute.xlu0 %1905
        %1907 = vrot.lane.b32.xlu0 %v1858, 112
        %v1908 = vpop.permute.xlu0 %1907
        %1909 = vrot.lane.b32.xlu0 %v1873, 112
        %v1910 = vpop.permute.xlu0 %1909
        %1911 = vrot.lane.b32.xlu0 %v1888, 112
        %v1912 = vpop.permute.xlu0 %1911
        %v1921 = vmul.f32 %v1729, %v1898
        %v1922 = vmul.f32 %v1730, %v1900
        %v1923 = vmul.f32 %v1731, %v1902
        %v1924 = vmul.f32 %v1732, %v1904
        %v1925 = vmul.f32 %v1733, %v1906
        %v1926 = vmul.f32 %v1734, %v1908
        %v1927 = vmul.f32 %v1735, %v1910
        %v1928 = vmul.f32 %v1736, %v1912
        %v1929 = vadd.f32 %v206, %v1921
        %v1930 = vadd.f32 %v207, %v1922
        %v1931 = vadd.f32 %v208, %v1923
        %v1932 = vadd.f32 %v209, %v1924
        %v1933 = vadd.f32 %v210, %v1925
        %v1934 = vadd.f32 %v211, %v1926
        %v1935 = vadd.f32 %v212, %v1927
        %v1936 = vadd.f32 %v213, %v1928
        %v1937 = vld [vmem:[#allocation2 + $0x30] sm:$0xff]
        %v1938 = vld [vmem:[#allocation2 + $0x38] sm:$0xff]
        %v1939 = vld [vmem:[#allocation2 + $0x40] sm:$0x1]
        %v1940 = vld [vmem:[#allocation2 + $0x48] sm:$0xff]
        %v1941 = vld [vmem:[#allocation2 + $0x50] sm:$0xff]
        %v1942 = vld [vmem:[#allocation2 + $0x58] sm:$0x1]
        %vm1943 = vcmp.gt.f32.partialorder %v1929, 0.0
        %vm1944 = vcmp.gt.f32.partialorder %v1930, 0.0
        %vm1945 = vcmp.gt.f32.partialorder %v1931, 0.0
        %vm1946 = vcmp.gt.f32.partialorder %v1932, 0.0
        %vm1947 = vcmp.gt.f32.partialorder %v1933, 0.0
        %vm1948 = vcmp.gt.f32.partialorder %v1934, 0.0
        %vm1949 = vcmp.gt.f32.partialorder %v1935, 0.0
        %vm1950 = vcmp.gt.f32.partialorder %v1936, 0.0
        %v1951 = vmin.f32 %v1929, 0.0
        %v1952 = vmin.f32 %v1930, 0.0
        %v1953 = vmin.f32 %v1931, 0.0
        %v1954 = vmin.f32 %v1932, 0.0
        %v1955 = vmin.f32 %v1933, 0.0
        %v1956 = vmin.f32 %v1934, 0.0
        %v1957 = vmin.f32 %v1935, 0.0
        %v1958 = vmin.f32 %v1936, 0.0
        %v1959 = vmul.f32 %v1951, 1.442695
        %v1960 = vpow.pop %v1959
        %v1961 = vmul.f32 %v1952, 1.442695
        %v1962 = vpow.pop %v1961
        %v1963 = vmul.f32 %v1953, 1.442695
        %v1964 = vpow.pop %v1963
        %v1965 = vmul.f32 %v1954, 1.442695
        %v1966 = vpow.pop %v1965
        %v1967 = vmul.f32 %v1955, 1.442695
        %v1968 = vpow.pop %v1967
        %v1969 = vmul.f32 %v1956, 1.442695
        %v1970 = vpow.pop %v1969
        %v1971 = vmul.f32 %v1957, 1.442695
        %v1972 = vpow.pop %v1971
        %v1973 = vmul.f32 %v1958, 1.442695
        %v1974 = vpow.pop %v1973
        %v1975 = vsub.f32 %v1960, 1.0
        %v1976 = vsub.f32 %v1962, 1.0
        %v1977 = vsub.f32 %v1964, 1.0
        %v1978 = vsub.f32 %v1966, 1.0
        %v1979 = vsub.f32 %v1968, 1.0
        %v1980 = vsub.f32 %v1970, 1.0
        %v1981 = vsub.f32 %v1972, 1.0
        %v1982 = vsub.f32 %v1974, 1.0
        %v1983 = vsel %vm1943, %v1929, %v1975
        %v1984 = vsel %vm1944, %v1930, %v1976
        %v1985 = vsel %vm1945, %v1931, %v1977
        %v1986 = vsel %vm1946, %v1932, %v1978
        %v1987 = vsel %vm1947, %v1933, %v1979
        %v1988 = vsel %vm1948, %v1934, %v1980
        %v1989 = vsel %vm1949, %v1935, %v1981
        %v1990 = vsel %vm1950, %v1936, %v1982
        %v1992 = vsel %vm501, %v1983, 0
        %v1995 = vsel %vm501, %v1984, 0
        %v1998 = vsel %vm501, %v1985, 0
        %v2001 = vsel %vm501, %v1986, 0
        %v2004 = vsel %vm501, %v1987, 0
        %v2007 = vsel %vm501, %v1988, 0
        %v2010 = vsel %vm501, %v1989, 0
        %v2013 = vsel %vm501, %v1990, 0
        %2015 = vmatpush.msra.mxu0 0.0
        %2016 = vmatpush.msra.mxu0 0.0
        %2017 = vmatpush.msra.mxu0 0.0
        %2018 = vmatpush.msra.mxu0 0.0
        %2019 = vmatpush.msra.mxu0 0.0
        %2020 = vmatpush.msra.mxu0 0.0
        %2021 = vmatpush.msra.mxu0 0.0
        %2022 = vmatpush.msra.mxu0 0.0
        %2023 = vmatpush.msra.mxu0 0.0
        %2024 = vmatpush.msra.mxu0 0.0
        %2025 = vmatpush.msra.mxu0 0.0
        %2026 = vmatpush.msra.mxu0 0.0
        %2027 = vmatpush.msra.mxu0 0.0
        %2028 = vmatpush.msra.mxu0 0.0
        %v2029 = vand.u32 %v1938, 4294901760
        %2030 = vmatpush.msra.mxu0 %v2029
        %v2031 = vand.u32 %v1937, 4294901760
        %2032 = vmatpush.msra.mxu0 %v2031
        %v2033 = vand.u32 %v1992, 4294901760
        %v2034 = vsub.f32 %v1992, %v2033
        %v2035 = vand.u32 %v2034, 4294901760
        %v2036 = vsub.f32 %v2034, %v2035
        %v2037 = vand.u32 %v2036, 4294901760
        %2038 = vmatmul.f32.gmra.mxu0 %v2037
        %v2039 = vpop.f32.mrf.mxu0
        %v2040 = vadd.f32 0.0, %v2039
        %v2041 = vand.u32 %v1995, 4294901760
        %v2042 = vsub.f32 %v1995, %v2041
        %v2043 = vand.u32 %v2042, 4294901760
        %v2044 = vsub.f32 %v2042, %v2043
        %v2045 = vand.u32 %v2044, 4294901760
        %2046 = vmatmul.f32.gmra.mxu0 %v2045
        %v2047 = vpop.f32.mrf.mxu0
        %v2048 = vadd.f32 0.0, %v2047
        %v2049 = vand.u32 %v1998, 4294901760
        %v2050 = vsub.f32 %v1998, %v2049
        %v2051 = vand.u32 %v2050, 4294901760
        %v2052 = vsub.f32 %v2050, %v2051
        %v2053 = vand.u32 %v2052, 4294901760
        %2054 = vmatmul.f32.gmra.mxu0 %v2053
        %v2055 = vpop.f32.mrf.mxu0
        %v2056 = vadd.f32 0.0, %v2055
        %v2057 = vand.u32 %v2001, 4294901760
        %v2058 = vsub.f32 %v2001, %v2057
        %v2059 = vand.u32 %v2058, 4294901760
        %v2060 = vsub.f32 %v2058, %v2059
        %v2061 = vand.u32 %v2060, 4294901760
        %2062 = vmatmul.f32.gmra.mxu0 %v2061
        %v2063 = vpop.f32.mrf.mxu0
        %v2064 = vadd.f32 0.0, %v2063
        %v2065 = vand.u32 %v2004, 4294901760
        %v2066 = vsub.f32 %v2004, %v2065
        %v2067 = vand.u32 %v2066, 4294901760
        %v2068 = vsub.f32 %v2066, %v2067
        %v2069 = vand.u32 %v2068, 4294901760
        %2070 = vmatmul.f32.gmra.mxu0 %v2069
        %v2071 = vpop.f32.mrf.mxu0
        %v2072 = vadd.f32 0.0, %v2071
        %v2073 = vand.u32 %v2007, 4294901760
        %v2074 = vsub.f32 %v2007, %v2073
        %v2075 = vand.u32 %v2074, 4294901760
        %v2076 = vsub.f32 %v2074, %v2075
        %v2077 = vand.u32 %v2076, 4294901760
        %2078 = vmatmul.f32.gmra.mxu0 %v2077
        %v2079 = vpop.f32.mrf.mxu0
        %v2080 = vadd.f32 0.0, %v2079
        %v2081 = vand.u32 %v2010, 4294901760
        %v2082 = vsub.f32 %v2010, %v2081
        %v2083 = vand.u32 %v2082, 4294901760
        %v2084 = vsub.f32 %v2082, %v2083
        %v2085 = vand.u32 %v2084, 4294901760
        %2086 = vmatmul.f32.gmra.mxu0 %v2085
        %v2087 = vpop.f32.mrf.mxu0
        %v2088 = vadd.f32 0.0, %v2087
        %v2089 = vand.u32 %v2013, 4294901760
        %v2090 = vsub.f32 %v2013, %v2089
        %v2091 = vand.u32 %v2090, 4294901760
        %v2092 = vsub.f32 %v2090, %v2091
        %v2093 = vand.u32 %v2092, 4294901760
        %2094 = vmatmul.f32.gmra.mxu0 %v2093
        %v2095 = vpop.f32.mrf.mxu0
        %v2096 = vadd.f32 0.0, %v2095
        %2097 = vdwg.mxu0
        %2098 = vmatpush.msra.mxu0 0.0
        %2099 = vmatpush.msra.mxu0 0.0
        %2100 = vmatpush.msra.mxu0 0.0
        %2101 = vmatpush.msra.mxu0 0.0
        %2102 = vmatpush.msra.mxu0 0.0
        %2103 = vmatpush.msra.mxu0 0.0
        %2104 = vmatpush.msra.mxu0 0.0
        %2105 = vmatpush.msra.mxu0 0.0
        %2106 = vmatpush.msra.mxu0 0.0
        %2107 = vmatpush.msra.mxu0 0.0
        %2108 = vmatpush.msra.mxu0 0.0
        %2109 = vmatpush.msra.mxu0 0.0
        %2110 = vmatpush.msra.mxu0 0.0
        %2111 = vmatpush.msra.mxu0 0.0
        %v2112 = vand.u32 %v1938, 4294901760
        %v2113 = vsub.f32 %v1938, %v2112
        %v2114 = vand.u32 %v2113, 4294901760
        %v2115 = vsub.f32 %v2113, %v2114
        %v2116 = vand.u32 %v2115, 4294901760
        %2117 = vmatpush.msra.mxu0 %v2116
        %v2118 = vand.u32 %v1937, 4294901760
        %v2119 = vsub.f32 %v1937, %v2118
        %v2120 = vand.u32 %v2119, 4294901760
        %v2121 = vsub.f32 %v2119, %v2120
        %v2122 = vand.u32 %v2121, 4294901760
        %2123 = vmatpush.msra.mxu0 %v2122
        %v2124 = vand.u32 %v1992, 4294901760
        %2125 = vmatmul.f32.gmra.mxu0 %v2124
        %v2126 = vpop.f32.mrf.mxu0
        %v2127 = vadd.f32 %v2040, %v2126
        %v2128 = vand.u32 %v1995, 4294901760
        %2129 = vmatmul.f32.gmra.mxu0 %v2128
        %v2130 = vpop.f32.mrf.mxu0
        %v2131 = vadd.f32 %v2048, %v2130
        %v2132 = vand.u32 %v1998, 4294901760
        %2133 = vmatmul.f32.gmra.mxu0 %v2132
        %v2134 = vpop.f32.mrf.mxu0
        %v2135 = vadd.f32 %v2056, %v2134
        %v2136 = vand.u32 %v2001, 4294901760
        %2137 = vmatmul.f32.gmra.mxu0 %v2136
        %v2138 = vpop.f32.mrf.mxu0
        %v2139 = vadd.f32 %v2064, %v2138
        %v2140 = vand.u32 %v2004, 4294901760
        %2141 = vmatmul.f32.gmra.mxu0 %v2140
        %v2142 = vpop.f32.mrf.mxu0
        %v2143 = vadd.f32 %v2072, %v2142
        %v2144 = vand.u32 %v2007, 4294901760
        %2145 = vmatmul.f32.gmra.mxu0 %v2144
        %v2146 = vpop.f32.mrf.mxu0
        %v2147 = vadd.f32 %v2080, %v2146
        %v2148 = vand.u32 %v2010, 4294901760
        %2149 = vmatmul.f32.gmra.mxu0 %v2148
        %v2150 = vpop.f32.mrf.mxu0
        %v2151 = vadd.f32 %v2088, %v2150
        %v2152 = vand.u32 %v2013, 4294901760
        %2153 = vmatmul.f32.gmra.mxu0 %v2152
        %v2154 = vpop.f32.mrf.mxu0
        %v2155 = vadd.f32 %v2096, %v2154
        %2156 = vdwg.mxu0
        %2157 = vmatpush.msra.mxu0 0.0
        %2158 = vmatpush.msra.mxu0 0.0
        %2159 = vmatpush.msra.mxu0 0.0
        %2160 = vmatpush.msra.mxu0 0.0
        %2161 = vmatpush.msra.mxu0 0.0
        %2162 = vmatpush.msra.mxu0 0.0
        %2163 = vmatpush.msra.mxu0 0.0
        %2164 = vmatpush.msra.mxu0 0.0
        %2165 = vmatpush.msra.mxu0 0.0
        %2166 = vmatpush.msra.mxu0 0.0
        %2167 = vmatpush.msra.mxu0 0.0
        %2168 = vmatpush.msra.mxu0 0.0
        %2169 = vmatpush.msra.mxu0 0.0
        %2170 = vmatpush.msra.mxu0 0.0
        %v2171 = vand.u32 %v1938, 4294901760
        %v2172 = vsub.f32 %v1938, %v2171
        %2173 = vmatpush.msra.mxu0 %v2172
        %v2174 = vand.u32 %v1937, 4294901760
        %v2175 = vsub.f32 %v1937, %v2174
        %2176 = vmatpush.msra.mxu0 %v2175
        %v2177 = vand.u32 %v1992, 4294901760
        %v2178 = vsub.f32 %v1992, %v2177
        %2179 = vmatmul.f32.gmra.mxu0 %v2178
        %v2180 = vpop.f32.mrf.mxu0
        %v2181 = vadd.f32 %v2127, %v2180
        %v2182 = vand.u32 %v1995, 4294901760
        %v2183 = vsub.f32 %v1995, %v2182
        %2184 = vmatmul.f32.gmra.mxu0 %v2183
        %v2185 = vpop.f32.mrf.mxu0
        %v2186 = vadd.f32 %v2131, %v2185
        %v2187 = vand.u32 %v1998, 4294901760
        %v2188 = vsub.f32 %v1998, %v2187
        %2189 = vmatmul.f32.gmra.mxu0 %v2188
        %v2190 = vpop.f32.mrf.mxu0
        %v2191 = vadd.f32 %v2135, %v2190
        %v2192 = vand.u32 %v2001, 4294901760
        %v2193 = vsub.f32 %v2001, %v2192
        %2194 = vmatmul.f32.gmra.mxu0 %v2193
        %v2195 = vpop.f32.mrf.mxu0
        %v2196 = vadd.f32 %v2139, %v2195
        %v2197 = vand.u32 %v2004, 4294901760
        %v2198 = vsub.f32 %v2004, %v2197
        %2199 = vmatmul.f32.gmra.mxu0 %v2198
        %v2200 = vpop.f32.mrf.mxu0
        %v2201 = vadd.f32 %v2143, %v2200
        %v2202 = vand.u32 %v2007, 4294901760
        %v2203 = vsub.f32 %v2007, %v2202
        %2204 = vmatmul.f32.gmra.mxu0 %v2203
        %v2205 = vpop.f32.mrf.mxu0
        %v2206 = vadd.f32 %v2147, %v2205
        %v2207 = vand.u32 %v2010, 4294901760
        %v2208 = vsub.f32 %v2010, %v2207
        %2209 = vmatmul.f32.gmra.mxu0 %v2208
        %v2210 = vpop.f32.mrf.mxu0
        %v2211 = vadd.f32 %v2151, %v2210
        %v2212 = vand.u32 %v2013, 4294901760
        %v2213 = vsub.f32 %v2013, %v2212
        %2214 = vmatmul.f32.gmra.mxu0 %v2213
        %v2215 = vpop.f32.mrf.mxu0
        %v2216 = vadd.f32 %v2155, %v2215
        %2217 = vdwg.mxu0
        %2218 = vmatpush.msra.mxu0 0.0
        %2219 = vmatpush.msra.mxu0 0.0
        %2220 = vmatpush.msra.mxu0 0.0
        %2221 = vmatpush.msra.mxu0 0.0
        %2222 = vmatpush.msra.mxu0 0.0
        %2223 = vmatpush.msra.mxu0 0.0
        %2224 = vmatpush.msra.mxu0 0.0
        %2225 = vmatpush.msra.mxu0 0.0
        %2226 = vmatpush.msra.mxu0 0.0
        %2227 = vmatpush.msra.mxu0 0.0
        %2228 = vmatpush.msra.mxu0 0.0
        %2229 = vmatpush.msra.mxu0 0.0
        %2230 = vmatpush.msra.mxu0 0.0
        %2231 = vmatpush.msra.mxu0 0.0
        %v2232 = vand.u32 %v1938, 4294901760
        %2233 = vmatpush.msra.mxu0 %v2232
        %v2234 = vand.u32 %v1937, 4294901760
        %2235 = vmatpush.msra.mxu0 %v2234
        %v2236 = vand.u32 %v1992, 4294901760
        %v2237 = vsub.f32 %v1992, %v2236
        %v2238 = vand.u32 %v2237, 4294901760
        %2239 = vmatmul.f32.gmra.mxu0 %v2238
        %v2240 = vpop.f32.mrf.mxu0
        %v2241 = vadd.f32 %v2181, %v2240
        %v2242 = vand.u32 %v1995, 4294901760
        %v2243 = vsub.f32 %v1995, %v2242
        %v2244 = vand.u32 %v2243, 4294901760
        %2245 = vmatmul.f32.gmra.mxu0 %v2244
        %v2246 = vpop.f32.mrf.mxu0
        %v2247 = vadd.f32 %v2186, %v2246
        %v2248 = vand.u32 %v1998, 4294901760
        %v2249 = vsub.f32 %v1998, %v2248
        %v2250 = vand.u32 %v2249, 4294901760
        %2251 = vmatmul.f32.gmra.mxu0 %v2250
        %v2252 = vpop.f32.mrf.mxu0
        %v2253 = vadd.f32 %v2191, %v2252
        %v2254 = vand.u32 %v2001, 4294901760
        %v2255 = vsub.f32 %v2001, %v2254
        %v2256 = vand.u32 %v2255, 4294901760
        %2257 = vmatmul.f32.gmra.mxu0 %v2256
        %v2258 = vpop.f32.mrf.mxu0
        %v2259 = vadd.f32 %v2196, %v2258
        %v2260 = vand.u32 %v2004, 4294901760
        %v2261 = vsub.f32 %v2004, %v2260
        %v2262 = vand.u32 %v2261, 4294901760
        %2263 = vmatmul.f32.gmra.mxu0 %v2262
        %v2264 = vpop.f32.mrf.mxu0
        %v2265 = vadd.f32 %v2201, %v2264
        %v2266 = vand.u32 %v2007, 4294901760
        %v2267 = vsub.f32 %v2007, %v2266
        %v2268 = vand.u32 %v2267, 4294901760
        %2269 = vmatmul.f32.gmra.mxu0 %v2268
        %v2270 = vpop.f32.mrf.mxu0
        %v2271 = vadd.f32 %v2206, %v2270
        %v2272 = vand.u32 %v2010, 4294901760
        %v2273 = vsub.f32 %v2010, %v2272
        %v2274 = vand.u32 %v2273, 4294901760
        %2275 = vmatmul.f32.gmra.mxu0 %v2274
        %v2276 = vpop.f32.mrf.mxu0
        %v2277 = vadd.f32 %v2211, %v2276
        %v2278 = vand.u32 %v2013, 4294901760
        %v2279 = vsub.f32 %v2013, %v2278
        %v2280 = vand.u32 %v2279, 4294901760
        %2281 = vmatmul.f32.gmra.mxu0 %v2280
        %v2282 = vpop.f32.mrf.mxu0
        %v2283 = vadd.f32 %v2216, %v2282
        %2284 = vdwg.mxu0
        %2285 = vmatpush.msra.mxu0 0.0
        %2286 = vmatpush.msra.mxu0 0.0
        %2287 = vmatpush.msra.mxu0 0.0
        %2288 = vmatpush.msra.mxu0 0.0
        %2289 = vmatpush.msra.mxu0 0.0
        %2290 = vmatpush.msra.mxu0 0.0
        %2291 = vmatpush.msra.mxu0 0.0
        %2292 = vmatpush.msra.mxu0 0.0
        %2293 = vmatpush.msra.mxu0 0.0
        %2294 = vmatpush.msra.mxu0 0.0
        %2295 = vmatpush.msra.mxu0 0.0
        %2296 = vmatpush.msra.mxu0 0.0
        %2297 = vmatpush.msra.mxu0 0.0
        %2298 = vmatpush.msra.mxu0 0.0
        %v2299 = vand.u32 %v1938, 4294901760
        %v2300 = vsub.f32 %v1938, %v2299
        %v2301 = vand.u32 %v2300, 4294901760
        %2302 = vmatpush.msra.mxu0 %v2301
        %v2303 = vand.u32 %v1937, 4294901760
        %v2304 = vsub.f32 %v1937, %v2303
        %v2305 = vand.u32 %v2304, 4294901760
        %2306 = vmatpush.msra.mxu0 %v2305
        %v2307 = vand.u32 %v1992, 4294901760
        %2308 = vmatmul.f32.gmra.mxu0 %v2307
        %v2309 = vpop.f32.mrf.mxu0
        %v2310 = vadd.f32 %v2241, %v2309
        %v2311 = vand.u32 %v1995, 4294901760
        %2312 = vmatmul.f32.gmra.mxu0 %v2311
        %v2313 = vpop.f32.mrf.mxu0
        %v2314 = vadd.f32 %v2247, %v2313
        %v2315 = vand.u32 %v1998, 4294901760
        %2316 = vmatmul.f32.gmra.mxu0 %v2315
        %v2317 = vpop.f32.mrf.mxu0
        %v2318 = vadd.f32 %v2253, %v2317
        %v2319 = vand.u32 %v2001, 4294901760
        %2320 = vmatmul.f32.gmra.mxu0 %v2319
        %v2321 = vpop.f32.mrf.mxu0
        %v2322 = vadd.f32 %v2259, %v2321
        %v2323 = vand.u32 %v2004, 4294901760
        %2324 = vmatmul.f32.gmra.mxu0 %v2323
        %v2325 = vpop.f32.mrf.mxu0
        %v2326 = vadd.f32 %v2265, %v2325
        %v2327 = vand.u32 %v2007, 4294901760
        %2328 = vmatmul.f32.gmra.mxu0 %v2327
        %v2329 = vpop.f32.mrf.mxu0
        %v2330 = vadd.f32 %v2271, %v2329
        %v2331 = vand.u32 %v2010, 4294901760
        %2332 = vmatmul.f32.gmra.mxu0 %v2331
        %v2333 = vpop.f32.mrf.mxu0
        %v2334 = vadd.f32 %v2277, %v2333
        %v2335 = vand.u32 %v2013, 4294901760
        %2336 = vmatmul.f32.gmra.mxu0 %v2335
        %v2337 = vpop.f32.mrf.mxu0
        %v2338 = vadd.f32 %v2283, %v2337
        %2339 = vdwg.mxu0
        %2340 = vmatpush.msra.mxu0 0.0
        %2341 = vmatpush.msra.mxu0 0.0
        %2342 = vmatpush.msra.mxu0 0.0
        %2343 = vmatpush.msra.mxu0 0.0
        %2344 = vmatpush.msra.mxu0 0.0
        %2345 = vmatpush.msra.mxu0 0.0
        %2346 = vmatpush.msra.mxu0 0.0
        %2347 = vmatpush.msra.mxu0 0.0
        %2348 = vmatpush.msra.mxu0 0.0
        %2349 = vmatpush.msra.mxu0 0.0
        %2350 = vmatpush.msra.mxu0 0.0
        %2351 = vmatpush.msra.mxu0 0.0
        %2352 = vmatpush.msra.mxu0 0.0
        %2353 = vmatpush.msra.mxu0 0.0
        %v2354 = vand.u32 %v1938, 4294901760
        %2355 = vmatpush.msra.mxu0 %v2354
        %v2356 = vand.u32 %v1937, 4294901760
        %2357 = vmatpush.msra.mxu0 %v2356
        %v2358 = vand.u32 %v1992, 4294901760
        %2359 = vmatmul.f32.gmra.mxu0 %v2358
        %v2360 = vpop.f32.mrf.mxu0
        %v2361 = vadd.f32 %v2310, %v2360
        %v2362 = vand.u32 %v1995, 4294901760
        %2363 = vmatmul.f32.gmra.mxu0 %v2362
        %v2364 = vpop.f32.mrf.mxu0
        %v2365 = vadd.f32 %v2314, %v2364
        %v2366 = vand.u32 %v1998, 4294901760
        %2367 = vmatmul.f32.gmra.mxu0 %v2366
        %v2368 = vpop.f32.mrf.mxu0
        %v2369 = vadd.f32 %v2318, %v2368
        %v2370 = vand.u32 %v2001, 4294901760
        %2371 = vmatmul.f32.gmra.mxu0 %v2370
        %v2372 = vpop.f32.mrf.mxu0
        %v2373 = vadd.f32 %v2322, %v2372
        %v2374 = vand.u32 %v2004, 4294901760
        %2375 = vmatmul.f32.gmra.mxu0 %v2374
        %v2376 = vpop.f32.mrf.mxu0
        %v2377 = vadd.f32 %v2326, %v2376
        %v2378 = vand.u32 %v2007, 4294901760
        %2379 = vmatmul.f32.gmra.mxu0 %v2378
        %v2380 = vpop.f32.mrf.mxu0
        %v2381 = vadd.f32 %v2330, %v2380
        %v2382 = vand.u32 %v2010, 4294901760
        %2383 = vmatmul.f32.gmra.mxu0 %v2382
        %v2384 = vpop.f32.mrf.mxu0
        %v2385 = vadd.f32 %v2334, %v2384
        %v2386 = vand.u32 %v2013, 4294901760
        %2387 = vmatmul.f32.gmra.mxu0 %v2386
        %v2388 = vpop.f32.mrf.mxu0
        %v2389 = vadd.f32 %v2338, %v2388
        %2390 = vdwg.mxu0
        %2399 = vrot.lane.b32.xlu0 %v2361, 112
        %v2400 = vpop.permute.xlu0 %2399
        %2401 = vrot.lane.b32.xlu0 %v2365, 112
        %v2402 = vpop.permute.xlu0 %2401
        %2403 = vrot.lane.b32.xlu0 %v2369, 112
        %v2404 = vpop.permute.xlu0 %2403
        %2405 = vrot.lane.b32.xlu0 %v2373, 112
        %v2406 = vpop.permute.xlu0 %2405
        %2407 = vrot.lane.b32.xlu0 %v2377, 112
        %v2408 = vpop.permute.xlu0 %2407
        %2409 = vrot.lane.b32.xlu0 %v2381, 112
        %v2410 = vpop.permute.xlu0 %2409
        %2411 = vrot.lane.b32.xlu0 %v2385, 112
        %v2412 = vpop.permute.xlu0 %2411
        %2413 = vrot.lane.b32.xlu0 %v2389, 112
        %v2414 = vpop.permute.xlu0 %2413
        %v2423 = vrot.slane %v2400, 7
        %v2424 = vrot.slane %v2402, 7
        %v2425 = vrot.slane %v2404, 7
        %v2426 = vrot.slane %v2406, 7
        %v2427 = vrot.slane %v2408, 7
        %v2428 = vrot.slane %v2410, 7
        %v2429 = vrot.slane %v2412, 7
        %v2430 = vrot.slane %v2414, 7
        %v2431 = vsel %vm942, %v2429, %v2430
        %v2432 = vsel %vm942, %v2428, %v2429
        %v2433 = vsel %vm942, %v2427, %v2428
        %v2434 = vsel %vm942, %v2426, %v2427
        %v2435 = vsel %vm942, %v2425, %v2426
        %v2436 = vsel %vm942, %v2424, %v2425
        %v2437 = vsel %vm942, %v2423, %v2424
        %v2438 = vsel %vm942, %v2430, %v2423
        %v2439 = vsel %vm959, %v2438, 0.0
        %v2440 = vsel %vm960, %v2437, 0.0
        %v2441 = vsel %vm961, %v2436, 0.0
        %v2442 = vsel %vm962, %v2435, 0.0
        %v2443 = vsel %vm963, %v2434, 0.0
        %v2444 = vsel %vm964, %v2433, 0.0
        %v2445 = vsel %vm965, %v2432, 0.0
        %v2446 = vsel %vm966, %v2431, 0.0
        %2447 = vrot.lane.b32.xlu0 %v2361, 96
        %v2448 = vpop.permute.xlu0 %2447
        %2449 = vrot.lane.b32.xlu0 %v2365, 96
        %v2450 = vpop.permute.xlu0 %2449
        %2451 = vrot.lane.b32.xlu0 %v2369, 96
        %v2452 = vpop.permute.xlu0 %2451
        %2453 = vrot.lane.b32.xlu0 %v2373, 96
        %v2454 = vpop.permute.xlu0 %2453
        %2455 = vrot.lane.b32.xlu0 %v2377, 96
        %v2456 = vpop.permute.xlu0 %2455
        %2457 = vrot.lane.b32.xlu0 %v2381, 96
        %v2458 = vpop.permute.xlu0 %2457
        %2459 = vrot.lane.b32.xlu0 %v2385, 96
        %v2460 = vpop.permute.xlu0 %2459
        %2461 = vrot.lane.b32.xlu0 %v2389, 96
        %v2462 = vpop.permute.xlu0 %2461
        %v2471 = vsel %vm1007, %v2462, 0.0
        %v2472 = vsel %vm1008, %v2448, 0.0
        %v2473 = vsel %vm1009, %v2450, 0.0
        %v2474 = vsel %vm1010, %v2452, 0.0
        %v2475 = vsel %vm1011, %v2454, 0.0
        %v2476 = vsel %vm1012, %v2456, 0.0
        %v2477 = vsel %vm1013, %v2458, 0.0
        %v2478 = vsel %vm1014, %v2460, 0.0
        %2479 = vrot.lane.b32.xlu0 %v2361, 80
        %v2480 = vpop.permute.xlu0 %2479
        %2481 = vrot.lane.b32.xlu0 %v2365, 80
        %v2482 = vpop.permute.xlu0 %2481
        %2483 = vrot.lane.b32.xlu0 %v2369, 80
        %v2484 = vpop.permute.xlu0 %2483
        %2485 = vrot.lane.b32.xlu0 %v2373, 80
        %v2486 = vpop.permute.xlu0 %2485
        %2487 = vrot.lane.b32.xlu0 %v2377, 80
        %v2488 = vpop.permute.xlu0 %2487
        %2489 = vrot.lane.b32.xlu0 %v2381, 80
        %v2490 = vpop.permute.xlu0 %2489
        %2491 = vrot.lane.b32.xlu0 %v2385, 80
        %v2492 = vpop.permute.xlu0 %2491
        %2493 = vrot.lane.b32.xlu0 %v2389, 80
        %v2494 = vpop.permute.xlu0 %2493
        %v2503 = vrot.slane %v2480, 7
        %v2504 = vrot.slane %v2482, 7
        %v2505 = vrot.slane %v2484, 7
        %v2506 = vrot.slane %v2486, 7
        %v2507 = vrot.slane %v2488, 7
        %v2508 = vrot.slane %v2490, 7
        %v2509 = vrot.slane %v2492, 7
        %v2510 = vrot.slane %v2494, 7
        %v2511 = vsel %vm942, %v2509, %v2510
        %v2512 = vsel %vm942, %v2508, %v2509
        %v2513 = vsel %vm942, %v2507, %v2508
        %v2514 = vsel %vm942, %v2506, %v2507
        %v2515 = vsel %vm942, %v2505, %v2506
        %v2516 = vsel %vm942, %v2504, %v2505
        %v2517 = vsel %vm942, %v2503, %v2504
        %v2518 = vsel %vm942, %v2510, %v2503
        %v2519 = vsel %vm1071, %v2511, 0.0
        %v2520 = vsel %vm1072, %v2518, 0.0
        %v2521 = vsel %vm1073, %v2517, 0.0
        %v2522 = vsel %vm1074, %v2516, 0.0
        %v2523 = vsel %vm1075, %v2515, 0.0
        %v2524 = vsel %vm1076, %v2514, 0.0
        %v2525 = vsel %vm1077, %v2513, 0.0
        %v2526 = vsel %vm1078, %v2512, 0.0
        %v2527 = vadd.f32 %v2361, %v2439
        %v2528 = vadd.f32 %v2365, %v2440
        %v2529 = vadd.f32 %v2369, %v2441
        %v2530 = vadd.f32 %v2373, %v2442
        %v2531 = vadd.f32 %v2377, %v2443
        %v2532 = vadd.f32 %v2381, %v2444
        %v2533 = vadd.f32 %v2385, %v2445
        %v2534 = vadd.f32 %v2389, %v2446
        %v2535 = vadd.f32 %v2527, %v2471
        %v2536 = vadd.f32 %v2528, %v2472
        %v2537 = vadd.f32 %v2529, %v2473
        %v2538 = vadd.f32 %v2530, %v2474
        %v2539 = vadd.f32 %v2531, %v2475
        %v2540 = vadd.f32 %v2532, %v2476
        %v2541 = vadd.f32 %v2533, %v2477
        %v2542 = vadd.f32 %v2534, %v2478
        %v2543 = vadd.f32 %v2535, %v2519
        %v2544 = vadd.f32 %v2536, %v2520
        %v2545 = vadd.f32 %v2537, %v2521
        %v2546 = vadd.f32 %v2538, %v2522
        %v2547 = vadd.f32 %v2539, %v2523
        %v2548 = vadd.f32 %v2540, %v2524
        %v2549 = vadd.f32 %v2541, %v2525
        %v2550 = vadd.f32 %v2542, %v2526
        %v2551 = vperm.slane %v1939, 0
        %v2552 = vadd.f32 %v2543, %v2551
        %v2553 = vadd.f32 %v2544, %v2551
        %v2554 = vadd.f32 %v2545, %v2551
        %v2555 = vadd.f32 %v2546, %v2551
        %v2556 = vadd.f32 %v2547, %v2551
        %v2557 = vadd.f32 %v2548, %v2551
        %v2558 = vadd.f32 %v2549, %v2551
        %v2559 = vadd.f32 %v2550, %v2551
        %vm2560 = vcmp.gt.f32.partialorder %v2552, 0.0
        %vm2561 = vcmp.gt.f32.partialorder %v2553, 0.0
        %vm2562 = vcmp.gt.f32.partialorder %v2554, 0.0
        %vm2563 = vcmp.gt.f32.partialorder %v2555, 0.0
        %vm2564 = vcmp.gt.f32.partialorder %v2556, 0.0
        %vm2565 = vcmp.gt.f32.partialorder %v2557, 0.0
        %vm2566 = vcmp.gt.f32.partialorder %v2558, 0.0
        %vm2567 = vcmp.gt.f32.partialorder %v2559, 0.0
        %v2568 = vmin.f32 %v2552, 0.0
        %v2569 = vmin.f32 %v2553, 0.0
        %v2570 = vmin.f32 %v2554, 0.0
        %v2571 = vmin.f32 %v2555, 0.0
        %v2572 = vmin.f32 %v2556, 0.0
        %v2573 = vmin.f32 %v2557, 0.0
        %v2574 = vmin.f32 %v2558, 0.0
        %v2575 = vmin.f32 %v2559, 0.0
        %v2576 = vmul.f32 %v2568, 1.442695
        %v2577 = vpow.pop %v2576
        %v2578 = vmul.f32 %v2569, 1.442695
        %v2579 = vpow.pop %v2578
        %v2580 = vmul.f32 %v2570, 1.442695
        %v2581 = vpow.pop %v2580
        %v2582 = vmul.f32 %v2571, 1.442695
        %v2583 = vpow.pop %v2582
        %v2584 = vmul.f32 %v2572, 1.442695
        %v2585 = vpow.pop %v2584
        %v2586 = vmul.f32 %v2573, 1.442695
        %v2587 = vpow.pop %v2586
        %v2588 = vmul.f32 %v2574, 1.442695
        %v2589 = vpow.pop %v2588
        %v2590 = vmul.f32 %v2575, 1.442695
        %v2591 = vpow.pop %v2590
        %v2592 = vsub.f32 %v2577, 1.0
        %v2593 = vsub.f32 %v2579, 1.0
        %v2594 = vsub.f32 %v2581, 1.0
        %v2595 = vsub.f32 %v2583, 1.0
        %v2596 = vsub.f32 %v2585, 1.0
        %v2597 = vsub.f32 %v2587, 1.0
        %v2598 = vsub.f32 %v2589, 1.0
        %v2599 = vsub.f32 %v2591, 1.0
        %v2600 = vsel %vm2560, %v2552, %v2592
        %v2601 = vsel %vm2561, %v2553, %v2593
        %v2602 = vsel %vm2562, %v2554, %v2594
        %v2603 = vsel %vm2563, %v2555, %v2595
        %v2604 = vsel %vm2564, %v2556, %v2596
        %v2605 = vsel %vm2565, %v2557, %v2597
        %v2606 = vsel %vm2566, %v2558, %v2598
        %v2607 = vsel %vm2567, %v2559, %v2599
        %v2609 = vsel %vm501, %v2600, 0
        %v2612 = vsel %vm501, %v2601, 0
        %v2615 = vsel %vm501, %v2602, 0
        %v2618 = vsel %vm501, %v2603, 0
        %v2621 = vsel %vm501, %v2604, 0
        %v2624 = vsel %vm501, %v2605, 0
        %v2627 = vsel %vm501, %v2606, 0
        %v2630 = vsel %vm501, %v2607, 0
        %2632 = vmatpush.msra.mxu0 0.0
        %2633 = vmatpush.msra.mxu0 0.0
        %2634 = vmatpush.msra.mxu0 0.0
        %2635 = vmatpush.msra.mxu0 0.0
        %2636 = vmatpush.msra.mxu0 0.0
        %2637 = vmatpush.msra.mxu0 0.0
        %2638 = vmatpush.msra.mxu0 0.0
        %2639 = vmatpush.msra.mxu0 0.0
        %2640 = vmatpush.msra.mxu0 0.0
        %2641 = vmatpush.msra.mxu0 0.0
        %2642 = vmatpush.msra.mxu0 0.0
        %2643 = vmatpush.msra.mxu0 0.0
        %2644 = vmatpush.msra.mxu0 0.0
        %2645 = vmatpush.msra.mxu0 0.0
        %v2646 = vand.u32 %v1941, 4294901760
        %2647 = vmatpush.msra.mxu0 %v2646
        %v2648 = vand.u32 %v1940, 4294901760
        %2649 = vmatpush.msra.mxu0 %v2648
        %v2650 = vand.u32 %v2609, 4294901760
        %v2651 = vsub.f32 %v2609, %v2650
        %v2652 = vand.u32 %v2651, 4294901760
        %v2653 = vsub.f32 %v2651, %v2652
        %v2654 = vand.u32 %v2653, 4294901760
        %2655 = vmatmul.f32.gmra.mxu0 %v2654
        %v2656 = vpop.f32.mrf.mxu0
        %v2657 = vadd.f32 0.0, %v2656
        %v2658 = vand.u32 %v2612, 4294901760
        %v2659 = vsub.f32 %v2612, %v2658
        %v2660 = vand.u32 %v2659, 4294901760
        %v2661 = vsub.f32 %v2659, %v2660
        %v2662 = vand.u32 %v2661, 4294901760
        %2663 = vmatmul.f32.gmra.mxu0 %v2662
        %v2664 = vpop.f32.mrf.mxu0
        %v2665 = vadd.f32 0.0, %v2664
        %v2666 = vand.u32 %v2615, 4294901760
        %v2667 = vsub.f32 %v2615, %v2666
        %v2668 = vand.u32 %v2667, 4294901760
        %v2669 = vsub.f32 %v2667, %v2668
        %v2670 = vand.u32 %v2669, 4294901760
        %2671 = vmatmul.f32.gmra.mxu0 %v2670
        %v2672 = vpop.f32.mrf.mxu0
        %v2673 = vadd.f32 0.0, %v2672
        %v2674 = vand.u32 %v2618, 4294901760
        %v2675 = vsub.f32 %v2618, %v2674
        %v2676 = vand.u32 %v2675, 4294901760
        %v2677 = vsub.f32 %v2675, %v2676
        %v2678 = vand.u32 %v2677, 4294901760
        %2679 = vmatmul.f32.gmra.mxu0 %v2678
        %v2680 = vpop.f32.mrf.mxu0
        %v2681 = vadd.f32 0.0, %v2680
        %v2682 = vand.u32 %v2621, 4294901760
        %v2683 = vsub.f32 %v2621, %v2682
        %v2684 = vand.u32 %v2683, 4294901760
        %v2685 = vsub.f32 %v2683, %v2684
        %v2686 = vand.u32 %v2685, 4294901760
        %2687 = vmatmul.f32.gmra.mxu0 %v2686
        %v2688 = vpop.f32.mrf.mxu0
        %v2689 = vadd.f32 0.0, %v2688
        %v2690 = vand.u32 %v2624, 4294901760
        %v2691 = vsub.f32 %v2624, %v2690
        %v2692 = vand.u32 %v2691, 4294901760
        %v2693 = vsub.f32 %v2691, %v2692
        %v2694 = vand.u32 %v2693, 4294901760
        %2695 = vmatmul.f32.gmra.mxu0 %v2694
        %v2696 = vpop.f32.mrf.mxu0
        %v2697 = vadd.f32 0.0, %v2696
        %v2698 = vand.u32 %v2627, 4294901760
        %v2699 = vsub.f32 %v2627, %v2698
        %v2700 = vand.u32 %v2699, 4294901760
        %v2701 = vsub.f32 %v2699, %v2700
        %v2702 = vand.u32 %v2701, 4294901760
        %2703 = vmatmul.f32.gmra.mxu0 %v2702
        %v2704 = vpop.f32.mrf.mxu0
        %v2705 = vadd.f32 0.0, %v2704
        %v2706 = vand.u32 %v2630, 4294901760
        %v2707 = vsub.f32 %v2630, %v2706
        %v2708 = vand.u32 %v2707, 4294901760
        %v2709 = vsub.f32 %v2707, %v2708
        %v2710 = vand.u32 %v2709, 4294901760
        %2711 = vmatmul.f32.gmra.mxu0 %v2710
        %v2712 = vpop.f32.mrf.mxu0
        %v2713 = vadd.f32 0.0, %v2712
        %2714 = vdwg.mxu0
        %2715 = vmatpush.msra.mxu0 0.0
        %2716 = vmatpush.msra.mxu0 0.0
        %2717 = vmatpush.msra.mxu0 0.0
        %2718 = vmatpush.msra.mxu0 0.0
        %2719 = vmatpush.msra.mxu0 0.0
        %2720 = vmatpush.msra.mxu0 0.0
        %2721 = vmatpush.msra.mxu0 0.0
        %2722 = vmatpush.msra.mxu0 0.0
        %2723 = vmatpush.msra.mxu0 0.0
        %2724 = vmatpush.msra.mxu0 0.0
        %2725 = vmatpush.msra.mxu0 0.0
        %2726 = vmatpush.msra.mxu0 0.0
        %2727 = vmatpush.msra.mxu0 0.0
        %2728 = vmatpush.msra.mxu0 0.0
        %v2729 = vand.u32 %v1941, 4294901760
        %v2730 = vsub.f32 %v1941, %v2729
        %v2731 = vand.u32 %v2730, 4294901760
        %v2732 = vsub.f32 %v2730, %v2731
        %v2733 = vand.u32 %v2732, 4294901760
        %2734 = vmatpush.msra.mxu0 %v2733
        %v2735 = vand.u32 %v1940, 4294901760
        %v2736 = vsub.f32 %v1940, %v2735
        %v2737 = vand.u32 %v2736, 4294901760
        %v2738 = vsub.f32 %v2736, %v2737
        %v2739 = vand.u32 %v2738, 4294901760
        %2740 = vmatpush.msra.mxu0 %v2739
        %v2741 = vand.u32 %v2609, 4294901760
        %2742 = vmatmul.f32.gmra.mxu0 %v2741
        %v2743 = vpop.f32.mrf.mxu0
        %v2744 = vadd.f32 %v2657, %v2743
        %v2745 = vand.u32 %v2612, 4294901760
        %2746 = vmatmul.f32.gmra.mxu0 %v2745
        %v2747 = vpop.f32.mrf.mxu0
        %v2748 = vadd.f32 %v2665, %v2747
        %v2749 = vand.u32 %v2615, 4294901760
        %2750 = vmatmul.f32.gmra.mxu0 %v2749
        %v2751 = vpop.f32.mrf.mxu0
        %v2752 = vadd.f32 %v2673, %v2751
        %v2753 = vand.u32 %v2618, 4294901760
        %2754 = vmatmul.f32.gmra.mxu0 %v2753
        %v2755 = vpop.f32.mrf.mxu0
        %v2756 = vadd.f32 %v2681, %v2755
        %v2757 = vand.u32 %v2621, 4294901760
        %2758 = vmatmul.f32.gmra.mxu0 %v2757
        %v2759 = vpop.f32.mrf.mxu0
        %v2760 = vadd.f32 %v2689, %v2759
        %v2761 = vand.u32 %v2624, 4294901760
        %2762 = vmatmul.f32.gmra.mxu0 %v2761
        %v2763 = vpop.f32.mrf.mxu0
        %v2764 = vadd.f32 %v2697, %v2763
        %v2765 = vand.u32 %v2627, 4294901760
        %2766 = vmatmul.f32.gmra.mxu0 %v2765
        %v2767 = vpop.f32.mrf.mxu0
        %v2768 = vadd.f32 %v2705, %v2767
        %v2769 = vand.u32 %v2630, 4294901760
        %2770 = vmatmul.f32.gmra.mxu0 %v2769
        %v2771 = vpop.f32.mrf.mxu0
        %v2772 = vadd.f32 %v2713, %v2771
        %2773 = vdwg.mxu0
        %2774 = vmatpush.msra.mxu0 0.0
        %2775 = vmatpush.msra.mxu0 0.0
        %2776 = vmatpush.msra.mxu0 0.0
        %2777 = vmatpush.msra.mxu0 0.0
        %2778 = vmatpush.msra.mxu0 0.0
        %2779 = vmatpush.msra.mxu0 0.0
        %2780 = vmatpush.msra.mxu0 0.0
        %2781 = vmatpush.msra.mxu0 0.0
        %2782 = vmatpush.msra.mxu0 0.0
        %2783 = vmatpush.msra.mxu0 0.0
        %2784 = vmatpush.msra.mxu0 0.0
        %2785 = vmatpush.msra.mxu0 0.0
        %2786 = vmatpush.msra.mxu0 0.0
        %2787 = vmatpush.msra.mxu0 0.0
        %v2788 = vand.u32 %v1941, 4294901760
        %v2789 = vsub.f32 %v1941, %v2788
        %2790 = vmatpush.msra.mxu0 %v2789
        %v2791 = vand.u32 %v1940, 4294901760
        %v2792 = vsub.f32 %v1940, %v2791
        %2793 = vmatpush.msra.mxu0 %v2792
        %v2794 = vand.u32 %v2609, 4294901760
        %v2795 = vsub.f32 %v2609, %v2794
        %2796 = vmatmul.f32.gmra.mxu0 %v2795
        %v2797 = vpop.f32.mrf.mxu0
        %v2798 = vadd.f32 %v2744, %v2797
        %v2799 = vand.u32 %v2612, 4294901760
        %v2800 = vsub.f32 %v2612, %v2799
        %2801 = vmatmul.f32.gmra.mxu0 %v2800
        %v2802 = vpop.f32.mrf.mxu0
        %v2803 = vadd.f32 %v2748, %v2802
        %v2804 = vand.u32 %v2615, 4294901760
        %v2805 = vsub.f32 %v2615, %v2804
        %2806 = vmatmul.f32.gmra.mxu0 %v2805
        %v2807 = vpop.f32.mrf.mxu0
        %v2808 = vadd.f32 %v2752, %v2807
        %v2809 = vand.u32 %v2618, 4294901760
        %v2810 = vsub.f32 %v2618, %v2809
        %2811 = vmatmul.f32.gmra.mxu0 %v2810
        %v2812 = vpop.f32.mrf.mxu0
        %v2813 = vadd.f32 %v2756, %v2812
        %v2814 = vand.u32 %v2621, 4294901760
        %v2815 = vsub.f32 %v2621, %v2814
        %2816 = vmatmul.f32.gmra.mxu0 %v2815
        %v2817 = vpop.f32.mrf.mxu0
        %v2818 = vadd.f32 %v2760, %v2817
        %v2819 = vand.u32 %v2624, 4294901760
        %v2820 = vsub.f32 %v2624, %v2819
        %2821 = vmatmul.f32.gmra.mxu0 %v2820
        %v2822 = vpop.f32.mrf.mxu0
        %v2823 = vadd.f32 %v2764, %v2822
        %v2824 = vand.u32 %v2627, 4294901760
        %v2825 = vsub.f32 %v2627, %v2824
        %2826 = vmatmul.f32.gmra.mxu0 %v2825
        %v2827 = vpop.f32.mrf.mxu0
        %v2828 = vadd.f32 %v2768, %v2827
        %v2829 = vand.u32 %v2630, 4294901760
        %v2830 = vsub.f32 %v2630, %v2829
        %2831 = vmatmul.f32.gmra.mxu0 %v2830
        %v2832 = vpop.f32.mrf.mxu0
        %v2833 = vadd.f32 %v2772, %v2832
        %2834 = vdwg.mxu0
        %2835 = vmatpush.msra.mxu0 0.0
        %2836 = vmatpush.msra.mxu0 0.0
        %2837 = vmatpush.msra.mxu0 0.0
        %2838 = vmatpush.msra.mxu0 0.0
        %2839 = vmatpush.msra.mxu0 0.0
        %2840 = vmatpush.msra.mxu0 0.0
        %2841 = vmatpush.msra.mxu0 0.0
        %2842 = vmatpush.msra.mxu0 0.0
        %2843 = vmatpush.msra.mxu0 0.0
        %2844 = vmatpush.msra.mxu0 0.0
        %2845 = vmatpush.msra.mxu0 0.0
        %2846 = vmatpush.msra.mxu0 0.0
        %2847 = vmatpush.msra.mxu0 0.0
        %2848 = vmatpush.msra.mxu0 0.0
        %v2849 = vand.u32 %v1941, 4294901760
        %2850 = vmatpush.msra.mxu0 %v2849
        %v2851 = vand.u32 %v1940, 4294901760
        %2852 = vmatpush.msra.mxu0 %v2851
        %v2853 = vand.u32 %v2609, 4294901760
        %v2854 = vsub.f32 %v2609, %v2853
        %v2855 = vand.u32 %v2854, 4294901760
        %2856 = vmatmul.f32.gmra.mxu0 %v2855
        %v2857 = vpop.f32.mrf.mxu0
        %v2858 = vadd.f32 %v2798, %v2857
        %v2859 = vand.u32 %v2612, 4294901760
        %v2860 = vsub.f32 %v2612, %v2859
        %v2861 = vand.u32 %v2860, 4294901760
        %2862 = vmatmul.f32.gmra.mxu0 %v2861
        %v2863 = vpop.f32.mrf.mxu0
        %v2864 = vadd.f32 %v2803, %v2863
        %v2865 = vand.u32 %v2615, 4294901760
        %v2866 = vsub.f32 %v2615, %v2865
        %v2867 = vand.u32 %v2866, 4294901760
        %2868 = vmatmul.f32.gmra.mxu0 %v2867
        %v2869 = vpop.f32.mrf.mxu0
        %v2870 = vadd.f32 %v2808, %v2869
        %v2871 = vand.u32 %v2618, 4294901760
        %v2872 = vsub.f32 %v2618, %v2871
        %v2873 = vand.u32 %v2872, 4294901760
        %2874 = vmatmul.f32.gmra.mxu0 %v2873
        %v2875 = vpop.f32.mrf.mxu0
        %v2876 = vadd.f32 %v2813, %v2875
        %v2877 = vand.u32 %v2621, 4294901760
        %v2878 = vsub.f32 %v2621, %v2877
        %v2879 = vand.u32 %v2878, 4294901760
        %2880 = vmatmul.f32.gmra.mxu0 %v2879
        %v2881 = vpop.f32.mrf.mxu0
        %v2882 = vadd.f32 %v2818, %v2881
        %v2883 = vand.u32 %v2624, 4294901760
        %v2884 = vsub.f32 %v2624, %v2883
        %v2885 = vand.u32 %v2884, 4294901760
        %2886 = vmatmul.f32.gmra.mxu0 %v2885
        %v2887 = vpop.f32.mrf.mxu0
        %v2888 = vadd.f32 %v2823, %v2887
        %v2889 = vand.u32 %v2627, 4294901760
        %v2890 = vsub.f32 %v2627, %v2889
        %v2891 = vand.u32 %v2890, 4294901760
        %2892 = vmatmul.f32.gmra.mxu0 %v2891
        %v2893 = vpop.f32.mrf.mxu0
        %v2894 = vadd.f32 %v2828, %v2893
        %v2895 = vand.u32 %v2630, 4294901760
        %v2896 = vsub.f32 %v2630, %v2895
        %v2897 = vand.u32 %v2896, 4294901760
        %2898 = vmatmul.f32.gmra.mxu0 %v2897
        %v2899 = vpop.f32.mrf.mxu0
        %v2900 = vadd.f32 %v2833, %v2899
        %2901 = vdwg.mxu0
        %2902 = vmatpush.msra.mxu0 0.0
        %2903 = vmatpush.msra.mxu0 0.0
        %2904 = vmatpush.msra.mxu0 0.0
        %2905 = vmatpush.msra.mxu0 0.0
        %2906 = vmatpush.msra.mxu0 0.0
        %2907 = vmatpush.msra.mxu0 0.0
        %2908 = vmatpush.msra.mxu0 0.0
        %2909 = vmatpush.msra.mxu0 0.0
        %2910 = vmatpush.msra.mxu0 0.0
        %2911 = vmatpush.msra.mxu0 0.0
        %2912 = vmatpush.msra.mxu0 0.0
        %2913 = vmatpush.msra.mxu0 0.0
        %2914 = vmatpush.msra.mxu0 0.0
        %2915 = vmatpush.msra.mxu0 0.0
        %v2916 = vand.u32 %v1941, 4294901760
        %v2917 = vsub.f32 %v1941, %v2916
        %v2918 = vand.u32 %v2917, 4294901760
        %2919 = vmatpush.msra.mxu0 %v2918
        %v2920 = vand.u32 %v1940, 4294901760
        %v2921 = vsub.f32 %v1940, %v2920
        %v2922 = vand.u32 %v2921, 4294901760
        %2923 = vmatpush.msra.mxu0 %v2922
        %v2924 = vand.u32 %v2609, 4294901760
        %2925 = vmatmul.f32.gmra.mxu0 %v2924
        %v2926 = vpop.f32.mrf.mxu0
        %v2927 = vadd.f32 %v2858, %v2926
        %v2928 = vand.u32 %v2612, 4294901760
        %2929 = vmatmul.f32.gmra.mxu0 %v2928
        %v2930 = vpop.f32.mrf.mxu0
        %v2931 = vadd.f32 %v2864, %v2930
        %v2932 = vand.u32 %v2615, 4294901760
        %2933 = vmatmul.f32.gmra.mxu0 %v2932
        %v2934 = vpop.f32.mrf.mxu0
        %v2935 = vadd.f32 %v2870, %v2934
        %v2936 = vand.u32 %v2618, 4294901760
        %2937 = vmatmul.f32.gmra.mxu0 %v2936
        %v2938 = vpop.f32.mrf.mxu0
        %v2939 = vadd.f32 %v2876, %v2938
        %v2940 = vand.u32 %v2621, 4294901760
        %2941 = vmatmul.f32.gmra.mxu0 %v2940
        %v2942 = vpop.f32.mrf.mxu0
        %v2943 = vadd.f32 %v2882, %v2942
        %v2944 = vand.u32 %v2624, 4294901760
        %2945 = vmatmul.f32.gmra.mxu0 %v2944
        %v2946 = vpop.f32.mrf.mxu0
        %v2947 = vadd.f32 %v2888, %v2946
        %v2948 = vand.u32 %v2627, 4294901760
        %2949 = vmatmul.f32.gmra.mxu0 %v2948
        %v2950 = vpop.f32.mrf.mxu0
        %v2951 = vadd.f32 %v2894, %v2950
        %v2952 = vand.u32 %v2630, 4294901760
        %2953 = vmatmul.f32.gmra.mxu0 %v2952
        %v2954 = vpop.f32.mrf.mxu0
        %v2955 = vadd.f32 %v2900, %v2954
        %2956 = vdwg.mxu0
        %2957 = vmatpush.msra.mxu0 0.0
        %2958 = vmatpush.msra.mxu0 0.0
        %2959 = vmatpush.msra.mxu0 0.0
        %2960 = vmatpush.msra.mxu0 0.0
        %2961 = vmatpush.msra.mxu0 0.0
        %2962 = vmatpush.msra.mxu0 0.0
        %2963 = vmatpush.msra.mxu0 0.0
        %2964 = vmatpush.msra.mxu0 0.0
        %2965 = vmatpush.msra.mxu0 0.0
        %2966 = vmatpush.msra.mxu0 0.0
        %2967 = vmatpush.msra.mxu0 0.0
        %2968 = vmatpush.msra.mxu0 0.0
        %2969 = vmatpush.msra.mxu0 0.0
        %2970 = vmatpush.msra.mxu0 0.0
        %v2971 = vand.u32 %v1941, 4294901760
        %2972 = vmatpush.msra.mxu0 %v2971
        %v2973 = vand.u32 %v1940, 4294901760
        %2974 = vmatpush.msra.mxu0 %v2973
        %v2975 = vand.u32 %v2609, 4294901760
        %2976 = vmatmul.f32.gmra.mxu0 %v2975
        %v2977 = vpop.f32.mrf.mxu0
        %v2978 = vadd.f32 %v2927, %v2977
        %v2979 = vand.u32 %v2612, 4294901760
        %2980 = vmatmul.f32.gmra.mxu0 %v2979
        %v2981 = vpop.f32.mrf.mxu0
        %v2982 = vadd.f32 %v2931, %v2981
        %v2983 = vand.u32 %v2615, 4294901760
        %2984 = vmatmul.f32.gmra.mxu0 %v2983
        %v2985 = vpop.f32.mrf.mxu0
        %v2986 = vadd.f32 %v2935, %v2985
        %v2987 = vand.u32 %v2618, 4294901760
        %2988 = vmatmul.f32.gmra.mxu0 %v2987
        %v2989 = vpop.f32.mrf.mxu0
        %v2990 = vadd.f32 %v2939, %v2989
        %v2991 = vand.u32 %v2621, 4294901760
        %2992 = vmatmul.f32.gmra.mxu0 %v2991
        %v2993 = vpop.f32.mrf.mxu0
        %v2994 = vadd.f32 %v2943, %v2993
        %v2995 = vand.u32 %v2624, 4294901760
        %2996 = vmatmul.f32.gmra.mxu0 %v2995
        %v2997 = vpop.f32.mrf.mxu0
        %v2998 = vadd.f32 %v2947, %v2997
        %v2999 = vand.u32 %v2627, 4294901760
        %3000 = vmatmul.f32.gmra.mxu0 %v2999
        %v3001 = vpop.f32.mrf.mxu0
        %v3002 = vadd.f32 %v2951, %v3001
        %v3003 = vand.u32 %v2630, 4294901760
        %3004 = vmatmul.f32.gmra.mxu0 %v3003
        %v3005 = vpop.f32.mrf.mxu0
        %v3006 = vadd.f32 %v2955, %v3005
        %3007 = vdwg.mxu0
        %3016 = vrot.lane.b32.xlu0 %v2978, 96
        %v3017 = vpop.permute.xlu0 %3016
        %3018 = vrot.lane.b32.xlu0 %v2982, 96
        %v3019 = vpop.permute.xlu0 %3018
        %3020 = vrot.lane.b32.xlu0 %v2986, 96
        %v3021 = vpop.permute.xlu0 %3020
        %3022 = vrot.lane.b32.xlu0 %v2990, 96
        %v3023 = vpop.permute.xlu0 %3022
        %3024 = vrot.lane.b32.xlu0 %v2994, 96
        %v3025 = vpop.permute.xlu0 %3024
        %3026 = vrot.lane.b32.xlu0 %v2998, 96
        %v3027 = vpop.permute.xlu0 %3026
        %3028 = vrot.lane.b32.xlu0 %v3002, 96
        %v3029 = vpop.permute.xlu0 %3028
        %3030 = vrot.lane.b32.xlu0 %v3006, 96
        %v3031 = vpop.permute.xlu0 %3030
        %v3040 = vrot.slane %v3017, 7
        %v3041 = vrot.slane %v3019, 7
        %v3042 = vrot.slane %v3021, 7
        %v3043 = vrot.slane %v3023, 7
        %v3044 = vrot.slane %v3025, 7
        %v3045 = vrot.slane %v3027, 7
        %v3046 = vrot.slane %v3029, 7
        %v3047 = vrot.slane %v3031, 7
        %v3048 = vsel %vm942, %v3046, %v3047
        %v3049 = vsel %vm942, %v3045, %v3046
        %v3050 = vsel %vm942, %v3044, %v3045
        %v3051 = vsel %vm942, %v3043, %v3044
        %v3052 = vsel %vm942, %v3042, %v3043
        %v3053 = vsel %vm942, %v3041, %v3042
        %v3054 = vsel %vm942, %v3040, %v3041
        %v3055 = vsel %vm942, %v3047, %v3040
        %v3056 = vsel %vm959, %v3055, 0.0
        %v3057 = vsel %vm960, %v3054, 0.0
        %v3058 = vsel %vm961, %v3053, 0.0
        %v3059 = vsel %vm962, %v3052, 0.0
        %v3060 = vsel %vm963, %v3051, 0.0
        %v3061 = vsel %vm964, %v3050, 0.0
        %v3062 = vsel %vm965, %v3049, 0.0
        %v3063 = vsel %vm966, %v3048, 0.0
        %3064 = vrot.lane.b32.xlu0 %v2978, 64
        %v3065 = vpop.permute.xlu0 %3064
        %3066 = vrot.lane.b32.xlu0 %v2982, 64
        %v3067 = vpop.permute.xlu0 %3066
        %3068 = vrot.lane.b32.xlu0 %v2986, 64
        %v3069 = vpop.permute.xlu0 %3068
        %3070 = vrot.lane.b32.xlu0 %v2990, 64
        %v3071 = vpop.permute.xlu0 %3070
        %3072 = vrot.lane.b32.xlu0 %v2994, 64
        %v3073 = vpop.permute.xlu0 %3072
        %3074 = vrot.lane.b32.xlu0 %v2998, 64
        %v3075 = vpop.permute.xlu0 %3074
        %3076 = vrot.lane.b32.xlu0 %v3002, 64
        %v3077 = vpop.permute.xlu0 %3076
        %3078 = vrot.lane.b32.xlu0 %v3006, 64
        %v3079 = vpop.permute.xlu0 %3078
        %v3088 = vsel %vm1007, %v3079, 0.0
        %v3089 = vsel %vm1008, %v3065, 0.0
        %v3090 = vsel %vm1009, %v3067, 0.0
        %v3091 = vsel %vm1010, %v3069, 0.0
        %v3092 = vsel %vm1011, %v3071, 0.0
        %v3093 = vsel %vm1012, %v3073, 0.0
        %v3094 = vsel %vm1013, %v3075, 0.0
        %v3095 = vsel %vm1014, %v3077, 0.0
        %3096 = vrot.lane.b32.xlu0 %v2978, 32
        %v3097 = vpop.permute.xlu0 %3096
        %3098 = vrot.lane.b32.xlu0 %v2982, 32
        %v3099 = vpop.permute.xlu0 %3098
        %3100 = vrot.lane.b32.xlu0 %v2986, 32
        %v3101 = vpop.permute.xlu0 %3100
        %3102 = vrot.lane.b32.xlu0 %v2990, 32
        %v3103 = vpop.permute.xlu0 %3102
        %3104 = vrot.lane.b32.xlu0 %v2994, 32
        %v3105 = vpop.permute.xlu0 %3104
        %3106 = vrot.lane.b32.xlu0 %v2998, 32
        %v3107 = vpop.permute.xlu0 %3106
        %3108 = vrot.lane.b32.xlu0 %v3002, 32
        %v3109 = vpop.permute.xlu0 %3108
        %3110 = vrot.lane.b32.xlu0 %v3006, 32
        %v3111 = vpop.permute.xlu0 %3110
        %v3120 = vrot.slane %v3097, 7
        %v3121 = vrot.slane %v3099, 7
        %v3122 = vrot.slane %v3101, 7
        %v3123 = vrot.slane %v3103, 7
        %v3124 = vrot.slane %v3105, 7
        %v3125 = vrot.slane %v3107, 7
        %v3126 = vrot.slane %v3109, 7
        %v3127 = vrot.slane %v3111, 7
        %v3128 = vsel %vm942, %v3126, %v3127
        %v3129 = vsel %vm942, %v3125, %v3126
        %v3130 = vsel %vm942, %v3124, %v3125
        %v3131 = vsel %vm942, %v3123, %v3124
        %v3132 = vsel %vm942, %v3122, %v3123
        %v3133 = vsel %vm942, %v3121, %v3122
        %v3134 = vsel %vm942, %v3120, %v3121
        %v3135 = vsel %vm942, %v3127, %v3120
        %v3136 = vsel %vm1071, %v3128, 0.0
        %v3137 = vsel %vm1072, %v3135, 0.0
        %v3138 = vsel %vm1073, %v3134, 0.0
        %v3139 = vsel %vm1074, %v3133, 0.0
        %v3140 = vsel %vm1075, %v3132, 0.0
        %v3141 = vsel %vm1076, %v3131, 0.0
        %v3142 = vsel %vm1077, %v3130, 0.0
        %v3143 = vsel %vm1078, %v3129, 0.0
        %v3144 = vadd.f32 %v2978, %v3056
        %v3145 = vadd.f32 %v2982, %v3057
        %v3146 = vadd.f32 %v2986, %v3058
        %v3147 = vadd.f32 %v2990, %v3059
        %v3148 = vadd.f32 %v2994, %v3060
        %v3149 = vadd.f32 %v2998, %v3061
        %v3150 = vadd.f32 %v3002, %v3062
        %v3151 = vadd.f32 %v3006, %v3063
        %v3152 = vadd.f32 %v3144, %v3088
        %v3153 = vadd.f32 %v3145, %v3089
        %v3154 = vadd.f32 %v3146, %v3090
        %v3155 = vadd.f32 %v3147, %v3091
        %v3156 = vadd.f32 %v3148, %v3092
        %v3157 = vadd.f32 %v3149, %v3093
        %v3158 = vadd.f32 %v3150, %v3094
        %v3159 = vadd.f32 %v3151, %v3095
        %v3160 = vadd.f32 %v3152, %v3136
        %v3161 = vadd.f32 %v3153, %v3137
        %v3162 = vadd.f32 %v3154, %v3138
        %v3163 = vadd.f32 %v3155, %v3139
        %v3164 = vadd.f32 %v3156, %v3140
        %v3165 = vadd.f32 %v3157, %v3141
        %v3166 = vadd.f32 %v3158, %v3142
        %v3167 = vadd.f32 %v3159, %v3143
        %v3168 = vperm.slane %v1942, 0
        %v3169 = vadd.f32 %v3160, %v3168
        %v3170 = vadd.f32 %v3161, %v3168
        %v3171 = vadd.f32 %v3162, %v3168
        %v3172 = vadd.f32 %v3163, %v3168
        %v3173 = vadd.f32 %v3164, %v3168
        %v3174 = vadd.f32 %v3165, %v3168
        %v3175 = vadd.f32 %v3166, %v3168
        %v3176 = vadd.f32 %v3167, %v3168
        %v3177 = vxor.u32 %v3169, 2147483648
        %v3178 = vxor.u32 %v3170, 2147483648
        %v3179 = vxor.u32 %v3171, 2147483648
        %v3180 = vxor.u32 %v3172, 2147483648
        %v3181 = vxor.u32 %v3173, 2147483648
        %v3182 = vxor.u32 %v3174, 2147483648
        %v3183 = vxor.u32 %v3175, 2147483648
        %v3184 = vxor.u32 %v3176, 2147483648
        %v3185 = vmul.f32 %v3177, 1.442695
        %v3186 = vpow.pop %v3185
        %v3187 = vmul.f32 %v3178, 1.442695
        %v3188 = vpow.pop %v3187
        %v3189 = vmul.f32 %v3179, 1.442695
        %v3190 = vpow.pop %v3189
        %v3191 = vmul.f32 %v3180, 1.442695
        %v3192 = vpow.pop %v3191
        %v3193 = vmul.f32 %v3181, 1.442695
        %v3194 = vpow.pop %v3193
        %v3195 = vmul.f32 %v3182, 1.442695
        %v3196 = vpow.pop %v3195
        %v3197 = vmul.f32 %v3183, 1.442695
        %v3198 = vpow.pop %v3197
        %v3199 = vmul.f32 %v3184, 1.442695
        %v3200 = vpow.pop %v3199
        %v3201 = vadd.f32 %v3186, 1.0
        %v3202 = vadd.f32 %v3188, 1.0
        %v3203 = vadd.f32 %v3190, 1.0
        %v3204 = vadd.f32 %v3192, 1.0
        %v3205 = vadd.f32 %v3194, 1.0
        %v3206 = vadd.f32 %v3196, 1.0
        %v3207 = vadd.f32 %v3198, 1.0
        %v3208 = vadd.f32 %v3200, 1.0
        %v3209 = vrcp.pop %v3201
        %v3210 = vmul.f32 %v3201, %v3209
        %v3211 = vsub.f32 1.0, %v3210
        %v3212 = vmul.f32 %v3209, %v3211
        %v3213 = vadd.f32 %v3209, %v3212
        %vm3214 = vweird.f32 %v3201
        %vm3215 = vweird.f32 %v3209
        %vm3216 = vmor %vm3214, %vm3215
        %v3217 = vsel %vm3216, %v3209, %v3213
        %v3218 = vand.u32 2147483647, %v3201
        %vm3219 = vcmp.eq.f32.partialorder %v3218, 8.507059e+37
        %v3220 = vand.u32 %v3201, 2147483648
        %v3221 = vor.u32 1.1754944e-38, %v3220
        %v3222 = vsel %vm3219, %v3221, %v3217
        %v3223 = vmul.f32 1.0, %v3222
        %v3224 = vrcp.pop %v3202
        %v3225 = vmul.f32 %v3202, %v3224
        %v3226 = vsub.f32 1.0, %v3225
        %v3227 = vmul.f32 %v3224, %v3226
        %v3228 = vadd.f32 %v3224, %v3227
        %vm3229 = vweird.f32 %v3202
        %vm3230 = vweird.f32 %v3224
        %vm3231 = vmor %vm3229, %vm3230
        %v3232 = vsel %vm3231, %v3224, %v3228
        %v3233 = vand.u32 2147483647, %v3202
        %vm3234 = vcmp.eq.f32.partialorder %v3233, 8.507059e+37
        %v3235 = vand.u32 %v3202, 2147483648
        %v3236 = vor.u32 1.1754944e-38, %v3235
        %v3237 = vsel %vm3234, %v3236, %v3232
        %v3238 = vmul.f32 1.0, %v3237
        %v3239 = vrcp.pop %v3203
        %v3240 = vmul.f32 %v3203, %v3239
        %v3241 = vsub.f32 1.0, %v3240
        %v3242 = vmul.f32 %v3239, %v3241
        %v3243 = vadd.f32 %v3239, %v3242
        %vm3244 = vweird.f32 %v3203
        %vm3245 = vweird.f32 %v3239
        %vm3246 = vmor %vm3244, %vm3245
        %v3247 = vsel %vm3246, %v3239, %v3243
        %v3248 = vand.u32 2147483647, %v3203
        %vm3249 = vcmp.eq.f32.partialorder %v3248, 8.507059e+37
        %v3250 = vand.u32 %v3203, 2147483648
        %v3251 = vor.u32 1.1754944e-38, %v3250
        %v3252 = vsel %vm3249, %v3251, %v3247
        %v3253 = vmul.f32 1.0, %v3252
        %v3254 = vrcp.pop %v3204
        %v3255 = vmul.f32 %v3204, %v3254
        %v3256 = vsub.f32 1.0, %v3255
        %v3257 = vmul.f32 %v3254, %v3256
        %v3258 = vadd.f32 %v3254, %v3257
        %vm3259 = vweird.f32 %v3204
        %vm3260 = vweird.f32 %v3254
        %vm3261 = vmor %vm3259, %vm3260
        %v3262 = vsel %vm3261, %v3254, %v3258
        %v3263 = vand.u32 2147483647, %v3204
        %vm3264 = vcmp.eq.f32.partialorder %v3263, 8.507059e+37
        %v3265 = vand.u32 %v3204, 2147483648
        %v3266 = vor.u32 1.1754944e-38, %v3265
        %v3267 = vsel %vm3264, %v3266, %v3262
        %v3268 = vmul.f32 1.0, %v3267
        %v3269 = vrcp.pop %v3205
        %v3270 = vmul.f32 %v3205, %v3269
        %v3271 = vsub.f32 1.0, %v3270
        %v3272 = vmul.f32 %v3269, %v3271
        %v3273 = vadd.f32 %v3269, %v3272
        %vm3274 = vweird.f32 %v3205
        %vm3275 = vweird.f32 %v3269
        %vm3276 = vmor %vm3274, %vm3275
        %v3277 = vsel %vm3276, %v3269, %v3273
        %v3278 = vand.u32 2147483647, %v3205
        %vm3279 = vcmp.eq.f32.partialorder %v3278, 8.507059e+37
        %v3280 = vand.u32 %v3205, 2147483648
        %v3281 = vor.u32 1.1754944e-38, %v3280
        %v3282 = vsel %vm3279, %v3281, %v3277
        %v3283 = vmul.f32 1.0, %v3282
        %v3284 = vrcp.pop %v3206
        %v3285 = vmul.f32 %v3206, %v3284
        %v3286 = vsub.f32 1.0, %v3285
        %v3287 = vmul.f32 %v3284, %v3286
        %v3288 = vadd.f32 %v3284, %v3287
        %vm3289 = vweird.f32 %v3206
        %vm3290 = vweird.f32 %v3284
        %vm3291 = vmor %vm3289, %vm3290
        %v3292 = vsel %vm3291, %v3284, %v3288
        %v3293 = vand.u32 2147483647, %v3206
        %vm3294 = vcmp.eq.f32.partialorder %v3293, 8.507059e+37
        %v3295 = vand.u32 %v3206, 2147483648
        %v3296 = vor.u32 1.1754944e-38, %v3295
        %v3297 = vsel %vm3294, %v3296, %v3292
        %v3298 = vmul.f32 1.0, %v3297
        %v3299 = vrcp.pop %v3207
        %v3300 = vmul.f32 %v3207, %v3299
        %v3301 = vsub.f32 1.0, %v3300
        %v3302 = vmul.f32 %v3299, %v3301
        %v3303 = vadd.f32 %v3299, %v3302
        %vm3304 = vweird.f32 %v3207
        %vm3305 = vweird.f32 %v3299
        %vm3306 = vmor %vm3304, %vm3305
        %v3307 = vsel %vm3306, %v3299, %v3303
        %v3308 = vand.u32 2147483647, %v3207
        %vm3309 = vcmp.eq.f32.partialorder %v3308, 8.507059e+37
        %v3310 = vand.u32 %v3207, 2147483648
        %v3311 = vor.u32 1.1754944e-38, %v3310
        %v3312 = vsel %vm3309, %v3311, %v3307
        %v3313 = vmul.f32 1.0, %v3312
        %v3314 = vrcp.pop %v3208
        %v3315 = vmul.f32 %v3208, %v3314
        %v3316 = vsub.f32 1.0, %v3315
        %v3317 = vmul.f32 %v3314, %v3316
        %v3318 = vadd.f32 %v3314, %v3317
        %vm3319 = vweird.f32 %v3208
        %vm3320 = vweird.f32 %v3314
        %vm3321 = vmor %vm3319, %vm3320
        %v3322 = vsel %vm3321, %v3314, %v3318
        %v3323 = vand.u32 2147483647, %v3208
        %vm3324 = vcmp.eq.f32.partialorder %v3323, 8.507059e+37
        %v3325 = vand.u32 %v3208, 2147483648
        %v3326 = vor.u32 1.1754944e-38, %v3325
        %v3327 = vsel %vm3324, %v3326, %v3322
        %v3328 = vmul.f32 1.0, %v3327
        %3337 = vrot.lane.b32.xlu0 %v3223, 112
        %v3338 = vpop.permute.xlu0 %3337
        %3339 = vrot.lane.b32.xlu0 %v3238, 112
        %v3340 = vpop.permute.xlu0 %3339
        %3341 = vrot.lane.b32.xlu0 %v3253, 112
        %v3342 = vpop.permute.xlu0 %3341
        %3343 = vrot.lane.b32.xlu0 %v3268, 112
        %v3344 = vpop.permute.xlu0 %3343
        %3345 = vrot.lane.b32.xlu0 %v3283, 112
        %v3346 = vpop.permute.xlu0 %3345
        %3347 = vrot.lane.b32.xlu0 %v3298, 112
        %v3348 = vpop.permute.xlu0 %3347
        %3349 = vrot.lane.b32.xlu0 %v3313, 112
        %v3350 = vpop.permute.xlu0 %3349
        %3351 = vrot.lane.b32.xlu0 %v3328, 112
        %v3352 = vpop.permute.xlu0 %3351
        %v3361 = vmul.f32 %v3169, %v3338
        %v3362 = vmul.f32 %v3170, %v3340
        %v3363 = vmul.f32 %v3171, %v3342
        %v3364 = vmul.f32 %v3172, %v3344
        %v3365 = vmul.f32 %v3173, %v3346
        %v3366 = vmul.f32 %v3174, %v3348
        %v3367 = vmul.f32 %v3175, %v3350
        %v3368 = vmul.f32 %v3176, %v3352
        %v3369 = vadd.f32 %v1929, %v3361
        %v3370 = vadd.f32 %v1930, %v3362
        %v3371 = vadd.f32 %v1931, %v3363
        %v3372 = vadd.f32 %v1932, %v3364
        %v3373 = vadd.f32 %v1933, %v3365
        %v3374 = vadd.f32 %v1934, %v3366
        %v3375 = vadd.f32 %v1935, %v3367
        %v3376 = vadd.f32 %v1936, %v3368
        %v3377 = vld [vmem:[#allocation2 + $0x60] sm:$0xff]
        %v3378 = vld [vmem:[#allocation2 + $0x68] sm:$0xff]
        %v3379 = vld [vmem:[#allocation2 + $0x70] sm:$0xff]
        %v3380 = vld [vmem:[#allocation2 + $0x78] sm:$0xff]
        %v3381 = vld [vmem:[#allocation2 + $0x80] sm:$0xff]
        %v3382 = vld [vmem:[#allocation2 + $0x88] sm:$0xff]
        %v3383 = vld [vmem:[#allocation2 + $0x90] sm:$0xff]
        %v3384 = vld [vmem:[#allocation2 + $0x98] sm:$0xff]
        %v3385 = vld [vmem:[#allocation2 + $0xa0] sm:$0xff]
        %v3386 = vld [vmem:[#allocation2 + $0xa8] sm:$0xff]
        %v3388 = vsel %vm501, %v3369, 0
        %v3391 = vsel %vm501, %v3370, 0
        %v3394 = vsel %vm501, %v3371, 0
        %v3397 = vsel %vm501, %v3372, 0
        %v3400 = vsel %vm501, %v3373, 0
        %v3403 = vsel %vm501, %v3374, 0
        %v3406 = vsel %vm501, %v3375, 0
        %v3409 = vsel %vm501, %v3376, 0
        %3411 = vmatpush.msra.mxu0 0.0
        %3412 = vmatpush.msra.mxu0 0.0
        %3413 = vmatpush.msra.mxu0 0.0
        %3414 = vmatpush.msra.mxu0 0.0
        %3415 = vmatpush.msra.mxu0 0.0
        %3416 = vmatpush.msra.mxu0 0.0
        %3417 = vmatpush.msra.mxu0 0.0
        %3418 = vmatpush.msra.mxu0 0.0
        %3419 = vmatpush.msra.mxu0 0.0
        %3420 = vmatpush.msra.mxu0 0.0
        %3421 = vmatpush.msra.mxu0 0.0
        %3422 = vmatpush.msra.mxu0 0.0
        %3423 = vmatpush.msra.mxu0 0.0
        %3424 = vmatpush.msra.mxu0 0.0
        %v3425 = vand.u32 %v3378, 4294901760
        %3426 = vmatpush.msra.mxu0 %v3425
        %v3427 = vand.u32 %v3377, 4294901760
        %3428 = vmatpush.msra.mxu0 %v3427
        %v3429 = vand.u32 %v3388, 4294901760
        %v3430 = vsub.f32 %v3388, %v3429
        %v3431 = vand.u32 %v3430, 4294901760
        %v3432 = vsub.f32 %v3430, %v3431
        %v3433 = vand.u32 %v3432, 4294901760
        %3434 = vmatmul.f32.gmra.mxu0 %v3433
        %v3435 = vpop.f32.mrf.mxu0
        %v3436 = vadd.f32 %v3379, %v3435
        %v3437 = vand.u32 %v3391, 4294901760
        %v3438 = vsub.f32 %v3391, %v3437
        %v3439 = vand.u32 %v3438, 4294901760
        %v3440 = vsub.f32 %v3438, %v3439
        %v3441 = vand.u32 %v3440, 4294901760
        %3442 = vmatmul.f32.gmra.mxu0 %v3441
        %v3443 = vpop.f32.mrf.mxu0
        %v3444 = vadd.f32 %v3380, %v3443
        %v3445 = vand.u32 %v3394, 4294901760
        %v3446 = vsub.f32 %v3394, %v3445
        %v3447 = vand.u32 %v3446, 4294901760
        %v3448 = vsub.f32 %v3446, %v3447
        %v3449 = vand.u32 %v3448, 4294901760
        %3450 = vmatmul.f32.gmra.mxu0 %v3449
        %v3451 = vpop.f32.mrf.mxu0
        %v3452 = vadd.f32 %v3381, %v3451
        %v3453 = vand.u32 %v3397, 4294901760
        %v3454 = vsub.f32 %v3397, %v3453
        %v3455 = vand.u32 %v3454, 4294901760
        %v3456 = vsub.f32 %v3454, %v3455
        %v3457 = vand.u32 %v3456, 4294901760
        %3458 = vmatmul.f32.gmra.mxu0 %v3457
        %v3459 = vpop.f32.mrf.mxu0
        %v3460 = vadd.f32 %v3382, %v3459
        %v3461 = vand.u32 %v3400, 4294901760
        %v3462 = vsub.f32 %v3400, %v3461
        %v3463 = vand.u32 %v3462, 4294901760
        %v3464 = vsub.f32 %v3462, %v3463
        %v3465 = vand.u32 %v3464, 4294901760
        %3466 = vmatmul.f32.gmra.mxu0 %v3465
        %v3467 = vpop.f32.mrf.mxu0
        %v3468 = vadd.f32 %v3383, %v3467
        %v3469 = vand.u32 %v3403, 4294901760
        %v3470 = vsub.f32 %v3403, %v3469
        %v3471 = vand.u32 %v3470, 4294901760
        %v3472 = vsub.f32 %v3470, %v3471
        %v3473 = vand.u32 %v3472, 4294901760
        %3474 = vmatmul.f32.gmra.mxu0 %v3473
        %v3475 = vpop.f32.mrf.mxu0
        %v3476 = vadd.f32 %v3384, %v3475
        %v3477 = vand.u32 %v3406, 4294901760
        %v3478 = vsub.f32 %v3406, %v3477
        %v3479 = vand.u32 %v3478, 4294901760
        %v3480 = vsub.f32 %v3478, %v3479
        %v3481 = vand.u32 %v3480, 4294901760
        %3482 = vmatmul.f32.gmra.mxu0 %v3481
        %v3483 = vpop.f32.mrf.mxu0
        %v3484 = vadd.f32 %v3385, %v3483
        %v3485 = vand.u32 %v3409, 4294901760
        %v3486 = vsub.f32 %v3409, %v3485
        %v3487 = vand.u32 %v3486, 4294901760
        %v3488 = vsub.f32 %v3486, %v3487
        %v3489 = vand.u32 %v3488, 4294901760
        %3490 = vmatmul.f32.gmra.mxu0 %v3489
        %v3491 = vpop.f32.mrf.mxu0
        %v3492 = vadd.f32 %v3386, %v3491
        %3493 = vdwg.mxu0
        %3494 = vmatpush.msra.mxu0 0.0
        %3495 = vmatpush.msra.mxu0 0.0
        %3496 = vmatpush.msra.mxu0 0.0
        %3497 = vmatpush.msra.mxu0 0.0
        %3498 = vmatpush.msra.mxu0 0.0
        %3499 = vmatpush.msra.mxu0 0.0
        %3500 = vmatpush.msra.mxu0 0.0
        %3501 = vmatpush.msra.mxu0 0.0
        %3502 = vmatpush.msra.mxu0 0.0
        %3503 = vmatpush.msra.mxu0 0.0
        %3504 = vmatpush.msra.mxu0 0.0
        %3505 = vmatpush.msra.mxu0 0.0
        %3506 = vmatpush.msra.mxu0 0.0
        %3507 = vmatpush.msra.mxu0 0.0
        %v3508 = vand.u32 %v3378, 4294901760
        %v3509 = vsub.f32 %v3378, %v3508
        %v3510 = vand.u32 %v3509, 4294901760
        %v3511 = vsub.f32 %v3509, %v3510
        %v3512 = vand.u32 %v3511, 4294901760
        %3513 = vmatpush.msra.mxu0 %v3512
        %v3514 = vand.u32 %v3377, 4294901760
        %v3515 = vsub.f32 %v3377, %v3514
        %v3516 = vand.u32 %v3515, 4294901760
        %v3517 = vsub.f32 %v3515, %v3516
        %v3518 = vand.u32 %v3517, 4294901760
        %3519 = vmatpush.msra.mxu0 %v3518
        %v3520 = vand.u32 %v3388, 4294901760
        %3521 = vmatmul.f32.gmra.mxu0 %v3520
        %v3522 = vpop.f32.mrf.mxu0
        %v3523 = vadd.f32 %v3436, %v3522
        %v3524 = vand.u32 %v3391, 4294901760
        %3525 = vmatmul.f32.gmra.mxu0 %v3524
        %v3526 = vpop.f32.mrf.mxu0
        %v3527 = vadd.f32 %v3444, %v3526
        %v3528 = vand.u32 %v3394, 4294901760
        %3529 = vmatmul.f32.gmra.mxu0 %v3528
        %v3530 = vpop.f32.mrf.mxu0
        %v3531 = vadd.f32 %v3452, %v3530
        %v3532 = vand.u32 %v3397, 4294901760
        %3533 = vmatmul.f32.gmra.mxu0 %v3532
        %v3534 = vpop.f32.mrf.mxu0
        %v3535 = vadd.f32 %v3460, %v3534
        %v3536 = vand.u32 %v3400, 4294901760
        %3537 = vmatmul.f32.gmra.mxu0 %v3536
        %v3538 = vpop.f32.mrf.mxu0
        %v3539 = vadd.f32 %v3468, %v3538
        %v3540 = vand.u32 %v3403, 4294901760
        %3541 = vmatmul.f32.gmra.mxu0 %v3540
        %v3542 = vpop.f32.mrf.mxu0
        %v3543 = vadd.f32 %v3476, %v3542
        %v3544 = vand.u32 %v3406, 4294901760
        %3545 = vmatmul.f32.gmra.mxu0 %v3544
        %v3546 = vpop.f32.mrf.mxu0
        %v3547 = vadd.f32 %v3484, %v3546
        %v3548 = vand.u32 %v3409, 4294901760
        %3549 = vmatmul.f32.gmra.mxu0 %v3548
        %v3550 = vpop.f32.mrf.mxu0
        %v3551 = vadd.f32 %v3492, %v3550
        %3552 = vdwg.mxu0
        %3553 = vmatpush.msra.mxu0 0.0
        %3554 = vmatpush.msra.mxu0 0.0
        %3555 = vmatpush.msra.mxu0 0.0
        %3556 = vmatpush.msra.mxu0 0.0
        %3557 = vmatpush.msra.mxu0 0.0
        %3558 = vmatpush.msra.mxu0 0.0
        %3559 = vmatpush.msra.mxu0 0.0
        %3560 = vmatpush.msra.mxu0 0.0
        %3561 = vmatpush.msra.mxu0 0.0
        %3562 = vmatpush.msra.mxu0 0.0
        %3563 = vmatpush.msra.mxu0 0.0
        %3564 = vmatpush.msra.mxu0 0.0
        %3565 = vmatpush.msra.mxu0 0.0
        %3566 = vmatpush.msra.mxu0 0.0
        %v3567 = vand.u32 %v3378, 4294901760
        %v3568 = vsub.f32 %v3378, %v3567
        %3569 = vmatpush.msra.mxu0 %v3568
        %v3570 = vand.u32 %v3377, 4294901760
        %v3571 = vsub.f32 %v3377, %v3570
        %3572 = vmatpush.msra.mxu0 %v3571
        %v3573 = vand.u32 %v3388, 4294901760
        %v3574 = vsub.f32 %v3388, %v3573
        %3575 = vmatmul.f32.gmra.mxu0 %v3574
        %v3576 = vpop.f32.mrf.mxu0
        %v3577 = vadd.f32 %v3523, %v3576
        %v3578 = vand.u32 %v3391, 4294901760
        %v3579 = vsub.f32 %v3391, %v3578
        %3580 = vmatmul.f32.gmra.mxu0 %v3579
        %v3581 = vpop.f32.mrf.mxu0
        %v3582 = vadd.f32 %v3527, %v3581
        %v3583 = vand.u32 %v3394, 4294901760
        %v3584 = vsub.f32 %v3394, %v3583
        %3585 = vmatmul.f32.gmra.mxu0 %v3584
        %v3586 = vpop.f32.mrf.mxu0
        %v3587 = vadd.f32 %v3531, %v3586
        %v3588 = vand.u32 %v3397, 4294901760
        %v3589 = vsub.f32 %v3397, %v3588
        %3590 = vmatmul.f32.gmra.mxu0 %v3589
        %v3591 = vpop.f32.mrf.mxu0
        %v3592 = vadd.f32 %v3535, %v3591
        %v3593 = vand.u32 %v3400, 4294901760
        %v3594 = vsub.f32 %v3400, %v3593
        %3595 = vmatmul.f32.gmra.mxu0 %v3594
        %v3596 = vpop.f32.mrf.mxu0
        %v3597 = vadd.f32 %v3539, %v3596
        %v3598 = vand.u32 %v3403, 4294901760
        %v3599 = vsub.f32 %v3403, %v3598
        %3600 = vmatmul.f32.gmra.mxu0 %v3599
        %v3601 = vpop.f32.mrf.mxu0
        %v3602 = vadd.f32 %v3543, %v3601
        %v3603 = vand.u32 %v3406, 4294901760
        %v3604 = vsub.f32 %v3406, %v3603
        %3605 = vmatmul.f32.gmra.mxu0 %v3604
        %v3606 = vpop.f32.mrf.mxu0
        %v3607 = vadd.f32 %v3547, %v3606
        %v3608 = vand.u32 %v3409, 4294901760
        %v3609 = vsub.f32 %v3409, %v3608
        %3610 = vmatmul.f32.gmra.mxu0 %v3609
        %v3611 = vpop.f32.mrf.mxu0
        %v3612 = vadd.f32 %v3551, %v3611
        %3613 = vdwg.mxu0
        %3614 = vmatpush.msra.mxu0 0.0
        %3615 = vmatpush.msra.mxu0 0.0
        %3616 = vmatpush.msra.mxu0 0.0
        %3617 = vmatpush.msra.mxu0 0.0
        %3618 = vmatpush.msra.mxu0 0.0
        %3619 = vmatpush.msra.mxu0 0.0
        %3620 = vmatpush.msra.mxu0 0.0
        %3621 = vmatpush.msra.mxu0 0.0
        %3622 = vmatpush.msra.mxu0 0.0
        %3623 = vmatpush.msra.mxu0 0.0
        %3624 = vmatpush.msra.mxu0 0.0
        %3625 = vmatpush.msra.mxu0 0.0
        %3626 = vmatpush.msra.mxu0 0.0
        %3627 = vmatpush.msra.mxu0 0.0
        %v3628 = vand.u32 %v3378, 4294901760
        %3629 = vmatpush.msra.mxu0 %v3628
        %v3630 = vand.u32 %v3377, 4294901760
        %3631 = vmatpush.msra.mxu0 %v3630
        %v3632 = vand.u32 %v3388, 4294901760
        %v3633 = vsub.f32 %v3388, %v3632
        %v3634 = vand.u32 %v3633, 4294901760
        %3635 = vmatmul.f32.gmra.mxu0 %v3634
        %v3636 = vpop.f32.mrf.mxu0
        %v3637 = vadd.f32 %v3577, %v3636
        %v3638 = vand.u32 %v3391, 4294901760
        %v3639 = vsub.f32 %v3391, %v3638
        %v3640 = vand.u32 %v3639, 4294901760
        %3641 = vmatmul.f32.gmra.mxu0 %v3640
        %v3642 = vpop.f32.mrf.mxu0
        %v3643 = vadd.f32 %v3582, %v3642
        %v3644 = vand.u32 %v3394, 4294901760
        %v3645 = vsub.f32 %v3394, %v3644
        %v3646 = vand.u32 %v3645, 4294901760
        %3647 = vmatmul.f32.gmra.mxu0 %v3646
        %v3648 = vpop.f32.mrf.mxu0
        %v3649 = vadd.f32 %v3587, %v3648
        %v3650 = vand.u32 %v3397, 4294901760
        %v3651 = vsub.f32 %v3397, %v3650
        %v3652 = vand.u32 %v3651, 4294901760
        %3653 = vmatmul.f32.gmra.mxu0 %v3652
        %v3654 = vpop.f32.mrf.mxu0
        %v3655 = vadd.f32 %v3592, %v3654
        %v3656 = vand.u32 %v3400, 4294901760
        %v3657 = vsub.f32 %v3400, %v3656
        %v3658 = vand.u32 %v3657, 4294901760
        %3659 = vmatmul.f32.gmra.mxu0 %v3658
        %v3660 = vpop.f32.mrf.mxu0
        %v3661 = vadd.f32 %v3597, %v3660
        %v3662 = vand.u32 %v3403, 4294901760
        %v3663 = vsub.f32 %v3403, %v3662
        %v3664 = vand.u32 %v3663, 4294901760
        %3665 = vmatmul.f32.gmra.mxu0 %v3664
        %v3666 = vpop.f32.mrf.mxu0
        %v3667 = vadd.f32 %v3602, %v3666
        %v3668 = vand.u32 %v3406, 4294901760
        %v3669 = vsub.f32 %v3406, %v3668
        %v3670 = vand.u32 %v3669, 4294901760
        %3671 = vmatmul.f32.gmra.mxu0 %v3670
        %v3672 = vpop.f32.mrf.mxu0
        %v3673 = vadd.f32 %v3607, %v3672
        %v3674 = vand.u32 %v3409, 4294901760
        %v3675 = vsub.f32 %v3409, %v3674
        %v3676 = vand.u32 %v3675, 4294901760
        %3677 = vmatmul.f32.gmra.mxu0 %v3676
        %v3678 = vpop.f32.mrf.mxu0
        %v3679 = vadd.f32 %v3612, %v3678
        %3680 = vdwg.mxu0
        %3681 = vmatpush.msra.mxu0 0.0
        %3682 = vmatpush.msra.mxu0 0.0
        %3683 = vmatpush.msra.mxu0 0.0
        %3684 = vmatpush.msra.mxu0 0.0
        %3685 = vmatpush.msra.mxu0 0.0
        %3686 = vmatpush.msra.mxu0 0.0
        %3687 = vmatpush.msra.mxu0 0.0
        %3688 = vmatpush.msra.mxu0 0.0
        %3689 = vmatpush.msra.mxu0 0.0
        %3690 = vmatpush.msra.mxu0 0.0
        %3691 = vmatpush.msra.mxu0 0.0
        %3692 = vmatpush.msra.mxu0 0.0
        %3693 = vmatpush.msra.mxu0 0.0
        %3694 = vmatpush.msra.mxu0 0.0
        %v3695 = vand.u32 %v3378, 4294901760
        %v3696 = vsub.f32 %v3378, %v3695
        %v3697 = vand.u32 %v3696, 4294901760
        %3698 = vmatpush.msra.mxu0 %v3697
        %v3699 = vand.u32 %v3377, 4294901760
        %v3700 = vsub.f32 %v3377, %v3699
        %v3701 = vand.u32 %v3700, 4294901760
        %3702 = vmatpush.msra.mxu0 %v3701
        %v3703 = vand.u32 %v3388, 4294901760
        %3704 = vmatmul.f32.gmra.mxu0 %v3703
        %v3705 = vpop.f32.mrf.mxu0
        %v3706 = vadd.f32 %v3637, %v3705
        %v3707 = vand.u32 %v3391, 4294901760
        %3708 = vmatmul.f32.gmra.mxu0 %v3707
        %v3709 = vpop.f32.mrf.mxu0
        %v3710 = vadd.f32 %v3643, %v3709
        %v3711 = vand.u32 %v3394, 4294901760
        %3712 = vmatmul.f32.gmra.mxu0 %v3711
        %v3713 = vpop.f32.mrf.mxu0
        %v3714 = vadd.f32 %v3649, %v3713
        %v3715 = vand.u32 %v3397, 4294901760
        %3716 = vmatmul.f32.gmra.mxu0 %v3715
        %v3717 = vpop.f32.mrf.mxu0
        %v3718 = vadd.f32 %v3655, %v3717
        %v3719 = vand.u32 %v3400, 4294901760
        %3720 = vmatmul.f32.gmra.mxu0 %v3719
        %v3721 = vpop.f32.mrf.mxu0
        %v3722 = vadd.f32 %v3661, %v3721
        %v3723 = vand.u32 %v3403, 4294901760
        %3724 = vmatmul.f32.gmra.mxu0 %v3723
        %v3725 = vpop.f32.mrf.mxu0
        %v3726 = vadd.f32 %v3667, %v3725
        %v3727 = vand.u32 %v3406, 4294901760
        %3728 = vmatmul.f32.gmra.mxu0 %v3727
        %v3729 = vpop.f32.mrf.mxu0
        %v3730 = vadd.f32 %v3673, %v3729
        %v3731 = vand.u32 %v3409, 4294901760
        %3732 = vmatmul.f32.gmra.mxu0 %v3731
        %v3733 = vpop.f32.mrf.mxu0
        %v3734 = vadd.f32 %v3679, %v3733
        %3735 = vdwg.mxu0
        %3736 = vmatpush.msra.mxu0 0.0
        %3737 = vmatpush.msra.mxu0 0.0
        %3738 = vmatpush.msra.mxu0 0.0
        %3739 = vmatpush.msra.mxu0 0.0
        %3740 = vmatpush.msra.mxu0 0.0
        %3741 = vmatpush.msra.mxu0 0.0
        %3742 = vmatpush.msra.mxu0 0.0
        %3743 = vmatpush.msra.mxu0 0.0
        %3744 = vmatpush.msra.mxu0 0.0
        %3745 = vmatpush.msra.mxu0 0.0
        %3746 = vmatpush.msra.mxu0 0.0
        %3747 = vmatpush.msra.mxu0 0.0
        %3748 = vmatpush.msra.mxu0 0.0
        %3749 = vmatpush.msra.mxu0 0.0
        %v3750 = vand.u32 %v3378, 4294901760
        %3751 = vmatpush.msra.mxu0 %v3750
        %v3752 = vand.u32 %v3377, 4294901760
        %3753 = vmatpush.msra.mxu0 %v3752
        %v3754 = vand.u32 %v3388, 4294901760
        %3755 = vmatmul.f32.gmra.mxu0 %v3754
        %v3756 = vpop.f32.mrf.mxu0
        %v3757 = vadd.f32 %v3706, %v3756
        %v3758 = vand.u32 %v3391, 4294901760
        %3759 = vmatmul.f32.gmra.mxu0 %v3758
        %v3760 = vpop.f32.mrf.mxu0
        %v3761 = vadd.f32 %v3710, %v3760
        %v3762 = vand.u32 %v3394, 4294901760
        %3763 = vmatmul.f32.gmra.mxu0 %v3762
        %v3764 = vpop.f32.mrf.mxu0
        %v3765 = vadd.f32 %v3714, %v3764
        %v3766 = vand.u32 %v3397, 4294901760
        %3767 = vmatmul.f32.gmra.mxu0 %v3766
        %v3768 = vpop.f32.mrf.mxu0
        %v3769 = vadd.f32 %v3718, %v3768
        %v3770 = vand.u32 %v3400, 4294901760
        %3771 = vmatmul.f32.gmra.mxu0 %v3770
        %v3772 = vpop.f32.mrf.mxu0
        %v3773 = vadd.f32 %v3722, %v3772
        %v3774 = vand.u32 %v3403, 4294901760
        %3775 = vmatmul.f32.gmra.mxu0 %v3774
        %v3776 = vpop.f32.mrf.mxu0
        %v3777 = vadd.f32 %v3726, %v3776
        %v3778 = vand.u32 %v3406, 4294901760
        %3779 = vmatmul.f32.gmra.mxu0 %v3778
        %v3780 = vpop.f32.mrf.mxu0
        %v3781 = vadd.f32 %v3730, %v3780
        %v3782 = vand.u32 %v3409, 4294901760
        %3783 = vmatmul.f32.gmra.mxu0 %v3782
        %v3784 = vpop.f32.mrf.mxu0
        %v3785 = vadd.f32 %v3734, %v3784
        %3786 = vdwg.mxu0
        %v3787 = vld [vmem:[#allocation2 + $0xb0] sm:$0x1]
        %3789 = vset.pattern.permute.xlu0 0
        %3790 = vperm.xlu0 %3789, %v214
        %v3791 = vpop.permute.xlu0 %3790
        %3794 = vset.pattern.permute.xlu0 0
        %3795 = vperm.xlu0 %3794, %v215
        %v3796 = vpop.permute.xlu0 %3795
        %3799 = vset.pattern.permute.xlu0 0
        %3800 = vperm.xlu0 %3799, %v216
        %v3801 = vpop.permute.xlu0 %3800
        %3804 = vset.pattern.permute.xlu0 0
        %3805 = vperm.xlu0 %3804, %v217
        %v3806 = vpop.permute.xlu0 %3805
        %3809 = vset.pattern.permute.xlu0 0
        %3810 = vperm.xlu0 %3809, %v218
        %v3811 = vpop.permute.xlu0 %3810
        %3814 = vset.pattern.permute.xlu0 0
        %3815 = vperm.xlu0 %3814, %v219
        %v3816 = vpop.permute.xlu0 %3815
        %3819 = vset.pattern.permute.xlu0 0
        %3820 = vperm.xlu0 %3819, %v220
        %v3821 = vpop.permute.xlu0 %3820
        %3824 = vset.pattern.permute.xlu0 0
        %3825 = vperm.xlu0 %3824, %v221
        %v3826 = vpop.permute.xlu0 %3825
        %v3828 = vperm.slane %v3787, 0
        %v3829 = vmul.f32 %v3791, %v3828
        %v3830 = vmul.f32 %v3796, %v3828
        %v3831 = vmul.f32 %v3801, %v3828
        %v3832 = vmul.f32 %v3806, %v3828
        %v3833 = vmul.f32 %v3811, %v3828
        %v3834 = vmul.f32 %v3816, %v3828
        %v3835 = vmul.f32 %v3821, %v3828
        %v3836 = vmul.f32 %v3826, %v3828
        %v3837 = vadd.f32 %v3757, %v3829
        %v3838 = vadd.f32 %v3761, %v3830
        %v3839 = vadd.f32 %v3765, %v3831
        %v3840 = vadd.f32 %v3769, %v3832
        %v3841 = vadd.f32 %v3773, %v3833
        %v3842 = vadd.f32 %v3777, %v3834
        %v3843 = vadd.f32 %v3781, %v3835
        %v3844 = vadd.f32 %v3785, %v3836
        %3853 = vrot.lane.b32.xlu0 %v3837, 124
        %v3854 = vpop.permute.xlu0 %3853
        %3855 = vrot.lane.b32.xlu0 %v3838, 124
        %v3856 = vpop.permute.xlu0 %3855
        %3857 = vrot.lane.b32.xlu0 %v3839, 124
        %v3858 = vpop.permute.xlu0 %3857
        %3859 = vrot.lane.b32.xlu0 %v3840, 124
        %v3860 = vpop.permute.xlu0 %3859
        %3861 = vrot.lane.b32.xlu0 %v3841, 124
        %v3862 = vpop.permute.xlu0 %3861
        %3863 = vrot.lane.b32.xlu0 %v3842, 124
        %v3864 = vpop.permute.xlu0 %3863
        %3865 = vrot.lane.b32.xlu0 %v3843, 124
        %v3866 = vpop.permute.xlu0 %3865
        %3867 = vrot.lane.b32.xlu0 %v3844, 124
        %v3868 = vpop.permute.xlu0 %3867
        %vm3869 = vcmask 31744
        %v3870 = vsel %vm3869, %v3837, 0
        %v3872 = vsel %vm3869, %v3838, 0
        %v3874 = vsel %vm3869, %v3839, 0
        %v3876 = vsel %vm3869, %v3840, 0
        %v3878 = vsel %vm3869, %v3841, 0
        %v3880 = vsel %vm3869, %v3842, 0
        %v3882 = vsel %vm3869, %v3843, 0
        %v3884 = vsel %vm3869, %v3844, 0
        %v3886 = vsel %vm3869, %v3854, 0
        %v3888 = vsel %vm3869, %v3856, 0
        %v3890 = vsel %vm3869, %v3858, 0
        %v3892 = vsel %vm3869, %v3860, 0
        %v3894 = vsel %vm3869, %v3862, 0
        %v3896 = vsel %vm3869, %v3864, 0
        %v3898 = vsel %vm3869, %v3866, 0
        %v3900 = vsel %vm3869, %v3868, 0
        %3902 = vmatpush.xpose.msra.mxu0 0.0
        %3903 = vmatpush.xpose.msra.mxu0 0.0
        %3904 = vmatpush.xpose.msra.mxu0 0.0
        %3905 = vmatpush.xpose.msra.mxu0 0.0
        %3906 = vmatpush.xpose.msra.mxu0 0.0
        %3907 = vmatpush.xpose.msra.mxu0 0.0
        %3908 = vmatpush.xpose.msra.mxu0 0.0
        %3909 = vmatpush.xpose.msra.mxu0 0.0
        %v3910 = vand.u32 %v3900, 4294901760
        %3911 = vmatpush.xpose.msra.mxu0 %v3910
        %v3912 = vand.u32 %v3898, 4294901760
        %3913 = vmatpush.xpose.msra.mxu0 %v3912
        %v3914 = vand.u32 %v3896, 4294901760
        %3915 = vmatpush.xpose.msra.mxu0 %v3914
        %v3916 = vand.u32 %v3894, 4294901760
        %3917 = vmatpush.xpose.msra.mxu0 %v3916
        %v3918 = vand.u32 %v3892, 4294901760
        %3919 = vmatpush.xpose.msra.mxu0 %v3918
        %v3920 = vand.u32 %v3890, 4294901760
        %3921 = vmatpush.xpose.msra.mxu0 %v3920
        %v3922 = vand.u32 %v3888, 4294901760
        %3923 = vmatpush.xpose.msra.mxu0 %v3922
        %v3924 = vand.u32 %v3886, 4294901760
        %3925 = vmatpush.xpose.msra.mxu0 %v3924
        %v3926 = vand.u32 %v3870, 4294901760
        %v3927 = vsub.f32 %v3870, %v3926
        %v3928 = vand.u32 %v3927, 4294901760
        %v3929 = vsub.f32 %v3927, %v3928
        %v3930 = vand.u32 %v3929, 4294901760
        %3931 = vmatmul.f32.gmra.mxu0 %v3930
        %v3932 = vpop.f32.mrf.mxu0
        %v3933 = vadd.f32 0.0, %v3932
        %v3934 = vand.u32 %v3872, 4294901760
        %v3935 = vsub.f32 %v3872, %v3934
        %v3936 = vand.u32 %v3935, 4294901760
        %v3937 = vsub.f32 %v3935, %v3936
        %v3938 = vand.u32 %v3937, 4294901760
        %3939 = vmatmul.f32.gmra.mxu0 %v3938
        %v3940 = vpop.f32.mrf.mxu0
        %v3941 = vadd.f32 0.0, %v3940
        %v3942 = vand.u32 %v3874, 4294901760
        %v3943 = vsub.f32 %v3874, %v3942
        %v3944 = vand.u32 %v3943, 4294901760
        %v3945 = vsub.f32 %v3943, %v3944
        %v3946 = vand.u32 %v3945, 4294901760
        %3947 = vmatmul.f32.gmra.mxu0 %v3946
        %v3948 = vpop.f32.mrf.mxu0
        %v3949 = vadd.f32 0.0, %v3948
        %v3950 = vand.u32 %v3876, 4294901760
        %v3951 = vsub.f32 %v3876, %v3950
        %v3952 = vand.u32 %v3951, 4294901760
        %v3953 = vsub.f32 %v3951, %v3952
        %v3954 = vand.u32 %v3953, 4294901760
        %3955 = vmatmul.f32.gmra.mxu0 %v3954
        %v3956 = vpop.f32.mrf.mxu0
        %v3957 = vadd.f32 0.0, %v3956
        %v3958 = vand.u32 %v3878, 4294901760
        %v3959 = vsub.f32 %v3878, %v3958
        %v3960 = vand.u32 %v3959, 4294901760
        %v3961 = vsub.f32 %v3959, %v3960
        %v3962 = vand.u32 %v3961, 4294901760
        %3963 = vmatmul.f32.gmra.mxu0 %v3962
        %v3964 = vpop.f32.mrf.mxu0
        %v3965 = vadd.f32 0.0, %v3964
        %v3966 = vand.u32 %v3880, 4294901760
        %v3967 = vsub.f32 %v3880, %v3966
        %v3968 = vand.u32 %v3967, 4294901760
        %v3969 = vsub.f32 %v3967, %v3968
        %v3970 = vand.u32 %v3969, 4294901760
        %3971 = vmatmul.f32.gmra.mxu0 %v3970
        %v3972 = vpop.f32.mrf.mxu0
        %v3973 = vadd.f32 0.0, %v3972
        %v3974 = vand.u32 %v3882, 4294901760
        %v3975 = vsub.f32 %v3882, %v3974
        %v3976 = vand.u32 %v3975, 4294901760
        %v3977 = vsub.f32 %v3975, %v3976
        %v3978 = vand.u32 %v3977, 4294901760
        %3979 = vmatmul.f32.gmra.mxu0 %v3978
        %v3980 = vpop.f32.mrf.mxu0
        %v3981 = vadd.f32 0.0, %v3980
        %v3982 = vand.u32 %v3884, 4294901760
        %v3983 = vsub.f32 %v3884, %v3982
        %v3984 = vand.u32 %v3983, 4294901760
        %v3985 = vsub.f32 %v3983, %v3984
        %v3986 = vand.u32 %v3985, 4294901760
        %3987 = vmatmul.f32.gmra.mxu0 %v3986
        %v3988 = vpop.f32.mrf.mxu0
        %v3989 = vadd.f32 0.0, %v3988
        %3990 = vdwg.mxu0
        %3991 = vmatpush.xpose.msra.mxu0 0.0
        %3992 = vmatpush.xpose.msra.mxu0 0.0
        %3993 = vmatpush.xpose.msra.mxu0 0.0
        %3994 = vmatpush.xpose.msra.mxu0 0.0
        %3995 = vmatpush.xpose.msra.mxu0 0.0
        %3996 = vmatpush.xpose.msra.mxu0 0.0
        %3997 = vmatpush.xpose.msra.mxu0 0.0
        %3998 = vmatpush.xpose.msra.mxu0 0.0
        %v3999 = vand.u32 %v3900, 4294901760
        %v4000 = vsub.f32 %v3900, %v3999
        %v4001 = vand.u32 %v4000, 4294901760
        %v4002 = vsub.f32 %v4000, %v4001
        %v4003 = vand.u32 %v4002, 4294901760
        %4004 = vmatpush.xpose.msra.mxu0 %v4003
        %v4005 = vand.u32 %v3898, 4294901760
        %v4006 = vsub.f32 %v3898, %v4005
        %v4007 = vand.u32 %v4006, 4294901760
        %v4008 = vsub.f32 %v4006, %v4007
        %v4009 = vand.u32 %v4008, 4294901760
        %4010 = vmatpush.xpose.msra.mxu0 %v4009
        %v4011 = vand.u32 %v3896, 4294901760
        %v4012 = vsub.f32 %v3896, %v4011
        %v4013 = vand.u32 %v4012, 4294901760
        %v4014 = vsub.f32 %v4012, %v4013
        %v4015 = vand.u32 %v4014, 4294901760
        %4016 = vmatpush.xpose.msra.mxu0 %v4015
        %v4017 = vand.u32 %v3894, 4294901760
        %v4018 = vsub.f32 %v3894, %v4017
        %v4019 = vand.u32 %v4018, 4294901760
        %v4020 = vsub.f32 %v4018, %v4019
        %v4021 = vand.u32 %v4020, 4294901760
        %4022 = vmatpush.xpose.msra.mxu0 %v4021
        %v4023 = vand.u32 %v3892, 4294901760
        %v4024 = vsub.f32 %v3892, %v4023
        %v4025 = vand.u32 %v4024, 4294901760
        %v4026 = vsub.f32 %v4024, %v4025
        %v4027 = vand.u32 %v4026, 4294901760
        %4028 = vmatpush.xpose.msra.mxu0 %v4027
        %v4029 = vand.u32 %v3890, 4294901760
        %v4030 = vsub.f32 %v3890, %v4029
        %v4031 = vand.u32 %v4030, 4294901760
        %v4032 = vsub.f32 %v4030, %v4031
        %v4033 = vand.u32 %v4032, 4294901760
        %4034 = vmatpush.xpose.msra.mxu0 %v4033
        %v4035 = vand.u32 %v3888, 4294901760
        %v4036 = vsub.f32 %v3888, %v4035
        %v4037 = vand.u32 %v4036, 4294901760
        %v4038 = vsub.f32 %v4036, %v4037
        %v4039 = vand.u32 %v4038, 4294901760
        %4040 = vmatpush.xpose.msra.mxu0 %v4039
        %v4041 = vand.u32 %v3886, 4294901760
        %v4042 = vsub.f32 %v3886, %v4041
        %v4043 = vand.u32 %v4042, 4294901760
        %v4044 = vsub.f32 %v4042, %v4043
        %v4045 = vand.u32 %v4044, 4294901760
        %4046 = vmatpush.xpose.msra.mxu0 %v4045
        %v4047 = vand.u32 %v3870, 4294901760
        %4048 = vmatmul.f32.gmra.mxu0 %v4047
        %v4049 = vpop.f32.mrf.mxu0
        %v4050 = vadd.f32 %v3933, %v4049
        %v4051 = vand.u32 %v3872, 4294901760
        %4052 = vmatmul.f32.gmra.mxu0 %v4051
        %v4053 = vpop.f32.mrf.mxu0
        %v4054 = vadd.f32 %v3941, %v4053
        %v4055 = vand.u32 %v3874, 4294901760
        %4056 = vmatmul.f32.gmra.mxu0 %v4055
        %v4057 = vpop.f32.mrf.mxu0
        %v4058 = vadd.f32 %v3949, %v4057
        %v4059 = vand.u32 %v3876, 4294901760
        %4060 = vmatmul.f32.gmra.mxu0 %v4059
        %v4061 = vpop.f32.mrf.mxu0
        %v4062 = vadd.f32 %v3957, %v4061
        %v4063 = vand.u32 %v3878, 4294901760
        %4064 = vmatmul.f32.gmra.mxu0 %v4063
        %v4065 = vpop.f32.mrf.mxu0
        %v4066 = vadd.f32 %v3965, %v4065
        %v4067 = vand.u32 %v3880, 4294901760
        %4068 = vmatmul.f32.gmra.mxu0 %v4067
        %v4069 = vpop.f32.mrf.mxu0
        %v4070 = vadd.f32 %v3973, %v4069
        %v4071 = vand.u32 %v3882, 4294901760
        %4072 = vmatmul.f32.gmra.mxu0 %v4071
        %v4073 = vpop.f32.mrf.mxu0
        %v4074 = vadd.f32 %v3981, %v4073
        %v4075 = vand.u32 %v3884, 4294901760
        %4076 = vmatmul.f32.gmra.mxu0 %v4075
        %v4077 = vpop.f32.mrf.mxu0
        %v4078 = vadd.f32 %v3989, %v4077
        %4079 = vdwg.mxu0
        %4080 = vmatpush.xpose.msra.mxu0 0.0
        %4081 = vmatpush.xpose.msra.mxu0 0.0
        %4082 = vmatpush.xpose.msra.mxu0 0.0
        %4083 = vmatpush.xpose.msra.mxu0 0.0
        %4084 = vmatpush.xpose.msra.mxu0 0.0
        %4085 = vmatpush.xpose.msra.mxu0 0.0
        %4086 = vmatpush.xpose.msra.mxu0 0.0
        %4087 = vmatpush.xpose.msra.mxu0 0.0
        %v4088 = vand.u32 %v3900, 4294901760
        %v4089 = vsub.f32 %v3900, %v4088
        %4090 = vmatpush.xpose.msra.mxu0 %v4089
        %v4091 = vand.u32 %v3898, 4294901760
        %v4092 = vsub.f32 %v3898, %v4091
        %4093 = vmatpush.xpose.msra.mxu0 %v4092
        %v4094 = vand.u32 %v3896, 4294901760
        %v4095 = vsub.f32 %v3896, %v4094
        %4096 = vmatpush.xpose.msra.mxu0 %v4095
        %v4097 = vand.u32 %v3894, 4294901760
        %v4098 = vsub.f32 %v3894, %v4097
        %4099 = vmatpush.xpose.msra.mxu0 %v4098
        %v4100 = vand.u32 %v3892, 4294901760
        %v4101 = vsub.f32 %v3892, %v4100
        %4102 = vmatpush.xpose.msra.mxu0 %v4101
        %v4103 = vand.u32 %v3890, 4294901760
        %v4104 = vsub.f32 %v3890, %v4103
        %4105 = vmatpush.xpose.msra.mxu0 %v4104
        %v4106 = vand.u32 %v3888, 4294901760
        %v4107 = vsub.f32 %v3888, %v4106
        %4108 = vmatpush.xpose.msra.mxu0 %v4107
        %v4109 = vand.u32 %v3886, 4294901760
        %v4110 = vsub.f32 %v3886, %v4109
        %4111 = vmatpush.xpose.msra.mxu0 %v4110
        %v4112 = vand.u32 %v3870, 4294901760
        %v4113 = vsub.f32 %v3870, %v4112
        %4114 = vmatmul.f32.gmra.mxu0 %v4113
        %v4115 = vpop.f32.mrf.mxu0
        %v4116 = vadd.f32 %v4050, %v4115
        %v4117 = vand.u32 %v3872, 4294901760
        %v4118 = vsub.f32 %v3872, %v4117
        %4119 = vmatmul.f32.gmra.mxu0 %v4118
        %v4120 = vpop.f32.mrf.mxu0
        %v4121 = vadd.f32 %v4054, %v4120
        %v4122 = vand.u32 %v3874, 4294901760
        %v4123 = vsub.f32 %v3874, %v4122
        %4124 = vmatmul.f32.gmra.mxu0 %v4123
        %v4125 = vpop.f32.mrf.mxu0
        %v4126 = vadd.f32 %v4058, %v4125
        %v4127 = vand.u32 %v3876, 4294901760
        %v4128 = vsub.f32 %v3876, %v4127
        %4129 = vmatmul.f32.gmra.mxu0 %v4128
        %v4130 = vpop.f32.mrf.mxu0
        %v4131 = vadd.f32 %v4062, %v4130
        %v4132 = vand.u32 %v3878, 4294901760
        %v4133 = vsub.f32 %v3878, %v4132
        %4134 = vmatmul.f32.gmra.mxu0 %v4133
        %v4135 = vpop.f32.mrf.mxu0
        %v4136 = vadd.f32 %v4066, %v4135
        %v4137 = vand.u32 %v3880, 4294901760
        %v4138 = vsub.f32 %v3880, %v4137
        %4139 = vmatmul.f32.gmra.mxu0 %v4138
        %v4140 = vpop.f32.mrf.mxu0
        %v4141 = vadd.f32 %v4070, %v4140
        %v4142 = vand.u32 %v3882, 4294901760
        %v4143 = vsub.f32 %v3882, %v4142
        %4144 = vmatmul.f32.gmra.mxu0 %v4143
        %v4145 = vpop.f32.mrf.mxu0
        %v4146 = vadd.f32 %v4074, %v4145
        %v4147 = vand.u32 %v3884, 4294901760
        %v4148 = vsub.f32 %v3884, %v4147
        %4149 = vmatmul.f32.gmra.mxu0 %v4148
        %v4150 = vpop.f32.mrf.mxu0
        %v4151 = vadd.f32 %v4078, %v4150
        %4152 = vdwg.mxu0
        %4153 = vmatpush.xpose.msra.mxu0 0.0
        %4154 = vmatpush.xpose.msra.mxu0 0.0
        %4155 = vmatpush.xpose.msra.mxu0 0.0
        %4156 = vmatpush.xpose.msra.mxu0 0.0
        %4157 = vmatpush.xpose.msra.mxu0 0.0
        %4158 = vmatpush.xpose.msra.mxu0 0.0
        %4159 = vmatpush.xpose.msra.mxu0 0.0
        %4160 = vmatpush.xpose.msra.mxu0 0.0
        %v4161 = vand.u32 %v3900, 4294901760
        %4162 = vmatpush.xpose.msra.mxu0 %v4161
        %v4163 = vand.u32 %v3898, 4294901760
        %4164 = vmatpush.xpose.msra.mxu0 %v4163
        %v4165 = vand.u32 %v3896, 4294901760
        %4166 = vmatpush.xpose.msra.mxu0 %v4165
        %v4167 = vand.u32 %v3894, 4294901760
        %4168 = vmatpush.xpose.msra.mxu0 %v4167
        %v4169 = vand.u32 %v3892, 4294901760
        %4170 = vmatpush.xpose.msra.mxu0 %v4169
        %v4171 = vand.u32 %v3890, 4294901760
        %4172 = vmatpush.xpose.msra.mxu0 %v4171
        %v4173 = vand.u32 %v3888, 4294901760
        %4174 = vmatpush.xpose.msra.mxu0 %v4173
        %v4175 = vand.u32 %v3886, 4294901760
        %4176 = vmatpush.xpose.msra.mxu0 %v4175
        %v4177 = vand.u32 %v3870, 4294901760
        %v4178 = vsub.f32 %v3870, %v4177
        %v4179 = vand.u32 %v4178, 4294901760
        %4180 = vmatmul.f32.gmra.mxu0 %v4179
        %v4181 = vpop.f32.mrf.mxu0
        %v4182 = vadd.f32 %v4116, %v4181
        %v4183 = vand.u32 %v3872, 4294901760
        %v4184 = vsub.f32 %v3872, %v4183
        %v4185 = vand.u32 %v4184, 4294901760
        %4186 = vmatmul.f32.gmra.mxu0 %v4185
        %v4187 = vpop.f32.mrf.mxu0
        %v4188 = vadd.f32 %v4121, %v4187
        %v4189 = vand.u32 %v3874, 4294901760
        %v4190 = vsub.f32 %v3874, %v4189
        %v4191 = vand.u32 %v4190, 4294901760
        %4192 = vmatmul.f32.gmra.mxu0 %v4191
        %v4193 = vpop.f32.mrf.mxu0
        %v4194 = vadd.f32 %v4126, %v4193
        %v4195 = vand.u32 %v3876, 4294901760
        %v4196 = vsub.f32 %v3876, %v4195
        %v4197 = vand.u32 %v4196, 4294901760
        %4198 = vmatmul.f32.gmra.mxu0 %v4197
        %v4199 = vpop.f32.mrf.mxu0
        %v4200 = vadd.f32 %v4131, %v4199
        %v4201 = vand.u32 %v3878, 4294901760
        %v4202 = vsub.f32 %v3878, %v4201
        %v4203 = vand.u32 %v4202, 4294901760
        %4204 = vmatmul.f32.gmra.mxu0 %v4203
        %v4205 = vpop.f32.mrf.mxu0
        %v4206 = vadd.f32 %v4136, %v4205
        %v4207 = vand.u32 %v3880, 4294901760
        %v4208 = vsub.f32 %v3880, %v4207
        %v4209 = vand.u32 %v4208, 4294901760
        %4210 = vmatmul.f32.gmra.mxu0 %v4209
        %v4211 = vpop.f32.mrf.mxu0
        %v4212 = vadd.f32 %v4141, %v4211
        %v4213 = vand.u32 %v3882, 4294901760
        %v4214 = vsub.f32 %v3882, %v4213
        %v4215 = vand.u32 %v4214, 4294901760
        %4216 = vmatmul.f32.gmra.mxu0 %v4215
        %v4217 = vpop.f32.mrf.mxu0
        %v4218 = vadd.f32 %v4146, %v4217
        %v4219 = vand.u32 %v3884, 4294901760
        %v4220 = vsub.f32 %v3884, %v4219
        %v4221 = vand.u32 %v4220, 4294901760
        %4222 = vmatmul.f32.gmra.mxu0 %v4221
        %v4223 = vpop.f32.mrf.mxu0
        %v4224 = vadd.f32 %v4151, %v4223
        %4225 = vdwg.mxu0
        %4226 = vmatpush.xpose.msra.mxu0 0.0
        %4227 = vmatpush.xpose.msra.mxu0 0.0
        %4228 = vmatpush.xpose.msra.mxu0 0.0
        %4229 = vmatpush.xpose.msra.mxu0 0.0
        %4230 = vmatpush.xpose.msra.mxu0 0.0
        %4231 = vmatpush.xpose.msra.mxu0 0.0
        %4232 = vmatpush.xpose.msra.mxu0 0.0
        %4233 = vmatpush.xpose.msra.mxu0 0.0
        %v4234 = vand.u32 %v3900, 4294901760
        %v4235 = vsub.f32 %v3900, %v4234
        %v4236 = vand.u32 %v4235, 4294901760
        %4237 = vmatpush.xpose.msra.mxu0 %v4236
        %v4238 = vand.u32 %v3898, 4294901760
        %v4239 = vsub.f32 %v3898, %v4238
        %v4240 = vand.u32 %v4239, 4294901760
        %4241 = vmatpush.xpose.msra.mxu0 %v4240
        %v4242 = vand.u32 %v3896, 4294901760
        %v4243 = vsub.f32 %v3896, %v4242
        %v4244 = vand.u32 %v4243, 4294901760
        %4245 = vmatpush.xpose.msra.mxu0 %v4244
        %v4246 = vand.u32 %v3894, 4294901760
        %v4247 = vsub.f32 %v3894, %v4246
        %v4248 = vand.u32 %v4247, 4294901760
        %4249 = vmatpush.xpose.msra.mxu0 %v4248
        %v4250 = vand.u32 %v3892, 4294901760
        %v4251 = vsub.f32 %v3892, %v4250
        %v4252 = vand.u32 %v4251, 4294901760
        %4253 = vmatpush.xpose.msra.mxu0 %v4252
        %v4254 = vand.u32 %v3890, 4294901760
        %v4255 = vsub.f32 %v3890, %v4254
        %v4256 = vand.u32 %v4255, 4294901760
        %4257 = vmatpush.xpose.msra.mxu0 %v4256
        %v4258 = vand.u32 %v3888, 4294901760
        %v4259 = vsub.f32 %v3888, %v4258
        %v4260 = vand.u32 %v4259, 4294901760
        %4261 = vmatpush.xpose.msra.mxu0 %v4260
        %v4262 = vand.u32 %v3886, 4294901760
        %v4263 = vsub.f32 %v3886, %v4262
        %v4264 = vand.u32 %v4263, 4294901760
        %4265 = vmatpush.xpose.msra.mxu0 %v4264
        %v4266 = vand.u32 %v3870, 4294901760
        %4267 = vmatmul.f32.gmra.mxu0 %v4266
        %v4268 = vpop.f32.mrf.mxu0
        %v4269 = vadd.f32 %v4182, %v4268
        %v4270 = vand.u32 %v3872, 4294901760
        %4271 = vmatmul.f32.gmra.mxu0 %v4270
        %v4272 = vpop.f32.mrf.mxu0
        %v4273 = vadd.f32 %v4188, %v4272
        %v4274 = vand.u32 %v3874, 4294901760
        %4275 = vmatmul.f32.gmra.mxu0 %v4274
        %v4276 = vpop.f32.mrf.mxu0
        %v4277 = vadd.f32 %v4194, %v4276
        %v4278 = vand.u32 %v3876, 4294901760
        %4279 = vmatmul.f32.gmra.mxu0 %v4278
        %v4280 = vpop.f32.mrf.mxu0
        %v4281 = vadd.f32 %v4200, %v4280
        %v4282 = vand.u32 %v3878, 4294901760
        %4283 = vmatmul.f32.gmra.mxu0 %v4282
        %v4284 = vpop.f32.mrf.mxu0
        %v4285 = vadd.f32 %v4206, %v4284
        %v4286 = vand.u32 %v3880, 4294901760
        %4287 = vmatmul.f32.gmra.mxu0 %v4286
        %v4288 = vpop.f32.mrf.mxu0
        %v4289 = vadd.f32 %v4212, %v4288
        %v4290 = vand.u32 %v3882, 4294901760
        %4291 = vmatmul.f32.gmra.mxu0 %v4290
        %v4292 = vpop.f32.mrf.mxu0
        %v4293 = vadd.f32 %v4218, %v4292
        %v4294 = vand.u32 %v3884, 4294901760
        %4295 = vmatmul.f32.gmra.mxu0 %v4294
        %v4296 = vpop.f32.mrf.mxu0
        %v4297 = vadd.f32 %v4224, %v4296
        %4298 = vdwg.mxu0
        %4299 = vmatpush.xpose.msra.mxu0 0.0
        %4300 = vmatpush.xpose.msra.mxu0 0.0
        %4301 = vmatpush.xpose.msra.mxu0 0.0
        %4302 = vmatpush.xpose.msra.mxu0 0.0
        %4303 = vmatpush.xpose.msra.mxu0 0.0
        %4304 = vmatpush.xpose.msra.mxu0 0.0
        %4305 = vmatpush.xpose.msra.mxu0 0.0
        %4306 = vmatpush.xpose.msra.mxu0 0.0
        %v4307 = vand.u32 %v3900, 4294901760
        %4308 = vmatpush.xpose.msra.mxu0 %v4307
        %v4309 = vand.u32 %v3898, 4294901760
        %4310 = vmatpush.xpose.msra.mxu0 %v4309
        %v4311 = vand.u32 %v3896, 4294901760
        %4312 = vmatpush.xpose.msra.mxu0 %v4311
        %v4313 = vand.u32 %v3894, 4294901760
        %4314 = vmatpush.xpose.msra.mxu0 %v4313
        %v4315 = vand.u32 %v3892, 4294901760
        %4316 = vmatpush.xpose.msra.mxu0 %v4315
        %v4317 = vand.u32 %v3890, 4294901760
        %4318 = vmatpush.xpose.msra.mxu0 %v4317
        %v4319 = vand.u32 %v3888, 4294901760
        %4320 = vmatpush.xpose.msra.mxu0 %v4319
        %v4321 = vand.u32 %v3886, 4294901760
        %4322 = vmatpush.xpose.msra.mxu0 %v4321
        %v4323 = vand.u32 %v3870, 4294901760
        %4324 = vmatmul.f32.gmra.mxu0 %v4323
        %v4325 = vpop.f32.mrf.mxu0
        %v4326 = vadd.f32 %v4269, %v4325
        %v4327 = vand.u32 %v3872, 4294901760
        %4328 = vmatmul.f32.gmra.mxu0 %v4327
        %v4329 = vpop.f32.mrf.mxu0
        %v4330 = vadd.f32 %v4273, %v4329
        %v4331 = vand.u32 %v3874, 4294901760
        %4332 = vmatmul.f32.gmra.mxu0 %v4331
        %v4333 = vpop.f32.mrf.mxu0
        %v4334 = vadd.f32 %v4277, %v4333
        %v4335 = vand.u32 %v3876, 4294901760
        %4336 = vmatmul.f32.gmra.mxu0 %v4335
        %v4337 = vpop.f32.mrf.mxu0
        %v4338 = vadd.f32 %v4281, %v4337
        %v4339 = vand.u32 %v3878, 4294901760
        %4340 = vmatmul.f32.gmra.mxu0 %v4339
        %v4341 = vpop.f32.mrf.mxu0
        %v4342 = vadd.f32 %v4285, %v4341
        %v4343 = vand.u32 %v3880, 4294901760
        %4344 = vmatmul.f32.gmra.mxu0 %v4343
        %v4345 = vpop.f32.mrf.mxu0
        %v4346 = vadd.f32 %v4289, %v4345
        %v4347 = vand.u32 %v3882, 4294901760
        %4348 = vmatmul.f32.gmra.mxu0 %v4347
        %v4349 = vpop.f32.mrf.mxu0
        %v4350 = vadd.f32 %v4293, %v4349
        %v4351 = vand.u32 %v3884, 4294901760
        %4352 = vmatmul.f32.gmra.mxu0 %v4351
        %v4353 = vpop.f32.mrf.mxu0
        %v4354 = vadd.f32 %v4297, %v4353
        %4355 = vdwg.mxu0
        %v4356 = vlaneseq
        %v4357 = vand.u32 %v4356, 127
        %vm4358 = vcmp.ge.s32.totalorder %v223, %v4357
        %vm4359 = vcmp.ge.s32.totalorder %v224, %v4357
        %vm4360 = vcmp.ge.s32.totalorder %v225, %v4357
        %vm4361 = vcmp.ge.s32.totalorder %v226, %v4357
        %vm4362 = vcmp.ge.s32.totalorder %v227, %v4357
        %vm4363 = vcmp.ge.s32.totalorder %v228, %v4357
        %vm4364 = vcmp.ge.s32.totalorder %v229, %v4357
        %vm4365 = vcmp.ge.s32.totalorder %v230, %v4357
        %v4366 = vsel %vm4358, %v4326, -1e+30
        %v4367 = vsel %vm4359, %v4330, -1e+30
        %v4368 = vsel %vm4360, %v4334, -1e+30
        %v4369 = vsel %vm4361, %v4338, -1e+30
        %v4370 = vsel %vm4362, %v4342, -1e+30
        %v4371 = vsel %vm4363, %v4346, -1e+30
        %v4372 = vsel %vm4364, %v4350, -1e+30
        %v4373 = vsel %vm4365, %v4354, -1e+30
        %vm4374 = vcmask 523264
        %v4375 = vsel %vm4374, %v4366, -inf
        %4376 = vmax.xlane.f32.xlu0 %v4375
        %v4377 = vpop.xlane.xlu0 %4376
        %v4378 = vsel %vm4374, %v4367, -inf
        %4379 = vmax.xlane.f32.xlu0 %v4378
        %v4380 = vpop.xlane.xlu0 %4379
        %v4381 = vsel %vm4374, %v4368, -inf
        %4382 = vmax.xlane.f32.xlu0 %v4381
        %v4383 = vpop.xlane.xlu0 %4382
        %v4384 = vsel %vm4374, %v4369, -inf
        %4385 = vmax.xlane.f32.xlu0 %v4384
        %v4386 = vpop.xlane.xlu0 %4385
        %v4387 = vsel %vm4374, %v4370, -inf
        %4388 = vmax.xlane.f32.xlu0 %v4387
        %v4389 = vpop.xlane.xlu0 %4388
        %v4390 = vsel %vm4374, %v4371, -inf
        %4391 = vmax.xlane.f32.xlu0 %v4390
        %v4392 = vpop.xlane.xlu0 %4391
        %v4393 = vsel %vm4374, %v4372, -inf
        %4394 = vmax.xlane.f32.xlu0 %v4393
        %v4395 = vpop.xlane.xlu0 %4394
        %v4396 = vsel %vm4374, %v4373, -inf
        %4397 = vmax.xlane.f32.xlu0 %v4396
        %v4398 = vpop.xlane.xlu0 %4397
        %v4399 = vsub.f32 %v4366, %v4377
        %v4400 = vsub.f32 %v4367, %v4380
        %v4401 = vsub.f32 %v4368, %v4383
        %v4402 = vsub.f32 %v4369, %v4386
        %v4403 = vsub.f32 %v4370, %v4389
        %v4404 = vsub.f32 %v4371, %v4392
        %v4405 = vsub.f32 %v4372, %v4395
        %v4406 = vsub.f32 %v4373, %v4398
        %v4407 = vmul.f32 %v4399, 1.442695
        %v4408 = vpow.pop %v4407
        %v4409 = vmul.f32 %v4400, 1.442695
        %v4410 = vpow.pop %v4409
        %v4411 = vmul.f32 %v4401, 1.442695
        %v4412 = vpow.pop %v4411
        %v4413 = vmul.f32 %v4402, 1.442695
        %v4414 = vpow.pop %v4413
        %v4415 = vmul.f32 %v4403, 1.442695
        %v4416 = vpow.pop %v4415
        %v4417 = vmul.f32 %v4404, 1.442695
        %v4418 = vpow.pop %v4417
        %v4419 = vmul.f32 %v4405, 1.442695
        %v4420 = vpow.pop %v4419
        %v4421 = vmul.f32 %v4406, 1.442695
        %v4422 = vpow.pop %v4421
        %v4423 = vsel %vm4374, %v4408, 0.0
        %4424 = vadd.xlane.f32.xlu0 %v4423
        %v4425 = vpop.xlane.xlu0 %4424
        %v4426 = vsel %vm4374, %v4410, 0.0
        %4427 = vadd.xlane.f32.xlu0 %v4426
        %v4428 = vpop.xlane.xlu0 %4427
        %v4429 = vsel %vm4374, %v4412, 0.0
        %4430 = vadd.xlane.f32.xlu0 %v4429
        %v4431 = vpop.xlane.xlu0 %4430
        %v4432 = vsel %vm4374, %v4414, 0.0
        %4433 = vadd.xlane.f32.xlu0 %v4432
        %v4434 = vpop.xlane.xlu0 %4433
        %v4435 = vsel %vm4374, %v4416, 0.0
        %4436 = vadd.xlane.f32.xlu0 %v4435
        %v4437 = vpop.xlane.xlu0 %4436
        %v4438 = vsel %vm4374, %v4418, 0.0
        %4439 = vadd.xlane.f32.xlu0 %v4438
        %v4440 = vpop.xlane.xlu0 %4439
        %v4441 = vsel %vm4374, %v4420, 0.0
        %4442 = vadd.xlane.f32.xlu0 %v4441
        %v4443 = vpop.xlane.xlu0 %4442
        %v4444 = vsel %vm4374, %v4422, 0.0
        %4445 = vadd.xlane.f32.xlu0 %v4444
        %v4446 = vpop.xlane.xlu0 %4445
        %v4447 = vrcp.pop %v4425
        %v4448 = vmul.f32 %v4425, %v4447
        %v4449 = vsub.f32 1.0, %v4448
        %v4450 = vmul.f32 %v4447, %v4449
        %v4451 = vadd.f32 %v4447, %v4450
        %vm4452 = vweird.f32 %v4425
        %vm4453 = vweird.f32 %v4447
        %vm4454 = vmor %vm4452, %vm4453
        %v4455 = vsel %vm4454, %v4447, %v4451
        %v4456 = vand.u32 2147483647, %v4425
        %vm4457 = vcmp.eq.f32.partialorder %v4456, 8.507059e+37
        %v4458 = vand.u32 %v4425, 2147483648
        %v4459 = vor.u32 1.1754944e-38, %v4458
        %v4460 = vsel %vm4457, %v4459, %v4455
        %v4461 = vmul.f32 %v4408, %v4460
        %v4462 = vrcp.pop %v4428
        %v4463 = vmul.f32 %v4428, %v4462
        %v4464 = vsub.f32 1.0, %v4463
        %v4465 = vmul.f32 %v4462, %v4464
        %v4466 = vadd.f32 %v4462, %v4465
        %vm4467 = vweird.f32 %v4428
        %vm4468 = vweird.f32 %v4462
        %vm4469 = vmor %vm4467, %vm4468
        %v4470 = vsel %vm4469, %v4462, %v4466
        %v4471 = vand.u32 2147483647, %v4428
        %vm4472 = vcmp.eq.f32.partialorder %v4471, 8.507059e+37
        %v4473 = vand.u32 %v4428, 2147483648
        %v4474 = vor.u32 1.1754944e-38, %v4473
        %v4475 = vsel %vm4472, %v4474, %v4470
        %v4476 = vmul.f32 %v4410, %v4475
        %v4477 = vrcp.pop %v4431
        %v4478 = vmul.f32 %v4431, %v4477
        %v4479 = vsub.f32 1.0, %v4478
        %v4480 = vmul.f32 %v4477, %v4479
        %v4481 = vadd.f32 %v4477, %v4480
        %vm4482 = vweird.f32 %v4431
        %vm4483 = vweird.f32 %v4477
        %vm4484 = vmor %vm4482, %vm4483
        %v4485 = vsel %vm4484, %v4477, %v4481
        %v4486 = vand.u32 2147483647, %v4431
        %vm4487 = vcmp.eq.f32.partialorder %v4486, 8.507059e+37
        %v4488 = vand.u32 %v4431, 2147483648
        %v4489 = vor.u32 1.1754944e-38, %v4488
        %v4490 = vsel %vm4487, %v4489, %v4485
        %v4491 = vmul.f32 %v4412, %v4490
        %v4492 = vrcp.pop %v4434
        %v4493 = vmul.f32 %v4434, %v4492
        %v4494 = vsub.f32 1.0, %v4493
        %v4495 = vmul.f32 %v4492, %v4494
        %v4496 = vadd.f32 %v4492, %v4495
        %vm4497 = vweird.f32 %v4434
        %vm4498 = vweird.f32 %v4492
        %vm4499 = vmor %vm4497, %vm4498
        %v4500 = vsel %vm4499, %v4492, %v4496
        %v4501 = vand.u32 2147483647, %v4434
        %vm4502 = vcmp.eq.f32.partialorder %v4501, 8.507059e+37
        %v4503 = vand.u32 %v4434, 2147483648
        %v4504 = vor.u32 1.1754944e-38, %v4503
        %v4505 = vsel %vm4502, %v4504, %v4500
        %v4506 = vmul.f32 %v4414, %v4505
        %v4507 = vrcp.pop %v4437
        %v4508 = vmul.f32 %v4437, %v4507
        %v4509 = vsub.f32 1.0, %v4508
        %v4510 = vmul.f32 %v4507, %v4509
        %v4511 = vadd.f32 %v4507, %v4510
        %vm4512 = vweird.f32 %v4437
        %vm4513 = vweird.f32 %v4507
        %vm4514 = vmor %vm4512, %vm4513
        %v4515 = vsel %vm4514, %v4507, %v4511
        %v4516 = vand.u32 2147483647, %v4437
        %vm4517 = vcmp.eq.f32.partialorder %v4516, 8.507059e+37
        %v4518 = vand.u32 %v4437, 2147483648
        %v4519 = vor.u32 1.1754944e-38, %v4518
        %v4520 = vsel %vm4517, %v4519, %v4515
        %v4521 = vmul.f32 %v4416, %v4520
        %v4522 = vrcp.pop %v4440
        %v4523 = vmul.f32 %v4440, %v4522
        %v4524 = vsub.f32 1.0, %v4523
        %v4525 = vmul.f32 %v4522, %v4524
        %v4526 = vadd.f32 %v4522, %v4525
        %vm4527 = vweird.f32 %v4440
        %vm4528 = vweird.f32 %v4522
        %vm4529 = vmor %vm4527, %vm4528
        %v4530 = vsel %vm4529, %v4522, %v4526
        %v4531 = vand.u32 2147483647, %v4440
        %vm4532 = vcmp.eq.f32.partialorder %v4531, 8.507059e+37
        %v4533 = vand.u32 %v4440, 2147483648
        %v4534 = vor.u32 1.1754944e-38, %v4533
        %v4535 = vsel %vm4532, %v4534, %v4530
        %v4536 = vmul.f32 %v4418, %v4535
        %v4537 = vrcp.pop %v4443
        %v4538 = vmul.f32 %v4443, %v4537
        %v4539 = vsub.f32 1.0, %v4538
        %v4540 = vmul.f32 %v4537, %v4539
        %v4541 = vadd.f32 %v4537, %v4540
        %vm4542 = vweird.f32 %v4443
        %vm4543 = vweird.f32 %v4537
        %vm4544 = vmor %vm4542, %vm4543
        %v4545 = vsel %vm4544, %v4537, %v4541
        %v4546 = vand.u32 2147483647, %v4443
        %vm4547 = vcmp.eq.f32.partialorder %v4546, 8.507059e+37
        %v4548 = vand.u32 %v4443, 2147483648
        %v4549 = vor.u32 1.1754944e-38, %v4548
        %v4550 = vsel %vm4547, %v4549, %v4545
        %v4551 = vmul.f32 %v4420, %v4550
        %v4552 = vrcp.pop %v4446
        %v4553 = vmul.f32 %v4446, %v4552
        %v4554 = vsub.f32 1.0, %v4553
        %v4555 = vmul.f32 %v4552, %v4554
        %v4556 = vadd.f32 %v4552, %v4555
        %vm4557 = vweird.f32 %v4446
        %vm4558 = vweird.f32 %v4552
        %vm4559 = vmor %vm4557, %vm4558
        %v4560 = vsel %vm4559, %v4552, %v4556
        %v4561 = vand.u32 2147483647, %v4446
        %vm4562 = vcmp.eq.f32.partialorder %v4561, 8.507059e+37
        %v4563 = vand.u32 %v4446, 2147483648
        %v4564 = vor.u32 1.1754944e-38, %v4563
        %v4565 = vsel %vm4562, %v4564, %v4560
        %v4566 = vmul.f32 %v4422, %v4565
        %4567 = vrot.lane.b32.xlu0 %v3837, 120
        %v4568 = vpop.permute.xlu0 %4567
        %4569 = vrot.lane.b32.xlu0 %v3838, 120
        %v4570 = vpop.permute.xlu0 %4569
        %4571 = vrot.lane.b32.xlu0 %v3839, 120
        %v4572 = vpop.permute.xlu0 %4571
        %4573 = vrot.lane.b32.xlu0 %v3840, 120
        %v4574 = vpop.permute.xlu0 %4573
        %4575 = vrot.lane.b32.xlu0 %v3841, 120
        %v4576 = vpop.permute.xlu0 %4575
        %4577 = vrot.lane.b32.xlu0 %v3842, 120
        %v4578 = vpop.permute.xlu0 %4577
        %4579 = vrot.lane.b32.xlu0 %v3843, 120
        %v4580 = vpop.permute.xlu0 %4579
        %4581 = vrot.lane.b32.xlu0 %v3844, 120
        %v4582 = vpop.permute.xlu0 %4581
        %v4592 = vsel %vm4374, %v4461, 0
        %v4595 = vsel %vm4374, %v4476, 0
        %v4598 = vsel %vm4374, %v4491, 0
        %v4601 = vsel %vm4374, %v4506, 0
        %v4604 = vsel %vm4374, %v4521, 0
        %v4607 = vsel %vm4374, %v4536, 0
        %v4610 = vsel %vm4374, %v4551, 0
        %v4613 = vsel %vm4374, %v4566, 0
        %4615 = vmatpush.msra.mxu0 0.0
        %4616 = vmatpush.msra.mxu0 0.0
        %4617 = vmatpush.msra.mxu0 0.0
        %4618 = vmatpush.msra.mxu0 0.0
        %4619 = vmatpush.msra.mxu0 0.0
        %4620 = vmatpush.msra.mxu0 0.0
        %4621 = vmatpush.msra.mxu0 0.0
        %4622 = vmatpush.msra.mxu0 0.0
        %v4623 = vand.u32 %v4582, 4294901760
        %4624 = vmatpush.msra.mxu0 %v4623
        %v4625 = vand.u32 %v4580, 4294901760
        %4626 = vmatpush.msra.mxu0 %v4625
        %v4627 = vand.u32 %v4578, 4294901760
        %4628 = vmatpush.msra.mxu0 %v4627
        %v4629 = vand.u32 %v4576, 4294901760
        %4630 = vmatpush.msra.mxu0 %v4629
        %v4631 = vand.u32 %v4574, 4294901760
        %4632 = vmatpush.msra.mxu0 %v4631
        %v4633 = vand.u32 %v4572, 4294901760
        %4634 = vmatpush.msra.mxu0 %v4633
        %v4635 = vand.u32 %v4570, 4294901760
        %4636 = vmatpush.msra.mxu0 %v4635
        %v4637 = vand.u32 %v4568, 4294901760
        %4638 = vmatpush.msra.mxu0 %v4637
        %v4639 = vand.u32 %v4592, 4294901760
        %v4640 = vsub.f32 %v4592, %v4639
        %v4641 = vand.u32 %v4640, 4294901760
        %v4642 = vsub.f32 %v4640, %v4641
        %v4643 = vand.u32 %v4642, 4294901760
        %4644 = vmatmul.f32.gmra.mxu0 %v4643
        %v4645 = vpop.f32.mrf.mxu0
        %v4646 = vadd.f32 0.0, %v4645
        %v4647 = vand.u32 %v4595, 4294901760
        %v4648 = vsub.f32 %v4595, %v4647
        %v4649 = vand.u32 %v4648, 4294901760
        %v4650 = vsub.f32 %v4648, %v4649
        %v4651 = vand.u32 %v4650, 4294901760
        %4652 = vmatmul.f32.gmra.mxu0 %v4651
        %v4653 = vpop.f32.mrf.mxu0
        %v4654 = vadd.f32 0.0, %v4653
        %v4655 = vand.u32 %v4598, 4294901760
        %v4656 = vsub.f32 %v4598, %v4655
        %v4657 = vand.u32 %v4656, 4294901760
        %v4658 = vsub.f32 %v4656, %v4657
        %v4659 = vand.u32 %v4658, 4294901760
        %4660 = vmatmul.f32.gmra.mxu0 %v4659
        %v4661 = vpop.f32.mrf.mxu0
        %v4662 = vadd.f32 0.0, %v4661
        %v4663 = vand.u32 %v4601, 4294901760
        %v4664 = vsub.f32 %v4601, %v4663
        %v4665 = vand.u32 %v4664, 4294901760
        %v4666 = vsub.f32 %v4664, %v4665
        %v4667 = vand.u32 %v4666, 4294901760
        %4668 = vmatmul.f32.gmra.mxu0 %v4667
        %v4669 = vpop.f32.mrf.mxu0
        %v4670 = vadd.f32 0.0, %v4669
        %v4671 = vand.u32 %v4604, 4294901760
        %v4672 = vsub.f32 %v4604, %v4671
        %v4673 = vand.u32 %v4672, 4294901760
        %v4674 = vsub.f32 %v4672, %v4673
        %v4675 = vand.u32 %v4674, 4294901760
        %4676 = vmatmul.f32.gmra.mxu0 %v4675
        %v4677 = vpop.f32.mrf.mxu0
        %v4678 = vadd.f32 0.0, %v4677
        %v4679 = vand.u32 %v4607, 4294901760
        %v4680 = vsub.f32 %v4607, %v4679
        %v4681 = vand.u32 %v4680, 4294901760
        %v4682 = vsub.f32 %v4680, %v4681
        %v4683 = vand.u32 %v4682, 4294901760
        %4684 = vmatmul.f32.gmra.mxu0 %v4683
        %v4685 = vpop.f32.mrf.mxu0
        %v4686 = vadd.f32 0.0, %v4685
        %v4687 = vand.u32 %v4610, 4294901760
        %v4688 = vsub.f32 %v4610, %v4687
        %v4689 = vand.u32 %v4688, 4294901760
        %v4690 = vsub.f32 %v4688, %v4689
        %v4691 = vand.u32 %v4690, 4294901760
        %4692 = vmatmul.f32.gmra.mxu0 %v4691
        %v4693 = vpop.f32.mrf.mxu0
        %v4694 = vadd.f32 0.0, %v4693
        %v4695 = vand.u32 %v4613, 4294901760
        %v4696 = vsub.f32 %v4613, %v4695
        %v4697 = vand.u32 %v4696, 4294901760
        %v4698 = vsub.f32 %v4696, %v4697
        %v4699 = vand.u32 %v4698, 4294901760
        %4700 = vmatmul.f32.gmra.mxu0 %v4699
        %v4701 = vpop.f32.mrf.mxu0
        %v4702 = vadd.f32 0.0, %v4701
        %4703 = vdwg.mxu0
        %4704 = vmatpush.msra.mxu0 0.0
        %4705 = vmatpush.msra.mxu0 0.0
        %4706 = vmatpush.msra.mxu0 0.0
        %4707 = vmatpush.msra.mxu0 0.0
        %4708 = vmatpush.msra.mxu0 0.0
        %4709 = vmatpush.msra.mxu0 0.0
        %4710 = vmatpush.msra.mxu0 0.0
        %4711 = vmatpush.msra.mxu0 0.0
        %v4712 = vand.u32 %v4582, 4294901760
        %v4713 = vsub.f32 %v4582, %v4712
        %v4714 = vand.u32 %v4713, 4294901760
        %v4715 = vsub.f32 %v4713, %v4714
        %v4716 = vand.u32 %v4715, 4294901760
        %4717 = vmatpush.msra.mxu0 %v4716
        %v4718 = vand.u32 %v4580, 4294901760
        %v4719 = vsub.f32 %v4580, %v4718
        %v4720 = vand.u32 %v4719, 4294901760
        %v4721 = vsub.f32 %v4719, %v4720
        %v4722 = vand.u32 %v4721, 4294901760
        %4723 = vmatpush.msra.mxu0 %v4722
        %v4724 = vand.u32 %v4578, 4294901760
        %v4725 = vsub.f32 %v4578, %v4724
        %v4726 = vand.u32 %v4725, 4294901760
        %v4727 = vsub.f32 %v4725, %v4726
        %v4728 = vand.u32 %v4727, 4294901760
        %4729 = vmatpush.msra.mxu0 %v4728
        %v4730 = vand.u32 %v4576, 4294901760
        %v4731 = vsub.f32 %v4576, %v4730
        %v4732 = vand.u32 %v4731, 4294901760
        %v4733 = vsub.f32 %v4731, %v4732
        %v4734 = vand.u32 %v4733, 4294901760
        %4735 = vmatpush.msra.mxu0 %v4734
        %v4736 = vand.u32 %v4574, 4294901760
        %v4737 = vsub.f32 %v4574, %v4736
        %v4738 = vand.u32 %v4737, 4294901760
        %v4739 = vsub.f32 %v4737, %v4738
        %v4740 = vand.u32 %v4739, 4294901760
        %4741 = vmatpush.msra.mxu0 %v4740
        %v4742 = vand.u32 %v4572, 4294901760
        %v4743 = vsub.f32 %v4572, %v4742
        %v4744 = vand.u32 %v4743, 4294901760
        %v4745 = vsub.f32 %v4743, %v4744
        %v4746 = vand.u32 %v4745, 4294901760
        %4747 = vmatpush.msra.mxu0 %v4746
        %v4748 = vand.u32 %v4570, 4294901760
        %v4749 = vsub.f32 %v4570, %v4748
        %v4750 = vand.u32 %v4749, 4294901760
        %v4751 = vsub.f32 %v4749, %v4750
        %v4752 = vand.u32 %v4751, 4294901760
        %4753 = vmatpush.msra.mxu0 %v4752
        %v4754 = vand.u32 %v4568, 4294901760
        %v4755 = vsub.f32 %v4568, %v4754
        %v4756 = vand.u32 %v4755, 4294901760
        %v4757 = vsub.f32 %v4755, %v4756
        %v4758 = vand.u32 %v4757, 4294901760
        %4759 = vmatpush.msra.mxu0 %v4758
        %v4760 = vand.u32 %v4592, 4294901760
        %4761 = vmatmul.f32.gmra.mxu0 %v4760
        %v4762 = vpop.f32.mrf.mxu0
        %v4763 = vadd.f32 %v4646, %v4762
        %v4764 = vand.u32 %v4595, 4294901760
        %4765 = vmatmul.f32.gmra.mxu0 %v4764
        %v4766 = vpop.f32.mrf.mxu0
        %v4767 = vadd.f32 %v4654, %v4766
        %v4768 = vand.u32 %v4598, 4294901760
        %4769 = vmatmul.f32.gmra.mxu0 %v4768
        %v4770 = vpop.f32.mrf.mxu0
        %v4771 = vadd.f32 %v4662, %v4770
        %v4772 = vand.u32 %v4601, 4294901760
        %4773 = vmatmul.f32.gmra.mxu0 %v4772
        %v4774 = vpop.f32.mrf.mxu0
        %v4775 = vadd.f32 %v4670, %v4774
        %v4776 = vand.u32 %v4604, 4294901760
        %4777 = vmatmul.f32.gmra.mxu0 %v4776
        %v4778 = vpop.f32.mrf.mxu0
        %v4779 = vadd.f32 %v4678, %v4778
        %v4780 = vand.u32 %v4607, 4294901760
        %4781 = vmatmul.f32.gmra.mxu0 %v4780
        %v4782 = vpop.f32.mrf.mxu0
        %v4783 = vadd.f32 %v4686, %v4782
        %v4784 = vand.u32 %v4610, 4294901760
        %4785 = vmatmul.f32.gmra.mxu0 %v4784
        %v4786 = vpop.f32.mrf.mxu0
        %v4787 = vadd.f32 %v4694, %v4786
        %v4788 = vand.u32 %v4613, 4294901760
        %4789 = vmatmul.f32.gmra.mxu0 %v4788
        %v4790 = vpop.f32.mrf.mxu0
        %v4791 = vadd.f32 %v4702, %v4790
        %4792 = vdwg.mxu0
        %4793 = vmatpush.msra.mxu0 0.0
        %4794 = vmatpush.msra.mxu0 0.0
        %4795 = vmatpush.msra.mxu0 0.0
        %4796 = vmatpush.msra.mxu0 0.0
        %4797 = vmatpush.msra.mxu0 0.0
        %4798 = vmatpush.msra.mxu0 0.0
        %4799 = vmatpush.msra.mxu0 0.0
        %4800 = vmatpush.msra.mxu0 0.0
        %v4801 = vand.u32 %v4582, 4294901760
        %v4802 = vsub.f32 %v4582, %v4801
        %4803 = vmatpush.msra.mxu0 %v4802
        %v4804 = vand.u32 %v4580, 4294901760
        %v4805 = vsub.f32 %v4580, %v4804
        %4806 = vmatpush.msra.mxu0 %v4805
        %v4807 = vand.u32 %v4578, 4294901760
        %v4808 = vsub.f32 %v4578, %v4807
        %4809 = vmatpush.msra.mxu0 %v4808
        %v4810 = vand.u32 %v4576, 4294901760
        %v4811 = vsub.f32 %v4576, %v4810
        %4812 = vmatpush.msra.mxu0 %v4811
        %v4813 = vand.u32 %v4574, 4294901760
        %v4814 = vsub.f32 %v4574, %v4813
        %4815 = vmatpush.msra.mxu0 %v4814
        %v4816 = vand.u32 %v4572, 4294901760
        %v4817 = vsub.f32 %v4572, %v4816
        %4818 = vmatpush.msra.mxu0 %v4817
        %v4819 = vand.u32 %v4570, 4294901760
        %v4820 = vsub.f32 %v4570, %v4819
        %4821 = vmatpush.msra.mxu0 %v4820
        %v4822 = vand.u32 %v4568, 4294901760
        %v4823 = vsub.f32 %v4568, %v4822
        %4824 = vmatpush.msra.mxu0 %v4823
        %v4825 = vand.u32 %v4592, 4294901760
        %v4826 = vsub.f32 %v4592, %v4825
        %4827 = vmatmul.f32.gmra.mxu0 %v4826
        %v4828 = vpop.f32.mrf.mxu0
        %v4829 = vadd.f32 %v4763, %v4828
        %v4830 = vand.u32 %v4595, 4294901760
        %v4831 = vsub.f32 %v4595, %v4830
        %4832 = vmatmul.f32.gmra.mxu0 %v4831
        %v4833 = vpop.f32.mrf.mxu0
        %v4834 = vadd.f32 %v4767, %v4833
        %v4835 = vand.u32 %v4598, 4294901760
        %v4836 = vsub.f32 %v4598, %v4835
        %4837 = vmatmul.f32.gmra.mxu0 %v4836
        %v4838 = vpop.f32.mrf.mxu0
        %v4839 = vadd.f32 %v4771, %v4838
        %v4840 = vand.u32 %v4601, 4294901760
        %v4841 = vsub.f32 %v4601, %v4840
        %4842 = vmatmul.f32.gmra.mxu0 %v4841
        %v4843 = vpop.f32.mrf.mxu0
        %v4844 = vadd.f32 %v4775, %v4843
        %v4845 = vand.u32 %v4604, 4294901760
        %v4846 = vsub.f32 %v4604, %v4845
        %4847 = vmatmul.f32.gmra.mxu0 %v4846
        %v4848 = vpop.f32.mrf.mxu0
        %v4849 = vadd.f32 %v4779, %v4848
        %v4850 = vand.u32 %v4607, 4294901760
        %v4851 = vsub.f32 %v4607, %v4850
        %4852 = vmatmul.f32.gmra.mxu0 %v4851
        %v4853 = vpop.f32.mrf.mxu0
        %v4854 = vadd.f32 %v4783, %v4853
        %v4855 = vand.u32 %v4610, 4294901760
        %v4856 = vsub.f32 %v4610, %v4855
        %4857 = vmatmul.f32.gmra.mxu0 %v4856
        %v4858 = vpop.f32.mrf.mxu0
        %v4859 = vadd.f32 %v4787, %v4858
        %v4860 = vand.u32 %v4613, 4294901760
        %v4861 = vsub.f32 %v4613, %v4860
        %4862 = vmatmul.f32.gmra.mxu0 %v4861
        %v4863 = vpop.f32.mrf.mxu0
        %v4864 = vadd.f32 %v4791, %v4863
        %4865 = vdwg.mxu0
        %4866 = vmatpush.msra.mxu0 0.0
        %4867 = vmatpush.msra.mxu0 0.0
        %4868 = vmatpush.msra.mxu0 0.0
        %4869 = vmatpush.msra.mxu0 0.0
        %4870 = vmatpush.msra.mxu0 0.0
        %4871 = vmatpush.msra.mxu0 0.0
        %4872 = vmatpush.msra.mxu0 0.0
        %4873 = vmatpush.msra.mxu0 0.0
        %v4874 = vand.u32 %v4582, 4294901760
        %4875 = vmatpush.msra.mxu0 %v4874
        %v4876 = vand.u32 %v4580, 4294901760
        %4877 = vmatpush.msra.mxu0 %v4876
        %v4878 = vand.u32 %v4578, 4294901760
        %4879 = vmatpush.msra.mxu0 %v4878
        %v4880 = vand.u32 %v4576, 4294901760
        %4881 = vmatpush.msra.mxu0 %v4880
        %v4882 = vand.u32 %v4574, 4294901760
        %4883 = vmatpush.msra.mxu0 %v4882
        %v4884 = vand.u32 %v4572, 4294901760
        %4885 = vmatpush.msra.mxu0 %v4884
        %v4886 = vand.u32 %v4570, 4294901760
        %4887 = vmatpush.msra.mxu0 %v4886
        %v4888 = vand.u32 %v4568, 4294901760
        %4889 = vmatpush.msra.mxu0 %v4888
        %v4890 = vand.u32 %v4592, 4294901760
        %v4891 = vsub.f32 %v4592, %v4890
        %v4892 = vand.u32 %v4891, 4294901760
        %4893 = vmatmul.f32.gmra.mxu0 %v4892
        %v4894 = vpop.f32.mrf.mxu0
        %v4895 = vadd.f32 %v4829, %v4894
        %v4896 = vand.u32 %v4595, 4294901760
        %v4897 = vsub.f32 %v4595, %v4896
        %v4898 = vand.u32 %v4897, 4294901760
        %4899 = vmatmul.f32.gmra.mxu0 %v4898
        %v4900 = vpop.f32.mrf.mxu0
        %v4901 = vadd.f32 %v4834, %v4900
        %v4902 = vand.u32 %v4598, 4294901760
        %v4903 = vsub.f32 %v4598, %v4902
        %v4904 = vand.u32 %v4903, 4294901760
        %4905 = vmatmul.f32.gmra.mxu0 %v4904
        %v4906 = vpop.f32.mrf.mxu0
        %v4907 = vadd.f32 %v4839, %v4906
        %v4908 = vand.u32 %v4601, 4294901760
        %v4909 = vsub.f32 %v4601, %v4908
        %v4910 = vand.u32 %v4909, 4294901760
        %4911 = vmatmul.f32.gmra.mxu0 %v4910
        %v4912 = vpop.f32.mrf.mxu0
        %v4913 = vadd.f32 %v4844, %v4912
        %v4914 = vand.u32 %v4604, 4294901760
        %v4915 = vsub.f32 %v4604, %v4914
        %v4916 = vand.u32 %v4915, 4294901760
        %4917 = vmatmul.f32.gmra.mxu0 %v4916
        %v4918 = vpop.f32.mrf.mxu0
        %v4919 = vadd.f32 %v4849, %v4918
        %v4920 = vand.u32 %v4607, 4294901760
        %v4921 = vsub.f32 %v4607, %v4920
        %v4922 = vand.u32 %v4921, 4294901760
        %4923 = vmatmul.f32.gmra.mxu0 %v4922
        %v4924 = vpop.f32.mrf.mxu0
        %v4925 = vadd.f32 %v4854, %v4924
        %v4926 = vand.u32 %v4610, 4294901760
        %v4927 = vsub.f32 %v4610, %v4926
        %v4928 = vand.u32 %v4927, 4294901760
        %4929 = vmatmul.f32.gmra.mxu0 %v4928
        %v4930 = vpop.f32.mrf.mxu0
        %v4931 = vadd.f32 %v4859, %v4930
        %v4932 = vand.u32 %v4613, 4294901760
        %v4933 = vsub.f32 %v4613, %v4932
        %v4934 = vand.u32 %v4933, 4294901760
        %4935 = vmatmul.f32.gmra.mxu0 %v4934
        %v4936 = vpop.f32.mrf.mxu0
        %v4937 = vadd.f32 %v4864, %v4936
        %4938 = vdwg.mxu0
        %4939 = vmatpush.msra.mxu0 0.0
        %4940 = vmatpush.msra.mxu0 0.0
        %4941 = vmatpush.msra.mxu0 0.0
        %4942 = vmatpush.msra.mxu0 0.0
        %4943 = vmatpush.msra.mxu0 0.0
        %4944 = vmatpush.msra.mxu0 0.0
        %4945 = vmatpush.msra.mxu0 0.0
        %4946 = vmatpush.msra.mxu0 0.0
        %v4947 = vand.u32 %v4582, 4294901760
        %v4948 = vsub.f32 %v4582, %v4947
        %v4949 = vand.u32 %v4948, 4294901760
        %4950 = vmatpush.msra.mxu0 %v4949
        %v4951 = vand.u32 %v4580, 4294901760
        %v4952 = vsub.f32 %v4580, %v4951
        %v4953 = vand.u32 %v4952, 4294901760
        %4954 = vmatpush.msra.mxu0 %v4953
        %v4955 = vand.u32 %v4578, 4294901760
        %v4956 = vsub.f32 %v4578, %v4955
        %v4957 = vand.u32 %v4956, 4294901760
        %4958 = vmatpush.msra.mxu0 %v4957
        %v4959 = vand.u32 %v4576, 4294901760
        %v4960 = vsub.f32 %v4576, %v4959
        %v4961 = vand.u32 %v4960, 4294901760
        %4962 = vmatpush.msra.mxu0 %v4961
        %v4963 = vand.u32 %v4574, 4294901760
        %v4964 = vsub.f32 %v4574, %v4963
        %v4965 = vand.u32 %v4964, 4294901760
        %4966 = vmatpush.msra.mxu0 %v4965
        %v4967 = vand.u32 %v4572, 4294901760
        %v4968 = vsub.f32 %v4572, %v4967
        %v4969 = vand.u32 %v4968, 4294901760
        %4970 = vmatpush.msra.mxu0 %v4969
        %v4971 = vand.u32 %v4570, 4294901760
        %v4972 = vsub.f32 %v4570, %v4971
        %v4973 = vand.u32 %v4972, 4294901760
        %4974 = vmatpush.msra.mxu0 %v4973
        %v4975 = vand.u32 %v4568, 4294901760
        %v4976 = vsub.f32 %v4568, %v4975
        %v4977 = vand.u32 %v4976, 4294901760
        %4978 = vmatpush.msra.mxu0 %v4977
        %v4979 = vand.u32 %v4592, 4294901760
        %4980 = vmatmul.f32.gmra.mxu0 %v4979
        %v4981 = vpop.f32.mrf.mxu0
        %v4982 = vadd.f32 %v4895, %v4981
        %v4983 = vand.u32 %v4595, 4294901760
        %4984 = vmatmul.f32.gmra.mxu0 %v4983
        %v4985 = vpop.f32.mrf.mxu0
        %v4986 = vadd.f32 %v4901, %v4985
        %v4987 = vand.u32 %v4598, 4294901760
        %4988 = vmatmul.f32.gmra.mxu0 %v4987
        %v4989 = vpop.f32.mrf.mxu0
        %v4990 = vadd.f32 %v4907, %v4989
        %v4991 = vand.u32 %v4601, 4294901760
        %4992 = vmatmul.f32.gmra.mxu0 %v4991
        %v4993 = vpop.f32.mrf.mxu0
        %v4994 = vadd.f32 %v4913, %v4993
        %v4995 = vand.u32 %v4604, 4294901760
        %4996 = vmatmul.f32.gmra.mxu0 %v4995
        %v4997 = vpop.f32.mrf.mxu0
        %v4998 = vadd.f32 %v4919, %v4997
        %v4999 = vand.u32 %v4607, 4294901760
        %5000 = vmatmul.f32.gmra.mxu0 %v4999
        %v5001 = vpop.f32.mrf.mxu0
        %v5002 = vadd.f32 %v4925, %v5001
        %v5003 = vand.u32 %v4610, 4294901760
        %5004 = vmatmul.f32.gmra.mxu0 %v5003
        %v5005 = vpop.f32.mrf.mxu0
        %v5006 = vadd.f32 %v4931, %v5005
        %v5007 = vand.u32 %v4613, 4294901760
        %5008 = vmatmul.f32.gmra.mxu0 %v5007
        %v5009 = vpop.f32.mrf.mxu0
        %v5010 = vadd.f32 %v4937, %v5009
        %5011 = vdwg.mxu0
        %5012 = vmatpush.msra.mxu0 0.0
        %5013 = vmatpush.msra.mxu0 0.0
        %5014 = vmatpush.msra.mxu0 0.0
        %5015 = vmatpush.msra.mxu0 0.0
        %5016 = vmatpush.msra.mxu0 0.0
        %5017 = vmatpush.msra.mxu0 0.0
        %5018 = vmatpush.msra.mxu0 0.0
        %5019 = vmatpush.msra.mxu0 0.0
        %v5020 = vand.u32 %v4582, 4294901760
        %5021 = vmatpush.msra.mxu0 %v5020
        %v5022 = vand.u32 %v4580, 4294901760
        %5023 = vmatpush.msra.mxu0 %v5022
        %v5024 = vand.u32 %v4578, 4294901760
        %5025 = vmatpush.msra.mxu0 %v5024
        %v5026 = vand.u32 %v4576, 4294901760
        %5027 = vmatpush.msra.mxu0 %v5026
        %v5028 = vand.u32 %v4574, 4294901760
        %5029 = vmatpush.msra.mxu0 %v5028
        %v5030 = vand.u32 %v4572, 4294901760
        %5031 = vmatpush.msra.mxu0 %v5030
        %v5032 = vand.u32 %v4570, 4294901760
        %5033 = vmatpush.msra.mxu0 %v5032
        %v5034 = vand.u32 %v4568, 4294901760
        %5035 = vmatpush.msra.mxu0 %v5034
        %v5036 = vand.u32 %v4592, 4294901760
        %5037 = vmatmul.f32.gmra.mxu0 %v5036
        %v5038 = vpop.f32.mrf.mxu0
        %v5039 = vadd.f32 %v4982, %v5038
        %v5040 = vand.u32 %v4595, 4294901760
        %5041 = vmatmul.f32.gmra.mxu0 %v5040
        %v5042 = vpop.f32.mrf.mxu0
        %v5043 = vadd.f32 %v4986, %v5042
        %v5044 = vand.u32 %v4598, 4294901760
        %5045 = vmatmul.f32.gmra.mxu0 %v5044
        %v5046 = vpop.f32.mrf.mxu0
        %v5047 = vadd.f32 %v4990, %v5046
        %v5048 = vand.u32 %v4601, 4294901760
        %5049 = vmatmul.f32.gmra.mxu0 %v5048
        %v5050 = vpop.f32.mrf.mxu0
        %v5051 = vadd.f32 %v4994, %v5050
        %v5052 = vand.u32 %v4604, 4294901760
        %5053 = vmatmul.f32.gmra.mxu0 %v5052
        %v5054 = vpop.f32.mrf.mxu0
        %v5055 = vadd.f32 %v4998, %v5054
        %v5056 = vand.u32 %v4607, 4294901760
        %5057 = vmatmul.f32.gmra.mxu0 %v5056
        %v5058 = vpop.f32.mrf.mxu0
        %v5059 = vadd.f32 %v5002, %v5058
        %v5060 = vand.u32 %v4610, 4294901760
        %5061 = vmatmul.f32.gmra.mxu0 %v5060
        %v5062 = vpop.f32.mrf.mxu0
        %v5063 = vadd.f32 %v5006, %v5062
        %v5064 = vand.u32 %v4613, 4294901760
        %5065 = vmatmul.f32.gmra.mxu0 %v5064
        %v5066 = vpop.f32.mrf.mxu0
        %v5067 = vadd.f32 %v5010, %v5066
        %5068 = vdwg.mxu0
        %v5069 = vld [vmem:[#allocation2 + $0xb8] sm:$0xff]
        %v5070 = vld [vmem:[#allocation2 + $0xc0] sm:$0xff]
        %v5071 = vld [vmem:[#allocation2 + $0xc8] sm:$0xff]
        %v5072 = vld [vmem:[#allocation2 + $0xd0] sm:$0xff]
        %v5073 = vld [vmem:[#allocation2 + $0xd8] sm:$0x1]
        %v5074 = vperm.slane %v5073, 0
        %vm5075 = vcmask 261120
        %v5077 = vsel %vm5075, %v5039, 0
        %v5080 = vsel %vm5075, %v5043, 0
        %v5083 = vsel %vm5075, %v5047, 0
        %v5086 = vsel %vm5075, %v5051, 0
        %v5089 = vsel %vm5075, %v5055, 0
        %v5092 = vsel %vm5075, %v5059, 0
        %v5095 = vsel %vm5075, %v5063, 0
        %v5098 = vsel %vm5075, %v5067, 0
        %5100 = vmatpush.msra.mxu0 0.0
        %5101 = vmatpush.msra.mxu0 0.0
        %5102 = vmatpush.msra.mxu0 0.0
        %5103 = vmatpush.msra.mxu0 0.0
        %5104 = vmatpush.msra.mxu0 0.0
        %5105 = vmatpush.msra.mxu0 0.0
        %5106 = vmatpush.msra.mxu0 0.0
        %5107 = vmatpush.msra.mxu0 0.0
        %5108 = vmatpush.msra.mxu0 0.0
        %5109 = vmatpush.msra.mxu0 0.0
        %5110 = vmatpush.msra.mxu0 0.0
        %5111 = vmatpush.msra.mxu0 0.0
        %v5112 = vand.u32 %v5072, 4294901760
        %5113 = vmatpush.msra.mxu0 %v5112
        %v5114 = vand.u32 %v5071, 4294901760
        %5115 = vmatpush.msra.mxu0 %v5114
        %v5116 = vand.u32 %v5070, 4294901760
        %5117 = vmatpush.msra.mxu0 %v5116
        %v5118 = vand.u32 %v5069, 4294901760
        %5119 = vmatpush.msra.mxu0 %v5118
        %v5120 = vand.u32 %v5077, 4294901760
        %v5121 = vsub.f32 %v5077, %v5120
        %v5122 = vand.u32 %v5121, 4294901760
        %v5123 = vsub.f32 %v5121, %v5122
        %v5124 = vand.u32 %v5123, 4294901760
        %5125 = vmatmul.f32.gmra.mxu0 %v5124
        %v5126 = vpop.f32.mrf.mxu0
        %v5127 = vadd.f32 %v5074, %v5126
        %v5128 = vand.u32 %v5080, 4294901760
        %v5129 = vsub.f32 %v5080, %v5128
        %v5130 = vand.u32 %v5129, 4294901760
        %v5131 = vsub.f32 %v5129, %v5130
        %v5132 = vand.u32 %v5131, 4294901760
        %5133 = vmatmul.f32.gmra.mxu0 %v5132
        %v5134 = vpop.f32.mrf.mxu0
        %v5135 = vadd.f32 %v5074, %v5134
        %v5136 = vand.u32 %v5083, 4294901760
        %v5137 = vsub.f32 %v5083, %v5136
        %v5138 = vand.u32 %v5137, 4294901760
        %v5139 = vsub.f32 %v5137, %v5138
        %v5140 = vand.u32 %v5139, 4294901760
        %5141 = vmatmul.f32.gmra.mxu0 %v5140
        %v5142 = vpop.f32.mrf.mxu0
        %v5143 = vadd.f32 %v5074, %v5142
        %v5144 = vand.u32 %v5086, 4294901760
        %v5145 = vsub.f32 %v5086, %v5144
        %v5146 = vand.u32 %v5145, 4294901760
        %v5147 = vsub.f32 %v5145, %v5146
        %v5148 = vand.u32 %v5147, 4294901760
        %5149 = vmatmul.f32.gmra.mxu0 %v5148
        %v5150 = vpop.f32.mrf.mxu0
        %v5151 = vadd.f32 %v5074, %v5150
        %v5152 = vand.u32 %v5089, 4294901760
        %v5153 = vsub.f32 %v5089, %v5152
        %v5154 = vand.u32 %v5153, 4294901760
        %v5155 = vsub.f32 %v5153, %v5154
        %v5156 = vand.u32 %v5155, 4294901760
        %5157 = vmatmul.f32.gmra.mxu0 %v5156
        %v5158 = vpop.f32.mrf.mxu0
        %v5159 = vadd.f32 %v5074, %v5158
        %v5160 = vand.u32 %v5092, 4294901760
        %v5161 = vsub.f32 %v5092, %v5160
        %v5162 = vand.u32 %v5161, 4294901760
        %v5163 = vsub.f32 %v5161, %v5162
        %v5164 = vand.u32 %v5163, 4294901760
        %5165 = vmatmul.f32.gmra.mxu0 %v5164
        %v5166 = vpop.f32.mrf.mxu0
        %v5167 = vadd.f32 %v5074, %v5166
        %v5168 = vand.u32 %v5095, 4294901760
        %v5169 = vsub.f32 %v5095, %v5168
        %v5170 = vand.u32 %v5169, 4294901760
        %v5171 = vsub.f32 %v5169, %v5170
        %v5172 = vand.u32 %v5171, 4294901760
        %5173 = vmatmul.f32.gmra.mxu0 %v5172
        %v5174 = vpop.f32.mrf.mxu0
        %v5175 = vadd.f32 %v5074, %v5174
        %v5176 = vand.u32 %v5098, 4294901760
        %v5177 = vsub.f32 %v5098, %v5176
        %v5178 = vand.u32 %v5177, 4294901760
        %v5179 = vsub.f32 %v5177, %v5178
        %v5180 = vand.u32 %v5179, 4294901760
        %5181 = vmatmul.f32.gmra.mxu0 %v5180
        %v5182 = vpop.f32.mrf.mxu0
        %v5183 = vadd.f32 %v5074, %v5182
        %5184 = vdwg.mxu0
        %5185 = vmatpush.msra.mxu0 0.0
        %5186 = vmatpush.msra.mxu0 0.0
        %5187 = vmatpush.msra.mxu0 0.0
        %5188 = vmatpush.msra.mxu0 0.0
        %5189 = vmatpush.msra.mxu0 0.0
        %5190 = vmatpush.msra.mxu0 0.0
        %5191 = vmatpush.msra.mxu0 0.0
        %5192 = vmatpush.msra.mxu0 0.0
        %5193 = vmatpush.msra.mxu0 0.0
        %5194 = vmatpush.msra.mxu0 0.0
        %5195 = vmatpush.msra.mxu0 0.0
        %5196 = vmatpush.msra.mxu0 0.0
        %v5197 = vand.u32 %v5072, 4294901760
        %v5198 = vsub.f32 %v5072, %v5197
        %v5199 = vand.u32 %v5198, 4294901760
        %v5200 = vsub.f32 %v5198, %v5199
        %v5201 = vand.u32 %v5200, 4294901760
        %5202 = vmatpush.msra.mxu0 %v5201
        %v5203 = vand.u32 %v5071, 4294901760
        %v5204 = vsub.f32 %v5071, %v5203
        %v5205 = vand.u32 %v5204, 4294901760
        %v5206 = vsub.f32 %v5204, %v5205
        %v5207 = vand.u32 %v5206, 4294901760
        %5208 = vmatpush.msra.mxu0 %v5207
        %v5209 = vand.u32 %v5070, 4294901760
        %v5210 = vsub.f32 %v5070, %v5209
        %v5211 = vand.u32 %v5210, 4294901760
        %v5212 = vsub.f32 %v5210, %v5211
        %v5213 = vand.u32 %v5212, 4294901760
        %5214 = vmatpush.msra.mxu0 %v5213
        %v5215 = vand.u32 %v5069, 4294901760
        %v5216 = vsub.f32 %v5069, %v5215
        %v5217 = vand.u32 %v5216, 4294901760
        %v5218 = vsub.f32 %v5216, %v5217
        %v5219 = vand.u32 %v5218, 4294901760
        %5220 = vmatpush.msra.mxu0 %v5219
        %v5221 = vand.u32 %v5077, 4294901760
        %5222 = vmatmul.f32.gmra.mxu0 %v5221
        %v5223 = vpop.f32.mrf.mxu0
        %v5224 = vadd.f32 %v5127, %v5223
        %v5225 = vand.u32 %v5080, 4294901760
        %5226 = vmatmul.f32.gmra.mxu0 %v5225
        %v5227 = vpop.f32.mrf.mxu0
        %v5228 = vadd.f32 %v5135, %v5227
        %v5229 = vand.u32 %v5083, 4294901760
        %5230 = vmatmul.f32.gmra.mxu0 %v5229
        %v5231 = vpop.f32.mrf.mxu0
        %v5232 = vadd.f32 %v5143, %v5231
        %v5233 = vand.u32 %v5086, 4294901760
        %5234 = vmatmul.f32.gmra.mxu0 %v5233
        %v5235 = vpop.f32.mrf.mxu0
        %v5236 = vadd.f32 %v5151, %v5235
        %v5237 = vand.u32 %v5089, 4294901760
        %5238 = vmatmul.f32.gmra.mxu0 %v5237
        %v5239 = vpop.f32.mrf.mxu0
        %v5240 = vadd.f32 %v5159, %v5239
        %v5241 = vand.u32 %v5092, 4294901760
        %5242 = vmatmul.f32.gmra.mxu0 %v5241
        %v5243 = vpop.f32.mrf.mxu0
        %v5244 = vadd.f32 %v5167, %v5243
        %v5245 = vand.u32 %v5095, 4294901760
        %5246 = vmatmul.f32.gmra.mxu0 %v5245
        %v5247 = vpop.f32.mrf.mxu0
        %v5248 = vadd.f32 %v5175, %v5247
        %v5249 = vand.u32 %v5098, 4294901760
        %5250 = vmatmul.f32.gmra.mxu0 %v5249
        %v5251 = vpop.f32.mrf.mxu0
        %v5252 = vadd.f32 %v5183, %v5251
        %5253 = vdwg.mxu0
        %5254 = vmatpush.msra.mxu0 0.0
        %5255 = vmatpush.msra.mxu0 0.0
        %5256 = vmatpush.msra.mxu0 0.0
        %5257 = vmatpush.msra.mxu0 0.0
        %5258 = vmatpush.msra.mxu0 0.0
        %5259 = vmatpush.msra.mxu0 0.0
        %5260 = vmatpush.msra.mxu0 0.0
        %5261 = vmatpush.msra.mxu0 0.0
        %5262 = vmatpush.msra.mxu0 0.0
        %5263 = vmatpush.msra.mxu0 0.0
        %5264 = vmatpush.msra.mxu0 0.0
        %5265 = vmatpush.msra.mxu0 0.0
        %v5266 = vand.u32 %v5072, 4294901760
        %v5267 = vsub.f32 %v5072, %v5266
        %5268 = vmatpush.msra.mxu0 %v5267
        %v5269 = vand.u32 %v5071, 4294901760
        %v5270 = vsub.f32 %v5071, %v5269
        %5271 = vmatpush.msra.mxu0 %v5270
        %v5272 = vand.u32 %v5070, 4294901760
        %v5273 = vsub.f32 %v5070, %v5272
        %5274 = vmatpush.msra.mxu0 %v5273
        %v5275 = vand.u32 %v5069, 4294901760
        %v5276 = vsub.f32 %v5069, %v5275
        %5277 = vmatpush.msra.mxu0 %v5276
        %v5278 = vand.u32 %v5077, 4294901760
        %v5279 = vsub.f32 %v5077, %v5278
        %5280 = vmatmul.f32.gmra.mxu0 %v5279
        %v5281 = vpop.f32.mrf.mxu0
        %v5282 = vadd.f32 %v5224, %v5281
        %v5283 = vand.u32 %v5080, 4294901760
        %v5284 = vsub.f32 %v5080, %v5283
        %5285 = vmatmul.f32.gmra.mxu0 %v5284
        %v5286 = vpop.f32.mrf.mxu0
        %v5287 = vadd.f32 %v5228, %v5286
        %v5288 = vand.u32 %v5083, 4294901760
        %v5289 = vsub.f32 %v5083, %v5288
        %5290 = vmatmul.f32.gmra.mxu0 %v5289
        %v5291 = vpop.f32.mrf.mxu0
        %v5292 = vadd.f32 %v5232, %v5291
        %v5293 = vand.u32 %v5086, 4294901760
        %v5294 = vsub.f32 %v5086, %v5293
        %5295 = vmatmul.f32.gmra.mxu0 %v5294
        %v5296 = vpop.f32.mrf.mxu0
        %v5297 = vadd.f32 %v5236, %v5296
        %v5298 = vand.u32 %v5089, 4294901760
        %v5299 = vsub.f32 %v5089, %v5298
        %5300 = vmatmul.f32.gmra.mxu0 %v5299
        %v5301 = vpop.f32.mrf.mxu0
        %v5302 = vadd.f32 %v5240, %v5301
        %v5303 = vand.u32 %v5092, 4294901760
        %v5304 = vsub.f32 %v5092, %v5303
        %5305 = vmatmul.f32.gmra.mxu0 %v5304
        %v5306 = vpop.f32.mrf.mxu0
        %v5307 = vadd.f32 %v5244, %v5306
        %v5308 = vand.u32 %v5095, 4294901760
        %v5309 = vsub.f32 %v5095, %v5308
        %5310 = vmatmul.f32.gmra.mxu0 %v5309
        %v5311 = vpop.f32.mrf.mxu0
        %v5312 = vadd.f32 %v5248, %v5311
        %v5313 = vand.u32 %v5098, 4294901760
        %v5314 = vsub.f32 %v5098, %v5313
        %5315 = vmatmul.f32.gmra.mxu0 %v5314
        %v5316 = vpop.f32.mrf.mxu0
        %v5317 = vadd.f32 %v5252, %v5316
        %5318 = vdwg.mxu0
        %5319 = vmatpush.msra.mxu0 0.0
        %5320 = vmatpush.msra.mxu0 0.0
        %5321 = vmatpush.msra.mxu0 0.0
        %5322 = vmatpush.msra.mxu0 0.0
        %5323 = vmatpush.msra.mxu0 0.0
        %5324 = vmatpush.msra.mxu0 0.0
        %5325 = vmatpush.msra.mxu0 0.0
        %5326 = vmatpush.msra.mxu0 0.0
        %5327 = vmatpush.msra.mxu0 0.0
        %5328 = vmatpush.msra.mxu0 0.0
        %5329 = vmatpush.msra.mxu0 0.0
        %5330 = vmatpush.msra.mxu0 0.0
        %v5331 = vand.u32 %v5072, 4294901760
        %5332 = vmatpush.msra.mxu0 %v5331
        %v5333 = vand.u32 %v5071, 4294901760
        %5334 = vmatpush.msra.mxu0 %v5333
        %v5335 = vand.u32 %v5070, 4294901760
        %5336 = vmatpush.msra.mxu0 %v5335
        %v5337 = vand.u32 %v5069, 4294901760
        %5338 = vmatpush.msra.mxu0 %v5337
        %v5339 = vand.u32 %v5077, 4294901760
        %v5340 = vsub.f32 %v5077, %v5339
        %v5341 = vand.u32 %v5340, 4294901760
        %5342 = vmatmul.f32.gmra.mxu0 %v5341
        %v5343 = vpop.f32.mrf.mxu0
        %v5344 = vadd.f32 %v5282, %v5343
        %v5345 = vand.u32 %v5080, 4294901760
        %v5346 = vsub.f32 %v5080, %v5345
        %v5347 = vand.u32 %v5346, 4294901760
        %5348 = vmatmul.f32.gmra.mxu0 %v5347
        %v5349 = vpop.f32.mrf.mxu0
        %v5350 = vadd.f32 %v5287, %v5349
        %v5351 = vand.u32 %v5083, 4294901760
        %v5352 = vsub.f32 %v5083, %v5351
        %v5353 = vand.u32 %v5352, 4294901760
        %5354 = vmatmul.f32.gmra.mxu0 %v5353
        %v5355 = vpop.f32.mrf.mxu0
        %v5356 = vadd.f32 %v5292, %v5355
        %v5357 = vand.u32 %v5086, 4294901760
        %v5358 = vsub.f32 %v5086, %v5357
        %v5359 = vand.u32 %v5358, 4294901760
        %5360 = vmatmul.f32.gmra.mxu0 %v5359
        %v5361 = vpop.f32.mrf.mxu0
        %v5362 = vadd.f32 %v5297, %v5361
        %v5363 = vand.u32 %v5089, 4294901760
        %v5364 = vsub.f32 %v5089, %v5363
        %v5365 = vand.u32 %v5364, 4294901760
        %5366 = vmatmul.f32.gmra.mxu0 %v5365
        %v5367 = vpop.f32.mrf.mxu0
        %v5368 = vadd.f32 %v5302, %v5367
        %v5369 = vand.u32 %v5092, 4294901760
        %v5370 = vsub.f32 %v5092, %v5369
        %v5371 = vand.u32 %v5370, 4294901760
        %5372 = vmatmul.f32.gmra.mxu0 %v5371
        %v5373 = vpop.f32.mrf.mxu0
        %v5374 = vadd.f32 %v5307, %v5373
        %v5375 = vand.u32 %v5095, 4294901760
        %v5376 = vsub.f32 %v5095, %v5375
        %v5377 = vand.u32 %v5376, 4294901760
        %5378 = vmatmul.f32.gmra.mxu0 %v5377
        %v5379 = vpop.f32.mrf.mxu0
        %v5380 = vadd.f32 %v5312, %v5379
        %v5381 = vand.u32 %v5098, 4294901760
        %v5382 = vsub.f32 %v5098, %v5381
        %v5383 = vand.u32 %v5382, 4294901760
        %5384 = vmatmul.f32.gmra.mxu0 %v5383
        %v5385 = vpop.f32.mrf.mxu0
        %v5386 = vadd.f32 %v5317, %v5385
        %5387 = vdwg.mxu0
        %5388 = vmatpush.msra.mxu0 0.0
        %5389 = vmatpush.msra.mxu0 0.0
        %5390 = vmatpush.msra.mxu0 0.0
        %5391 = vmatpush.msra.mxu0 0.0
        %5392 = vmatpush.msra.mxu0 0.0
        %5393 = vmatpush.msra.mxu0 0.0
        %5394 = vmatpush.msra.mxu0 0.0
        %5395 = vmatpush.msra.mxu0 0.0
        %5396 = vmatpush.msra.mxu0 0.0
        %5397 = vmatpush.msra.mxu0 0.0
        %5398 = vmatpush.msra.mxu0 0.0
        %5399 = vmatpush.msra.mxu0 0.0
        %v5400 = vand.u32 %v5072, 4294901760
        %v5401 = vsub.f32 %v5072, %v5400
        %v5402 = vand.u32 %v5401, 4294901760
        %5403 = vmatpush.msra.mxu0 %v5402
        %v5404 = vand.u32 %v5071, 4294901760
        %v5405 = vsub.f32 %v5071, %v5404
        %v5406 = vand.u32 %v5405, 4294901760
        %5407 = vmatpush.msra.mxu0 %v5406
        %v5408 = vand.u32 %v5070, 4294901760
        %v5409 = vsub.f32 %v5070, %v5408
        %v5410 = vand.u32 %v5409, 4294901760
        %5411 = vmatpush.msra.mxu0 %v5410
        %v5412 = vand.u32 %v5069, 4294901760
        %v5413 = vsub.f32 %v5069, %v5412
        %v5414 = vand.u32 %v5413, 4294901760
        %5415 = vmatpush.msra.mxu0 %v5414
        %v5416 = vand.u32 %v5077, 4294901760
        %5417 = vmatmul.f32.gmra.mxu0 %v5416
        %v5418 = vpop.f32.mrf.mxu0
        %v5419 = vadd.f32 %v5344, %v5418
        %v5420 = vand.u32 %v5080, 4294901760
        %5421 = vmatmul.f32.gmra.mxu0 %v5420
        %v5422 = vpop.f32.mrf.mxu0
        %v5423 = vadd.f32 %v5350, %v5422
        %v5424 = vand.u32 %v5083, 4294901760
        %5425 = vmatmul.f32.gmra.mxu0 %v5424
        %v5426 = vpop.f32.mrf.mxu0
        %v5427 = vadd.f32 %v5356, %v5426
        %v5428 = vand.u32 %v5086, 4294901760
        %5429 = vmatmul.f32.gmra.mxu0 %v5428
        %v5430 = vpop.f32.mrf.mxu0
        %v5431 = vadd.f32 %v5362, %v5430
        %v5432 = vand.u32 %v5089, 4294901760
        %5433 = vmatmul.f32.gmra.mxu0 %v5432
        %v5434 = vpop.f32.mrf.mxu0
        %v5435 = vadd.f32 %v5368, %v5434
        %v5436 = vand.u32 %v5092, 4294901760
        %5437 = vmatmul.f32.gmra.mxu0 %v5436
        %v5438 = vpop.f32.mrf.mxu0
        %v5439 = vadd.f32 %v5374, %v5438
        %v5440 = vand.u32 %v5095, 4294901760
        %5441 = vmatmul.f32.gmra.mxu0 %v5440
        %v5442 = vpop.f32.mrf.mxu0
        %v5443 = vadd.f32 %v5380, %v5442
        %v5444 = vand.u32 %v5098, 4294901760
        %5445 = vmatmul.f32.gmra.mxu0 %v5444
        %v5446 = vpop.f32.mrf.mxu0
        %v5447 = vadd.f32 %v5386, %v5446
        %5448 = vdwg.mxu0
        %5449 = vmatpush.msra.mxu0 0.0
        %5450 = vmatpush.msra.mxu0 0.0
        %5451 = vmatpush.msra.mxu0 0.0
        %5452 = vmatpush.msra.mxu0 0.0
        %5453 = vmatpush.msra.mxu0 0.0
        %5454 = vmatpush.msra.mxu0 0.0
        %5455 = vmatpush.msra.mxu0 0.0
        %5456 = vmatpush.msra.mxu0 0.0
        %5457 = vmatpush.msra.mxu0 0.0
        %5458 = vmatpush.msra.mxu0 0.0
        %5459 = vmatpush.msra.mxu0 0.0
        %5460 = vmatpush.msra.mxu0 0.0
        %v5461 = vand.u32 %v5072, 4294901760
        %5462 = vmatpush.msra.mxu0 %v5461
        %v5463 = vand.u32 %v5071, 4294901760
        %5464 = vmatpush.msra.mxu0 %v5463
        %v5465 = vand.u32 %v5070, 4294901760
        %5466 = vmatpush.msra.mxu0 %v5465
        %v5467 = vand.u32 %v5069, 4294901760
        %5468 = vmatpush.msra.mxu0 %v5467
        %v5469 = vand.u32 %v5077, 4294901760
        %5470 = vmatmul.f32.gmra.mxu0 %v5469
        %v5471 = vpop.f32.mrf.mxu0
        %v5472 = vadd.f32 %v5419, %v5471
        %v5473 = vand.u32 %v5080, 4294901760
        %5474 = vmatmul.f32.gmra.mxu0 %v5473
        %v5475 = vpop.f32.mrf.mxu0
        %v5476 = vadd.f32 %v5423, %v5475
        %v5477 = vand.u32 %v5083, 4294901760
        %5478 = vmatmul.f32.gmra.mxu0 %v5477
        %v5479 = vpop.f32.mrf.mxu0
        %v5480 = vadd.f32 %v5427, %v5479
        %v5481 = vand.u32 %v5086, 4294901760
        %5482 = vmatmul.f32.gmra.mxu0 %v5481
        %v5483 = vpop.f32.mrf.mxu0
        %v5484 = vadd.f32 %v5431, %v5483
        %v5485 = vand.u32 %v5089, 4294901760
        %5486 = vmatmul.f32.gmra.mxu0 %v5485
        %v5487 = vpop.f32.mrf.mxu0
        %v5488 = vadd.f32 %v5435, %v5487
        %v5489 = vand.u32 %v5092, 4294901760
        %5490 = vmatmul.f32.gmra.mxu0 %v5489
        %v5491 = vpop.f32.mrf.mxu0
        %v5492 = vadd.f32 %v5439, %v5491
        %v5493 = vand.u32 %v5095, 4294901760
        %5494 = vmatmul.f32.gmra.mxu0 %v5493
        %v5495 = vpop.f32.mrf.mxu0
        %v5496 = vadd.f32 %v5443, %v5495
        %v5497 = vand.u32 %v5098, 4294901760
        %5498 = vmatmul.f32.gmra.mxu0 %v5497
        %v5499 = vpop.f32.mrf.mxu0
        %v5500 = vadd.f32 %v5447, %v5499
        %5501 = vdwg.mxu0
        %vm5502 = vcmp.gt.f32.partialorder %v3369, 0.0
        %vm5503 = vcmp.gt.f32.partialorder %v3370, 0.0
        %vm5504 = vcmp.gt.f32.partialorder %v3371, 0.0
        %vm5505 = vcmp.gt.f32.partialorder %v3372, 0.0
        %vm5506 = vcmp.gt.f32.partialorder %v3373, 0.0
        %vm5507 = vcmp.gt.f32.partialorder %v3374, 0.0
        %vm5508 = vcmp.gt.f32.partialorder %v3375, 0.0
        %vm5509 = vcmp.gt.f32.partialorder %v3376, 0.0
        %v5510 = vmin.f32 %v3369, 0.0
        %v5511 = vmin.f32 %v3370, 0.0
        %v5512 = vmin.f32 %v3371, 0.0
        %v5513 = vmin.f32 %v3372, 0.0
        %v5514 = vmin.f32 %v3373, 0.0
        %v5515 = vmin.f32 %v3374, 0.0
        %v5516 = vmin.f32 %v3375, 0.0
        %v5517 = vmin.f32 %v3376, 0.0
        %v5518 = vmul.f32 %v5510, 1.442695
        %v5519 = vpow.pop %v5518
        %v5520 = vmul.f32 %v5511, 1.442695
        %v5521 = vpow.pop %v5520
        %v5522 = vmul.f32 %v5512, 1.442695
        %v5523 = vpow.pop %v5522
        %v5524 = vmul.f32 %v5513, 1.442695
        %v5525 = vpow.pop %v5524
        %v5526 = vmul.f32 %v5514, 1.442695
        %v5527 = vpow.pop %v5526
        %v5528 = vmul.f32 %v5515, 1.442695
        %v5529 = vpow.pop %v5528
        %v5530 = vmul.f32 %v5516, 1.442695
        %v5531 = vpow.pop %v5530
        %v5532 = vmul.f32 %v5517, 1.442695
        %v5533 = vpow.pop %v5532
        %v5534 = vsub.f32 %v5519, 1.0
        %v5535 = vsub.f32 %v5521, 1.0
        %v5536 = vsub.f32 %v5523, 1.0
        %v5537 = vsub.f32 %v5525, 1.0
        %v5538 = vsub.f32 %v5527, 1.0
        %v5539 = vsub.f32 %v5529, 1.0
        %v5540 = vsub.f32 %v5531, 1.0
        %v5541 = vsub.f32 %v5533, 1.0
        %v5542 = vsel %vm5502, %v3369, %v5534
        %v5543 = vsel %vm5503, %v3370, %v5535
        %v5544 = vsel %vm5504, %v3371, %v5536
        %v5545 = vsel %vm5505, %v3372, %v5537
        %v5546 = vsel %vm5506, %v3373, %v5538
        %v5547 = vsel %vm5507, %v3374, %v5539
        %v5548 = vsel %vm5508, %v3375, %v5540
        %v5549 = vsel %vm5509, %v3376, %v5541
        %v5550 = vld [vmem:[#allocation2 + $0xe0] sm:$0xff]
        %v5551 = vld [vmem:[#allocation2 + $0xe8] sm:$0xff]
        %v5552 = vld [vmem:[#allocation2 + $0xf0] sm:$0x1]
        %v5553 = vperm.slane %v5552, 0
        %v5555 = vsel %vm501, %v5542, 0
        %v5558 = vsel %vm501, %v5543, 0
        %v5561 = vsel %vm501, %v5544, 0
        %v5564 = vsel %vm501, %v5545, 0
        %v5567 = vsel %vm501, %v5546, 0
        %v5570 = vsel %vm501, %v5547, 0
        %v5573 = vsel %vm501, %v5548, 0
        %v5576 = vsel %vm501, %v5549, 0
        %5578 = vmatpush.msra.mxu0 0.0
        %5579 = vmatpush.msra.mxu0 0.0
        %5580 = vmatpush.msra.mxu0 0.0
        %5581 = vmatpush.msra.mxu0 0.0
        %5582 = vmatpush.msra.mxu0 0.0
        %5583 = vmatpush.msra.mxu0 0.0
        %5584 = vmatpush.msra.mxu0 0.0
        %5585 = vmatpush.msra.mxu0 0.0
        %5586 = vmatpush.msra.mxu0 0.0
        %5587 = vmatpush.msra.mxu0 0.0
        %5588 = vmatpush.msra.mxu0 0.0
        %5589 = vmatpush.msra.mxu0 0.0
        %5590 = vmatpush.msra.mxu0 0.0
        %5591 = vmatpush.msra.mxu0 0.0
        %v5592 = vand.u32 %v5551, 4294901760
        %5593 = vmatpush.msra.mxu0 %v5592
        %v5594 = vand.u32 %v5550, 4294901760
        %5595 = vmatpush.msra.mxu0 %v5594
        %v5596 = vand.u32 %v5555, 4294901760
        %v5597 = vsub.f32 %v5555, %v5596
        %v5598 = vand.u32 %v5597, 4294901760
        %v5599 = vsub.f32 %v5597, %v5598
        %v5600 = vand.u32 %v5599, 4294901760
        %5601 = vmatmul.f32.gmra.mxu0 %v5600
        %v5602 = vpop.f32.mrf.mxu0
        %v5603 = vadd.f32 %v5553, %v5602
        %v5604 = vand.u32 %v5558, 4294901760
        %v5605 = vsub.f32 %v5558, %v5604
        %v5606 = vand.u32 %v5605, 4294901760
        %v5607 = vsub.f32 %v5605, %v5606
        %v5608 = vand.u32 %v5607, 4294901760
        %5609 = vmatmul.f32.gmra.mxu0 %v5608
        %v5610 = vpop.f32.mrf.mxu0
        %v5611 = vadd.f32 %v5553, %v5610
        %v5612 = vand.u32 %v5561, 4294901760
        %v5613 = vsub.f32 %v5561, %v5612
        %v5614 = vand.u32 %v5613, 4294901760
        %v5615 = vsub.f32 %v5613, %v5614
        %v5616 = vand.u32 %v5615, 4294901760
        %5617 = vmatmul.f32.gmra.mxu0 %v5616
        %v5618 = vpop.f32.mrf.mxu0
        %v5619 = vadd.f32 %v5553, %v5618
        %v5620 = vand.u32 %v5564, 4294901760
        %v5621 = vsub.f32 %v5564, %v5620
        %v5622 = vand.u32 %v5621, 4294901760
        %v5623 = vsub.f32 %v5621, %v5622
        %v5624 = vand.u32 %v5623, 4294901760
        %5625 = vmatmul.f32.gmra.mxu0 %v5624
        %v5626 = vpop.f32.mrf.mxu0
        %v5627 = vadd.f32 %v5553, %v5626
        %v5628 = vand.u32 %v5567, 4294901760
        %v5629 = vsub.f32 %v5567, %v5628
        %v5630 = vand.u32 %v5629, 4294901760
        %v5631 = vsub.f32 %v5629, %v5630
        %v5632 = vand.u32 %v5631, 4294901760
        %5633 = vmatmul.f32.gmra.mxu0 %v5632
        %v5634 = vpop.f32.mrf.mxu0
        %v5635 = vadd.f32 %v5553, %v5634
        %v5636 = vand.u32 %v5570, 4294901760
        %v5637 = vsub.f32 %v5570, %v5636
        %v5638 = vand.u32 %v5637, 4294901760
        %v5639 = vsub.f32 %v5637, %v5638
        %v5640 = vand.u32 %v5639, 4294901760
        %5641 = vmatmul.f32.gmra.mxu0 %v5640
        %v5642 = vpop.f32.mrf.mxu0
        %v5643 = vadd.f32 %v5553, %v5642
        %v5644 = vand.u32 %v5573, 4294901760
        %v5645 = vsub.f32 %v5573, %v5644
        %v5646 = vand.u32 %v5645, 4294901760
        %v5647 = vsub.f32 %v5645, %v5646
        %v5648 = vand.u32 %v5647, 4294901760
        %5649 = vmatmul.f32.gmra.mxu0 %v5648
        %v5650 = vpop.f32.mrf.mxu0
        %v5651 = vadd.f32 %v5553, %v5650
        %v5652 = vand.u32 %v5576, 4294901760
        %v5653 = vsub.f32 %v5576, %v5652
        %v5654 = vand.u32 %v5653, 4294901760
        %v5655 = vsub.f32 %v5653, %v5654
        %v5656 = vand.u32 %v5655, 4294901760
        %5657 = vmatmul.f32.gmra.mxu0 %v5656
        %v5658 = vpop.f32.mrf.mxu0
        %v5659 = vadd.f32 %v5553, %v5658
        %5660 = vdwg.mxu0
        %5661 = vmatpush.msra.mxu0 0.0
        %5662 = vmatpush.msra.mxu0 0.0
        %5663 = vmatpush.msra.mxu0 0.0
        %5664 = vmatpush.msra.mxu0 0.0
        %5665 = vmatpush.msra.mxu0 0.0
        %5666 = vmatpush.msra.mxu0 0.0
        %5667 = vmatpush.msra.mxu0 0.0
        %5668 = vmatpush.msra.mxu0 0.0
        %5669 = vmatpush.msra.mxu0 0.0
        %5670 = vmatpush.msra.mxu0 0.0
        %5671 = vmatpush.msra.mxu0 0.0
        %5672 = vmatpush.msra.mxu0 0.0
        %5673 = vmatpush.msra.mxu0 0.0
        %5674 = vmatpush.msra.mxu0 0.0
        %v5675 = vand.u32 %v5551, 4294901760
        %v5676 = vsub.f32 %v5551, %v5675
        %v5677 = vand.u32 %v5676, 4294901760
        %v5678 = vsub.f32 %v5676, %v5677
        %v5679 = vand.u32 %v5678, 4294901760
        %5680 = vmatpush.msra.mxu0 %v5679
        %v5681 = vand.u32 %v5550, 4294901760
        %v5682 = vsub.f32 %v5550, %v5681
        %v5683 = vand.u32 %v5682, 4294901760
        %v5684 = vsub.f32 %v5682, %v5683
        %v5685 = vand.u32 %v5684, 4294901760
        %5686 = vmatpush.msra.mxu0 %v5685
        %v5687 = vand.u32 %v5555, 4294901760
        %5688 = vmatmul.f32.gmra.mxu0 %v5687
        %v5689 = vpop.f32.mrf.mxu0
        %v5690 = vadd.f32 %v5603, %v5689
        %v5691 = vand.u32 %v5558, 4294901760
        %5692 = vmatmul.f32.gmra.mxu0 %v5691
        %v5693 = vpop.f32.mrf.mxu0
        %v5694 = vadd.f32 %v5611, %v5693
        %v5695 = vand.u32 %v5561, 4294901760
        %5696 = vmatmul.f32.gmra.mxu0 %v5695
        %v5697 = vpop.f32.mrf.mxu0
        %v5698 = vadd.f32 %v5619, %v5697
        %v5699 = vand.u32 %v5564, 4294901760
        %5700 = vmatmul.f32.gmra.mxu0 %v5699
        %v5701 = vpop.f32.mrf.mxu0
        %v5702 = vadd.f32 %v5627, %v5701
        %v5703 = vand.u32 %v5567, 4294901760
        %5704 = vmatmul.f32.gmra.mxu0 %v5703
        %v5705 = vpop.f32.mrf.mxu0
        %v5706 = vadd.f32 %v5635, %v5705
        %v5707 = vand.u32 %v5570, 4294901760
        %5708 = vmatmul.f32.gmra.mxu0 %v5707
        %v5709 = vpop.f32.mrf.mxu0
        %v5710 = vadd.f32 %v5643, %v5709
        %v5711 = vand.u32 %v5573, 4294901760
        %5712 = vmatmul.f32.gmra.mxu0 %v5711
        %v5713 = vpop.f32.mrf.mxu0
        %v5714 = vadd.f32 %v5651, %v5713
        %v5715 = vand.u32 %v5576, 4294901760
        %5716 = vmatmul.f32.gmra.mxu0 %v5715
        %v5717 = vpop.f32.mrf.mxu0
        %v5718 = vadd.f32 %v5659, %v5717
        %5719 = vdwg.mxu0
        %5720 = vmatpush.msra.mxu0 0.0
        %5721 = vmatpush.msra.mxu0 0.0
        %5722 = vmatpush.msra.mxu0 0.0
        %5723 = vmatpush.msra.mxu0 0.0
        %5724 = vmatpush.msra.mxu0 0.0
        %5725 = vmatpush.msra.mxu0 0.0
        %5726 = vmatpush.msra.mxu0 0.0
        %5727 = vmatpush.msra.mxu0 0.0
        %5728 = vmatpush.msra.mxu0 0.0
        %5729 = vmatpush.msra.mxu0 0.0
        %5730 = vmatpush.msra.mxu0 0.0
        %5731 = vmatpush.msra.mxu0 0.0
        %5732 = vmatpush.msra.mxu0 0.0
        %5733 = vmatpush.msra.mxu0 0.0
        %v5734 = vand.u32 %v5551, 4294901760
        %v5735 = vsub.f32 %v5551, %v5734
        %5736 = vmatpush.msra.mxu0 %v5735
        %v5737 = vand.u32 %v5550, 4294901760
        %v5738 = vsub.f32 %v5550, %v5737
        %5739 = vmatpush.msra.mxu0 %v5738
        %v5740 = vand.u32 %v5555, 4294901760
        %v5741 = vsub.f32 %v5555, %v5740
        %5742 = vmatmul.f32.gmra.mxu0 %v5741
        %v5743 = vpop.f32.mrf.mxu0
        %v5744 = vadd.f32 %v5690, %v5743
        %v5745 = vand.u32 %v5558, 4294901760
        %v5746 = vsub.f32 %v5558, %v5745
        %5747 = vmatmul.f32.gmra.mxu0 %v5746
        %v5748 = vpop.f32.mrf.mxu0
        %v5749 = vadd.f32 %v5694, %v5748
        %v5750 = vand.u32 %v5561, 4294901760
        %v5751 = vsub.f32 %v5561, %v5750
        %5752 = vmatmul.f32.gmra.mxu0 %v5751
        %v5753 = vpop.f32.mrf.mxu0
        %v5754 = vadd.f32 %v5698, %v5753
        %v5755 = vand.u32 %v5564, 4294901760
        %v5756 = vsub.f32 %v5564, %v5755
        %5757 = vmatmul.f32.gmra.mxu0 %v5756
        %v5758 = vpop.f32.mrf.mxu0
        %v5759 = vadd.f32 %v5702, %v5758
        %v5760 = vand.u32 %v5567, 4294901760
        %v5761 = vsub.f32 %v5567, %v5760
        %5762 = vmatmul.f32.gmra.mxu0 %v5761
        %v5763 = vpop.f32.mrf.mxu0
        %v5764 = vadd.f32 %v5706, %v5763
        %v5765 = vand.u32 %v5570, 4294901760
        %v5766 = vsub.f32 %v5570, %v5765
        %5767 = vmatmul.f32.gmra.mxu0 %v5766
        %v5768 = vpop.f32.mrf.mxu0
        %v5769 = vadd.f32 %v5710, %v5768
        %v5770 = vand.u32 %v5573, 4294901760
        %v5771 = vsub.f32 %v5573, %v5770
        %5772 = vmatmul.f32.gmra.mxu0 %v5771
        %v5773 = vpop.f32.mrf.mxu0
        %v5774 = vadd.f32 %v5714, %v5773
        %v5775 = vand.u32 %v5576, 4294901760
        %v5776 = vsub.f32 %v5576, %v5775
        %5777 = vmatmul.f32.gmra.mxu0 %v5776
        %v5778 = vpop.f32.mrf.mxu0
        %v5779 = vadd.f32 %v5718, %v5778
        %5780 = vdwg.mxu0
        %5781 = vmatpush.msra.mxu0 0.0
        %5782 = vmatpush.msra.mxu0 0.0
        %5783 = vmatpush.msra.mxu0 0.0
        %5784 = vmatpush.msra.mxu0 0.0
        %5785 = vmatpush.msra.mxu0 0.0
        %5786 = vmatpush.msra.mxu0 0.0
        %5787 = vmatpush.msra.mxu0 0.0
        %5788 = vmatpush.msra.mxu0 0.0
        %5789 = vmatpush.msra.mxu0 0.0
        %5790 = vmatpush.msra.mxu0 0.0
        %5791 = vmatpush.msra.mxu0 0.0
        %5792 = vmatpush.msra.mxu0 0.0
        %5793 = vmatpush.msra.mxu0 0.0
        %5794 = vmatpush.msra.mxu0 0.0
        %v5795 = vand.u32 %v5551, 4294901760
        %5796 = vmatpush.msra.mxu0 %v5795
        %v5797 = vand.u32 %v5550, 4294901760
        %5798 = vmatpush.msra.mxu0 %v5797
        %v5799 = vand.u32 %v5555, 4294901760
        %v5800 = vsub.f32 %v5555, %v5799
        %v5801 = vand.u32 %v5800, 4294901760
        %5802 = vmatmul.f32.gmra.mxu0 %v5801
        %v5803 = vpop.f32.mrf.mxu0
        %v5804 = vadd.f32 %v5744, %v5803
        %v5805 = vand.u32 %v5558, 4294901760
        %v5806 = vsub.f32 %v5558, %v5805
        %v5807 = vand.u32 %v5806, 4294901760
        %5808 = vmatmul.f32.gmra.mxu0 %v5807
        %v5809 = vpop.f32.mrf.mxu0
        %v5810 = vadd.f32 %v5749, %v5809
        %v5811 = vand.u32 %v5561, 4294901760
        %v5812 = vsub.f32 %v5561, %v5811
        %v5813 = vand.u32 %v5812, 4294901760
        %5814 = vmatmul.f32.gmra.mxu0 %v5813
        %v5815 = vpop.f32.mrf.mxu0
        %v5816 = vadd.f32 %v5754, %v5815
        %v5817 = vand.u32 %v5564, 4294901760
        %v5818 = vsub.f32 %v5564, %v5817
        %v5819 = vand.u32 %v5818, 4294901760
        %5820 = vmatmul.f32.gmra.mxu0 %v5819
        %v5821 = vpop.f32.mrf.mxu0
        %v5822 = vadd.f32 %v5759, %v5821
        %v5823 = vand.u32 %v5567, 4294901760
        %v5824 = vsub.f32 %v5567, %v5823
        %v5825 = vand.u32 %v5824, 4294901760
        %5826 = vmatmul.f32.gmra.mxu0 %v5825
        %v5827 = vpop.f32.mrf.mxu0
        %v5828 = vadd.f32 %v5764, %v5827
        %v5829 = vand.u32 %v5570, 4294901760
        %v5830 = vsub.f32 %v5570, %v5829
        %v5831 = vand.u32 %v5830, 4294901760
        %5832 = vmatmul.f32.gmra.mxu0 %v5831
        %v5833 = vpop.f32.mrf.mxu0
        %v5834 = vadd.f32 %v5769, %v5833
        %v5835 = vand.u32 %v5573, 4294901760
        %v5836 = vsub.f32 %v5573, %v5835
        %v5837 = vand.u32 %v5836, 4294901760
        %5838 = vmatmul.f32.gmra.mxu0 %v5837
        %v5839 = vpop.f32.mrf.mxu0
        %v5840 = vadd.f32 %v5774, %v5839
        %v5841 = vand.u32 %v5576, 4294901760
        %v5842 = vsub.f32 %v5576, %v5841
        %v5843 = vand.u32 %v5842, 4294901760
        %5844 = vmatmul.f32.gmra.mxu0 %v5843
        %v5845 = vpop.f32.mrf.mxu0
        %v5846 = vadd.f32 %v5779, %v5845
        %5847 = vdwg.mxu0
        %5848 = vmatpush.msra.mxu0 0.0
        %5849 = vmatpush.msra.mxu0 0.0
        %5850 = vmatpush.msra.mxu0 0.0
        %5851 = vmatpush.msra.mxu0 0.0
        %5852 = vmatpush.msra.mxu0 0.0
        %5853 = vmatpush.msra.mxu0 0.0
        %5854 = vmatpush.msra.mxu0 0.0
        %5855 = vmatpush.msra.mxu0 0.0
        %5856 = vmatpush.msra.mxu0 0.0
        %5857 = vmatpush.msra.mxu0 0.0
        %5858 = vmatpush.msra.mxu0 0.0
        %5859 = vmatpush.msra.mxu0 0.0
        %5860 = vmatpush.msra.mxu0 0.0
        %5861 = vmatpush.msra.mxu0 0.0
        %v5862 = vand.u32 %v5551, 4294901760
        %v5863 = vsub.f32 %v5551, %v5862
        %v5864 = vand.u32 %v5863, 4294901760
        %5865 = vmatpush.msra.mxu0 %v5864
        %v5866 = vand.u32 %v5550, 4294901760
        %v5867 = vsub.f32 %v5550, %v5866
        %v5868 = vand.u32 %v5867, 4294901760
        %5869 = vmatpush.msra.mxu0 %v5868
        %v5870 = vand.u32 %v5555, 4294901760
        %5871 = vmatmul.f32.gmra.mxu0 %v5870
        %v5872 = vpop.f32.mrf.mxu0
        %v5873 = vadd.f32 %v5804, %v5872
        %v5874 = vand.u32 %v5558, 4294901760
        %5875 = vmatmul.f32.gmra.mxu0 %v5874
        %v5876 = vpop.f32.mrf.mxu0
        %v5877 = vadd.f32 %v5810, %v5876
        %v5878 = vand.u32 %v5561, 4294901760
        %5879 = vmatmul.f32.gmra.mxu0 %v5878
        %v5880 = vpop.f32.mrf.mxu0
        %v5881 = vadd.f32 %v5816, %v5880
        %v5882 = vand.u32 %v5564, 4294901760
        %5883 = vmatmul.f32.gmra.mxu0 %v5882
        %v5884 = vpop.f32.mrf.mxu0
        %v5885 = vadd.f32 %v5822, %v5884
        %v5886 = vand.u32 %v5567, 4294901760
        %5887 = vmatmul.f32.gmra.mxu0 %v5886
        %v5888 = vpop.f32.mrf.mxu0
        %v5889 = vadd.f32 %v5828, %v5888
        %v5890 = vand.u32 %v5570, 4294901760
        %5891 = vmatmul.f32.gmra.mxu0 %v5890
        %v5892 = vpop.f32.mrf.mxu0
        %v5893 = vadd.f32 %v5834, %v5892
        %v5894 = vand.u32 %v5573, 4294901760
        %5895 = vmatmul.f32.gmra.mxu0 %v5894
        %v5896 = vpop.f32.mrf.mxu0
        %v5897 = vadd.f32 %v5840, %v5896
        %v5898 = vand.u32 %v5576, 4294901760
        %5899 = vmatmul.f32.gmra.mxu0 %v5898
        %v5900 = vpop.f32.mrf.mxu0
        %v5901 = vadd.f32 %v5846, %v5900
        %5902 = vdwg.mxu0
        %5903 = vmatpush.msra.mxu0 0.0
        %5904 = vmatpush.msra.mxu0 0.0
        %5905 = vmatpush.msra.mxu0 0.0
        %5906 = vmatpush.msra.mxu0 0.0
        %5907 = vmatpush.msra.mxu0 0.0
        %5908 = vmatpush.msra.mxu0 0.0
        %5909 = vmatpush.msra.mxu0 0.0
        %5910 = vmatpush.msra.mxu0 0.0
        %5911 = vmatpush.msra.mxu0 0.0
        %5912 = vmatpush.msra.mxu0 0.0
        %5913 = vmatpush.msra.mxu0 0.0
        %5914 = vmatpush.msra.mxu0 0.0
        %5915 = vmatpush.msra.mxu0 0.0
        %5916 = vmatpush.msra.mxu0 0.0
        %v5917 = vand.u32 %v5551, 4294901760
        %5918 = vmatpush.msra.mxu0 %v5917
        %v5919 = vand.u32 %v5550, 4294901760
        %5920 = vmatpush.msra.mxu0 %v5919
        %v5921 = vand.u32 %v5555, 4294901760
        %5922 = vmatmul.f32.gmra.mxu0 %v5921
        %v5923 = vpop.f32.mrf.mxu0
        %v5924 = vadd.f32 %v5873, %v5923
        %v5925 = vand.u32 %v5558, 4294901760
        %5926 = vmatmul.f32.gmra.mxu0 %v5925
        %v5927 = vpop.f32.mrf.mxu0
        %v5928 = vadd.f32 %v5877, %v5927
        %v5929 = vand.u32 %v5561, 4294901760
        %5930 = vmatmul.f32.gmra.mxu0 %v5929
        %v5931 = vpop.f32.mrf.mxu0
        %v5932 = vadd.f32 %v5881, %v5931
        %v5933 = vand.u32 %v5564, 4294901760
        %5934 = vmatmul.f32.gmra.mxu0 %v5933
        %v5935 = vpop.f32.mrf.mxu0
        %v5936 = vadd.f32 %v5885, %v5935
        %v5937 = vand.u32 %v5567, 4294901760
        %5938 = vmatmul.f32.gmra.mxu0 %v5937
        %v5939 = vpop.f32.mrf.mxu0
        %v5940 = vadd.f32 %v5889, %v5939
        %v5941 = vand.u32 %v5570, 4294901760
        %5942 = vmatmul.f32.gmra.mxu0 %v5941
        %v5943 = vpop.f32.mrf.mxu0
        %v5944 = vadd.f32 %v5893, %v5943
        %v5945 = vand.u32 %v5573, 4294901760
        %5946 = vmatmul.f32.gmra.mxu0 %v5945
        %v5947 = vpop.f32.mrf.mxu0
        %v5948 = vadd.f32 %v5897, %v5947
        %v5949 = vand.u32 %v5576, 4294901760
        %5950 = vmatmul.f32.gmra.mxu0 %v5949
        %v5951 = vpop.f32.mrf.mxu0
        %v5952 = vadd.f32 %v5901, %v5951
        %5953 = vdwg.mxu0
        %vm5954 = vcmp.gt.f32.partialorder %v5924, 0.0
        %vm5955 = vcmp.gt.f32.partialorder %v5928, 0.0
        %vm5956 = vcmp.gt.f32.partialorder %v5932, 0.0
        %vm5957 = vcmp.gt.f32.partialorder %v5936, 0.0
        %vm5958 = vcmp.gt.f32.partialorder %v5940, 0.0
        %vm5959 = vcmp.gt.f32.partialorder %v5944, 0.0
        %vm5960 = vcmp.gt.f32.partialorder %v5948, 0.0
        %vm5961 = vcmp.gt.f32.partialorder %v5952, 0.0
        %v5962 = vmin.f32 %v5924, 0.0
        %v5963 = vmin.f32 %v5928, 0.0
        %v5964 = vmin.f32 %v5932, 0.0
        %v5965 = vmin.f32 %v5936, 0.0
        %v5966 = vmin.f32 %v5940, 0.0
        %v5967 = vmin.f32 %v5944, 0.0
        %v5968 = vmin.f32 %v5948, 0.0
        %v5969 = vmin.f32 %v5952, 0.0
        %v5970 = vmul.f32 %v5962, 1.442695
        %v5971 = vpow.pop %v5970
        %v5972 = vmul.f32 %v5963, 1.442695
        %v5973 = vpow.pop %v5972
        %v5974 = vmul.f32 %v5964, 1.442695
        %v5975 = vpow.pop %v5974
        %v5976 = vmul.f32 %v5965, 1.442695
        %v5977 = vpow.pop %v5976
        %v5978 = vmul.f32 %v5966, 1.442695
        %v5979 = vpow.pop %v5978
        %v5980 = vmul.f32 %v5967, 1.442695
        %v5981 = vpow.pop %v5980
        %v5982 = vmul.f32 %v5968, 1.442695
        %v5983 = vpow.pop %v5982
        %v5984 = vmul.f32 %v5969, 1.442695
        %v5985 = vpow.pop %v5984
        %v5986 = vsub.f32 %v5971, 1.0
        %v5987 = vsub.f32 %v5973, 1.0
        %v5988 = vsub.f32 %v5975, 1.0
        %v5989 = vsub.f32 %v5977, 1.0
        %v5990 = vsub.f32 %v5979, 1.0
        %v5991 = vsub.f32 %v5981, 1.0
        %v5992 = vsub.f32 %v5983, 1.0
        %v5993 = vsub.f32 %v5985, 1.0
        %v5994 = vsel %vm5954, %v5924, %v5986
        %v5995 = vsel %vm5955, %v5928, %v5987
        %v5996 = vsel %vm5956, %v5932, %v5988
        %v5997 = vsel %vm5957, %v5936, %v5989
        %v5998 = vsel %vm5958, %v5940, %v5990
        %v5999 = vsel %vm5959, %v5944, %v5991
        %v6000 = vsel %vm5960, %v5948, %v5992
        %v6001 = vsel %vm5961, %v5952, %v5993
        %vm6002 = vcmp.gt.f32.partialorder %v5472, 0.0
        %vm6003 = vcmp.gt.f32.partialorder %v5476, 0.0
        %vm6004 = vcmp.gt.f32.partialorder %v5480, 0.0
        %vm6005 = vcmp.gt.f32.partialorder %v5484, 0.0
        %vm6006 = vcmp.gt.f32.partialorder %v5488, 0.0
        %vm6007 = vcmp.gt.f32.partialorder %v5492, 0.0
        %vm6008 = vcmp.gt.f32.partialorder %v5496, 0.0
        %vm6009 = vcmp.gt.f32.partialorder %v5500, 0.0
        %v6010 = vmin.f32 %v5472, 0.0
        %v6011 = vmin.f32 %v5476, 0.0
        %v6012 = vmin.f32 %v5480, 0.0
        %v6013 = vmin.f32 %v5484, 0.0
        %v6014 = vmin.f32 %v5488, 0.0
        %v6015 = vmin.f32 %v5492, 0.0
        %v6016 = vmin.f32 %v5496, 0.0
        %v6017 = vmin.f32 %v5500, 0.0
        %v6018 = vmul.f32 %v6010, 1.442695
        %v6019 = vpow.pop %v6018
        %v6020 = vmul.f32 %v6011, 1.442695
        %v6021 = vpow.pop %v6020
        %v6022 = vmul.f32 %v6012, 1.442695
        %v6023 = vpow.pop %v6022
        %v6024 = vmul.f32 %v6013, 1.442695
        %v6025 = vpow.pop %v6024
        %v6026 = vmul.f32 %v6014, 1.442695
        %v6027 = vpow.pop %v6026
        %v6028 = vmul.f32 %v6015, 1.442695
        %v6029 = vpow.pop %v6028
        %v6030 = vmul.f32 %v6016, 1.442695
        %v6031 = vpow.pop %v6030
        %v6032 = vmul.f32 %v6017, 1.442695
        %v6033 = vpow.pop %v6032
        %v6034 = vsub.f32 %v6019, 1.0
        %v6035 = vsub.f32 %v6021, 1.0
        %v6036 = vsub.f32 %v6023, 1.0
        %v6037 = vsub.f32 %v6025, 1.0
        %v6038 = vsub.f32 %v6027, 1.0
        %v6039 = vsub.f32 %v6029, 1.0
        %v6040 = vsub.f32 %v6031, 1.0
        %v6041 = vsub.f32 %v6033, 1.0
        %v6042 = vsel %vm6002, %v5472, %v6034
        %v6043 = vsel %vm6003, %v5476, %v6035
        %v6044 = vsel %vm6004, %v5480, %v6036
        %v6045 = vsel %vm6005, %v5484, %v6037
        %v6046 = vsel %vm6006, %v5488, %v6038
        %v6047 = vsel %vm6007, %v5492, %v6039
        %v6048 = vsel %vm6008, %v5496, %v6040
        %v6049 = vsel %vm6009, %v5500, %v6041
        %v6050 = vld [vmem:[#allocation2 + $0xf8] sm:$0xff]
        %v6051 = vld [vmem:[#allocation2 + $0x100] sm:$0xff]
        %v6052 = vld [vmem:[#allocation2 + $0x108] sm:$0xff]
        %v6053 = vld [vmem:[#allocation2 + $0x110] sm:$0xff]
        %v6054 = vld [vmem:[#allocation2 + $0x118] sm:$0x1]
        %v6055 = vperm.slane %v6054, 0
        %v6057 = vsel %vm5075, %v6042, 0
        %v6060 = vsel %vm5075, %v6043, 0
        %v6063 = vsel %vm5075, %v6044, 0
        %v6066 = vsel %vm5075, %v6045, 0
        %v6069 = vsel %vm5075, %v6046, 0
        %v6072 = vsel %vm5075, %v6047, 0
        %v6075 = vsel %vm5075, %v6048, 0
        %v6078 = vsel %vm5075, %v6049, 0
        %6080 = vmatpush.msra.mxu0 0.0
        %6081 = vmatpush.msra.mxu0 0.0
        %6082 = vmatpush.msra.mxu0 0.0
        %6083 = vmatpush.msra.mxu0 0.0
        %6084 = vmatpush.msra.mxu0 0.0
        %6085 = vmatpush.msra.mxu0 0.0
        %6086 = vmatpush.msra.mxu0 0.0
        %6087 = vmatpush.msra.mxu0 0.0
        %6088 = vmatpush.msra.mxu0 0.0
        %6089 = vmatpush.msra.mxu0 0.0
        %6090 = vmatpush.msra.mxu0 0.0
        %6091 = vmatpush.msra.mxu0 0.0
        %v6092 = vand.u32 %v6053, 4294901760
        %6093 = vmatpush.msra.mxu0 %v6092
        %v6094 = vand.u32 %v6052, 4294901760
        %6095 = vmatpush.msra.mxu0 %v6094
        %v6096 = vand.u32 %v6051, 4294901760
        %6097 = vmatpush.msra.mxu0 %v6096
        %v6098 = vand.u32 %v6050, 4294901760
        %6099 = vmatpush.msra.mxu0 %v6098
        %v6100 = vand.u32 %v6057, 4294901760
        %v6101 = vsub.f32 %v6057, %v6100
        %v6102 = vand.u32 %v6101, 4294901760
        %v6103 = vsub.f32 %v6101, %v6102
        %v6104 = vand.u32 %v6103, 4294901760
        %6105 = vmatmul.f32.gmra.mxu0 %v6104
        %v6106 = vpop.f32.mrf.mxu0
        %v6107 = vadd.f32 %v6055, %v6106
        %v6108 = vand.u32 %v6060, 4294901760
        %v6109 = vsub.f32 %v6060, %v6108
        %v6110 = vand.u32 %v6109, 4294901760
        %v6111 = vsub.f32 %v6109, %v6110
        %v6112 = vand.u32 %v6111, 4294901760
        %6113 = vmatmul.f32.gmra.mxu0 %v6112
        %v6114 = vpop.f32.mrf.mxu0
        %v6115 = vadd.f32 %v6055, %v6114
        %v6116 = vand.u32 %v6063, 4294901760
        %v6117 = vsub.f32 %v6063, %v6116
        %v6118 = vand.u32 %v6117, 4294901760
        %v6119 = vsub.f32 %v6117, %v6118
        %v6120 = vand.u32 %v6119, 4294901760
        %6121 = vmatmul.f32.gmra.mxu0 %v6120
        %v6122 = vpop.f32.mrf.mxu0
        %v6123 = vadd.f32 %v6055, %v6122
        %v6124 = vand.u32 %v6066, 4294901760
        %v6125 = vsub.f32 %v6066, %v6124
        %v6126 = vand.u32 %v6125, 4294901760
        %v6127 = vsub.f32 %v6125, %v6126
        %v6128 = vand.u32 %v6127, 4294901760
        %6129 = vmatmul.f32.gmra.mxu0 %v6128
        %v6130 = vpop.f32.mrf.mxu0
        %v6131 = vadd.f32 %v6055, %v6130
        %v6132 = vand.u32 %v6069, 4294901760
        %v6133 = vsub.f32 %v6069, %v6132
        %v6134 = vand.u32 %v6133, 4294901760
        %v6135 = vsub.f32 %v6133, %v6134
        %v6136 = vand.u32 %v6135, 4294901760
        %6137 = vmatmul.f32.gmra.mxu0 %v6136
        %v6138 = vpop.f32.mrf.mxu0
        %v6139 = vadd.f32 %v6055, %v6138
        %v6140 = vand.u32 %v6072, 4294901760
        %v6141 = vsub.f32 %v6072, %v6140
        %v6142 = vand.u32 %v6141, 4294901760
        %v6143 = vsub.f32 %v6141, %v6142
        %v6144 = vand.u32 %v6143, 4294901760
        %6145 = vmatmul.f32.gmra.mxu0 %v6144
        %v6146 = vpop.f32.mrf.mxu0
        %v6147 = vadd.f32 %v6055, %v6146
        %v6148 = vand.u32 %v6075, 4294901760
        %v6149 = vsub.f32 %v6075, %v6148
        %v6150 = vand.u32 %v6149, 4294901760
        %v6151 = vsub.f32 %v6149, %v6150
        %v6152 = vand.u32 %v6151, 4294901760
        %6153 = vmatmul.f32.gmra.mxu0 %v6152
        %v6154 = vpop.f32.mrf.mxu0
        %v6155 = vadd.f32 %v6055, %v6154
        %v6156 = vand.u32 %v6078, 4294901760
        %v6157 = vsub.f32 %v6078, %v6156
        %v6158 = vand.u32 %v6157, 4294901760
        %v6159 = vsub.f32 %v6157, %v6158
        %v6160 = vand.u32 %v6159, 4294901760
        %6161 = vmatmul.f32.gmra.mxu0 %v6160
        %v6162 = vpop.f32.mrf.mxu0
        %v6163 = vadd.f32 %v6055, %v6162
        %6164 = vdwg.mxu0
        %6165 = vmatpush.msra.mxu0 0.0
        %6166 = vmatpush.msra.mxu0 0.0
        %6167 = vmatpush.msra.mxu0 0.0
        %6168 = vmatpush.msra.mxu0 0.0
        %6169 = vmatpush.msra.mxu0 0.0
        %6170 = vmatpush.msra.mxu0 0.0
        %6171 = vmatpush.msra.mxu0 0.0
        %6172 = vmatpush.msra.mxu0 0.0
        %6173 = vmatpush.msra.mxu0 0.0
        %6174 = vmatpush.msra.mxu0 0.0
        %6175 = vmatpush.msra.mxu0 0.0
        %6176 = vmatpush.msra.mxu0 0.0
        %v6177 = vand.u32 %v6053, 4294901760
        %v6178 = vsub.f32 %v6053, %v6177
        %v6179 = vand.u32 %v6178, 4294901760
        %v6180 = vsub.f32 %v6178, %v6179
        %v6181 = vand.u32 %v6180, 4294901760
        %6182 = vmatpush.msra.mxu0 %v6181
        %v6183 = vand.u32 %v6052, 4294901760
        %v6184 = vsub.f32 %v6052, %v6183
        %v6185 = vand.u32 %v6184, 4294901760
        %v6186 = vsub.f32 %v6184, %v6185
        %v6187 = vand.u32 %v6186, 4294901760
        %6188 = vmatpush.msra.mxu0 %v6187
        %v6189 = vand.u32 %v6051, 4294901760
        %v6190 = vsub.f32 %v6051, %v6189
        %v6191 = vand.u32 %v6190, 4294901760
        %v6192 = vsub.f32 %v6190, %v6191
        %v6193 = vand.u32 %v6192, 4294901760
        %6194 = vmatpush.msra.mxu0 %v6193
        %v6195 = vand.u32 %v6050, 4294901760
        %v6196 = vsub.f32 %v6050, %v6195
        %v6197 = vand.u32 %v6196, 4294901760
        %v6198 = vsub.f32 %v6196, %v6197
        %v6199 = vand.u32 %v6198, 4294901760
        %6200 = vmatpush.msra.mxu0 %v6199
        %v6201 = vand.u32 %v6057, 4294901760
        %6202 = vmatmul.f32.gmra.mxu0 %v6201
        %v6203 = vpop.f32.mrf.mxu0
        %v6204 = vadd.f32 %v6107, %v6203
        %v6205 = vand.u32 %v6060, 4294901760
        %6206 = vmatmul.f32.gmra.mxu0 %v6205
        %v6207 = vpop.f32.mrf.mxu0
        %v6208 = vadd.f32 %v6115, %v6207
        %v6209 = vand.u32 %v6063, 4294901760
        %6210 = vmatmul.f32.gmra.mxu0 %v6209
        %v6211 = vpop.f32.mrf.mxu0
        %v6212 = vadd.f32 %v6123, %v6211
        %v6213 = vand.u32 %v6066, 4294901760
        %6214 = vmatmul.f32.gmra.mxu0 %v6213
        %v6215 = vpop.f32.mrf.mxu0
        %v6216 = vadd.f32 %v6131, %v6215
        %v6217 = vand.u32 %v6069, 4294901760
        %6218 = vmatmul.f32.gmra.mxu0 %v6217
        %v6219 = vpop.f32.mrf.mxu0
        %v6220 = vadd.f32 %v6139, %v6219
        %v6221 = vand.u32 %v6072, 4294901760
        %6222 = vmatmul.f32.gmra.mxu0 %v6221
        %v6223 = vpop.f32.mrf.mxu0
        %v6224 = vadd.f32 %v6147, %v6223
        %v6225 = vand.u32 %v6075, 4294901760
        %6226 = vmatmul.f32.gmra.mxu0 %v6225
        %v6227 = vpop.f32.mrf.mxu0
        %v6228 = vadd.f32 %v6155, %v6227
        %v6229 = vand.u32 %v6078, 4294901760
        %6230 = vmatmul.f32.gmra.mxu0 %v6229
        %v6231 = vpop.f32.mrf.mxu0
        %v6232 = vadd.f32 %v6163, %v6231
        %6233 = vdwg.mxu0
        %6234 = vmatpush.msra.mxu0 0.0
        %6235 = vmatpush.msra.mxu0 0.0
        %6236 = vmatpush.msra.mxu0 0.0
        %6237 = vmatpush.msra.mxu0 0.0
        %6238 = vmatpush.msra.mxu0 0.0
        %6239 = vmatpush.msra.mxu0 0.0
        %6240 = vmatpush.msra.mxu0 0.0
        %6241 = vmatpush.msra.mxu0 0.0
        %6242 = vmatpush.msra.mxu0 0.0
        %6243 = vmatpush.msra.mxu0 0.0
        %6244 = vmatpush.msra.mxu0 0.0
        %6245 = vmatpush.msra.mxu0 0.0
        %v6246 = vand.u32 %v6053, 4294901760
        %v6247 = vsub.f32 %v6053, %v6246
        %6248 = vmatpush.msra.mxu0 %v6247
        %v6249 = vand.u32 %v6052, 4294901760
        %v6250 = vsub.f32 %v6052, %v6249
        %6251 = vmatpush.msra.mxu0 %v6250
        %v6252 = vand.u32 %v6051, 4294901760
        %v6253 = vsub.f32 %v6051, %v6252
        %6254 = vmatpush.msra.mxu0 %v6253
        %v6255 = vand.u32 %v6050, 4294901760
        %v6256 = vsub.f32 %v6050, %v6255
        %6257 = vmatpush.msra.mxu0 %v6256
        %v6258 = vand.u32 %v6057, 4294901760
        %v6259 = vsub.f32 %v6057, %v6258
        %6260 = vmatmul.f32.gmra.mxu0 %v6259
        %v6261 = vpop.f32.mrf.mxu0
        %v6262 = vadd.f32 %v6204, %v6261
        %v6263 = vand.u32 %v6060, 4294901760
        %v6264 = vsub.f32 %v6060, %v6263
        %6265 = vmatmul.f32.gmra.mxu0 %v6264
        %v6266 = vpop.f32.mrf.mxu0
        %v6267 = vadd.f32 %v6208, %v6266
        %v6268 = vand.u32 %v6063, 4294901760
        %v6269 = vsub.f32 %v6063, %v6268
        %6270 = vmatmul.f32.gmra.mxu0 %v6269
        %v6271 = vpop.f32.mrf.mxu0
        %v6272 = vadd.f32 %v6212, %v6271
        %v6273 = vand.u32 %v6066, 4294901760
        %v6274 = vsub.f32 %v6066, %v6273
        %6275 = vmatmul.f32.gmra.mxu0 %v6274
        %v6276 = vpop.f32.mrf.mxu0
        %v6277 = vadd.f32 %v6216, %v6276
        %v6278 = vand.u32 %v6069, 4294901760
        %v6279 = vsub.f32 %v6069, %v6278
        %6280 = vmatmul.f32.gmra.mxu0 %v6279
        %v6281 = vpop.f32.mrf.mxu0
        %v6282 = vadd.f32 %v6220, %v6281
        %v6283 = vand.u32 %v6072, 4294901760
        %v6284 = vsub.f32 %v6072, %v6283
        %6285 = vmatmul.f32.gmra.mxu0 %v6284
        %v6286 = vpop.f32.mrf.mxu0
        %v6287 = vadd.f32 %v6224, %v6286
        %v6288 = vand.u32 %v6075, 4294901760
        %v6289 = vsub.f32 %v6075, %v6288
        %6290 = vmatmul.f32.gmra.mxu0 %v6289
        %v6291 = vpop.f32.mrf.mxu0
        %v6292 = vadd.f32 %v6228, %v6291
        %v6293 = vand.u32 %v6078, 4294901760
        %v6294 = vsub.f32 %v6078, %v6293
        %6295 = vmatmul.f32.gmra.mxu0 %v6294
        %v6296 = vpop.f32.mrf.mxu0
        %v6297 = vadd.f32 %v6232, %v6296
        %6298 = vdwg.mxu0
        %6299 = vmatpush.msra.mxu0 0.0
        %6300 = vmatpush.msra.mxu0 0.0
        %6301 = vmatpush.msra.mxu0 0.0
        %6302 = vmatpush.msra.mxu0 0.0
        %6303 = vmatpush.msra.mxu0 0.0
        %6304 = vmatpush.msra.mxu0 0.0
        %6305 = vmatpush.msra.mxu0 0.0
        %6306 = vmatpush.msra.mxu0 0.0
        %6307 = vmatpush.msra.mxu0 0.0
        %6308 = vmatpush.msra.mxu0 0.0
        %6309 = vmatpush.msra.mxu0 0.0
        %6310 = vmatpush.msra.mxu0 0.0
        %v6311 = vand.u32 %v6053, 4294901760
        %6312 = vmatpush.msra.mxu0 %v6311
        %v6313 = vand.u32 %v6052, 4294901760
        %6314 = vmatpush.msra.mxu0 %v6313
        %v6315 = vand.u32 %v6051, 4294901760
        %6316 = vmatpush.msra.mxu0 %v6315
        %v6317 = vand.u32 %v6050, 4294901760
        %6318 = vmatpush.msra.mxu0 %v6317
        %v6319 = vand.u32 %v6057, 4294901760
        %v6320 = vsub.f32 %v6057, %v6319
        %v6321 = vand.u32 %v6320, 4294901760
        %6322 = vmatmul.f32.gmra.mxu0 %v6321
        %v6323 = vpop.f32.mrf.mxu0
        %v6324 = vadd.f32 %v6262, %v6323
        %v6325 = vand.u32 %v6060, 4294901760
        %v6326 = vsub.f32 %v6060, %v6325
        %v6327 = vand.u32 %v6326, 4294901760
        %6328 = vmatmul.f32.gmra.mxu0 %v6327
        %v6329 = vpop.f32.mrf.mxu0
        %v6330 = vadd.f32 %v6267, %v6329
        %v6331 = vand.u32 %v6063, 4294901760
        %v6332 = vsub.f32 %v6063, %v6331
        %v6333 = vand.u32 %v6332, 4294901760
        %6334 = vmatmul.f32.gmra.mxu0 %v6333
        %v6335 = vpop.f32.mrf.mxu0
        %v6336 = vadd.f32 %v6272, %v6335
        %v6337 = vand.u32 %v6066, 4294901760
        %v6338 = vsub.f32 %v6066, %v6337
        %v6339 = vand.u32 %v6338, 4294901760
        %6340 = vmatmul.f32.gmra.mxu0 %v6339
        %v6341 = vpop.f32.mrf.mxu0
        %v6342 = vadd.f32 %v6277, %v6341
        %v6343 = vand.u32 %v6069, 4294901760
        %v6344 = vsub.f32 %v6069, %v6343
        %v6345 = vand.u32 %v6344, 4294901760
        %6346 = vmatmul.f32.gmra.mxu0 %v6345
        %v6347 = vpop.f32.mrf.mxu0
        %v6348 = vadd.f32 %v6282, %v6347
        %v6349 = vand.u32 %v6072, 4294901760
        %v6350 = vsub.f32 %v6072, %v6349
        %v6351 = vand.u32 %v6350, 4294901760
        %6352 = vmatmul.f32.gmra.mxu0 %v6351
        %v6353 = vpop.f32.mrf.mxu0
        %v6354 = vadd.f32 %v6287, %v6353
        %v6355 = vand.u32 %v6075, 4294901760
        %v6356 = vsub.f32 %v6075, %v6355
        %v6357 = vand.u32 %v6356, 4294901760
        %6358 = vmatmul.f32.gmra.mxu0 %v6357
        %v6359 = vpop.f32.mrf.mxu0
        %v6360 = vadd.f32 %v6292, %v6359
        %v6361 = vand.u32 %v6078, 4294901760
        %v6362 = vsub.f32 %v6078, %v6361
        %v6363 = vand.u32 %v6362, 4294901760
        %6364 = vmatmul.f32.gmra.mxu0 %v6363
        %v6365 = vpop.f32.mrf.mxu0
        %v6366 = vadd.f32 %v6297, %v6365
        %6367 = vdwg.mxu0
        %6368 = vmatpush.msra.mxu0 0.0
        %6369 = vmatpush.msra.mxu0 0.0
        %6370 = vmatpush.msra.mxu0 0.0
        %6371 = vmatpush.msra.mxu0 0.0
        %6372 = vmatpush.msra.mxu0 0.0
        %6373 = vmatpush.msra.mxu0 0.0
        %6374 = vmatpush.msra.mxu0 0.0
        %6375 = vmatpush.msra.mxu0 0.0
        %6376 = vmatpush.msra.mxu0 0.0
        %6377 = vmatpush.msra.mxu0 0.0
        %6378 = vmatpush.msra.mxu0 0.0
        %6379 = vmatpush.msra.mxu0 0.0
        %v6380 = vand.u32 %v6053, 4294901760
        %v6381 = vsub.f32 %v6053, %v6380
        %v6382 = vand.u32 %v6381, 4294901760
        %6383 = vmatpush.msra.mxu0 %v6382
        %v6384 = vand.u32 %v6052, 4294901760
        %v6385 = vsub.f32 %v6052, %v6384
        %v6386 = vand.u32 %v6385, 4294901760
        %6387 = vmatpush.msra.mxu0 %v6386
        %v6388 = vand.u32 %v6051, 4294901760
        %v6389 = vsub.f32 %v6051, %v6388
        %v6390 = vand.u32 %v6389, 4294901760
        %6391 = vmatpush.msra.mxu0 %v6390
        %v6392 = vand.u32 %v6050, 4294901760
        %v6393 = vsub.f32 %v6050, %v6392
        %v6394 = vand.u32 %v6393, 4294901760
        %6395 = vmatpush.msra.mxu0 %v6394
        %v6396 = vand.u32 %v6057, 4294901760
        %6397 = vmatmul.f32.gmra.mxu0 %v6396
        %v6398 = vpop.f32.mrf.mxu0
        %v6399 = vadd.f32 %v6324, %v6398
        %v6400 = vand.u32 %v6060, 4294901760
        %6401 = vmatmul.f32.gmra.mxu0 %v6400
        %v6402 = vpop.f32.mrf.mxu0
        %v6403 = vadd.f32 %v6330, %v6402
        %v6404 = vand.u32 %v6063, 4294901760
        %6405 = vmatmul.f32.gmra.mxu0 %v6404
        %v6406 = vpop.f32.mrf.mxu0
        %v6407 = vadd.f32 %v6336, %v6406
        %v6408 = vand.u32 %v6066, 4294901760
        %6409 = vmatmul.f32.gmra.mxu0 %v6408
        %v6410 = vpop.f32.mrf.mxu0
        %v6411 = vadd.f32 %v6342, %v6410
        %v6412 = vand.u32 %v6069, 4294901760
        %6413 = vmatmul.f32.gmra.mxu0 %v6412
        %v6414 = vpop.f32.mrf.mxu0
        %v6415 = vadd.f32 %v6348, %v6414
        %v6416 = vand.u32 %v6072, 4294901760
        %6417 = vmatmul.f32.gmra.mxu0 %v6416
        %v6418 = vpop.f32.mrf.mxu0
        %v6419 = vadd.f32 %v6354, %v6418
        %v6420 = vand.u32 %v6075, 4294901760
        %6421 = vmatmul.f32.gmra.mxu0 %v6420
        %v6422 = vpop.f32.mrf.mxu0
        %v6423 = vadd.f32 %v6360, %v6422
        %v6424 = vand.u32 %v6078, 4294901760
        %6425 = vmatmul.f32.gmra.mxu0 %v6424
        %v6426 = vpop.f32.mrf.mxu0
        %v6427 = vadd.f32 %v6366, %v6426
        %6428 = vdwg.mxu0
        %6429 = vmatpush.msra.mxu0 0.0
        %6430 = vmatpush.msra.mxu0 0.0
        %6431 = vmatpush.msra.mxu0 0.0
        %6432 = vmatpush.msra.mxu0 0.0
        %6433 = vmatpush.msra.mxu0 0.0
        %6434 = vmatpush.msra.mxu0 0.0
        %6435 = vmatpush.msra.mxu0 0.0
        %6436 = vmatpush.msra.mxu0 0.0
        %6437 = vmatpush.msra.mxu0 0.0
        %6438 = vmatpush.msra.mxu0 0.0
        %6439 = vmatpush.msra.mxu0 0.0
        %6440 = vmatpush.msra.mxu0 0.0
        %v6441 = vand.u32 %v6053, 4294901760
        %6442 = vmatpush.msra.mxu0 %v6441
        %v6443 = vand.u32 %v6052, 4294901760
        %6444 = vmatpush.msra.mxu0 %v6443
        %v6445 = vand.u32 %v6051, 4294901760
        %6446 = vmatpush.msra.mxu0 %v6445
        %v6447 = vand.u32 %v6050, 4294901760
        %6448 = vmatpush.msra.mxu0 %v6447
        %v6449 = vand.u32 %v6057, 4294901760
        %6450 = vmatmul.f32.gmra.mxu0 %v6449
        %v6451 = vpop.f32.mrf.mxu0
        %v6452 = vadd.f32 %v6399, %v6451
        %v6453 = vand.u32 %v6060, 4294901760
        %6454 = vmatmul.f32.gmra.mxu0 %v6453
        %v6455 = vpop.f32.mrf.mxu0
        %v6456 = vadd.f32 %v6403, %v6455
        %v6457 = vand.u32 %v6063, 4294901760
        %6458 = vmatmul.f32.gmra.mxu0 %v6457
        %v6459 = vpop.f32.mrf.mxu0
        %v6460 = vadd.f32 %v6407, %v6459
        %v6461 = vand.u32 %v6066, 4294901760
        %6462 = vmatmul.f32.gmra.mxu0 %v6461
        %v6463 = vpop.f32.mrf.mxu0
        %v6464 = vadd.f32 %v6411, %v6463
        %v6465 = vand.u32 %v6069, 4294901760
        %6466 = vmatmul.f32.gmra.mxu0 %v6465
        %v6467 = vpop.f32.mrf.mxu0
        %v6468 = vadd.f32 %v6415, %v6467
        %v6469 = vand.u32 %v6072, 4294901760
        %6470 = vmatmul.f32.gmra.mxu0 %v6469
        %v6471 = vpop.f32.mrf.mxu0
        %v6472 = vadd.f32 %v6419, %v6471
        %v6473 = vand.u32 %v6075, 4294901760
        %6474 = vmatmul.f32.gmra.mxu0 %v6473
        %v6475 = vpop.f32.mrf.mxu0
        %v6476 = vadd.f32 %v6423, %v6475
        %v6477 = vand.u32 %v6078, 4294901760
        %6478 = vmatmul.f32.gmra.mxu0 %v6477
        %v6479 = vpop.f32.mrf.mxu0
        %v6480 = vadd.f32 %v6427, %v6479
        %6481 = vdwg.mxu0
        %vm6482 = vcmp.gt.f32.partialorder %v6452, 0.0
        %vm6483 = vcmp.gt.f32.partialorder %v6456, 0.0
        %vm6484 = vcmp.gt.f32.partialorder %v6460, 0.0
        %vm6485 = vcmp.gt.f32.partialorder %v6464, 0.0
        %vm6486 = vcmp.gt.f32.partialorder %v6468, 0.0
        %vm6487 = vcmp.gt.f32.partialorder %v6472, 0.0
        %vm6488 = vcmp.gt.f32.partialorder %v6476, 0.0
        %vm6489 = vcmp.gt.f32.partialorder %v6480, 0.0
        %v6490 = vmin.f32 %v6452, 0.0
        %v6491 = vmin.f32 %v6456, 0.0
        %v6492 = vmin.f32 %v6460, 0.0
        %v6493 = vmin.f32 %v6464, 0.0
        %v6494 = vmin.f32 %v6468, 0.0
        %v6495 = vmin.f32 %v6472, 0.0
        %v6496 = vmin.f32 %v6476, 0.0
        %v6497 = vmin.f32 %v6480, 0.0
        %v6498 = vmul.f32 %v6490, 1.442695
        %v6499 = vpow.pop %v6498
        %v6500 = vmul.f32 %v6491, 1.442695
        %v6501 = vpow.pop %v6500
        %v6502 = vmul.f32 %v6492, 1.442695
        %v6503 = vpow.pop %v6502
        %v6504 = vmul.f32 %v6493, 1.442695
        %v6505 = vpow.pop %v6504
        %v6506 = vmul.f32 %v6494, 1.442695
        %v6507 = vpow.pop %v6506
        %v6508 = vmul.f32 %v6495, 1.442695
        %v6509 = vpow.pop %v6508
        %v6510 = vmul.f32 %v6496, 1.442695
        %v6511 = vpow.pop %v6510
        %v6512 = vmul.f32 %v6497, 1.442695
        %v6513 = vpow.pop %v6512
        %v6514 = vsub.f32 %v6499, 1.0
        %v6515 = vsub.f32 %v6501, 1.0
        %v6516 = vsub.f32 %v6503, 1.0
        %v6517 = vsub.f32 %v6505, 1.0
        %v6518 = vsub.f32 %v6507, 1.0
        %v6519 = vsub.f32 %v6509, 1.0
        %v6520 = vsub.f32 %v6511, 1.0
        %v6521 = vsub.f32 %v6513, 1.0
        %v6522 = vsel %vm6482, %v6452, %v6514
        %v6523 = vsel %vm6483, %v6456, %v6515
        %v6524 = vsel %vm6484, %v6460, %v6516
        %v6525 = vsel %vm6485, %v6464, %v6517
        %v6526 = vsel %vm6486, %v6468, %v6518
        %v6527 = vsel %vm6487, %v6472, %v6519
        %v6528 = vsel %vm6488, %v6476, %v6520
        %v6529 = vsel %vm6489, %v6480, %v6521
        %v6530 = vadd.f32 %v5994, %v6522
        %v6531 = vadd.f32 %v5995, %v6523
        %v6532 = vadd.f32 %v5996, %v6524
        %v6533 = vadd.f32 %v5997, %v6525
        %v6534 = vadd.f32 %v5998, %v6526
        %v6535 = vadd.f32 %v5999, %v6527
        %v6536 = vadd.f32 %v6000, %v6528
        %v6537 = vadd.f32 %v6001, %v6529
        %vm6538 = vcmp.gt.f32.partialorder %v6530, 0.0
        %vm6539 = vcmp.gt.f32.partialorder %v6531, 0.0
        %vm6540 = vcmp.gt.f32.partialorder %v6532, 0.0
        %vm6541 = vcmp.gt.f32.partialorder %v6533, 0.0
        %vm6542 = vcmp.gt.f32.partialorder %v6534, 0.0
        %vm6543 = vcmp.gt.f32.partialorder %v6535, 0.0
        %vm6544 = vcmp.gt.f32.partialorder %v6536, 0.0
        %vm6545 = vcmp.gt.f32.partialorder %v6537, 0.0
        %v6546 = vmin.f32 %v6530, 0.0
        %v6547 = vmin.f32 %v6531, 0.0
        %v6548 = vmin.f32 %v6532, 0.0
        %v6549 = vmin.f32 %v6533, 0.0
        %v6550 = vmin.f32 %v6534, 0.0
        %v6551 = vmin.f32 %v6535, 0.0
        %v6552 = vmin.f32 %v6536, 0.0
        %v6553 = vmin.f32 %v6537, 0.0
        %v6554 = vmul.f32 %v6546, 1.442695
        %v6555 = vpow.pop %v6554
        %v6556 = vmul.f32 %v6547, 1.442695
        %v6557 = vpow.pop %v6556
        %v6558 = vmul.f32 %v6548, 1.442695
        %v6559 = vpow.pop %v6558
        %v6560 = vmul.f32 %v6549, 1.442695
        %v6561 = vpow.pop %v6560
        %v6562 = vmul.f32 %v6550, 1.442695
        %v6563 = vpow.pop %v6562
        %v6564 = vmul.f32 %v6551, 1.442695
        %v6565 = vpow.pop %v6564
        %v6566 = vmul.f32 %v6552, 1.442695
        %v6567 = vpow.pop %v6566
        %v6568 = vmul.f32 %v6553, 1.442695
        %v6569 = vpow.pop %v6568
        %v6570 = vsub.f32 %v6555, 1.0
        %v6571 = vsub.f32 %v6557, 1.0
        %v6572 = vsub.f32 %v6559, 1.0
        %v6573 = vsub.f32 %v6561, 1.0
        %v6574 = vsub.f32 %v6563, 1.0
        %v6575 = vsub.f32 %v6565, 1.0
        %v6576 = vsub.f32 %v6567, 1.0
        %v6577 = vsub.f32 %v6569, 1.0
        %v6578 = vsel %vm6538, %v6530, %v6570
        %v6579 = vsel %vm6539, %v6531, %v6571
        %v6580 = vsel %vm6540, %v6532, %v6572
        %v6581 = vsel %vm6541, %v6533, %v6573
        %v6582 = vsel %vm6542, %v6534, %v6574
        %v6583 = vsel %vm6543, %v6535, %v6575
        %v6584 = vsel %vm6544, %v6536, %v6576
        %v6585 = vsel %vm6545, %v6537, %v6577
        %v6586 = vld [vmem:[#allocation2 + $0x120] sm:$0xff]
        %v6587 = vld [vmem:[#allocation2 + $0x128] sm:$0xff]
        %v6588 = vld [vmem:[#allocation2 + $0x130] sm:$0x1]
        %v6589 = vperm.slane %v6588, 0
        %v6591 = vsel %vm501, %v6578, 0
        %v6594 = vsel %vm501, %v6579, 0
        %v6597 = vsel %vm501, %v6580, 0
        %v6600 = vsel %vm501, %v6581, 0
        %v6603 = vsel %vm501, %v6582, 0
        %v6606 = vsel %vm501, %v6583, 0
        %v6609 = vsel %vm501, %v6584, 0
        %v6612 = vsel %vm501, %v6585, 0
        %6614 = vmatpush.msra.mxu0 0.0
        %6615 = vmatpush.msra.mxu0 0.0
        %6616 = vmatpush.msra.mxu0 0.0
        %6617 = vmatpush.msra.mxu0 0.0
        %6618 = vmatpush.msra.mxu0 0.0
        %6619 = vmatpush.msra.mxu0 0.0
        %6620 = vmatpush.msra.mxu0 0.0
        %6621 = vmatpush.msra.mxu0 0.0
        %6622 = vmatpush.msra.mxu0 0.0
        %6623 = vmatpush.msra.mxu0 0.0
        %6624 = vmatpush.msra.mxu0 0.0
        %6625 = vmatpush.msra.mxu0 0.0
        %6626 = vmatpush.msra.mxu0 0.0
        %6627 = vmatpush.msra.mxu0 0.0
        %v6628 = vand.u32 %v6587, 4294901760
        %6629 = vmatpush.msra.mxu0 %v6628
        %v6630 = vand.u32 %v6586, 4294901760
        %6631 = vmatpush.msra.mxu0 %v6630
        %v6632 = vand.u32 %v6591, 4294901760
        %v6633 = vsub.f32 %v6591, %v6632
        %v6634 = vand.u32 %v6633, 4294901760
        %v6635 = vsub.f32 %v6633, %v6634
        %v6636 = vand.u32 %v6635, 4294901760
        %6637 = vmatmul.f32.gmra.mxu0 %v6636
        %v6638 = vpop.f32.mrf.mxu0
        %v6639 = vadd.f32 %v6589, %v6638
        %v6640 = vand.u32 %v6594, 4294901760
        %v6641 = vsub.f32 %v6594, %v6640
        %v6642 = vand.u32 %v6641, 4294901760
        %v6643 = vsub.f32 %v6641, %v6642
        %v6644 = vand.u32 %v6643, 4294901760
        %6645 = vmatmul.f32.gmra.mxu0 %v6644
        %v6646 = vpop.f32.mrf.mxu0
        %v6647 = vadd.f32 %v6589, %v6646
        %v6648 = vand.u32 %v6597, 4294901760
        %v6649 = vsub.f32 %v6597, %v6648
        %v6650 = vand.u32 %v6649, 4294901760
        %v6651 = vsub.f32 %v6649, %v6650
        %v6652 = vand.u32 %v6651, 4294901760
        %6653 = vmatmul.f32.gmra.mxu0 %v6652
        %v6654 = vpop.f32.mrf.mxu0
        %v6655 = vadd.f32 %v6589, %v6654
        %v6656 = vand.u32 %v6600, 4294901760
        %v6657 = vsub.f32 %v6600, %v6656
        %v6658 = vand.u32 %v6657, 4294901760
        %v6659 = vsub.f32 %v6657, %v6658
        %v6660 = vand.u32 %v6659, 4294901760
        %6661 = vmatmul.f32.gmra.mxu0 %v6660
        %v6662 = vpop.f32.mrf.mxu0
        %v6663 = vadd.f32 %v6589, %v6662
        %v6664 = vand.u32 %v6603, 4294901760
        %v6665 = vsub.f32 %v6603, %v6664
        %v6666 = vand.u32 %v6665, 4294901760
        %v6667 = vsub.f32 %v6665, %v6666
        %v6668 = vand.u32 %v6667, 4294901760
        %6669 = vmatmul.f32.gmra.mxu0 %v6668
        %v6670 = vpop.f32.mrf.mxu0
        %v6671 = vadd.f32 %v6589, %v6670
        %v6672 = vand.u32 %v6606, 4294901760
        %v6673 = vsub.f32 %v6606, %v6672
        %v6674 = vand.u32 %v6673, 4294901760
        %v6675 = vsub.f32 %v6673, %v6674
        %v6676 = vand.u32 %v6675, 4294901760
        %6677 = vmatmul.f32.gmra.mxu0 %v6676
        %v6678 = vpop.f32.mrf.mxu0
        %v6679 = vadd.f32 %v6589, %v6678
        %v6680 = vand.u32 %v6609, 4294901760
        %v6681 = vsub.f32 %v6609, %v6680
        %v6682 = vand.u32 %v6681, 4294901760
        %v6683 = vsub.f32 %v6681, %v6682
        %v6684 = vand.u32 %v6683, 4294901760
        %6685 = vmatmul.f32.gmra.mxu0 %v6684
        %v6686 = vpop.f32.mrf.mxu0
        %v6687 = vadd.f32 %v6589, %v6686
        %v6688 = vand.u32 %v6612, 4294901760
        %v6689 = vsub.f32 %v6612, %v6688
        %v6690 = vand.u32 %v6689, 4294901760
        %v6691 = vsub.f32 %v6689, %v6690
        %v6692 = vand.u32 %v6691, 4294901760
        %6693 = vmatmul.f32.gmra.mxu0 %v6692
        %v6694 = vpop.f32.mrf.mxu0
        %v6695 = vadd.f32 %v6589, %v6694
        %6696 = vdwg.mxu0
        %6697 = vmatpush.msra.mxu0 0.0
        %6698 = vmatpush.msra.mxu0 0.0
        %6699 = vmatpush.msra.mxu0 0.0
        %6700 = vmatpush.msra.mxu0 0.0
        %6701 = vmatpush.msra.mxu0 0.0
        %6702 = vmatpush.msra.mxu0 0.0
        %6703 = vmatpush.msra.mxu0 0.0
        %6704 = vmatpush.msra.mxu0 0.0
        %6705 = vmatpush.msra.mxu0 0.0
        %6706 = vmatpush.msra.mxu0 0.0
        %6707 = vmatpush.msra.mxu0 0.0
        %6708 = vmatpush.msra.mxu0 0.0
        %6709 = vmatpush.msra.mxu0 0.0
        %6710 = vmatpush.msra.mxu0 0.0
        %v6711 = vand.u32 %v6587, 4294901760
        %v6712 = vsub.f32 %v6587, %v6711
        %v6713 = vand.u32 %v6712, 4294901760
        %v6714 = vsub.f32 %v6712, %v6713
        %v6715 = vand.u32 %v6714, 4294901760
        %6716 = vmatpush.msra.mxu0 %v6715
        %v6717 = vand.u32 %v6586, 4294901760
        %v6718 = vsub.f32 %v6586, %v6717
        %v6719 = vand.u32 %v6718, 4294901760
        %v6720 = vsub.f32 %v6718, %v6719
        %v6721 = vand.u32 %v6720, 4294901760
        %6722 = vmatpush.msra.mxu0 %v6721
        %v6723 = vand.u32 %v6591, 4294901760
        %6724 = vmatmul.f32.gmra.mxu0 %v6723
        %v6725 = vpop.f32.mrf.mxu0
        %v6726 = vadd.f32 %v6639, %v6725
        %v6727 = vand.u32 %v6594, 4294901760
        %6728 = vmatmul.f32.gmra.mxu0 %v6727
        %v6729 = vpop.f32.mrf.mxu0
        %v6730 = vadd.f32 %v6647, %v6729
        %v6731 = vand.u32 %v6597, 4294901760
        %6732 = vmatmul.f32.gmra.mxu0 %v6731
        %v6733 = vpop.f32.mrf.mxu0
        %v6734 = vadd.f32 %v6655, %v6733
        %v6735 = vand.u32 %v6600, 4294901760
        %6736 = vmatmul.f32.gmra.mxu0 %v6735
        %v6737 = vpop.f32.mrf.mxu0
        %v6738 = vadd.f32 %v6663, %v6737
        %v6739 = vand.u32 %v6603, 4294901760
        %6740 = vmatmul.f32.gmra.mxu0 %v6739
        %v6741 = vpop.f32.mrf.mxu0
        %v6742 = vadd.f32 %v6671, %v6741
        %v6743 = vand.u32 %v6606, 4294901760
        %6744 = vmatmul.f32.gmra.mxu0 %v6743
        %v6745 = vpop.f32.mrf.mxu0
        %v6746 = vadd.f32 %v6679, %v6745
        %v6747 = vand.u32 %v6609, 4294901760
        %6748 = vmatmul.f32.gmra.mxu0 %v6747
        %v6749 = vpop.f32.mrf.mxu0
        %v6750 = vadd.f32 %v6687, %v6749
        %v6751 = vand.u32 %v6612, 4294901760
        %6752 = vmatmul.f32.gmra.mxu0 %v6751
        %v6753 = vpop.f32.mrf.mxu0
        %v6754 = vadd.f32 %v6695, %v6753
        %6755 = vdwg.mxu0
        %6756 = vmatpush.msra.mxu0 0.0
        %6757 = vmatpush.msra.mxu0 0.0
        %6758 = vmatpush.msra.mxu0 0.0
        %6759 = vmatpush.msra.mxu0 0.0
        %6760 = vmatpush.msra.mxu0 0.0
        %6761 = vmatpush.msra.mxu0 0.0
        %6762 = vmatpush.msra.mxu0 0.0
        %6763 = vmatpush.msra.mxu0 0.0
        %6764 = vmatpush.msra.mxu0 0.0
        %6765 = vmatpush.msra.mxu0 0.0
        %6766 = vmatpush.msra.mxu0 0.0
        %6767 = vmatpush.msra.mxu0 0.0
        %6768 = vmatpush.msra.mxu0 0.0
        %6769 = vmatpush.msra.mxu0 0.0
        %v6770 = vand.u32 %v6587, 4294901760
        %v6771 = vsub.f32 %v6587, %v6770
        %6772 = vmatpush.msra.mxu0 %v6771
        %v6773 = vand.u32 %v6586, 4294901760
        %v6774 = vsub.f32 %v6586, %v6773
        %6775 = vmatpush.msra.mxu0 %v6774
        %v6776 = vand.u32 %v6591, 4294901760
        %v6777 = vsub.f32 %v6591, %v6776
        %6778 = vmatmul.f32.gmra.mxu0 %v6777
        %v6779 = vpop.f32.mrf.mxu0
        %v6780 = vadd.f32 %v6726, %v6779
        %v6781 = vand.u32 %v6594, 4294901760
        %v6782 = vsub.f32 %v6594, %v6781
        %6783 = vmatmul.f32.gmra.mxu0 %v6782
        %v6784 = vpop.f32.mrf.mxu0
        %v6785 = vadd.f32 %v6730, %v6784
        %v6786 = vand.u32 %v6597, 4294901760
        %v6787 = vsub.f32 %v6597, %v6786
        %6788 = vmatmul.f32.gmra.mxu0 %v6787
        %v6789 = vpop.f32.mrf.mxu0
        %v6790 = vadd.f32 %v6734, %v6789
        %v6791 = vand.u32 %v6600, 4294901760
        %v6792 = vsub.f32 %v6600, %v6791
        %6793 = vmatmul.f32.gmra.mxu0 %v6792
        %v6794 = vpop.f32.mrf.mxu0
        %v6795 = vadd.f32 %v6738, %v6794
        %v6796 = vand.u32 %v6603, 4294901760
        %v6797 = vsub.f32 %v6603, %v6796
        %6798 = vmatmul.f32.gmra.mxu0 %v6797
        %v6799 = vpop.f32.mrf.mxu0
        %v6800 = vadd.f32 %v6742, %v6799
        %v6801 = vand.u32 %v6606, 4294901760
        %v6802 = vsub.f32 %v6606, %v6801
        %6803 = vmatmul.f32.gmra.mxu0 %v6802
        %v6804 = vpop.f32.mrf.mxu0
        %v6805 = vadd.f32 %v6746, %v6804
        %v6806 = vand.u32 %v6609, 4294901760
        %v6807 = vsub.f32 %v6609, %v6806
        %6808 = vmatmul.f32.gmra.mxu0 %v6807
        %v6809 = vpop.f32.mrf.mxu0
        %v6810 = vadd.f32 %v6750, %v6809
        %v6811 = vand.u32 %v6612, 4294901760
        %v6812 = vsub.f32 %v6612, %v6811
        %6813 = vmatmul.f32.gmra.mxu0 %v6812
        %v6814 = vpop.f32.mrf.mxu0
        %v6815 = vadd.f32 %v6754, %v6814
        %6816 = vdwg.mxu0
        %6817 = vmatpush.msra.mxu0 0.0
        %6818 = vmatpush.msra.mxu0 0.0
        %6819 = vmatpush.msra.mxu0 0.0
        %6820 = vmatpush.msra.mxu0 0.0
        %6821 = vmatpush.msra.mxu0 0.0
        %6822 = vmatpush.msra.mxu0 0.0
        %6823 = vmatpush.msra.mxu0 0.0
        %6824 = vmatpush.msra.mxu0 0.0
        %6825 = vmatpush.msra.mxu0 0.0
        %6826 = vmatpush.msra.mxu0 0.0
        %6827 = vmatpush.msra.mxu0 0.0
        %6828 = vmatpush.msra.mxu0 0.0
        %6829 = vmatpush.msra.mxu0 0.0
        %6830 = vmatpush.msra.mxu0 0.0
        %v6831 = vand.u32 %v6587, 4294901760
        %6832 = vmatpush.msra.mxu0 %v6831
        %v6833 = vand.u32 %v6586, 4294901760
        %6834 = vmatpush.msra.mxu0 %v6833
        %v6835 = vand.u32 %v6591, 4294901760
        %v6836 = vsub.f32 %v6591, %v6835
        %v6837 = vand.u32 %v6836, 4294901760
        %6838 = vmatmul.f32.gmra.mxu0 %v6837
        %v6839 = vpop.f32.mrf.mxu0
        %v6840 = vadd.f32 %v6780, %v6839
        %v6841 = vand.u32 %v6594, 4294901760
        %v6842 = vsub.f32 %v6594, %v6841
        %v6843 = vand.u32 %v6842, 4294901760
        %6844 = vmatmul.f32.gmra.mxu0 %v6843
        %v6845 = vpop.f32.mrf.mxu0
        %v6846 = vadd.f32 %v6785, %v6845
        %v6847 = vand.u32 %v6597, 4294901760
        %v6848 = vsub.f32 %v6597, %v6847
        %v6849 = vand.u32 %v6848, 4294901760
        %6850 = vmatmul.f32.gmra.mxu0 %v6849
        %v6851 = vpop.f32.mrf.mxu0
        %v6852 = vadd.f32 %v6790, %v6851
        %v6853 = vand.u32 %v6600, 4294901760
        %v6854 = vsub.f32 %v6600, %v6853
        %v6855 = vand.u32 %v6854, 4294901760
        %6856 = vmatmul.f32.gmra.mxu0 %v6855
        %v6857 = vpop.f32.mrf.mxu0
        %v6858 = vadd.f32 %v6795, %v6857
        %v6859 = vand.u32 %v6603, 4294901760
        %v6860 = vsub.f32 %v6603, %v6859
        %v6861 = vand.u32 %v6860, 4294901760
        %6862 = vmatmul.f32.gmra.mxu0 %v6861
        %v6863 = vpop.f32.mrf.mxu0
        %v6864 = vadd.f32 %v6800, %v6863
        %v6865 = vand.u32 %v6606, 4294901760
        %v6866 = vsub.f32 %v6606, %v6865
        %v6867 = vand.u32 %v6866, 4294901760
        %6868 = vmatmul.f32.gmra.mxu0 %v6867
        %v6869 = vpop.f32.mrf.mxu0
        %v6870 = vadd.f32 %v6805, %v6869
        %v6871 = vand.u32 %v6609, 4294901760
        %v6872 = vsub.f32 %v6609, %v6871
        %v6873 = vand.u32 %v6872, 4294901760
        %6874 = vmatmul.f32.gmra.mxu0 %v6873
        %v6875 = vpop.f32.mrf.mxu0
        %v6876 = vadd.f32 %v6810, %v6875
        %v6877 = vand.u32 %v6612, 4294901760
        %v6878 = vsub.f32 %v6612, %v6877
        %v6879 = vand.u32 %v6878, 4294901760
        %6880 = vmatmul.f32.gmra.mxu0 %v6879
        %v6881 = vpop.f32.mrf.mxu0
        %v6882 = vadd.f32 %v6815, %v6881
        %6883 = vdwg.mxu0
        %6884 = vmatpush.msra.mxu0 0.0
        %6885 = vmatpush.msra.mxu0 0.0
        %6886 = vmatpush.msra.mxu0 0.0
        %6887 = vmatpush.msra.mxu0 0.0
        %6888 = vmatpush.msra.mxu0 0.0
        %6889 = vmatpush.msra.mxu0 0.0
        %6890 = vmatpush.msra.mxu0 0.0
        %6891 = vmatpush.msra.mxu0 0.0
        %6892 = vmatpush.msra.mxu0 0.0
        %6893 = vmatpush.msra.mxu0 0.0
        %6894 = vmatpush.msra.mxu0 0.0
        %6895 = vmatpush.msra.mxu0 0.0
        %6896 = vmatpush.msra.mxu0 0.0
        %6897 = vmatpush.msra.mxu0 0.0
        %v6898 = vand.u32 %v6587, 4294901760
        %v6899 = vsub.f32 %v6587, %v6898
        %v6900 = vand.u32 %v6899, 4294901760
        %6901 = vmatpush.msra.mxu0 %v6900
        %v6902 = vand.u32 %v6586, 4294901760
        %v6903 = vsub.f32 %v6586, %v6902
        %v6904 = vand.u32 %v6903, 4294901760
        %6905 = vmatpush.msra.mxu0 %v6904
        %v6906 = vand.u32 %v6591, 4294901760
        %6907 = vmatmul.f32.gmra.mxu0 %v6906
        %v6908 = vpop.f32.mrf.mxu0
        %v6909 = vadd.f32 %v6840, %v6908
        %v6910 = vand.u32 %v6594, 4294901760
        %6911 = vmatmul.f32.gmra.mxu0 %v6910
        %v6912 = vpop.f32.mrf.mxu0
        %v6913 = vadd.f32 %v6846, %v6912
        %v6914 = vand.u32 %v6597, 4294901760
        %6915 = vmatmul.f32.gmra.mxu0 %v6914
        %v6916 = vpop.f32.mrf.mxu0
        %v6917 = vadd.f32 %v6852, %v6916
        %v6918 = vand.u32 %v6600, 4294901760
        %6919 = vmatmul.f32.gmra.mxu0 %v6918
        %v6920 = vpop.f32.mrf.mxu0
        %v6921 = vadd.f32 %v6858, %v6920
        %v6922 = vand.u32 %v6603, 4294901760
        %6923 = vmatmul.f32.gmra.mxu0 %v6922
        %v6924 = vpop.f32.mrf.mxu0
        %v6925 = vadd.f32 %v6864, %v6924
        %v6926 = vand.u32 %v6606, 4294901760
        %6927 = vmatmul.f32.gmra.mxu0 %v6926
        %v6928 = vpop.f32.mrf.mxu0
        %v6929 = vadd.f32 %v6870, %v6928
        %v6930 = vand.u32 %v6609, 4294901760
        %6931 = vmatmul.f32.gmra.mxu0 %v6930
        %v6932 = vpop.f32.mrf.mxu0
        %v6933 = vadd.f32 %v6876, %v6932
        %v6934 = vand.u32 %v6612, 4294901760
        %6935 = vmatmul.f32.gmra.mxu0 %v6934
        %v6936 = vpop.f32.mrf.mxu0
        %v6937 = vadd.f32 %v6882, %v6936
        %6938 = vdwg.mxu0
        %6939 = vmatpush.msra.mxu0 0.0
        %6940 = vmatpush.msra.mxu0 0.0
        %6941 = vmatpush.msra.mxu0 0.0
        %6942 = vmatpush.msra.mxu0 0.0
        %6943 = vmatpush.msra.mxu0 0.0
        %6944 = vmatpush.msra.mxu0 0.0
        %6945 = vmatpush.msra.mxu0 0.0
        %6946 = vmatpush.msra.mxu0 0.0
        %6947 = vmatpush.msra.mxu0 0.0
        %6948 = vmatpush.msra.mxu0 0.0
        %6949 = vmatpush.msra.mxu0 0.0
        %6950 = vmatpush.msra.mxu0 0.0
        %6951 = vmatpush.msra.mxu0 0.0
        %6952 = vmatpush.msra.mxu0 0.0
        %v6953 = vand.u32 %v6587, 4294901760
        %6954 = vmatpush.msra.mxu0 %v6953
        %v6955 = vand.u32 %v6586, 4294901760
        %6956 = vmatpush.msra.mxu0 %v6955
        %v6957 = vand.u32 %v6591, 4294901760
        %6958 = vmatmul.f32.gmra.mxu0 %v6957
        %v6959 = vpop.f32.mrf.mxu0
        %v6960 = vadd.f32 %v6909, %v6959
        %v6961 = vand.u32 %v6594, 4294901760
        %6962 = vmatmul.f32.gmra.mxu0 %v6961
        %v6963 = vpop.f32.mrf.mxu0
        %v6964 = vadd.f32 %v6913, %v6963
        %v6965 = vand.u32 %v6597, 4294901760
        %6966 = vmatmul.f32.gmra.mxu0 %v6965
        %v6967 = vpop.f32.mrf.mxu0
        %v6968 = vadd.f32 %v6917, %v6967
        %v6969 = vand.u32 %v6600, 4294901760
        %6970 = vmatmul.f32.gmra.mxu0 %v6969
        %v6971 = vpop.f32.mrf.mxu0
        %v6972 = vadd.f32 %v6921, %v6971
        %v6973 = vand.u32 %v6603, 4294901760
        %6974 = vmatmul.f32.gmra.mxu0 %v6973
        %v6975 = vpop.f32.mrf.mxu0
        %v6976 = vadd.f32 %v6925, %v6975
        %v6977 = vand.u32 %v6606, 4294901760
        %6978 = vmatmul.f32.gmra.mxu0 %v6977
        %v6979 = vpop.f32.mrf.mxu0
        %v6980 = vadd.f32 %v6929, %v6979
        %v6981 = vand.u32 %v6609, 4294901760
        %6982 = vmatmul.f32.gmra.mxu0 %v6981
        %v6983 = vpop.f32.mrf.mxu0
        %v6984 = vadd.f32 %v6933, %v6983
        %v6985 = vand.u32 %v6612, 4294901760
        %6986 = vmatmul.f32.gmra.mxu0 %v6985
        %v6987 = vpop.f32.mrf.mxu0
        %v6988 = vadd.f32 %v6937, %v6987
        %6989 = vdwg.mxu0
        %vm6990 = vcmp.gt.f32.partialorder %v6960, 0.0
        %vm6991 = vcmp.gt.f32.partialorder %v6964, 0.0
        %vm6992 = vcmp.gt.f32.partialorder %v6968, 0.0
        %vm6993 = vcmp.gt.f32.partialorder %v6972, 0.0
        %vm6994 = vcmp.gt.f32.partialorder %v6976, 0.0
        %vm6995 = vcmp.gt.f32.partialorder %v6980, 0.0
        %vm6996 = vcmp.gt.f32.partialorder %v6984, 0.0
        %vm6997 = vcmp.gt.f32.partialorder %v6988, 0.0
        %v6998 = vmin.f32 %v6960, 0.0
        %v6999 = vmin.f32 %v6964, 0.0
        %v7000 = vmin.f32 %v6968, 0.0
        %v7001 = vmin.f32 %v6972, 0.0
        %v7002 = vmin.f32 %v6976, 0.0
        %v7003 = vmin.f32 %v6980, 0.0
        %v7004 = vmin.f32 %v6984, 0.0
        %v7005 = vmin.f32 %v6988, 0.0
        %v7006 = vmul.f32 %v6998, 1.442695
        %v7007 = vpow.pop %v7006
        %v7008 = vmul.f32 %v6999, 1.442695
        %v7009 = vpow.pop %v7008
        %v7010 = vmul.f32 %v7000, 1.442695
        %v7011 = vpow.pop %v7010
        %v7012 = vmul.f32 %v7001, 1.442695
        %v7013 = vpow.pop %v7012
        %v7014 = vmul.f32 %v7002, 1.442695
        %v7015 = vpow.pop %v7014
        %v7016 = vmul.f32 %v7003, 1.442695
        %v7017 = vpow.pop %v7016
        %v7018 = vmul.f32 %v7004, 1.442695
        %v7019 = vpow.pop %v7018
        %v7020 = vmul.f32 %v7005, 1.442695
        %v7021 = vpow.pop %v7020
        %v7022 = vsub.f32 %v7007, 1.0
        %v7023 = vsub.f32 %v7009, 1.0
        %v7024 = vsub.f32 %v7011, 1.0
        %v7025 = vsub.f32 %v7013, 1.0
        %v7026 = vsub.f32 %v7015, 1.0
        %v7027 = vsub.f32 %v7017, 1.0
        %v7028 = vsub.f32 %v7019, 1.0
        %v7029 = vsub.f32 %v7021, 1.0
        %v7030 = vsel %vm6990, %v6960, %v7022
        %v7031 = vsel %vm6991, %v6964, %v7023
        %v7032 = vsel %vm6992, %v6968, %v7024
        %v7033 = vsel %vm6993, %v6972, %v7025
        %v7034 = vsel %vm6994, %v6976, %v7026
        %v7035 = vsel %vm6995, %v6980, %v7027
        %v7036 = vsel %vm6996, %v6984, %v7028
        %v7037 = vsel %vm6997, %v6988, %v7029
        %7038 = vst.msk [vmem:[%s195] sm:$0xff] %vm501, %v7030
        %7039 = vst.msk [vmem:[%s195 + $0x8] sm:$0xff] %vm501, %v7031
        %7040 = vst.msk [vmem:[%s195 + $0x10] sm:$0xff] %vm501, %v7032
        %7041 = vst.msk [vmem:[%s195 + $0x18] sm:$0xff] %vm501, %v7033
        %7042 = vst.msk [vmem:[%s195 + $0x20] sm:$0xff] %vm501, %v7034
        %7043 = vst.msk [vmem:[%s195 + $0x28] sm:$0xff] %vm501, %v7035
        %7044 = vst.msk [vmem:[%s195 + $0x30] sm:$0xff] %vm501, %v7036
        %7045 = vst.msk [vmem:[%s195 + $0x38] sm:$0xff] %vm501, %v7037
        %s7046 = sand.u32 %s99, 1
        %s7047 = scalar_lea.sflag [#allocation4], %s7046
        %s7048 = sand.u32 %s99, 1
        %s7049 = smul.addr %s7048, 64
        %s7050 = scalar_lea.vmem [#allocation5], %s7049
        // Predicated region
        $region37: #{forward.1} parent=31 // pred_check
          %p7051 = pneg %p109
        $region38: #{forward.1} parent=31 // pred_check_branch
          %7053 = sbr.rel (%p7051) target = $region40
        $region39: #{forward.1} parent=31 // pred_region
          %7055 = vsyncadd %s7047, 0
          %s7056 = smul.addr %s18, 8
          %s7057 = smul.addr %s7056, 8
          %s7058 = scalar_lea.hbm %s3, %s7057
          %s7059 = sshll.u32 %s7050, 4
          %s7060 = int_to_ptr.vmem [resolvable:$true] %s7059
          %s7061 = sshll.u32 %s7058, 4
          %s7062 = int_to_ptr.hbm [resolvable:$true] %s7061
          %7067 = dma.vmem_to_hbm [thread:$0]  %s7060, 1024, %s7062, %s7047, 128, 128, 8
        $region40: #{forward.1} parent=31 // pred_fallthru
          _
      $region32: #{forward.1} parent=5 // pred_fallthru
        _
      %p7068 = scmp.le.s32.totalorder 2, %s13
      // Predicated region
      $region41: #{forward.1} parent=5 // pred_check
        %p7069 = pneg %p7068
      $region42: #{forward.1} parent=5 // pred_check_branch
        %7071 = sbr.rel (%p7069) target = $region44
      $region43: #{forward.1} parent=5 // pred_region
        %s7072 = ssub.s32 %s13, 2
        // Predicated region
        $region45: #{forward.1} parent=43 // pred_check
          %p7073 = pneg %p115
        $region46: #{forward.1} parent=43 // pred_check_branch
          %7075 = sbr.rel (%p7073) target = $region48
        $region47: #{forward.1} parent=43 // pred_region
          %s7076 = sand.u32 %s100, 1
          %s7077 = scalar_lea.sflag [#allocation4], %s7076
          %s7078 = sand.u32 %s100, 1
          %s7079 = smul.addr %s7078, 64
          %s7080 = scalar_lea.vmem [#allocation5], %s7079
          %7082 = dma.done %s7077, 1024
        $region48: #{forward.1} parent=43 // pred_fallthru
          _
      $region44: #{forward.1} parent=5 // pred_fallthru
        _
    $region6: #{forward.1} parent=1 // loop_footer
      %s17 = sadd.s32 1, %s13
    $region7: #{forward.1} parent=1 // loop_footer_branch
      %12 = sbr.rel target = $region3
    $region8: #{forward.1} parent=1 // loop_exit
      _
    %7083 = vsyncpa [#allocation3], 1
    %s7084 = scalar_lea.sflag [#allocation3], 1
    %7085 = vsyncpa %s7084, 1
    %7086 = vsyncpa [#allocation4], 1
    %s7087 = scalar_lea.sflag [#allocation4], 1
    %7088 = vsyncpa %s7087, 1

</llo_original>
